<compile_context>
chip_gen: v7x
topology: tpu7x:2x2x1
jax: 0.10.0
libtpu: 0.0.40
codegen_flags: <defaults>
</compile_context>

<pallas_src>
import functools

import jax
import jax.numpy as jnp
from jax.experimental import pallas as pl
from jax.experimental.pallas import tpu as pltpu

_LANE = 128


def _round_up(x, m):
    return (x + m - 1) // m * m


# ----------------------------------------------------------------------------
# Pallas kernel: grouped  out[g] = PReLU( W[g] @ P[g] + b[g] )
#   P[g] : (Kp, Mp)  bf16   (lane dim = Mp, multiple of 128)
#   W[g] : (Cout, Kp) bf16
#   b[g] : (Cout, 1)  f32   (broadcast along lanes)
#   out  : (Cout, Mp) bf16/f32 (lane-dense stores)
# ----------------------------------------------------------------------------
def _gconv_kernel(alpha_ref, p_ref, w_ref, b_ref, o_ref, *, apply_prelu):
    acc = jnp.dot(w_ref[...], p_ref[...], preferred_element_type=jnp.float32)
    acc = acc + b_ref[...]
    if apply_prelu:
        a = alpha_ref[pl.program_id(0)]          # scalar slope from SMEM
        acc = jnp.where(acc >= 0.0, acc, a * acc)
    o_ref[...] = acc.astype(o_ref.dtype)


# ----------------------------------------------------------------------------
# im2col in the lane-dense orientation (no transposes needed).
# ----------------------------------------------------------------------------
def _im2col(xg, k, stride, padding):
    """xg: (G, C, N, D, H, W) -> (G, C*k^3, N*Do*Ho*Wo); K is C-major/tap-minor
    to match PyTorch's (Cout, Cin, kd, kh, kw) weight flattening."""
    G, C, N, D, H, W = xg.shape
    s, p = stride, padding
    xp = jnp.pad(xg, ((0, 0), (0, 0), (0, 0), (p, p), (p, p), (p, p)))
    Do = (D + 2 * p - k) // s + 1
    Ho = (H + 2 * p - k) // s + 1
    Wo = (W + 2 * p - k) // s + 1
    cols = []
    for i in range(k):
        for j in range(k):
            for l in range(k):
                cols.append(xp[:, :, :,
                               i:i + s * (Do - 1) + 1:s,
                               j:j + s * (Ho - 1) + 1:s,
                               l:l + s * (Wo - 1) + 1:s])
    pat = jnp.stack(cols, axis=2)                       # (G, C, T, N, Do, Ho, Wo)
    pat = pat.reshape(G, C * k ** 3, N * Do * Ho * Wo)  # (G, K, M) contiguous
    return pat, (Do, Ho, Wo)


# ----------------------------------------------------------------------------
# Grouped Conv3d / ConvTranspose3d, bias+PReLU fused, one pallas_call each.
# ----------------------------------------------------------------------------
def grouped_conv3d_prelu(xg, w, b, alpha, *, stride, padding, apply_prelu,
                         x_shared=False, out_dtype=jnp.bfloat16):
    """xg: (Gx, Cin, N, D, H, W); w: (G, Cout, Cin, k, k, k);
    b: (G, Cout); alpha: (G,). If x_shared, Gx==1 and all groups read it."""
    G, Cout, Cin, k = w.shape[0], w.shape[1], w.shape[2], w.shape[3]
    N = xg.shape[2]

    pat, (Do, Ho, Wo) = _im2col(xg.astype(jnp.bfloat16), k, stride, padding)
    K = Cin * k ** 3
    M = N * Do * Ho * Wo
    Kp = _round_up(K, _LANE)
    Mp = _round_up(M, _LANE)

    pat = jnp.pad(pat, ((0, 0), (0, Kp - K), (0, Mp - M)))
    wmat = jnp.pad(w.reshape(G, Cout, K).astype(jnp.bfloat16),
                   ((0, 0), (0, 0), (0, Kp - K)))
    b3 = b.reshape(G, Cout, 1).astype(jnp.float32)
    a1 = alpha.reshape(G).astype(jnp.float32)

    p_map = (lambda g: (0, 0, 0)) if x_shared else (lambda g: (g, 0, 0))

    out = pl.pallas_call(
        functools.partial(_gconv_kernel, apply_prelu=apply_prelu),
        out_shape=jax.ShapeDtypeStruct((G, Cout, Mp), out_dtype),
        grid=(G,),
        in_specs=[
            pl.BlockSpec(memory_space=pltpu.MemorySpace.SMEM),       # alpha (G,)
            pl.BlockSpec((None, Kp, Mp), p_map),                     # patches
            pl.BlockSpec((None, Cout, Kp), lambda g: (g, 0, 0)),     # weights
            pl.BlockSpec((None, Cout, 1), lambda g: (g, 0, 0)),      # bias
        ],
        out_specs=pl.BlockSpec((None, Cout, Mp), lambda g: (g, 0, 0)),
        compiler_params=pltpu.CompilerParams(
            dimension_semantics=("parallel",)),
    )(a1, pat, wmat, b3)

    out = out[:, :, :M].reshape(G, Cout, N, Do, Ho, Wo)
    return out


def grouped_conv_transpose3d_prelu(xg, w, b, alpha, *, stride, padding,
                                   apply_prelu, x_shared=False,
                                   out_dtype=jnp.bfloat16):
    """xg: (Gx, Cin, N, D, H, W); w: (G, Cin, Cout, k, k, k) (PyTorch layout).
    Lowered to a stride-1 conv: zero-dilate by `stride`, pad by k-1-padding,
    spatially flip the weights and swap in/out channels."""
    Gx, Cin, N, D, H, W = xg.shape
    k = w.shape[3]
    s, p = stride, padding
    Dd, Hd, Wd = (D - 1) * s + 1, (H - 1) * s + 1, (W - 1) * s + 1
    xd = jnp.zeros((Gx, Cin, N, Dd, Hd, Wd), xg.dtype)
    xd = xd.at[:, :, :, ::s, ::s, ::s].set(xg)
    pe = k - 1 - p
    assert pe >= 0
    xdp = jnp.pad(xd, ((0, 0), (0, 0), (0, 0), (pe, pe), (pe, pe), (pe, pe)))
    we = jnp.flip(w, axis=(3, 4, 5)).transpose(0, 2, 1, 3, 4, 5)  # (G,Cout,Cin,k,k,k)
    return grouped_conv3d_prelu(xdp, we, b, alpha, stride=1, padding=0,
                                apply_prelu=apply_prelu, x_shared=x_shared,
                                out_dtype=out_dtype)


# ----------------------------------------------------------------------------
# Parameter construction (deterministic, synthetic).
# ----------------------------------------------------------------------------
def _conv_params(key, cin, cout, k):
    kw_, kb_ = jax.random.split(key)
    fan_in = cin * k ** 3
    w = jax.random.normal(kw_, (cout, cin, k, k, k), jnp.float32) / jnp.sqrt(fan_in)
    b = jax.random.normal(kb_, (cout,), jnp.float32) * 0.01
    return {"w": w, "b": b}


def _convT_params(key, cin, cout, k):
    kw_, kb_ = jax.random.split(key)
    fan_in = cin * k ** 3
    w = jax.random.normal(kw_, (cin, cout, k, k, k), jnp.float32) / jnp.sqrt(fan_in)
    b = jax.random.normal(kb_, (cout,), jnp.float32) * 0.01
    return {"w": w, "b": b}


def _prelu_param():
    return jnp.array(0.25, jnp.float32)   # PyTorch nn.PReLU() default


def make_encoder_params(key, cin, cout):
    ks = jax.random.split(key, 4)
    return {
        "conv_input": _conv_params(ks[0], cin, cout, 3),
        "conv_inblock1": _conv_params(ks[1], cout, cout, 3),
        "conv_inblock2": _conv_params(ks[2], cout, cout, 3),
        "conv_pooling": _conv_params(ks[3], cout, cout, 2),
        "prelu1": _prelu_param(), "prelu2": _prelu_param(),
        "prelu3": _prelu_param(), "prelu4": _prelu_param(),
    }


def make_decoder_params(key, cin, cout, pooling_filter):
    ks = jax.random.split(key, 4)
    return {
        "conv_unpooling": _convT_params(ks[0], cin, cin, pooling_filter),
        "conv_inblock1": _conv_params(ks[1], cin, cin, 3),
        "conv_inblock2": _conv_params(ks[2], cin, cin, 3),
        "conv_output": _conv_params(ks[3], cin, cout, 3),
        "prelu1": _prelu_param(), "prelu2": _prelu_param(),
        "prelu3": _prelu_param(), "prelu4": _prelu_param(),
    }


def _stack_trees(*trees):
    return jax.tree_util.tree_map(lambda *xs: jnp.stack(xs, axis=0), *trees)


def make_net_params(key, feature_num):
    ks = jax.random.split(key, 10)
    f = feature_num
    return {
        # moving / target encoders batched along G=2
        "encoder_1": _stack_trees(make_encoder_params(ks[0], 1, f),
                                  make_encoder_params(ks[1], 1, f)),
        "encoder_2": _stack_trees(make_encoder_params(ks[2], f, 2 * f),
                                  make_encoder_params(ks[3], f, 2 * f)),
        # x / y / z decoders batched along G=3
        "decoder_1": _stack_trees(make_decoder_params(ks[4], 4 * f, 2 * f, 2),
                                  make_decoder_params(ks[5], 4 * f, 2 * f, 2),
                                  make_decoder_params(ks[6], 4 * f, 2 * f, 2)),
        "decoder_2": _stack_trees(make_decoder_params(ks[7], 2 * f, 1, 3),
                                  make_decoder_params(ks[8], 2 * f, 1, 3),
                                  make_decoder_params(ks[9], 2 * f, 1, 3)),
    }


# ----------------------------------------------------------------------------
# Forward passes mirroring the PyTorch modules (use_dropout=False -> identity).
# ----------------------------------------------------------------------------
def encoder_forward(p, xg):
    xg = grouped_conv3d_prelu(xg, p["conv_input"]["w"], p["conv_input"]["b"],
                              p["prelu1"], stride=1, padding=1, apply_prelu=True)
    xg = grouped_conv3d_prelu(xg, p["conv_inblock1"]["w"], p["conv_inblock1"]["b"],
                              p["prelu2"], stride=1, padding=1, apply_prelu=True)
    xg = grouped_conv3d_prelu(xg, p["conv_inblock2"]["w"], p["conv_inblock2"]["b"],
                              p["prelu3"], stride=1, padding=1, apply_prelu=True)
    xg = grouped_conv3d_prelu(xg, p["conv_pooling"]["w"], p["conv_pooling"]["b"],
                              p["prelu4"], stride=2, padding=1, apply_prelu=True)
    return xg


def decoder_forward(p, xg, output_feature, x_shared=False):
    xg = grouped_conv_transpose3d_prelu(
        xg, p["conv_unpooling"]["w"], p["conv_unpooling"]["b"], p["prelu1"],
        stride=2, padding=1, apply_prelu=True, x_shared=x_shared)
    xg = grouped_conv3d_prelu(xg, p["conv_inblock1"]["w"], p["conv_inblock1"]["b"],
                              p["prelu2"], stride=1, padding=1, apply_prelu=True)
    xg = grouped_conv3d_prelu(xg, p["conv_inblock2"]["w"], p["conv_inblock2"]["b"],
                              p["prelu3"], stride=1, padding=1, apply_prelu=True)
    last_is_linear = (output_feature == 1)
    xg = grouped_conv3d_prelu(xg, p["conv_output"]["w"], p["conv_output"]["b"],
                              p["prelu4"], stride=1, padding=1,
                              apply_prelu=not last_is_linear,
                              out_dtype=(jnp.float32 if last_is_linear
                                         else jnp.bfloat16))
    return xg


def net_forward(params, x, feature_num):
    # x: (N, 2, D, H, W) NCDHW. torch.split(x, 1, 1) -> moving / target become
    # the two groups of the batched encoders (internal layout (G, C, N, D, H, W)).
    xg = x.transpose(1, 0, 2, 3, 4)[:, None]                 # (2, 1, N, D, H, W)
    e1 = encoder_forward(params["encoder_1"], xg)            # (2, f,  N, 5,5,5)
    e2 = encoder_forward(params["encoder_2"], e1)            # (2, 2f, N, 3,3,3)
    # torch.cat((moving, target), dim=1)
    comb = jnp.concatenate([e2[0], e2[1]], axis=0)[None]     # (1, 4f, N, 3,3,3)
    f2 = 2 * feature_num
    d1 = decoder_forward(params["decoder_1"], comb, f2, x_shared=True)   # (3,2f,N,4,4,4)
    d2 = decoder_forward(params["decoder_2"], d1, 1, x_shared=False)     # (3,1, N,7,7,7)
    out = d2[:, 0]                                            # (3, N, 7, 7, 7)
    return out.transpose(1, 0, 2, 3, 4)                       # (N, 3, 7, 7, 7)


if __name__ == "__main__":
    feature_num = 4
    key = jax.random.PRNGKey(0)
    k_params, k_x = jax.random.split(key)

    params = make_net_params(k_params, feature_num)
    # Input: (N=2, C=2 [moving, target], D=H=W=8), NCDHW like PyTorch.
    x = jax.random.normal(k_x, (2, 2, 8, 8, 8), jnp.float32)

    fwd = jax.jit(functools.partial(net_forward, feature_num=feature_num))
    out = fwd(params, x)
    out = jax.block_until_ready(out)

    assert out.shape == (2, 3, 7, 7, 7), out.shape
    assert out.dtype == jnp.float32, out.dtype
    assert jnp.all(jnp.isfinite(out))
    print("KERNEL_OK")
</pallas_src>

<mosaic_0001>
module attributes {stable_mosaic.version = 11 : i64} {
  func.func @_gconv_kernel(%arg0: i32, %arg1: memref<2xf32, #tpu.memory_space<smem>>, %arg2: memref<1x128x1024xbf16, #tpu.memory_space<vmem>>, %arg3: memref<1x4x128xbf16, #tpu.memory_space<vmem>>, %arg4: memref<1x4x1xf32, #tpu.memory_space<vmem>>, %arg5: memref<1x4x1024xbf16, #tpu.memory_space<vmem>>) attributes {dimension_semantics = [#tpu.dimension_semantics<parallel>], iteration_bounds = array<i64: 2>, scalar_prefetch = 0 : i64, scratch_operands = 0 : i64, tpu.core_type = #tpu.core_type<tc>, window_params = [{transform_indices = @transform_0, window_bounds = array<i64: 2>}, {transform_indices = @transform_1, window_bounds = array<i64: 1, 128, 1024>}, {transform_indices = @transform_2, window_bounds = array<i64: 1, 4, 128>}, {transform_indices = @transform_3, window_bounds = array<i64: 1, 4, 1>}, {transform_indices = @transform_4, window_bounds = array<i64: 1, 4, 1024>}]} {
    %c0 = arith.constant 0 : index
    %c0_0 = arith.constant 0 : index
    %c0_1 = arith.constant 0 : index
    %0 = vector.load %arg3[%c0, %c0_0, %c0_1] : memref<1x4x128xbf16, #tpu.memory_space<vmem>>, vector<1x4x128xbf16>
    %1 = vector.shape_cast %0 : vector<1x4x128xbf16> to vector<4x128xbf16>
    %c0_2 = arith.constant 0 : index
    %c0_3 = arith.constant 0 : index
    %c0_4 = arith.constant 0 : index
    %2 = vector.load %arg2[%c0_2, %c0_3, %c0_4] : memref<1x128x1024xbf16, #tpu.memory_space<vmem>>, vector<1x128x1024xbf16>
    %3 = vector.shape_cast %2 : vector<1x128x1024xbf16> to vector<128x1024xbf16>
    %cst = arith.constant dense<0.000000e+00> : vector<4x1024xf32>
    %4 = tpu.matmul %1, %3, %cst {dimension_numbers = #tpu.dot_dimension_numbers<[1], [0], [0], [1], [0, 0, 1, 1], [], []>} : vector<4x128xbf16>, vector<128x1024xbf16>, vector<4x1024xf32> -> vector<4x1024xf32>
    %c0_5 = arith.constant 0 : index
    %c0_6 = arith.constant 0 : index
    %c0_7 = arith.constant 0 : index
    %5 = vector.load %arg4[%c0_5, %c0_6, %c0_7] : memref<1x4x1xf32, #tpu.memory_space<vmem>>, vector<1x4x1xf32>
    %6 = vector.shape_cast %5 : vector<1x4x1xf32> to vector<4x1xf32>
    %7 = vector.broadcast %6 : vector<4x1xf32> to vector<4x1024xf32>
    %8 = arith.addf %4, %7 : vector<4x1024xf32>
    %9 = arith.index_cast %arg0 : i32 to index
    %10 = memref.load %arg1[%9] : memref<2xf32, #tpu.memory_space<smem>>
    %cst_8 = arith.constant 0.000000e+00 : f32
    %11 = vector.broadcast %cst_8 : f32 to vector<4x1024xf32>
    %12 = arith.cmpf oge, %8, %11 : vector<4x1024xf32>
    %13 = vector.broadcast %10 : f32 to vector<4x1024xf32>
    %14 = arith.mulf %13, %8 : vector<4x1024xf32>
    %15 = arith.select %12, %8, %14 : vector<4x1024xi1>, vector<4x1024xf32>
    %16 = arith.truncf %15 : vector<4x1024xf32> to vector<4x1024xbf16>
    %c0_9 = arith.constant 0 : index
    %c0_10 = arith.constant 0 : index
    %c0_11 = arith.constant 0 : index
    %17 = vector.load %arg5[%c0_9, %c0_10, %c0_11] : memref<1x4x1024xbf16, #tpu.memory_space<vmem>>, vector<1x4x1024xbf16>
    %18 = vector.shape_cast %17 : vector<1x4x1024xbf16> to vector<4x1024xbf16>
    %19 = vector.shape_cast %16 : vector<4x1024xbf16> to vector<1x4x1024xbf16>
    tpu.vector_store %arg5[%c0_9, %c0_10, %c0_11], %19 {strides = array<i32>} : memref<1x4x1024xbf16, #tpu.memory_space<vmem>>, vector<1x4x1024xbf16>,
    return
  }
  func.func @transform_0(%arg0: i32) -> i32 {
    %c0_i32 = arith.constant 0 : i32
    %c0_i32_0 = arith.constant 0 : i32
    return %c0_i32 : i32
  }
  func.func @transform_1(%arg0: i32) -> (i32, i32, i32) {
    %c0_i32 = arith.constant 0 : i32
    %c0_i32_0 = arith.constant 0 : i32
    %c0_i32_1 = arith.constant 0 : i32
    return %arg0, %c0_i32, %c0_i32_0 : i32, i32, i32
  }
  func.func @transform_2(%arg0: i32) -> (i32, i32, i32) {
    %c0_i32 = arith.constant 0 : i32
    %c0_i32_0 = arith.constant 0 : i32
    %c0_i32_1 = arith.constant 0 : i32
    return %arg0, %c0_i32, %c0_i32_0 : i32, i32, i32
  }
  func.func @transform_3(%arg0: i32) -> (i32, i32, i32) {
    %c0_i32 = arith.constant 0 : i32
    %c0_i32_0 = arith.constant 0 : i32
    %c0_i32_1 = arith.constant 0 : i32
    return %arg0, %c0_i32, %c0_i32_0 : i32, i32, i32
  }
  func.func @transform_4(%arg0: i32) -> (i32, i32, i32) {
    %c0_i32 = arith.constant 0 : i32
    %c0_i32_0 = arith.constant 0 : i32
    %c0_i32_1 = arith.constant 0 : i32
    return %arg0, %c0_i32, %c0_i32_0 : i32, i32, i32
  }
}

module attributes {stable_mosaic.version = 11 : i64} {
  func.func @_gconv_kernel(%arg0: i32, %arg1: memref<2xf32, #tpu.memory_space<smem>>, %arg2: memref<1x128x256xbf16, #tpu.memory_space<vmem>>, %arg3: memref<1x4x128xbf16, #tpu.memory_space<vmem>>, %arg4: memref<1x4x1xf32, #tpu.memory_space<vmem>>, %arg5: memref<1x4x256xbf16, #tpu.memory_space<vmem>>) attributes {dimension_semantics = [#tpu.dimension_semantics<parallel>], iteration_bounds = array<i64: 2>, scalar_prefetch = 0 : i64, scratch_operands = 0 : i64, tpu.core_type = #tpu.core_type<tc>, window_params = [{transform_indices = @transform_0, window_bounds = array<i64: 2>}, {transform_indices = @transform_1, window_bounds = array<i64: 1, 128, 256>}, {transform_indices = @transform_2, window_bounds = array<i64: 1, 4, 128>}, {transform_indices = @transform_3, window_bounds = array<i64: 1, 4, 1>}, {transform_indices = @transform_4, window_bounds = array<i64: 1, 4, 256>}]} {
    %c0 = arith.constant 0 : index
    %c0_0 = arith.constant 0 : index
    %c0_1 = arith.constant 0 : index
    %0 = vector.load %arg3[%c0, %c0_0, %c0_1] : memref<1x4x128xbf16, #tpu.memory_space<vmem>>, vector<1x4x128xbf16>
    %1 = vector.shape_cast %0 : vector<1x4x128xbf16> to vector<4x128xbf16>
    %c0_2 = arith.constant 0 : index
    %c0_3 = arith.constant 0 : index
    %c0_4 = arith.constant 0 : index
    %2 = vector.load %arg2[%c0_2, %c0_3, %c0_4] : memref<1x128x256xbf16, #tpu.memory_space<vmem>>, vector<1x128x256xbf16>
    %3 = vector.shape_cast %2 : vector<1x128x256xbf16> to vector<128x256xbf16>
    %cst = arith.constant dense<0.000000e+00> : vector<4x256xf32>
    %4 = tpu.matmul %1, %3, %cst {dimension_numbers = #tpu.dot_dimension_numbers<[1], [0], [0], [1], [0, 0, 1, 1], [], []>} : vector<4x128xbf16>, vector<128x256xbf16>, vector<4x256xf32> -> vector<4x256xf32>
    %c0_5 = arith.constant 0 : index
    %c0_6 = arith.constant 0 : index
    %c0_7 = arith.constant 0 : index
    %5 = vector.load %arg4[%c0_5, %c0_6, %c0_7] : memref<1x4x1xf32, #tpu.memory_space<vmem>>, vector<1x4x1xf32>
    %6 = vector.shape_cast %5 : vector<1x4x1xf32> to vector<4x1xf32>
    %7 = vector.broadcast %6 : vector<4x1xf32> to vector<4x256xf32>
    %8 = arith.addf %4, %7 : vector<4x256xf32>
    %9 = arith.index_cast %arg0 : i32 to index
    %10 = memref.load %arg1[%9] : memref<2xf32, #tpu.memory_space<smem>>
    %cst_8 = arith.constant 0.000000e+00 : f32
    %11 = vector.broadcast %cst_8 : f32 to vector<4x256xf32>
    %12 = arith.cmpf oge, %8, %11 : vector<4x256xf32>
    %13 = vector.broadcast %10 : f32 to vector<4x256xf32>
    %14 = arith.mulf %13, %8 : vector<4x256xf32>
    %15 = arith.select %12, %8, %14 : vector<4x256xi1>, vector<4x256xf32>
    %16 = arith.truncf %15 : vector<4x256xf32> to vector<4x256xbf16>
    %c0_9 = arith.constant 0 : index
    %c0_10 = arith.constant 0 : index
    %c0_11 = arith.constant 0 : index
    %17 = vector.load %arg5[%c0_9, %c0_10, %c0_11] : memref<1x4x256xbf16, #tpu.memory_space<vmem>>, vector<1x4x256xbf16>
    %18 = vector.shape_cast %17 : vector<1x4x256xbf16> to vector<4x256xbf16>
    %19 = vector.shape_cast %16 : vector<4x256xbf16> to vector<1x4x256xbf16>
    tpu.vector_store %arg5[%c0_9, %c0_10, %c0_11], %19 {strides = array<i32>} : memref<1x4x256xbf16, #tpu.memory_space<vmem>>, vector<1x4x256xbf16>,
    return
  }
  func.func @transform_0(%arg0: i32) -> i32 {
    %c0_i32 = arith.constant 0 : i32
    %c0_i32_0 = arith.constant 0 : i32
    return %c0_i32 : i32
  }
  func.func @transform_1(%arg0: i32) -> (i32, i32, i32) {
    %c0_i32 = arith.constant 0 : i32
    %c0_i32_0 = arith.constant 0 : i32
    %c0_i32_1 = arith.constant 0 : i32
    return %arg0, %c0_i32, %c0_i32_0 : i32, i32, i32
  }
  func.func @transform_2(%arg0: i32) -> (i32, i32, i32) {
    %c0_i32 = arith.constant 0 : i32
    %c0_i32_0 = arith.constant 0 : i32
    %c0_i32_1 = arith.constant 0 : i32
    return %arg0, %c0_i32, %c0_i32_0 : i32, i32, i32
  }
  func.func @transform_3(%arg0: i32) -> (i32, i32, i32) {
    %c0_i32 = arith.constant 0 : i32
    %c0_i32_0 = arith.constant 0 : i32
    %c0_i32_1 = arith.constant 0 : i32
    return %arg0, %c0_i32, %c0_i32_0 : i32, i32, i32
  }
  func.func @transform_4(%arg0: i32) -> (i32, i32, i32) {
    %c0_i32 = arith.constant 0 : i32
    %c0_i32_0 = arith.constant 0 : i32
    %c0_i32_1 = arith.constant 0 : i32
    return %arg0, %c0_i32, %c0_i32_0 : i32, i32, i32
  }
}

module attributes {stable_mosaic.version = 11 : i64} {
  func.func @_gconv_kernel(%arg0: i32, %arg1: memref<2xf32, #tpu.memory_space<smem>>, %arg2: memref<1x128x256xbf16, #tpu.memory_space<vmem>>, %arg3: memref<1x8x128xbf16, #tpu.memory_space<vmem>>, %arg4: memref<1x8x1xf32, #tpu.memory_space<vmem>>, %arg5: memref<1x8x256xbf16, #tpu.memory_space<vmem>>) attributes {dimension_semantics = [#tpu.dimension_semantics<parallel>], iteration_bounds = array<i64: 2>, scalar_prefetch = 0 : i64, scratch_operands = 0 : i64, tpu.core_type = #tpu.core_type<tc>, window_params = [{transform_indices = @transform_0, window_bounds = array<i64: 2>}, {transform_indices = @transform_1, window_bounds = array<i64: 1, 128, 256>}, {transform_indices = @transform_2, window_bounds = array<i64: 1, 8, 128>}, {transform_indices = @transform_3, window_bounds = array<i64: 1, 8, 1>}, {transform_indices = @transform_4, window_bounds = array<i64: 1, 8, 256>}]} {
    %c0 = arith.constant 0 : index
    %c0_0 = arith.constant 0 : index
    %c0_1 = arith.constant 0 : index
    %0 = vector.load %arg3[%c0, %c0_0, %c0_1] : memref<1x8x128xbf16, #tpu.memory_space<vmem>>, vector<1x8x128xbf16>
    %1 = vector.shape_cast %0 : vector<1x8x128xbf16> to vector<8x128xbf16>
    %c0_2 = arith.constant 0 : index
    %c0_3 = arith.constant 0 : index
    %c0_4 = arith.constant 0 : index
    %2 = vector.load %arg2[%c0_2, %c0_3, %c0_4] : memref<1x128x256xbf16, #tpu.memory_space<vmem>>, vector<1x128x256xbf16>
    %3 = vector.shape_cast %2 : vector<1x128x256xbf16> to vector<128x256xbf16>
    %cst = arith.constant dense<0.000000e+00> : vector<8x256xf32>
    %4 = tpu.matmul %1, %3, %cst {dimension_numbers = #tpu.dot_dimension_numbers<[1], [0], [0], [1], [0, 0, 1, 1], [], []>} : vector<8x128xbf16>, vector<128x256xbf16>, vector<8x256xf32> -> vector<8x256xf32>
    %c0_5 = arith.constant 0 : index
    %c0_6 = arith.constant 0 : index
    %c0_7 = arith.constant 0 : index
    %5 = vector.load %arg4[%c0_5, %c0_6, %c0_7] : memref<1x8x1xf32, #tpu.memory_space<vmem>>, vector<1x8x1xf32>
    %6 = vector.shape_cast %5 : vector<1x8x1xf32> to vector<8x1xf32>
    %7 = vector.broadcast %6 : vector<8x1xf32> to vector<8x256xf32>
    %8 = arith.addf %4, %7 : vector<8x256xf32>
    %9 = arith.index_cast %arg0 : i32 to index
    %10 = memref.load %arg1[%9] : memref<2xf32, #tpu.memory_space<smem>>
    %cst_8 = arith.constant 0.000000e+00 : f32
    %11 = vector.broadcast %cst_8 : f32 to vector<8x256xf32>
    %12 = arith.cmpf oge, %8, %11 : vector<8x256xf32>
    %13 = vector.broadcast %10 : f32 to vector<8x256xf32>
    %14 = arith.mulf %13, %8 : vector<8x256xf32>
    %15 = arith.select %12, %8, %14 : vector<8x256xi1>, vector<8x256xf32>
    %16 = arith.truncf %15 : vector<8x256xf32> to vector<8x256xbf16>
    %c0_9 = arith.constant 0 : index
    %c0_10 = arith.constant 0 : index
    %c0_11 = arith.constant 0 : index
    %17 = vector.load %arg5[%c0_9, %c0_10, %c0_11] : memref<1x8x256xbf16, #tpu.memory_space<vmem>>, vector<1x8x256xbf16>
    %18 = vector.shape_cast %17 : vector<1x8x256xbf16> to vector<8x256xbf16>
    %19 = vector.shape_cast %16 : vector<8x256xbf16> to vector<1x8x256xbf16>
    tpu.vector_store %arg5[%c0_9, %c0_10, %c0_11], %19 {strides = array<i32>} : memref<1x8x256xbf16, #tpu.memory_space<vmem>>, vector<1x8x256xbf16>,
    return
  }
  func.func @transform_0(%arg0: i32) -> i32 {
    %c0_i32 = arith.constant 0 : i32
    %c0_i32_0 = arith.constant 0 : i32
    return %c0_i32 : i32
  }
  func.func @transform_1(%arg0: i32) -> (i32, i32, i32) {
    %c0_i32 = arith.constant 0 : i32
    %c0_i32_0 = arith.constant 0 : i32
    %c0_i32_1 = arith.constant 0 : i32
    return %arg0, %c0_i32, %c0_i32_0 : i32, i32, i32
  }
  func.func @transform_2(%arg0: i32) -> (i32, i32, i32) {
    %c0_i32 = arith.constant 0 : i32
    %c0_i32_0 = arith.constant 0 : i32
    %c0_i32_1 = arith.constant 0 : i32
    return %arg0, %c0_i32, %c0_i32_0 : i32, i32, i32
  }
  func.func @transform_3(%arg0: i32) -> (i32, i32, i32) {
    %c0_i32 = arith.constant 0 : i32
    %c0_i32_0 = arith.constant 0 : i32
    %c0_i32_1 = arith.constant 0 : i32
    return %arg0, %c0_i32, %c0_i32_0 : i32, i32, i32
  }
  func.func @transform_4(%arg0: i32) -> (i32, i32, i32) {
    %c0_i32 = arith.constant 0 : i32
    %c0_i32_0 = arith.constant 0 : i32
    %c0_i32_1 = arith.constant 0 : i32
    return %arg0, %c0_i32, %c0_i32_0 : i32, i32, i32
  }
}

module attributes {stable_mosaic.version = 11 : i64} {
  func.func @_gconv_kernel(%arg0: i32, %arg1: memref<2xf32, #tpu.memory_space<smem>>, %arg2: memref<1x256x256xbf16, #tpu.memory_space<vmem>>, %arg3: memref<1x8x256xbf16, #tpu.memory_space<vmem>>, %arg4: memref<1x8x1xf32, #tpu.memory_space<vmem>>, %arg5: memref<1x8x256xbf16, #tpu.memory_space<vmem>>) attributes {dimension_semantics = [#tpu.dimension_semantics<parallel>], iteration_bounds = array<i64: 2>, scalar_prefetch = 0 : i64, scratch_operands = 0 : i64, tpu.core_type = #tpu.core_type<tc>, window_params = [{transform_indices = @transform_0, window_bounds = array<i64: 2>}, {transform_indices = @transform_1, window_bounds = array<i64: 1, 256, 256>}, {transform_indices = @transform_2, window_bounds = array<i64: 1, 8, 256>}, {transform_indices = @transform_3, window_bounds = array<i64: 1, 8, 1>}, {transform_indices = @transform_4, window_bounds = array<i64: 1, 8, 256>}]} {
    %c0 = arith.constant 0 : index
    %c0_0 = arith.constant 0 : index
    %c0_1 = arith.constant 0 : index
    %0 = vector.load %arg3[%c0, %c0_0, %c0_1] : memref<1x8x256xbf16, #tpu.memory_space<vmem>>, vector<1x8x256xbf16>
    %1 = vector.shape_cast %0 : vector<1x8x256xbf16> to vector<8x256xbf16>
    %c0_2 = arith.constant 0 : index
    %c0_3 = arith.constant 0 : index
    %c0_4 = arith.constant 0 : index
    %2 = vector.load %arg2[%c0_2, %c0_3, %c0_4] : memref<1x256x256xbf16, #tpu.memory_space<vmem>>, vector<1x256x256xbf16>
    %3 = vector.shape_cast %2 : vector<1x256x256xbf16> to vector<256x256xbf16>
    %cst = arith.constant dense<0.000000e+00> : vector<8x256xf32>
    %4 = tpu.matmul %1, %3, %cst {dimension_numbers = #tpu.dot_dimension_numbers<[1], [0], [0], [1], [0, 0, 1, 1], [], []>} : vector<8x256xbf16>, vector<256x256xbf16>, vector<8x256xf32> -> vector<8x256xf32>
    %c0_5 = arith.constant 0 : index
    %c0_6 = arith.constant 0 : index
    %c0_7 = arith.constant 0 : index
    %5 = vector.load %arg4[%c0_5, %c0_6, %c0_7] : memref<1x8x1xf32, #tpu.memory_space<vmem>>, vector<1x8x1xf32>
    %6 = vector.shape_cast %5 : vector<1x8x1xf32> to vector<8x1xf32>
    %7 = vector.broadcast %6 : vector<8x1xf32> to vector<8x256xf32>
    %8 = arith.addf %4, %7 : vector<8x256xf32>
    %9 = arith.index_cast %arg0 : i32 to index
    %10 = memref.load %arg1[%9] : memref<2xf32, #tpu.memory_space<smem>>
    %cst_8 = arith.constant 0.000000e+00 : f32
    %11 = vector.broadcast %cst_8 : f32 to vector<8x256xf32>
    %12 = arith.cmpf oge, %8, %11 : vector<8x256xf32>
    %13 = vector.broadcast %10 : f32 to vector<8x256xf32>
    %14 = arith.mulf %13, %8 : vector<8x256xf32>
    %15 = arith.select %12, %8, %14 : vector<8x256xi1>, vector<8x256xf32>
    %16 = arith.truncf %15 : vector<8x256xf32> to vector<8x256xbf16>
    %c0_9 = arith.constant 0 : index
    %c0_10 = arith.constant 0 : index
    %c0_11 = arith.constant 0 : index
    %17 = vector.load %arg5[%c0_9, %c0_10, %c0_11] : memref<1x8x256xbf16, #tpu.memory_space<vmem>>, vector<1x8x256xbf16>
    %18 = vector.shape_cast %17 : vector<1x8x256xbf16> to vector<8x256xbf16>
    %19 = vector.shape_cast %16 : vector<8x256xbf16> to vector<1x8x256xbf16>
    tpu.vector_store %arg5[%c0_9, %c0_10, %c0_11], %19 {strides = array<i32>} : memref<1x8x256xbf16, #tpu.memory_space<vmem>>, vector<1x8x256xbf16>,
    return
  }
  func.func @transform_0(%arg0: i32) -> i32 {
    %c0_i32 = arith.constant 0 : i32
    %c0_i32_0 = arith.constant 0 : i32
    return %c0_i32 : i32
  }
  func.func @transform_1(%arg0: i32) -> (i32, i32, i32) {
    %c0_i32 = arith.constant 0 : i32
    %c0_i32_0 = arith.constant 0 : i32
    %c0_i32_1 = arith.constant 0 : i32
    return %arg0, %c0_i32, %c0_i32_0 : i32, i32, i32
  }
  func.func @transform_2(%arg0: i32) -> (i32, i32, i32) {
    %c0_i32 = arith.constant 0 : i32
    %c0_i32_0 = arith.constant 0 : i32
    %c0_i32_1 = arith.constant 0 : i32
    return %arg0, %c0_i32, %c0_i32_0 : i32, i32, i32
  }
  func.func @transform_3(%arg0: i32) -> (i32, i32, i32) {
    %c0_i32 = arith.constant 0 : i32
    %c0_i32_0 = arith.constant 0 : i32
    %c0_i32_1 = arith.constant 0 : i32
    return %arg0, %c0_i32, %c0_i32_0 : i32, i32, i32
  }
  func.func @transform_4(%arg0: i32) -> (i32, i32, i32) {
    %c0_i32 = arith.constant 0 : i32
    %c0_i32_0 = arith.constant 0 : i32
    %c0_i32_1 = arith.constant 0 : i32
    return %arg0, %c0_i32, %c0_i32_0 : i32, i32, i32
  }
}

module attributes {stable_mosaic.version = 11 : i64} {
  func.func @_gconv_kernel(%arg0: i32, %arg1: memref<2xf32, #tpu.memory_space<smem>>, %arg2: memref<1x128x128xbf16, #tpu.memory_space<vmem>>, %arg3: memref<1x8x128xbf16, #tpu.memory_space<vmem>>, %arg4: memref<1x8x1xf32, #tpu.memory_space<vmem>>, %arg5: memref<1x8x128xbf16, #tpu.memory_space<vmem>>) attributes {dimension_semantics = [#tpu.dimension_semantics<parallel>], iteration_bounds = array<i64: 2>, scalar_prefetch = 0 : i64, scratch_operands = 0 : i64, tpu.core_type = #tpu.core_type<tc>, window_params = [{transform_indices = @transform_0, window_bounds = array<i64: 2>}, {transform_indices = @transform_1, window_bounds = array<i64: 1, 128, 128>}, {transform_indices = @transform_2, window_bounds = array<i64: 1, 8, 128>}, {transform_indices = @transform_3, window_bounds = array<i64: 1, 8, 1>}, {transform_indices = @transform_4, window_bounds = array<i64: 1, 8, 128>}]} {
    %c0 = arith.constant 0 : index
    %c0_0 = arith.constant 0 : index
    %c0_1 = arith.constant 0 : index
    %0 = vector.load %arg3[%c0, %c0_0, %c0_1] : memref<1x8x128xbf16, #tpu.memory_space<vmem>>, vector<1x8x128xbf16>
    %1 = vector.shape_cast %0 : vector<1x8x128xbf16> to vector<8x128xbf16>
    %c0_2 = arith.constant 0 : index
    %c0_3 = arith.constant 0 : index
    %c0_4 = arith.constant 0 : index
    %2 = vector.load %arg2[%c0_2, %c0_3, %c0_4] : memref<1x128x128xbf16, #tpu.memory_space<vmem>>, vector<1x128x128xbf16>
    %3 = vector.shape_cast %2 : vector<1x128x128xbf16> to vector<128x128xbf16>
    %cst = arith.constant dense<0.000000e+00> : vector<8x128xf32>
    %4 = tpu.matmul %1, %3, %cst {dimension_numbers = #tpu.dot_dimension_numbers<[1], [0], [0], [1], [0, 0, 1, 1], [], []>} : vector<8x128xbf16>, vector<128x128xbf16>, vector<8x128xf32> -> vector<8x128xf32>
    %c0_5 = arith.constant 0 : index
    %c0_6 = arith.constant 0 : index
    %c0_7 = arith.constant 0 : index
    %5 = vector.load %arg4[%c0_5, %c0_6, %c0_7] : memref<1x8x1xf32, #tpu.memory_space<vmem>>, vector<1x8x1xf32>
    %6 = vector.shape_cast %5 : vector<1x8x1xf32> to vector<8x1xf32>
    %7 = vector.broadcast %6 : vector<8x1xf32> to vector<8x128xf32>
    %8 = arith.addf %4, %7 : vector<8x128xf32>
    %9 = arith.index_cast %arg0 : i32 to index
    %10 = memref.load %arg1[%9] : memref<2xf32, #tpu.memory_space<smem>>
    %cst_8 = arith.constant 0.000000e+00 : f32
    %11 = vector.broadcast %cst_8 : f32 to vector<8x128xf32>
    %12 = arith.cmpf oge, %8, %11 : vector<8x128xf32>
    %13 = vector.broadcast %10 : f32 to vector<8x128xf32>
    %14 = arith.mulf %13, %8 : vector<8x128xf32>
    %15 = arith.select %12, %8, %14 : vector<8x128xi1>, vector<8x128xf32>
    %16 = arith.truncf %15 : vector<8x128xf32> to vector<8x128xbf16>
    %c0_9 = arith.constant 0 : index
    %c0_10 = arith.constant 0 : index
    %c0_11 = arith.constant 0 : index
    %17 = vector.load %arg5[%c0_9, %c0_10, %c0_11] : memref<1x8x128xbf16, #tpu.memory_space<vmem>>, vector<1x8x128xbf16>
    %18 = vector.shape_cast %17 : vector<1x8x128xbf16> to vector<8x128xbf16>
    %19 = vector.shape_cast %16 : vector<8x128xbf16> to vector<1x8x128xbf16>
    tpu.vector_store %arg5[%c0_9, %c0_10, %c0_11], %19 {strides = array<i32>} : memref<1x8x128xbf16, #tpu.memory_space<vmem>>, vector<1x8x128xbf16>,
    return
  }
  func.func @transform_0(%arg0: i32) -> i32 {
    %c0_i32 = arith.constant 0 : i32
    %c0_i32_0 = arith.constant 0 : i32
    return %c0_i32 : i32
  }
  func.func @transform_1(%arg0: i32) -> (i32, i32, i32) {
    %c0_i32 = arith.constant 0 : i32
    %c0_i32_0 = arith.constant 0 : i32
    %c0_i32_1 = arith.constant 0 : i32
    return %arg0, %c0_i32, %c0_i32_0 : i32, i32, i32
  }
  func.func @transform_2(%arg0: i32) -> (i32, i32, i32) {
    %c0_i32 = arith.constant 0 : i32
    %c0_i32_0 = arith.constant 0 : i32
    %c0_i32_1 = arith.constant 0 : i32
    return %arg0, %c0_i32, %c0_i32_0 : i32, i32, i32
  }
  func.func @transform_3(%arg0: i32) -> (i32, i32, i32) {
    %c0_i32 = arith.constant 0 : i32
    %c0_i32_0 = arith.constant 0 : i32
    %c0_i32_1 = arith.constant 0 : i32
    return %arg0, %c0_i32, %c0_i32_0 : i32, i32, i32
  }
  func.func @transform_4(%arg0: i32) -> (i32, i32, i32) {
    %c0_i32 = arith.constant 0 : i32
    %c0_i32_0 = arith.constant 0 : i32
    %c0_i32_1 = arith.constant 0 : i32
    return %arg0, %c0_i32, %c0_i32_0 : i32, i32, i32
  }
}

module attributes {stable_mosaic.version = 11 : i64} {
  func.func @_gconv_kernel(%arg0: i32, %arg1: memref<3xf32, #tpu.memory_space<smem>>, %arg2: memref<1x128x128xbf16, #tpu.memory_space<vmem>>, %arg3: memref<1x16x128xbf16, #tpu.memory_space<vmem>>, %arg4: memref<1x16x1xf32, #tpu.memory_space<vmem>>, %arg5: memref<1x16x128xbf16, #tpu.memory_space<vmem>>) attributes {dimension_semantics = [#tpu.dimension_semantics<parallel>], iteration_bounds = array<i64: 3>, scalar_prefetch = 0 : i64, scratch_operands = 0 : i64, tpu.core_type = #tpu.core_type<tc>, window_params = [{transform_indices = @transform_0, window_bounds = array<i64: 3>}, {pipeline_mode = #tpu.pipeline_mode<synchronous>, transform_indices = @transform_1, window_bounds = array<i64: 1, 128, 128>}, {transform_indices = @transform_2, window_bounds = array<i64: 1, 16, 128>}, {transform_indices = @transform_3, window_bounds = array<i64: 1, 16, 1>}, {transform_indices = @transform_4, window_bounds = array<i64: 1, 16, 128>}]} {
    %c0 = arith.constant 0 : index
    %c0_0 = arith.constant 0 : index
    %c0_1 = arith.constant 0 : index
    %0 = vector.load %arg3[%c0, %c0_0, %c0_1] : memref<1x16x128xbf16, #tpu.memory_space<vmem>>, vector<1x16x128xbf16>
    %1 = vector.shape_cast %0 : vector<1x16x128xbf16> to vector<16x128xbf16>
    %c0_2 = arith.constant 0 : index
    %c0_3 = arith.constant 0 : index
    %c0_4 = arith.constant 0 : index
    %2 = vector.load %arg2[%c0_2, %c0_3, %c0_4] : memref<1x128x128xbf16, #tpu.memory_space<vmem>>, vector<1x128x128xbf16>
    %3 = vector.shape_cast %2 : vector<1x128x128xbf16> to vector<128x128xbf16>
    %cst = arith.constant dense<0.000000e+00> : vector<16x128xf32>
    %4 = tpu.matmul %1, %3, %cst {dimension_numbers = #tpu.dot_dimension_numbers<[1], [0], [0], [1], [0, 0, 1, 1], [], []>} : vector<16x128xbf16>, vector<128x128xbf16>, vector<16x128xf32> -> vector<16x128xf32>
    %c0_5 = arith.constant 0 : index
    %c0_6 = arith.constant 0 : index
    %c0_7 = arith.constant 0 : index
    %5 = vector.load %arg4[%c0_5, %c0_6, %c0_7] : memref<1x16x1xf32, #tpu.memory_space<vmem>>, vector<1x16x1xf32>
    %6 = vector.shape_cast %5 : vector<1x16x1xf32> to vector<16x1xf32>
    %7 = vector.broadcast %6 : vector<16x1xf32> to vector<16x128xf32>
    %8 = arith.addf %4, %7 : vector<16x128xf32>
    %9 = arith.index_cast %arg0 : i32 to index
    %10 = memref.load %arg1[%9] : memref<3xf32, #tpu.memory_space<smem>>
    %cst_8 = arith.constant 0.000000e+00 : f32
    %11 = vector.broadcast %cst_8 : f32 to vector<16x128xf32>
    %12 = arith.cmpf oge, %8, %11 : vector<16x128xf32>
    %13 = vector.broadcast %10 : f32 to vector<16x128xf32>
    %14 = arith.mulf %13, %8 : vector<16x128xf32>
    %15 = arith.select %12, %8, %14 : vector<16x128xi1>, vector<16x128xf32>
    %16 = arith.truncf %15 : vector<16x128xf32> to vector<16x128xbf16>
    %c0_9 = arith.constant 0 : index
    %c0_10 = arith.constant 0 : index
    %c0_11 = arith.constant 0 : index
    %17 = vector.load %arg5[%c0_9, %c0_10, %c0_11] : memref<1x16x128xbf16, #tpu.memory_space<vmem>>, vector<1x16x128xbf16>
    %18 = vector.shape_cast %17 : vector<1x16x128xbf16> to vector<16x128xbf16>
    %19 = vector.shape_cast %16 : vector<16x128xbf16> to vector<1x16x128xbf16>
    tpu.vector_store %arg5[%c0_9, %c0_10, %c0_11], %19 {strides = array<i32>} : memref<1x16x128xbf16, #tpu.memory_space<vmem>>, vector<1x16x128xbf16>,
    return
  }
  func.func @transform_0(%arg0: i32) -> i32 {
    %c0_i32 = arith.constant 0 : i32
    %c0_i32_0 = arith.constant 0 : i32
    return %c0_i32 : i32
  }
  func.func @transform_1(%arg0: i32) -> (i32, i32, i32) {
    %c0_i32 = arith.constant 0 : i32
    %c0_i32_0 = arith.constant 0 : i32
    %c0_i32_1 = arith.constant 0 : i32
    %c0_i32_2 = arith.constant 0 : i32
    return %c0_i32, %c0_i32_0, %c0_i32_1 : i32, i32, i32
  }
  func.func @transform_2(%arg0: i32) -> (i32, i32, i32) {
    %c0_i32 = arith.constant 0 : i32
    %c0_i32_0 = arith.constant 0 : i32
    %c0_i32_1 = arith.constant 0 : i32
    return %arg0, %c0_i32, %c0_i32_0 : i32, i32, i32
  }
  func.func @transform_3(%arg0: i32) -> (i32, i32, i32) {
    %c0_i32 = arith.constant 0 : i32
    %c0_i32_0 = arith.constant 0 : i32
    %c0_i32_1 = arith.constant 0 : i32
    return %arg0, %c0_i32, %c0_i32_0 : i32, i32, i32
  }
  func.func @transform_4(%arg0: i32) -> (i32, i32, i32) {
    %c0_i32 = arith.constant 0 : i32
    %c0_i32_0 = arith.constant 0 : i32
    %c0_i32_1 = arith.constant 0 : i32
    return %arg0, %c0_i32, %c0_i32_0 : i32, i32, i32
  }
}

module attributes {stable_mosaic.version = 11 : i64} {
  func.func @_gconv_kernel(%arg0: i32, %arg1: memref<3xf32, #tpu.memory_space<smem>>, %arg2: memref<1x512x128xbf16, #tpu.memory_space<vmem>>, %arg3: memref<1x16x512xbf16, #tpu.memory_space<vmem>>, %arg4: memref<1x16x1xf32, #tpu.memory_space<vmem>>, %arg5: memref<1x16x128xbf16, #tpu.memory_space<vmem>>) attributes {dimension_semantics = [#tpu.dimension_semantics<parallel>], iteration_bounds = array<i64: 3>, scalar_prefetch = 0 : i64, scratch_operands = 0 : i64, tpu.core_type = #tpu.core_type<tc>, window_params = [{transform_indices = @transform_0, window_bounds = array<i64: 3>}, {transform_indices = @transform_1, window_bounds = array<i64: 1, 512, 128>}, {transform_indices = @transform_2, window_bounds = array<i64: 1, 16, 512>}, {transform_indices = @transform_3, window_bounds = array<i64: 1, 16, 1>}, {transform_indices = @transform_4, window_bounds = array<i64: 1, 16, 128>}]} {
    %c0 = arith.constant 0 : index
    %c0_0 = arith.constant 0 : index
    %c0_1 = arith.constant 0 : index
    %0 = vector.load %arg3[%c0, %c0_0, %c0_1] : memref<1x16x512xbf16, #tpu.memory_space<vmem>>, vector<1x16x512xbf16>
    %1 = vector.shape_cast %0 : vector<1x16x512xbf16> to vector<16x512xbf16>
    %c0_2 = arith.constant 0 : index
    %c0_3 = arith.constant 0 : index
    %c0_4 = arith.constant 0 : index
    %2 = vector.load %arg2[%c0_2, %c0_3, %c0_4] : memref<1x512x128xbf16, #tpu.memory_space<vmem>>, vector<1x512x128xbf16>
    %3 = vector.shape_cast %2 : vector<1x512x128xbf16> to vector<512x128xbf16>
    %cst = arith.constant dense<0.000000e+00> : vector<16x128xf32>
    %4 = tpu.matmul %1, %3, %cst {dimension_numbers = #tpu.dot_dimension_numbers<[1], [0], [0], [1], [0, 0, 1, 1], [], []>} : vector<16x512xbf16>, vector<512x128xbf16>, vector<16x128xf32> -> vector<16x128xf32>
    %c0_5 = arith.constant 0 : index
    %c0_6 = arith.constant 0 : index
    %c0_7 = arith.constant 0 : index
    %5 = vector.load %arg4[%c0_5, %c0_6, %c0_7] : memref<1x16x1xf32, #tpu.memory_space<vmem>>, vector<1x16x1xf32>
    %6 = vector.shape_cast %5 : vector<1x16x1xf32> to vector<16x1xf32>
    %7 = vector.broadcast %6 : vector<16x1xf32> to vector<16x128xf32>
    %8 = arith.addf %4, %7 : vector<16x128xf32>
    %9 = arith.index_cast %arg0 : i32 to index
    %10 = memref.load %arg1[%9] : memref<3xf32, #tpu.memory_space<smem>>
    %cst_8 = arith.constant 0.000000e+00 : f32
    %11 = vector.broadcast %cst_8 : f32 to vector<16x128xf32>
    %12 = arith.cmpf oge, %8, %11 : vector<16x128xf32>
    %13 = vector.broadcast %10 : f32 to vector<16x128xf32>
    %14 = arith.mulf %13, %8 : vector<16x128xf32>
    %15 = arith.select %12, %8, %14 : vector<16x128xi1>, vector<16x128xf32>
    %16 = arith.truncf %15 : vector<16x128xf32> to vector<16x128xbf16>
    %c0_9 = arith.constant 0 : index
    %c0_10 = arith.constant 0 : index
    %c0_11 = arith.constant 0 : index
    %17 = vector.load %arg5[%c0_9, %c0_10, %c0_11] : memref<1x16x128xbf16, #tpu.memory_space<vmem>>, vector<1x16x128xbf16>
    %18 = vector.shape_cast %17 : vector<1x16x128xbf16> to vector<16x128xbf16>
    %19 = vector.shape_cast %16 : vector<16x128xbf16> to vector<1x16x128xbf16>
    tpu.vector_store %arg5[%c0_9, %c0_10, %c0_11], %19 {strides = array<i32>} : memref<1x16x128xbf16, #tpu.memory_space<vmem>>, vector<1x16x128xbf16>,
    return
  }
  func.func @transform_0(%arg0: i32) -> i32 {
    %c0_i32 = arith.constant 0 : i32
    %c0_i32_0 = arith.constant 0 : i32
    return %c0_i32 : i32
  }
  func.func @transform_1(%arg0: i32) -> (i32, i32, i32) {
    %c0_i32 = arith.constant 0 : i32
    %c0_i32_0 = arith.constant 0 : i32
    %c0_i32_1 = arith.constant 0 : i32
    return %arg0, %c0_i32, %c0_i32_0 : i32, i32, i32
  }
  func.func @transform_2(%arg0: i32) -> (i32, i32, i32) {
    %c0_i32 = arith.constant 0 : i32
    %c0_i32_0 = arith.constant 0 : i32
    %c0_i32_1 = arith.constant 0 : i32
    return %arg0, %c0_i32, %c0_i32_0 : i32, i32, i32
  }
  func.func @transform_3(%arg0: i32) -> (i32, i32, i32) {
    %c0_i32 = arith.constant 0 : i32
    %c0_i32_0 = arith.constant 0 : i32
    %c0_i32_1 = arith.constant 0 : i32
    return %arg0, %c0_i32, %c0_i32_0 : i32, i32, i32
  }
  func.func @transform_4(%arg0: i32) -> (i32, i32, i32) {
    %c0_i32 = arith.constant 0 : i32
    %c0_i32_0 = arith.constant 0 : i32
    %c0_i32_1 = arith.constant 0 : i32
    return %arg0, %c0_i32, %c0_i32_0 : i32, i32, i32
  }
}

module attributes {stable_mosaic.version = 11 : i64} {
  func.func @_gconv_kernel(%arg0: i32, %arg1: memref<3xf32, #tpu.memory_space<smem>>, %arg2: memref<1x512x128xbf16, #tpu.memory_space<vmem>>, %arg3: memref<1x8x512xbf16, #tpu.memory_space<vmem>>, %arg4: memref<1x8x1xf32, #tpu.memory_space<vmem>>, %arg5: memref<1x8x128xbf16, #tpu.memory_space<vmem>>) attributes {dimension_semantics = [#tpu.dimension_semantics<parallel>], iteration_bounds = array<i64: 3>, scalar_prefetch = 0 : i64, scratch_operands = 0 : i64, tpu.core_type = #tpu.core_type<tc>, window_params = [{transform_indices = @transform_0, window_bounds = array<i64: 3>}, {transform_indices = @transform_1, window_bounds = array<i64: 1, 512, 128>}, {transform_indices = @transform_2, window_bounds = array<i64: 1, 8, 512>}, {transform_indices = @transform_3, window_bounds = array<i64: 1, 8, 1>}, {transform_indices = @transform_4, window_bounds = array<i64: 1, 8, 128>}]} {
    %c0 = arith.constant 0 : index
    %c0_0 = arith.constant 0 : index
    %c0_1 = arith.constant 0 : index
    %0 = vector.load %arg3[%c0, %c0_0, %c0_1] : memref<1x8x512xbf16, #tpu.memory_space<vmem>>, vector<1x8x512xbf16>
    %1 = vector.shape_cast %0 : vector<1x8x512xbf16> to vector<8x512xbf16>
    %c0_2 = arith.constant 0 : index
    %c0_3 = arith.constant 0 : index
    %c0_4 = arith.constant 0 : index
    %2 = vector.load %arg2[%c0_2, %c0_3, %c0_4] : memref<1x512x128xbf16, #tpu.memory_space<vmem>>, vector<1x512x128xbf16>
    %3 = vector.shape_cast %2 : vector<1x512x128xbf16> to vector<512x128xbf16>
    %cst = arith.constant dense<0.000000e+00> : vector<8x128xf32>
    %4 = tpu.matmul %1, %3, %cst {dimension_numbers = #tpu.dot_dimension_numbers<[1], [0], [0], [1], [0, 0, 1, 1], [], []>} : vector<8x512xbf16>, vector<512x128xbf16>, vector<8x128xf32> -> vector<8x128xf32>
    %c0_5 = arith.constant 0 : index
    %c0_6 = arith.constant 0 : index
    %c0_7 = arith.constant 0 : index
    %5 = vector.load %arg4[%c0_5, %c0_6, %c0_7] : memref<1x8x1xf32, #tpu.memory_space<vmem>>, vector<1x8x1xf32>
    %6 = vector.shape_cast %5 : vector<1x8x1xf32> to vector<8x1xf32>
    %7 = vector.broadcast %6 : vector<8x1xf32> to vector<8x128xf32>
    %8 = arith.addf %4, %7 : vector<8x128xf32>
    %9 = arith.index_cast %arg0 : i32 to index
    %10 = memref.load %arg1[%9] : memref<3xf32, #tpu.memory_space<smem>>
    %cst_8 = arith.constant 0.000000e+00 : f32
    %11 = vector.broadcast %cst_8 : f32 to vector<8x128xf32>
    %12 = arith.cmpf oge, %8, %11 : vector<8x128xf32>
    %13 = vector.broadcast %10 : f32 to vector<8x128xf32>
    %14 = arith.mulf %13, %8 : vector<8x128xf32>
    %15 = arith.select %12, %8, %14 : vector<8x128xi1>, vector<8x128xf32>
    %16 = arith.truncf %15 : vector<8x128xf32> to vector<8x128xbf16>
    %c0_9 = arith.constant 0 : index
    %c0_10 = arith.constant 0 : index
    %c0_11 = arith.constant 0 : index
    %17 = vector.load %arg5[%c0_9, %c0_10, %c0_11] : memref<1x8x128xbf16, #tpu.memory_space<vmem>>, vector<1x8x128xbf16>
    %18 = vector.shape_cast %17 : vector<1x8x128xbf16> to vector<8x128xbf16>
    %19 = vector.shape_cast %16 : vector<8x128xbf16> to vector<1x8x128xbf16>
    tpu.vector_store %arg5[%c0_9, %c0_10, %c0_11], %19 {strides = array<i32>} : memref<1x8x128xbf16, #tpu.memory_space<vmem>>, vector<1x8x128xbf16>,
    return
  }
  func.func @transform_0(%arg0: i32) -> i32 {
    %c0_i32 = arith.constant 0 : i32
    %c0_i32_0 = arith.constant 0 : i32
    return %c0_i32 : i32
  }
  func.func @transform_1(%arg0: i32) -> (i32, i32, i32) {
    %c0_i32 = arith.constant 0 : i32
    %c0_i32_0 = arith.constant 0 : i32
    %c0_i32_1 = arith.constant 0 : i32
    return %arg0, %c0_i32, %c0_i32_0 : i32, i32, i32
  }
  func.func @transform_2(%arg0: i32) -> (i32, i32, i32) {
    %c0_i32 = arith.constant 0 : i32
    %c0_i32_0 = arith.constant 0 : i32
    %c0_i32_1 = arith.constant 0 : i32
    return %arg0, %c0_i32, %c0_i32_0 : i32, i32, i32
  }
  func.func @transform_3(%arg0: i32) -> (i32, i32, i32) {
    %c0_i32 = arith.constant 0 : i32
    %c0_i32_0 = arith.constant 0 : i32
    %c0_i32_1 = arith.constant 0 : i32
    return %arg0, %c0_i32, %c0_i32_0 : i32, i32, i32
  }
  func.func @transform_4(%arg0: i32) -> (i32, i32, i32) {
    %c0_i32 = arith.constant 0 : i32
    %c0_i32_0 = arith.constant 0 : i32
    %c0_i32_1 = arith.constant 0 : i32
    return %arg0, %c0_i32, %c0_i32_0 : i32, i32, i32
  }
}

module attributes {stable_mosaic.version = 11 : i64} {
  func.func @_gconv_kernel(%arg0: i32, %arg1: memref<3xf32, #tpu.memory_space<smem>>, %arg2: memref<1x256x768xbf16, #tpu.memory_space<vmem>>, %arg3: memref<1x8x256xbf16, #tpu.memory_space<vmem>>, %arg4: memref<1x8x1xf32, #tpu.memory_space<vmem>>, %arg5: memref<1x8x768xbf16, #tpu.memory_space<vmem>>) attributes {dimension_semantics = [#tpu.dimension_semantics<parallel>], iteration_bounds = array<i64: 3>, scalar_prefetch = 0 : i64, scratch_operands = 0 : i64, tpu.core_type = #tpu.core_type<tc>, window_params = [{transform_indices = @transform_0, window_bounds = array<i64: 3>}, {transform_indices = @transform_1, window_bounds = array<i64: 1, 256, 768>}, {transform_indices = @transform_2, window_bounds = array<i64: 1, 8, 256>}, {transform_indices = @transform_3, window_bounds = array<i64: 1, 8, 1>}, {transform_indices = @transform_4, window_bounds = array<i64: 1, 8, 768>}]} {
    %c0 = arith.constant 0 : index
    %c0_0 = arith.constant 0 : index
    %c0_1 = arith.constant 0 : index
    %0 = vector.load %arg3[%c0, %c0_0, %c0_1] : memref<1x8x256xbf16, #tpu.memory_space<vmem>>, vector<1x8x256xbf16>
    %1 = vector.shape_cast %0 : vector<1x8x256xbf16> to vector<8x256xbf16>
    %c0_2 = arith.constant 0 : index
    %c0_3 = arith.constant 0 : index
    %c0_4 = arith.constant 0 : index
    %2 = vector.load %arg2[%c0_2, %c0_3, %c0_4] : memref<1x256x768xbf16, #tpu.memory_space<vmem>>, vector<1x256x768xbf16>
    %3 = vector.shape_cast %2 : vector<1x256x768xbf16> to vector<256x768xbf16>
    %cst = arith.constant dense<0.000000e+00> : vector<8x768xf32>
    %4 = tpu.matmul %1, %3, %cst {dimension_numbers = #tpu.dot_dimension_numbers<[1], [0], [0], [1], [0, 0, 1, 1], [], []>} : vector<8x256xbf16>, vector<256x768xbf16>, vector<8x768xf32> -> vector<8x768xf32>
    %c0_5 = arith.constant 0 : index
    %c0_6 = arith.constant 0 : index
    %c0_7 = arith.constant 0 : index
    %5 = vector.load %arg4[%c0_5, %c0_6, %c0_7] : memref<1x8x1xf32, #tpu.memory_space<vmem>>, vector<1x8x1xf32>
    %6 = vector.shape_cast %5 : vector<1x8x1xf32> to vector<8x1xf32>
    %7 = vector.broadcast %6 : vector<8x1xf32> to vector<8x768xf32>
    %8 = arith.addf %4, %7 : vector<8x768xf32>
    %9 = arith.index_cast %arg0 : i32 to index
    %10 = memref.load %arg1[%9] : memref<3xf32, #tpu.memory_space<smem>>
    %cst_8 = arith.constant 0.000000e+00 : f32
    %11 = vector.broadcast %cst_8 : f32 to vector<8x768xf32>
    %12 = arith.cmpf oge, %8, %11 : vector<8x768xf32>
    %13 = vector.broadcast %10 : f32 to vector<8x768xf32>
    %14 = arith.mulf %13, %8 : vector<8x768xf32>
    %15 = arith.select %12, %8, %14 : vector<8x768xi1>, vector<8x768xf32>
    %16 = arith.truncf %15 : vector<8x768xf32> to vector<8x768xbf16>
    %c0_9 = arith.constant 0 : index
    %c0_10 = arith.constant 0 : index
    %c0_11 = arith.constant 0 : index
    %17 = vector.load %arg5[%c0_9, %c0_10, %c0_11] : memref<1x8x768xbf16, #tpu.memory_space<vmem>>, vector<1x8x768xbf16>
    %18 = vector.shape_cast %17 : vector<1x8x768xbf16> to vector<8x768xbf16>
    %19 = vector.shape_cast %16 : vector<8x768xbf16> to vector<1x8x768xbf16>
    tpu.vector_store %arg5[%c0_9, %c0_10, %c0_11], %19 {strides = array<i32>} : memref<1x8x768xbf16, #tpu.memory_space<vmem>>, vector<1x8x768xbf16>,
    return
  }
  func.func @transform_0(%arg0: i32) -> i32 {
    %c0_i32 = arith.constant 0 : i32
    %c0_i32_0 = arith.constant 0 : i32
    return %c0_i32 : i32
  }
  func.func @transform_1(%arg0: i32) -> (i32, i32, i32) {
    %c0_i32 = arith.constant 0 : i32
    %c0_i32_0 = arith.constant 0 : i32
    %c0_i32_1 = arith.constant 0 : i32
    return %arg0, %c0_i32, %c0_i32_0 : i32, i32, i32
  }
  func.func @transform_2(%arg0: i32) -> (i32, i32, i32) {
    %c0_i32 = arith.constant 0 : i32
    %c0_i32_0 = arith.constant 0 : i32
    %c0_i32_1 = arith.constant 0 : i32
    return %arg0, %c0_i32, %c0_i32_0 : i32, i32, i32
  }
  func.func @transform_3(%arg0: i32) -> (i32, i32, i32) {
    %c0_i32 = arith.constant 0 : i32
    %c0_i32_0 = arith.constant 0 : i32
    %c0_i32_1 = arith.constant 0 : i32
    return %arg0, %c0_i32, %c0_i32_0 : i32, i32, i32
  }
  func.func @transform_4(%arg0: i32) -> (i32, i32, i32) {
    %c0_i32 = arith.constant 0 : i32
    %c0_i32_0 = arith.constant 0 : i32
    %c0_i32_1 = arith.constant 0 : i32
    return %arg0, %c0_i32, %c0_i32_0 : i32, i32, i32
  }
}

module attributes {stable_mosaic.version = 11 : i64} {
  func.func @_gconv_kernel(%arg0: i32, %arg1: memref<3xf32, #tpu.memory_space<smem>>, %arg2: memref<1x256x768xbf16, #tpu.memory_space<vmem>>, %arg3: memref<1x1x256xbf16, #tpu.memory_space<vmem>>, %arg4: memref<1x1x1xf32, #tpu.memory_space<vmem>>, %arg5: memref<1x1x768xf32, #tpu.memory_space<vmem>>) attributes {dimension_semantics = [#tpu.dimension_semantics<parallel>], iteration_bounds = array<i64: 3>, scalar_prefetch = 0 : i64, scratch_operands = 0 : i64, tpu.core_type = #tpu.core_type<tc>, window_params = [{transform_indices = @transform_0, window_bounds = array<i64: 3>}, {transform_indices = @transform_1, window_bounds = array<i64: 1, 256, 768>}, {transform_indices = @transform_2, window_bounds = array<i64: 1, 1, 256>}, {transform_indices = @transform_3, window_bounds = array<i64: 1, 1, 1>}, {transform_indices = @transform_4, window_bounds = array<i64: 1, 1, 768>}]} {
    %c0 = arith.constant 0 : index
    %c0_0 = arith.constant 0 : index
    %c0_1 = arith.constant 0 : index
    %0 = vector.load %arg3[%c0, %c0_0, %c0_1] : memref<1x1x256xbf16, #tpu.memory_space<vmem>>, vector<1x1x256xbf16>
    %1 = vector.shape_cast %0 : vector<1x1x256xbf16> to vector<1x256xbf16>
    %c0_2 = arith.constant 0 : index
    %c0_3 = arith.constant 0 : index
    %c0_4 = arith.constant 0 : index
    %2 = vector.load %arg2[%c0_2, %c0_3, %c0_4] : memref<1x256x768xbf16, #tpu.memory_space<vmem>>, vector<1x256x768xbf16>
    %3 = vector.shape_cast %2 : vector<1x256x768xbf16> to vector<256x768xbf16>
    %cst = arith.constant dense<0.000000e+00> : vector<1x768xf32>
    %4 = tpu.matmul %1, %3, %cst {dimension_numbers = #tpu.dot_dimension_numbers<[1], [0], [0], [1], [0, 0, 1, 1], [], []>} : vector<1x256xbf16>, vector<256x768xbf16>, vector<1x768xf32> -> vector<1x768xf32>
    %c0_5 = arith.constant 0 : index
    %c0_6 = arith.constant 0 : index
    %c0_7 = arith.constant 0 : index
    %5 = vector.load %arg4[%c0_5, %c0_6, %c0_7] : memref<1x1x1xf32, #tpu.memory_space<vmem>>, vector<1x1x1xf32>
    %6 = vector.shape_cast %5 : vector<1x1x1xf32> to vector<1x1xf32>
    %7 = vector.broadcast %6 : vector<1x1xf32> to vector<1x768xf32>
    %8 = arith.addf %4, %7 : vector<1x768xf32>
    %c0_8 = arith.constant 0 : index
    %c0_9 = arith.constant 0 : index
    %c0_10 = arith.constant 0 : index
    %9 = vector.load %arg5[%c0_8, %c0_9, %c0_10] : memref<1x1x768xf32, #tpu.memory_space<vmem>>, vector<1x1x768xf32>
    %10 = vector.shape_cast %9 : vector<1x1x768xf32> to vector<1x768xf32>
    %11 = vector.shape_cast %8 : vector<1x768xf32> to vector<1x1x768xf32>
    tpu.vector_store %arg5[%c0_8, %c0_9, %c0_10], %11 {strides = array<i32>} : memref<1x1x768xf32, #tpu.memory_space<vmem>>, vector<1x1x768xf32>,
    return
  }
  func.func @transform_0(%arg0: i32) -> i32 {
    %c0_i32 = arith.constant 0 : i32
    %c0_i32_0 = arith.constant 0 : i32
    return %c0_i32 : i32
  }
  func.func @transform_1(%arg0: i32) -> (i32, i32, i32) {
    %c0_i32 = arith.constant 0 : i32
    %c0_i32_0 = arith.constant 0 : i32
    %c0_i32_1 = arith.constant 0 : i32
    return %arg0, %c0_i32, %c0_i32_0 : i32, i32, i32
  }
  func.func @transform_2(%arg0: i32) -> (i32, i32, i32) {
    %c0_i32 = arith.constant 0 : i32
    %c0_i32_0 = arith.constant 0 : i32
    %c0_i32_1 = arith.constant 0 : i32
    return %arg0, %c0_i32, %c0_i32_0 : i32, i32, i32
  }
  func.func @transform_3(%arg0: i32) -> (i32, i32, i32) {
    %c0_i32 = arith.constant 0 : i32
    %c0_i32_0 = arith.constant 0 : i32
    %c0_i32_1 = arith.constant 0 : i32
    return %arg0, %c0_i32, %c0_i32_0 : i32, i32, i32
  }
  func.func @transform_4(%arg0: i32) -> (i32, i32, i32) {
    %c0_i32 = arith.constant 0 : i32
    %c0_i32_0 = arith.constant 0 : i32
    %c0_i32_1 = arith.constant 0 : i32
    return %arg0, %c0_i32, %c0_i32_0 : i32, i32, i32
  }
}

</mosaic_0001>

<llo_original>
// kernel: net_forward.16
$region0: #{net_forward.16}
  #allocation0 [shape = 'u32[]', space=smem, size = 0x4, offset = 0x4, fixed_abs, tag = 'smem constant byte address 0x4 - core index']
  #allocation1 [shape = 'u32[144,128]{1,0:T(1,128)}', space=vmem, size = 0x12000, scoped, tag = 'internal scratch']
  %s0 = inlined_call_operand.vmem [shape: f32[2], index: 0, kind: input, shape index: {}]
  %s1 = inlined_call_operand.vmem [shape: bf16[2,128,1024], index: 1, kind: input, shape index: {}]
  %s2 = inlined_call_operand.vmem [shape: bf16[2,4,128], index: 2, kind: input, shape index: {}]
  %s3 = inlined_call_operand.vmem [shape: f32[2,4,1], index: 3, kind: input, shape index: {}]
  %s4 = inlined_call_operand.vmem [shape: bf16[2,4,1024], index: 4, kind: output, shape index: {}]
  %s5 = sld [smem:[#allocation0]]
  $region53: #{net_forward.16} parent=0
    _
  %s7 = ssub.s32 1, %s5
  %s8 = scalar_select 0, %s7, %s5
  $region1: #{net_forward.16} parent=0
    #allocation2 [shape = 'u8[512]{0}', space=smem, size = 0x200, scoped, tag = 'input window, operand 0, single buffered']
    #allocation3 [shape = 's32[2]{0}', space=sflag, size = 0x8, scoped, tag = 'scoped memory for net_forward.16']
    %9 = vsyncpa [#allocation3], 0
    loop: start=0, step=1, limit=4
    $region2: #{net_forward.16} parent=1 // loop_pre_header
      _
    $region3: #{net_forward.16} parent=1 // loop_header
      %s11 = sphi 0, %s15
      %p12 = scmp.ge.s32.totalorder %s11, 4
      %s19 = sphi 0, %s19
      %s21 = sphi 0, %s19
      %s22 = sphi 0, %s21
      %s36 = sphi 0, %s22
      %s42 = sphi 0, %s44
      %s45 = sphi 0, %s42
      %s46 = sphi 0, %s45
      %s62 = sphi 0, %s46
      %s68 = sphi 0, %s70
      %s71 = sphi 0, %s68
      %s72 = sphi 0, %s71
      %s88 = sphi 0, %s72
      %s94 = sphi 0, %s96
      %s97 = sphi 0, %s94
      %s98 = sphi 0, %s97
      %s114 = sphi 0, %s98
      %s120 = sphi 0, %s122
      %s123 = sphi 0, %s120
      %s124 = sphi 0, %s123
      %s140 = sphi 0, %s124
    $region4: #{net_forward.16} parent=1 // loop_header_branch
      %14 = sbr.rel (%p12) target = $region8
    $region5: #{net_forward.16} parent=1 // loop_body
      %s16 = ssub.s32 %s11, 1
      %s17 = ssub.s32 %s11, 2
      %s18 = sadd.s32 %s11, 1
      %s20 = sadd.s32 %s19, 1
      %p23 = scmp.eq.s32.totalorder %s11, 1
      %p24 = scmp.ne.s32.totalorder %s19, %s21
      %p25 = scmp.eq.s32.totalorder %s11, 0
      %p26 = por %p24, %p25
      %p27 = scmp.ne.s32.totalorder %s19, %s21
      %p28 = scmp.eq.s32.totalorder %s16, 1
      %p29 = por %p27, %p28
      %p30 = scmp.ne.s32.totalorder %s21, %s22
      %p31 = scmp.eq.s32.totalorder %s16, 0
      %p32 = por %p30, %p31
      %p33 = scmp.ne.s32.totalorder %s21, %s22
      %p34 = scmp.eq.s32.totalorder %s17, 1
      %p35 = por %p33, %p34
      %p37 = scmp.ne.s32.totalorder %s22, %s36
      %p38 = scmp.eq.s32.totalorder %s17, 0
      %p39 = por %p37, %p38
      %s40 = ssub.s32 %s11, %s18
      %p41 = scmp.eq.s32.totalorder %s40, 0
      %s43 = sadd.s32 %s42, 1
      %s44 = scalar_select %p41, %s42, %s43
      %p47 = pneg %p41
      %p48 = scmp.eq.s32.totalorder %s11, 1
      %p49 = por %p47, %p48
      %p50 = scmp.ne.s32.totalorder %s42, %s45
      %p51 = scmp.eq.s32.totalorder %s11, 0
      %p52 = por %p50, %p51
      %p53 = scmp.ne.s32.totalorder %s42, %s45
      %p54 = scmp.eq.s32.totalorder %s16, 1
      %p55 = por %p53, %p54
      %p56 = scmp.ne.s32.totalorder %s45, %s46
      %p57 = scmp.eq.s32.totalorder %s16, 0
      %p58 = por %p56, %p57
      %p59 = scmp.ne.s32.totalorder %s45, %s46
      %p60 = scmp.eq.s32.totalorder %s17, 1
      %p61 = por %p59, %p60
      %p63 = scmp.ne.s32.totalorder %s46, %s62
      %p64 = scmp.eq.s32.totalorder %s17, 0
      %p65 = por %p63, %p64
      %s66 = ssub.s32 %s11, %s18
      %p67 = scmp.eq.s32.totalorder %s66, 0
      %s69 = sadd.s32 %s68, 1
      %s70 = scalar_select %p67, %s68, %s69
      %p73 = pneg %p67
      %p74 = scmp.eq.s32.totalorder %s11, 1
      %p75 = por %p73, %p74
      %p76 = scmp.ne.s32.totalorder %s68, %s71
      %p77 = scmp.eq.s32.totalorder %s11, 0
      %p78 = por %p76, %p77
      %p79 = scmp.ne.s32.totalorder %s68, %s71
      %p80 = scmp.eq.s32.totalorder %s16, 1
      %p81 = por %p79, %p80
      %p82 = scmp.ne.s32.totalorder %s71, %s72
      %p83 = scmp.eq.s32.totalorder %s16, 0
      %p84 = por %p82, %p83
      %p85 = scmp.ne.s32.totalorder %s71, %s72
      %p86 = scmp.eq.s32.totalorder %s17, 1
      %p87 = por %p85, %p86
      %p89 = scmp.ne.s32.totalorder %s72, %s88
      %p90 = scmp.eq.s32.totalorder %s17, 0
      %p91 = por %p89, %p90
      %s92 = ssub.s32 %s11, %s18
      %p93 = scmp.eq.s32.totalorder %s92, 0
      %s95 = sadd.s32 %s94, 1
      %s96 = scalar_select %p93, %s94, %s95
      %p99 = pneg %p93
      %p100 = scmp.eq.s32.totalorder %s11, 1
      %p101 = por %p99, %p100
      %p102 = scmp.ne.s32.totalorder %s94, %s97
      %p103 = scmp.eq.s32.totalorder %s11, 0
      %p104 = por %p102, %p103
      %p105 = scmp.ne.s32.totalorder %s94, %s97
      %p106 = scmp.eq.s32.totalorder %s16, 1
      %p107 = por %p105, %p106
      %p108 = scmp.ne.s32.totalorder %s97, %s98
      %p109 = scmp.eq.s32.totalorder %s16, 0
      %p110 = por %p108, %p109
      %p111 = scmp.ne.s32.totalorder %s97, %s98
      %p112 = scmp.eq.s32.totalorder %s17, 1
      %p113 = por %p111, %p112
      %p115 = scmp.ne.s32.totalorder %s98, %s114
      %p116 = scmp.eq.s32.totalorder %s17, 0
      %p117 = por %p115, %p116
      %s118 = ssub.s32 %s11, %s18
      %p119 = scmp.eq.s32.totalorder %s118, 0
      %s121 = sadd.s32 %s120, 1
      %s122 = scalar_select %p119, %s120, %s121
      %p125 = pneg %p119
      %p126 = scmp.eq.s32.totalorder %s11, 1
      %p127 = por %p125, %p126
      %p128 = scmp.ne.s32.totalorder %s120, %s123
      %p129 = scmp.eq.s32.totalorder %s11, 0
      %p130 = por %p128, %p129
      %p131 = scmp.ne.s32.totalorder %s120, %s123
      %p132 = scmp.eq.s32.totalorder %s16, 1
      %p133 = por %p131, %p132
      %p134 = scmp.ne.s32.totalorder %s123, %s124
      %p135 = scmp.eq.s32.totalorder %s16, 0
      %p136 = por %p134, %p135
      %p137 = scmp.ne.s32.totalorder %s123, %s124
      %p138 = scmp.eq.s32.totalorder %s17, 1
      %p139 = por %p137, %p138
      %p141 = scmp.ne.s32.totalorder %s124, %s140
      %p142 = scmp.eq.s32.totalorder %s17, 0
      %p143 = por %p141, %p142
      %p144 = scmp.le.s32.totalorder 1, %s11
      %p145 = scmp.lt.s32.totalorder %s11, 3
      %p146 = pnand %p144, %p145
      %p147 = pneg %p146
      // Predicated region
      $region9: #{net_forward.16} parent=5 // pred_check
        _
      $region10: #{net_forward.16} parent=5 // pred_check_branch
        %149 = sbr.rel (%p146) target = $region12
      $region11: #{net_forward.16} parent=5 // pred_region
        %s150 = ssub.s32 %s11, 1
        // Predicated region
        $region13: #{net_forward.16} parent=11 // pred_check
          %p151 = pneg %p32
        $region14: #{net_forward.16} parent=11 // pred_check_branch
          %153 = sbr.rel (%p151) target = $region16
        $region15: #{net_forward.16} parent=11 // pred_region
          %s155 = ssub.s32 16, 16
          %156 = vsyncadd [#allocation3], %s155
          %s158 = sshll.u32 %s0, 4
          %s159 = int_to_ptr.vmem [resolvable:$true] %s158
          %161 = dma.vmem_to_smem %s159, 16, [#allocation2], [#allocation3]
        $region16: #{net_forward.16} parent=11 // pred_fallthru
          _
      $region12: #{net_forward.16} parent=5 // pred_fallthru
        _
      %p162 = scmp.lt.s32.totalorder %s11, 2
      // Predicated region
      $region17: #{net_forward.16} parent=5 // pred_check
        %p163 = pneg %p162
      $region18: #{net_forward.16} parent=5 // pred_check_branch
        %165 = sbr.rel (%p163) target = $region20
      $region19: #{net_forward.16} parent=5 // pred_region
        // Predicated region
        $region21: #{net_forward.16} parent=19 // pred_check
          %p166 = pneg %p52
        $region22: #{net_forward.16} parent=19 // pred_check_branch
          %168 = sbr.rel (%p166) target = $region24
        $region23: #{net_forward.16} parent=19 // pred_region
          %p169 = scmp.lt.s32.totalorder %s11, 1
          %s170 = scalar_select %p169, %s11, 1
          %s171 = smul.addr %s170, 128
          %s172 = smul.addr %s171, 4
          %s173 = scalar_lea.vmem %s1, %s172
        $region24: #{net_forward.16} parent=19 // pred_fallthru
          _
        // Predicated region
        $region25: #{net_forward.16} parent=19 // pred_check
          %p174 = pneg %p78
        $region26: #{net_forward.16} parent=19 // pred_check_branch
          %176 = sbr.rel (%p174) target = $region28
        $region27: #{net_forward.16} parent=19 // pred_region
          %p177 = scmp.lt.s32.totalorder %s11, 1
          %s178 = scalar_select %p177, %s11, 1
          %s179 = smul.addr %s178, 2
          %s180 = scalar_lea.vmem %s2, %s179
        $region28: #{net_forward.16} parent=19 // pred_fallthru
          _
        // Predicated region
        $region29: #{net_forward.16} parent=19 // pred_check
          %p181 = pneg %p104
        $region30: #{net_forward.16} parent=19 // pred_check_branch
          %183 = sbr.rel (%p181) target = $region32
        $region31: #{net_forward.16} parent=19 // pred_region
          %p184 = scmp.lt.s32.totalorder %s11, 1
          %s185 = scalar_select %p184, %s11, 1
          %s186 = smul.addr %s185, 4
          %s187 = scalar_lea.vmem %s3, %s186
        $region32: #{net_forward.16} parent=19 // pred_fallthru
          _
      $region20: #{net_forward.16} parent=5 // pred_fallthru
        _
      %p188 = scmp.le.s32.totalorder 1, %s11
      %p189 = scmp.lt.s32.totalorder %s11, 3
      %p190 = pnand %p188, %p189
      %p191 = pneg %p190
      // Predicated region
      $region33: #{net_forward.16} parent=5 // pred_check
        _
      $region34: #{net_forward.16} parent=5 // pred_check_branch
        %193 = sbr.rel (%p190) target = $region36
      $region35: #{net_forward.16} parent=5 // pred_region
        %s194 = ssub.s32 %s11, 1
        // Predicated region
        $region37: #{net_forward.16} parent=35 // pred_check
          %p195 = pneg %p32
        $region38: #{net_forward.16} parent=35 // pred_check_branch
          %197 = sbr.rel (%p195) target = $region40
        $region39: #{net_forward.16} parent=35 // pred_region
          %198 = dma.done [#allocation3], 16
        $region40: #{net_forward.16} parent=35 // pred_fallthru
          _
        %199 = sfence
        %p200 = pneg %p32
        %p201 = pneg %p29
        %p202 = scmp.lt.s32.totalorder %s16, 1
        %s203 = scalar_select %p202, %s16, 1
        %s204 = smul.addr %s203, 128
        %s205 = smul.addr %s204, 4
        %s206 = scalar_lea.vmem %s1, %s205
        %p207 = pneg %p58
        %p208 = pneg %p55
        %p209 = scmp.lt.s32.totalorder %s16, 1
        %s210 = scalar_select %p209, %s16, 1
        %s211 = smul.addr %s210, 2
        %s212 = scalar_lea.vmem %s2, %s211
        %p213 = pneg %p84
        %p214 = pneg %p81
        %p215 = scmp.lt.s32.totalorder %s16, 1
        %s216 = scalar_select %p215, %s16, 1
        %s217 = smul.addr %s216, 4
        %s218 = scalar_lea.vmem %s3, %s217
        %p219 = pneg %p110
        %p220 = pneg %p107
        %p221 = pneg %p136
        %p222 = pneg %p133
        %p223 = scmp.lt.s32.totalorder %s16, 1
        %s224 = scalar_select %p223, %s16, 1
        %s225 = smul.addr %s224, 8
        %s226 = smul.addr %s225, 2
        %s227 = scalar_lea.vmem %s4, %s226
        %p228 = scmp.lt.s32.totalorder %s16, 1
        %s229 = scalar_select %p228, %s16, 1
        %s230 = smul.addr %s229, 128
        %s231 = smul.addr %s230, 4
        %s232 = scalar_lea.vmem %s1, %s231
        %p233 = scmp.lt.s32.totalorder %s16, 1
        %s234 = scalar_select %p233, %s16, 1
        %s235 = smul.addr %s234, 2
        %s236 = scalar_lea.vmem %s2, %s235
        %p237 = scmp.lt.s32.totalorder %s16, 1
        %s238 = scalar_select %p237, %s16, 1
        %s239 = smul.addr %s238, 4
        %s240 = scalar_lea.vmem %s3, %s239
        %p241 = scmp.lt.s32.totalorder %s16, 1
        %s242 = scalar_select %p241, %s16, 1
        %s243 = smul.addr %s242, 8
        %s244 = smul.addr %s243, 2
        %s245 = scalar_lea.vmem %s4, %s244
        %v247 = vld [vmem:[%s236] sm:$0x3]
        %v248 = vld [vmem:[%s232] sm:$0xff]
        %v249 = vld [vmem:[%s232 + $0x8] sm:$0xff]
        %v250 = vld [vmem:[%s232 + $0x10] sm:$0xff]
        %v251 = vld [vmem:[%s232 + $0x18] sm:$0xff]
        %v252 = vld [vmem:[%s232 + $0x20] sm:$0xff]
        %v253 = vld [vmem:[%s232 + $0x28] sm:$0xff]
        %v254 = vld [vmem:[%s232 + $0x30] sm:$0xff]
        %v255 = vld [vmem:[%s232 + $0x38] sm:$0xff]
        %v256 = vld [vmem:[%s232 + $0x40] sm:$0xff]
        %v257 = vld [vmem:[%s232 + $0x48] sm:$0xff]
        %v258 = vld [vmem:[%s232 + $0x50] sm:$0xff]
        %v259 = vld [vmem:[%s232 + $0x58] sm:$0xff]
        %v260 = vld [vmem:[%s232 + $0x60] sm:$0xff]
        %v261 = vld [vmem:[%s232 + $0x68] sm:$0xff]
        %v262 = vld [vmem:[%s232 + $0x70] sm:$0xff]
        %v263 = vld [vmem:[%s232 + $0x78] sm:$0xff]
        %v264 = vld [vmem:[%s232 + $0x80] sm:$0xff]
        %v265 = vld [vmem:[%s232 + $0x88] sm:$0xff]
        %v266 = vld [vmem:[%s232 + $0x90] sm:$0xff]
        %v267 = vld [vmem:[%s232 + $0x98] sm:$0xff]
        %v268 = vld [vmem:[%s232 + $0xa0] sm:$0xff]
        %v269 = vld [vmem:[%s232 + $0xa8] sm:$0xff]
        %v270 = vld [vmem:[%s232 + $0xb0] sm:$0xff]
        %v271 = vld [vmem:[%s232 + $0xb8] sm:$0xff]
        %v272 = vld [vmem:[%s232 + $0xc0] sm:$0xff]
        %v273 = vld [vmem:[%s232 + $0xc8] sm:$0xff]
        %v274 = vld [vmem:[%s232 + $0xd0] sm:$0xff]
        %v275 = vld [vmem:[%s232 + $0xd8] sm:$0xff]
        %v276 = vld [vmem:[%s232 + $0xe0] sm:$0xff]
        %v277 = vld [vmem:[%s232 + $0xe8] sm:$0xff]
        %v278 = vld [vmem:[%s232 + $0xf0] sm:$0xff]
        %v279 = vld [vmem:[%s232 + $0xf8] sm:$0xff]
        %v280 = vld [vmem:[%s232 + $0x100] sm:$0xff]
        %v281 = vld [vmem:[%s232 + $0x108] sm:$0xff]
        %v282 = vld [vmem:[%s232 + $0x110] sm:$0xff]
        %v283 = vld [vmem:[%s232 + $0x118] sm:$0xff]
        %v284 = vld [vmem:[%s232 + $0x120] sm:$0xff]
        %v285 = vld [vmem:[%s232 + $0x128] sm:$0xff]
        %v286 = vld [vmem:[%s232 + $0x130] sm:$0xff]
        %v287 = vld [vmem:[%s232 + $0x138] sm:$0xff]
        %v288 = vld [vmem:[%s232 + $0x140] sm:$0xff]
        %v289 = vld [vmem:[%s232 + $0x148] sm:$0xff]
        %v290 = vld [vmem:[%s232 + $0x150] sm:$0xff]
        %v291 = vld [vmem:[%s232 + $0x158] sm:$0xff]
        %v292 = vld [vmem:[%s232 + $0x160] sm:$0xff]
        %v293 = vld [vmem:[%s232 + $0x168] sm:$0xff]
        %v294 = vld [vmem:[%s232 + $0x170] sm:$0xff]
        %v295 = vld [vmem:[%s232 + $0x178] sm:$0xff]
        %v296 = vld [vmem:[%s232 + $0x180] sm:$0xff]
        %v297 = vld [vmem:[%s232 + $0x188] sm:$0xff]
        %v298 = vld [vmem:[%s232 + $0x190] sm:$0xff]
        %v299 = vld [vmem:[%s232 + $0x198] sm:$0xff]
        %v300 = vld [vmem:[%s232 + $0x1a0] sm:$0xff]
        %v301 = vld [vmem:[%s232 + $0x1a8] sm:$0xff]
        %v302 = vld [vmem:[%s232 + $0x1b0] sm:$0xff]
        %v303 = vld [vmem:[%s232 + $0x1b8] sm:$0xff]
        %v304 = vld [vmem:[%s232 + $0x1c0] sm:$0xff]
        %v305 = vld [vmem:[%s232 + $0x1c8] sm:$0xff]
        %v306 = vld [vmem:[%s232 + $0x1d0] sm:$0xff]
        %v307 = vld [vmem:[%s232 + $0x1d8] sm:$0xff]
        %v308 = vld [vmem:[%s232 + $0x1e0] sm:$0xff]
        %v309 = vld [vmem:[%s232 + $0x1e8] sm:$0xff]
        %v310 = vld [vmem:[%s232 + $0x1f0] sm:$0xff]
        %v311 = vld [vmem:[%s232 + $0x1f8] sm:$0xff]
        %v312 = vld [vmem:[%s240] sm:$0xf]
        %314 = vset.pattern.permute.xlu0 0
        %315 = vperm.xlu0 %314, %v312
        %v316 = vpop.permute.xlu0 %315
        %v382 = vunpack.c.l.b16 %v248
        %v383 = vunpack.c.h.b16 %v248
        %v384 = vunpack.c.l.b16 %v249
        %v385 = vunpack.c.h.b16 %v249
        %v386 = vunpack.c.l.b16 %v250
        %v387 = vunpack.c.h.b16 %v250
        %v388 = vunpack.c.l.b16 %v251
        %v389 = vunpack.c.h.b16 %v251
        %v390 = vunpack.c.l.b16 %v252
        %v391 = vunpack.c.h.b16 %v252
        %v392 = vunpack.c.l.b16 %v253
        %v393 = vunpack.c.h.b16 %v253
        %v394 = vunpack.c.l.b16 %v254
        %v395 = vunpack.c.h.b16 %v254
        %v396 = vunpack.c.l.b16 %v255
        %v397 = vunpack.c.h.b16 %v255
        %v398 = vunpack.c.l.b16 %v256
        %v399 = vunpack.c.h.b16 %v256
        %v400 = vunpack.c.l.b16 %v257
        %v401 = vunpack.c.h.b16 %v257
        %v402 = vunpack.c.l.b16 %v258
        %v403 = vunpack.c.h.b16 %v258
        %v404 = vunpack.c.l.b16 %v259
        %v405 = vunpack.c.h.b16 %v259
        %v406 = vunpack.c.l.b16 %v260
        %v407 = vunpack.c.h.b16 %v260
        %v408 = vunpack.c.l.b16 %v261
        %v409 = vunpack.c.h.b16 %v261
        %v410 = vunpack.c.l.b16 %v262
        %v411 = vunpack.c.h.b16 %v262
        %v412 = vunpack.c.l.b16 %v263
        %v413 = vunpack.c.h.b16 %v263
        %v414 = vunpack.c.l.b16 %v264
        %v415 = vunpack.c.h.b16 %v264
        %v416 = vunpack.c.l.b16 %v265
        %v417 = vunpack.c.h.b16 %v265
        %v418 = vunpack.c.l.b16 %v266
        %v419 = vunpack.c.h.b16 %v266
        %v420 = vunpack.c.l.b16 %v267
        %v421 = vunpack.c.h.b16 %v267
        %v422 = vunpack.c.l.b16 %v268
        %v423 = vunpack.c.h.b16 %v268
        %v424 = vunpack.c.l.b16 %v269
        %v425 = vunpack.c.h.b16 %v269
        %v426 = vunpack.c.l.b16 %v270
        %v427 = vunpack.c.h.b16 %v270
        %v428 = vunpack.c.l.b16 %v271
        %v429 = vunpack.c.h.b16 %v271
        %v430 = vunpack.c.l.b16 %v272
        %v431 = vunpack.c.h.b16 %v272
        %v432 = vunpack.c.l.b16 %v273
        %v433 = vunpack.c.h.b16 %v273
        %v434 = vunpack.c.l.b16 %v274
        %v435 = vunpack.c.h.b16 %v274
        %v436 = vunpack.c.l.b16 %v275
        %v437 = vunpack.c.h.b16 %v275
        %v438 = vunpack.c.l.b16 %v276
        %v439 = vunpack.c.h.b16 %v276
        %v440 = vunpack.c.l.b16 %v277
        %v441 = vunpack.c.h.b16 %v277
        %v442 = vunpack.c.l.b16 %v278
        %v443 = vunpack.c.h.b16 %v278
        %v444 = vunpack.c.l.b16 %v279
        %v445 = vunpack.c.h.b16 %v279
        %v446 = vunpack.c.l.b16 %v280
        %v447 = vunpack.c.h.b16 %v280
        %v448 = vunpack.c.l.b16 %v281
        %v449 = vunpack.c.h.b16 %v281
        %v450 = vunpack.c.l.b16 %v282
        %v451 = vunpack.c.h.b16 %v282
        %v452 = vunpack.c.l.b16 %v283
        %v453 = vunpack.c.h.b16 %v283
        %v454 = vunpack.c.l.b16 %v284
        %v455 = vunpack.c.h.b16 %v284
        %v456 = vunpack.c.l.b16 %v285
        %v457 = vunpack.c.h.b16 %v285
        %v458 = vunpack.c.l.b16 %v286
        %v459 = vunpack.c.h.b16 %v286
        %v460 = vunpack.c.l.b16 %v287
        %v461 = vunpack.c.h.b16 %v287
        %v462 = vunpack.c.l.b16 %v288
        %v463 = vunpack.c.h.b16 %v288
        %v464 = vunpack.c.l.b16 %v289
        %v465 = vunpack.c.h.b16 %v289
        %v466 = vunpack.c.l.b16 %v290
        %v467 = vunpack.c.h.b16 %v290
        %v468 = vunpack.c.l.b16 %v291
        %v469 = vunpack.c.h.b16 %v291
        %v470 = vunpack.c.l.b16 %v292
        %v471 = vunpack.c.h.b16 %v292
        %v472 = vunpack.c.l.b16 %v293
        %v473 = vunpack.c.h.b16 %v293
        %v474 = vunpack.c.l.b16 %v294
        %v475 = vunpack.c.h.b16 %v294
        %v476 = vunpack.c.l.b16 %v295
        %v477 = vunpack.c.h.b16 %v295
        %v478 = vunpack.c.l.b16 %v296
        %v479 = vunpack.c.h.b16 %v296
        %v480 = vunpack.c.l.b16 %v297
        %v481 = vunpack.c.h.b16 %v297
        %v482 = vunpack.c.l.b16 %v298
        %v483 = vunpack.c.h.b16 %v298
        %v484 = vunpack.c.l.b16 %v299
        %v485 = vunpack.c.h.b16 %v299
        %v486 = vunpack.c.l.b16 %v300
        %v487 = vunpack.c.h.b16 %v300
        %v488 = vunpack.c.l.b16 %v301
        %v489 = vunpack.c.h.b16 %v301
        %v490 = vunpack.c.l.b16 %v302
        %v491 = vunpack.c.h.b16 %v302
        %v492 = vunpack.c.l.b16 %v303
        %v493 = vunpack.c.h.b16 %v303
        %v494 = vunpack.c.l.b16 %v304
        %v495 = vunpack.c.h.b16 %v304
        %v496 = vunpack.c.l.b16 %v305
        %v497 = vunpack.c.h.b16 %v305
        %v498 = vunpack.c.l.b16 %v306
        %v499 = vunpack.c.h.b16 %v306
        %v500 = vunpack.c.l.b16 %v307
        %v501 = vunpack.c.h.b16 %v307
        %v502 = vunpack.c.l.b16 %v308
        %v503 = vunpack.c.h.b16 %v308
        %v504 = vunpack.c.l.b16 %v309
        %v505 = vunpack.c.h.b16 %v309
        %v506 = vunpack.c.l.b16 %v310
        %v507 = vunpack.c.h.b16 %v310
        %v508 = vunpack.c.l.b16 %v311
        %v509 = vunpack.c.h.b16 %v311
        %v510 = vpack.c.b16 %v390, %v382
        %v511 = vpack.c.b16 %v391, %v383
        %v512 = vpack.c.b16 %v392, %v384
        %v513 = vpack.c.b16 %v393, %v385
        %v514 = vpack.c.b16 %v394, %v386
        %v515 = vpack.c.b16 %v395, %v387
        %v516 = vpack.c.b16 %v396, %v388
        %v517 = vpack.c.b16 %v397, %v389
        %v518 = vpack.c.b16 %v406, %v398
        %v519 = vpack.c.b16 %v407, %v399
        %v520 = vpack.c.b16 %v408, %v400
        %v521 = vpack.c.b16 %v409, %v401
        %v522 = vpack.c.b16 %v410, %v402
        %v523 = vpack.c.b16 %v411, %v403
        %v524 = vpack.c.b16 %v412, %v404
        %v525 = vpack.c.b16 %v413, %v405
        %v526 = vpack.c.b16 %v422, %v414
        %v527 = vpack.c.b16 %v423, %v415
        %v528 = vpack.c.b16 %v424, %v416
        %v529 = vpack.c.b16 %v425, %v417
        %v530 = vpack.c.b16 %v426, %v418
        %v531 = vpack.c.b16 %v427, %v419
        %v532 = vpack.c.b16 %v428, %v420
        %v533 = vpack.c.b16 %v429, %v421
        %v534 = vpack.c.b16 %v438, %v430
        %v535 = vpack.c.b16 %v439, %v431
        %v536 = vpack.c.b16 %v440, %v432
        %v537 = vpack.c.b16 %v441, %v433
        %v538 = vpack.c.b16 %v442, %v434
        %v539 = vpack.c.b16 %v443, %v435
        %v540 = vpack.c.b16 %v444, %v436
        %v541 = vpack.c.b16 %v445, %v437
        %v542 = vpack.c.b16 %v454, %v446
        %v543 = vpack.c.b16 %v455, %v447
        %v544 = vpack.c.b16 %v456, %v448
        %v545 = vpack.c.b16 %v457, %v449
        %v546 = vpack.c.b16 %v458, %v450
        %v547 = vpack.c.b16 %v459, %v451
        %v548 = vpack.c.b16 %v460, %v452
        %v549 = vpack.c.b16 %v461, %v453
        %v550 = vpack.c.b16 %v470, %v462
        %v551 = vpack.c.b16 %v471, %v463
        %v552 = vpack.c.b16 %v472, %v464
        %v553 = vpack.c.b16 %v473, %v465
        %v554 = vpack.c.b16 %v474, %v466
        %v555 = vpack.c.b16 %v475, %v467
        %v556 = vpack.c.b16 %v476, %v468
        %v557 = vpack.c.b16 %v477, %v469
        %v558 = vpack.c.b16 %v486, %v478
        %v559 = vpack.c.b16 %v487, %v479
        %v560 = vpack.c.b16 %v488, %v480
        %v561 = vpack.c.b16 %v489, %v481
        %v562 = vpack.c.b16 %v490, %v482
        %v563 = vpack.c.b16 %v491, %v483
        %v564 = vpack.c.b16 %v492, %v484
        %v565 = vpack.c.b16 %v493, %v485
        %v566 = vpack.c.b16 %v502, %v494
        %v567 = vpack.c.b16 %v503, %v495
        %v568 = vpack.c.b16 %v504, %v496
        %v569 = vpack.c.b16 %v505, %v497
        %v570 = vpack.c.b16 %v506, %v498
        %v571 = vpack.c.b16 %v507, %v499
        %v572 = vpack.c.b16 %v508, %v500
        %v573 = vpack.c.b16 %v509, %v501
        %638 = vmatprep.subr.bf16.mxu0 %v511
        %639 = vmatpush1.bf16.msra.mxu0 %v510
        %640 = vmatprep.subr.bf16.mxu0 %v519
        %641 = vmatpush1.bf16.msra.mxu0 %v518
        %642 = vmatprep.subr.bf16.mxu0 %v527
        %643 = vmatpush1.bf16.msra.mxu0 %v526
        %644 = vmatprep.subr.bf16.mxu0 %v535
        %645 = vmatpush1.bf16.msra.mxu0 %v534
        %646 = vmatprep.subr.bf16.mxu0 %v543
        %647 = vmatpush1.bf16.msra.mxu0 %v542
        %648 = vmatprep.subr.bf16.mxu0 %v551
        %649 = vmatpush1.bf16.msra.mxu0 %v550
        %650 = vmatprep.subr.bf16.mxu0 %v559
        %651 = vmatpush1.bf16.msra.mxu0 %v558
        %652 = vmatprep.subr.bf16.mxu0 %v567
        %653 = vmatpush1.bf16.msra.mxu0 %v566
        %654 = vmatprep.subr.bf16.mxu0 0
        %655 = vmatpush1.bf16.msra.mxu0 0
        %656 = vmatprep.subr.bf16.mxu0 0
        %657 = vmatpush1.bf16.msra.mxu0 0
        %658 = vmatprep.subr.bf16.mxu0 0
        %659 = vmatpush1.bf16.msra.mxu0 0
        %660 = vmatprep.subr.bf16.mxu0 0
        %661 = vmatpush1.bf16.msra.mxu0 0
        %662 = vmatprep.subr.bf16.mxu0 0
        %663 = vmatpush1.bf16.msra.mxu0 0
        %664 = vmatprep.subr.bf16.mxu0 0
        %665 = vmatpush1.bf16.msra.mxu0 0
        %666 = vmatprep.subr.bf16.mxu0 0
        %667 = vmatpush1.bf16.msra.mxu0 0
        %668 = vmatprep.subr.bf16.mxu0 0
        %669 = vmatpush1.bf16.msra.mxu0 0
        %670 = vmatprep.mubr.bf16.mxu0 0
        %671 = vmatmul.mubr.bf16.gmra.mrb[0].mxu0 %v247
        %v672 = vpop.f32.mrb[0].mxu0
        %v673 = vadd.f32 %v316, %v672
        %v674 = vpop.f32.mrb[0].mxu0
        %v675 = vadd.f32 %v316, %v674
        %v676 = vpop.f32.mrb[0].mxu0
        %v677 = vpop.f32.mrb[0].mxu0
        %678 = vdwg.mxu0
        %679 = vmatprep.subr.bf16.mxu0 %v513
        %680 = vmatpush1.bf16.msra.mxu0 %v512
        %681 = vmatprep.subr.bf16.mxu0 %v521
        %682 = vmatpush1.bf16.msra.mxu0 %v520
        %683 = vmatprep.subr.bf16.mxu0 %v529
        %684 = vmatpush1.bf16.msra.mxu0 %v528
        %685 = vmatprep.subr.bf16.mxu0 %v537
        %686 = vmatpush1.bf16.msra.mxu0 %v536
        %687 = vmatprep.subr.bf16.mxu0 %v545
        %688 = vmatpush1.bf16.msra.mxu0 %v544
        %689 = vmatprep.subr.bf16.mxu0 %v553
        %690 = vmatpush1.bf16.msra.mxu0 %v552
        %691 = vmatprep.subr.bf16.mxu0 %v561
        %692 = vmatpush1.bf16.msra.mxu0 %v560
        %693 = vmatprep.subr.bf16.mxu0 %v569
        %694 = vmatpush1.bf16.msra.mxu0 %v568
        %695 = vmatprep.subr.bf16.mxu0 0
        %696 = vmatpush1.bf16.msra.mxu0 0
        %697 = vmatprep.subr.bf16.mxu0 0
        %698 = vmatpush1.bf16.msra.mxu0 0
        %699 = vmatprep.subr.bf16.mxu0 0
        %700 = vmatpush1.bf16.msra.mxu0 0
        %701 = vmatprep.subr.bf16.mxu0 0
        %702 = vmatpush1.bf16.msra.mxu0 0
        %703 = vmatprep.subr.bf16.mxu0 0
        %704 = vmatpush1.bf16.msra.mxu0 0
        %705 = vmatprep.subr.bf16.mxu0 0
        %706 = vmatpush1.bf16.msra.mxu0 0
        %707 = vmatprep.subr.bf16.mxu0 0
        %708 = vmatpush1.bf16.msra.mxu0 0
        %709 = vmatprep.subr.bf16.mxu0 0
        %710 = vmatpush1.bf16.msra.mxu0 0
        %711 = vmatprep.mubr.bf16.mxu0 0
        %712 = vmatmul.mubr.bf16.gmra.mrb[0].mxu0 %v247
        %v713 = vpop.f32.mrb[0].mxu0
        %v714 = vadd.f32 %v316, %v713
        %v715 = vpop.f32.mrb[0].mxu0
        %v716 = vadd.f32 %v316, %v715
        %v717 = vpop.f32.mrb[0].mxu0
        %v718 = vpop.f32.mrb[0].mxu0
        %719 = vdwg.mxu0
        %720 = vmatprep.subr.bf16.mxu0 %v515
        %721 = vmatpush1.bf16.msra.mxu0 %v514
        %722 = vmatprep.subr.bf16.mxu0 %v523
        %723 = vmatpush1.bf16.msra.mxu0 %v522
        %724 = vmatprep.subr.bf16.mxu0 %v531
        %725 = vmatpush1.bf16.msra.mxu0 %v530
        %726 = vmatprep.subr.bf16.mxu0 %v539
        %727 = vmatpush1.bf16.msra.mxu0 %v538
        %728 = vmatprep.subr.bf16.mxu0 %v547
        %729 = vmatpush1.bf16.msra.mxu0 %v546
        %730 = vmatprep.subr.bf16.mxu0 %v555
        %731 = vmatpush1.bf16.msra.mxu0 %v554
        %732 = vmatprep.subr.bf16.mxu0 %v563
        %733 = vmatpush1.bf16.msra.mxu0 %v562
        %734 = vmatprep.subr.bf16.mxu0 %v571
        %735 = vmatpush1.bf16.msra.mxu0 %v570
        %736 = vmatprep.subr.bf16.mxu0 0
        %737 = vmatpush1.bf16.msra.mxu0 0
        %738 = vmatprep.subr.bf16.mxu0 0
        %739 = vmatpush1.bf16.msra.mxu0 0
        %740 = vmatprep.subr.bf16.mxu0 0
        %741 = vmatpush1.bf16.msra.mxu0 0
        %742 = vmatprep.subr.bf16.mxu0 0
        %743 = vmatpush1.bf16.msra.mxu0 0
        %744 = vmatprep.subr.bf16.mxu0 0
        %745 = vmatpush1.bf16.msra.mxu0 0
        %746 = vmatprep.subr.bf16.mxu0 0
        %747 = vmatpush1.bf16.msra.mxu0 0
        %748 = vmatprep.subr.bf16.mxu0 0
        %749 = vmatpush1.bf16.msra.mxu0 0
        %750 = vmatprep.subr.bf16.mxu0 0
        %751 = vmatpush1.bf16.msra.mxu0 0
        %752 = vmatprep.mubr.bf16.mxu0 0
        %753 = vmatmul.mubr.bf16.gmra.mrb[0].mxu0 %v247
        %v754 = vpop.f32.mrb[0].mxu0
        %v755 = vadd.f32 %v316, %v754
        %v756 = vpop.f32.mrb[0].mxu0
        %v757 = vadd.f32 %v316, %v756
        %v758 = vpop.f32.mrb[0].mxu0
        %v759 = vpop.f32.mrb[0].mxu0
        %760 = vdwg.mxu0
        %761 = vmatprep.subr.bf16.mxu0 %v517
        %762 = vmatpush1.bf16.msra.mxu0 %v516
        %763 = vmatprep.subr.bf16.mxu0 %v525
        %764 = vmatpush1.bf16.msra.mxu0 %v524
        %765 = vmatprep.subr.bf16.mxu0 %v533
        %766 = vmatpush1.bf16.msra.mxu0 %v532
        %767 = vmatprep.subr.bf16.mxu0 %v541
        %768 = vmatpush1.bf16.msra.mxu0 %v540
        %769 = vmatprep.subr.bf16.mxu0 %v549
        %770 = vmatpush1.bf16.msra.mxu0 %v548
        %771 = vmatprep.subr.bf16.mxu0 %v557
        %772 = vmatpush1.bf16.msra.mxu0 %v556
        %773 = vmatprep.subr.bf16.mxu0 %v565
        %774 = vmatpush1.bf16.msra.mxu0 %v564
        %775 = vmatprep.subr.bf16.mxu0 %v573
        %776 = vmatpush1.bf16.msra.mxu0 %v572
        %777 = vmatprep.subr.bf16.mxu0 0
        %778 = vmatpush1.bf16.msra.mxu0 0
        %779 = vmatprep.subr.bf16.mxu0 0
        %780 = vmatpush1.bf16.msra.mxu0 0
        %781 = vmatprep.subr.bf16.mxu0 0
        %782 = vmatpush1.bf16.msra.mxu0 0
        %783 = vmatprep.subr.bf16.mxu0 0
        %784 = vmatpush1.bf16.msra.mxu0 0
        %785 = vmatprep.subr.bf16.mxu0 0
        %786 = vmatpush1.bf16.msra.mxu0 0
        %787 = vmatprep.subr.bf16.mxu0 0
        %788 = vmatpush1.bf16.msra.mxu0 0
        %789 = vmatprep.subr.bf16.mxu0 0
        %790 = vmatpush1.bf16.msra.mxu0 0
        %791 = vmatprep.subr.bf16.mxu0 0
        %792 = vmatpush1.bf16.msra.mxu0 0
        %793 = vmatprep.mubr.bf16.mxu0 0
        %794 = vmatmul.mubr.bf16.gmra.mrb[0].mxu0 %v247
        %v795 = vpop.f32.mrb[0].mxu0
        %v796 = vadd.f32 %v316, %v795
        %v797 = vpop.f32.mrb[0].mxu0
        %v798 = vadd.f32 %v316, %v797
        %v799 = vpop.f32.mrb[0].mxu0
        %v800 = vpop.f32.mrb[0].mxu0
        %801 = vdwg.mxu0
        %s802 = sld [smem:[#allocation2 + %s16]]
        %vm803 = vcmp.ge.f32.partialorder %v673, 0.0
        %vm804 = vcmp.ge.f32.partialorder %v675, 0.0
        %vm805 = vcmp.ge.f32.partialorder %v714, 0.0
        %vm806 = vcmp.ge.f32.partialorder %v716, 0.0
        %vm807 = vcmp.ge.f32.partialorder %v755, 0.0
        %vm808 = vcmp.ge.f32.partialorder %v757, 0.0
        %vm809 = vcmp.ge.f32.partialorder %v796, 0.0
        %vm810 = vcmp.ge.f32.partialorder %v798, 0.0
        %v811 = vstv %s802
        %v812 = vmul.f32 %v811, %v673
        %v813 = vmul.f32 %v811, %v675
        %v814 = vmul.f32 %v811, %v714
        %v815 = vmul.f32 %v811, %v716
        %v816 = vmul.f32 %v811, %v755
        %v817 = vmul.f32 %v811, %v757
        %v818 = vmul.f32 %v811, %v796
        %v819 = vmul.f32 %v811, %v798
        %v820 = vsel %vm803, %v673, %v812
        %v821 = vsel %vm804, %v675, %v813
        %v822 = vsel %vm805, %v714, %v814
        %v823 = vsel %vm806, %v716, %v815
        %v824 = vsel %vm807, %v755, %v816
        %v825 = vsel %vm808, %v757, %v817
        %v826 = vsel %vm809, %v796, %v818
        %v827 = vsel %vm810, %v798, %v819
        %v828 = vpack.c.bf16 %v820, %v820
        %v829 = vpack.c.bf16 %v821, %v821
        %v830 = vpack.c.bf16 %v822, %v822
        %v831 = vpack.c.bf16 %v823, %v823
        %v832 = vpack.c.bf16 %v824, %v824
        %v833 = vpack.c.bf16 %v825, %v825
        %v834 = vpack.c.bf16 %v826, %v826
        %v835 = vpack.c.bf16 %v827, %v827
        %v844 = vcombine.low %v828, %v829
        %v845 = vcombine.low %v830, %v831
        %v847 = vunpack.c.l.s4 1983009808
        %v848 = vunpack.c.0.s8 %v847
        %v849 = vlaneseq
        %v850 = vshrl.u32 %v849, 7
        %v851 = vsub.s32 %v848, %v850
        %v852 = vrot.slane %v844, %v851
        %v854 = vunpack.c.l.s4 1983009808
        %v855 = vunpack.c.0.s8 %v854
        %v856 = vlaneseq
        %v857 = vshrl.u32 %v856, 7
        %v858 = vsub.s32 %v855, %v857
        %v859 = vrot.slane %v845, %v858
        %v860 = vcombine.low %v852, %v859
        %v861 = vcombine.low %v832, %v833
        %v862 = vcombine.low %v834, %v835
        %v864 = vunpack.c.l.s4 1983009808
        %v865 = vunpack.c.0.s8 %v864
        %v866 = vlaneseq
        %v867 = vshrl.u32 %v866, 7
        %v868 = vsub.s32 %v865, %v867
        %v869 = vrot.slane %v861, %v868
        %v871 = vunpack.c.l.s4 1983009808
        %v872 = vunpack.c.0.s8 %v871
        %v873 = vlaneseq
        %v874 = vshrl.u32 %v873, 7
        %v875 = vsub.s32 %v872, %v874
        %v876 = vrot.slane %v862, %v875
        %v877 = vcombine.low %v869, %v876
        %880 = vst [vmem:[%s245] sm:$0xff] %v860
        %881 = vst [vmem:[%s245 + $0x8] sm:$0xff] %v877
        %p882 = scmp.lt.s32.totalorder %s16, 1
        %s883 = scalar_select %p882, %s16, 1
        %s884 = smul.addr %s883, 8
        %s885 = smul.addr %s884, 2
        %s886 = scalar_lea.vmem %s4, %s885
        // Predicated region
        $region41: #{net_forward.16} parent=35 // pred_check
          %p887 = pneg %p133
        $region42: #{net_forward.16} parent=35 // pred_check_branch
          %889 = sbr.rel (%p887) target = $region44
        $region43: #{net_forward.16} parent=35 // pred_region
          _
        $region44: #{net_forward.16} parent=35 // pred_fallthru
          _
      $region36: #{net_forward.16} parent=5 // pred_fallthru
        _
      %p890 = scmp.le.s32.totalorder 2, %s11
      // Predicated region
      $region45: #{net_forward.16} parent=5 // pred_check
        %p891 = pneg %p890
      $region46: #{net_forward.16} parent=5 // pred_check_branch
        %893 = sbr.rel (%p891) target = $region48
      $region47: #{net_forward.16} parent=5 // pred_region
        %s894 = ssub.s32 %s11, 2
        // Predicated region
        $region49: #{net_forward.16} parent=47 // pred_check
          %p895 = pneg %p139
        $region50: #{net_forward.16} parent=47 // pred_check_branch
          %897 = sbr.rel (%p895) target = $region52
        $region51: #{net_forward.16} parent=47 // pred_region
          %p898 = scmp.lt.s32.totalorder %s17, 1
          %s899 = scalar_select %p898, %s17, 1
          %s900 = smul.addr %s899, 8
          %s901 = smul.addr %s900, 2
          %s902 = scalar_lea.vmem %s4, %s901
        $region52: #{net_forward.16} parent=47 // pred_fallthru
          _
      $region48: #{net_forward.16} parent=5 // pred_fallthru
        _
    $region6: #{net_forward.16} parent=1 // loop_footer
      %s15 = sadd.s32 1, %s11
    $region7: #{net_forward.16} parent=1 // loop_footer_branch
      %10 = sbr.rel target = $region3
    $region8: #{net_forward.16} parent=1 // loop_exit
      _
    %903 = vsyncpa [#allocation3], 1
    %s904 = scalar_lea.sflag [#allocation3], 1
    %905 = vsyncpa %s904, 1

// kernel: net_forward.19
$region0: #{net_forward.19}
  #allocation0 [shape = 'u32[]', space=smem, size = 0x4, offset = 0x4, fixed_abs, tag = 'smem constant byte address 0x4 - core index']
  #allocation1 [shape = 'u32[144,128]{1,0:T(1,128)}', space=vmem, size = 0x12000, scoped, tag = 'internal scratch']
  %s0 = inlined_call_operand.vmem [shape: f32[2], index: 0, kind: input, shape index: {}]
  %s1 = inlined_call_operand.vmem [shape: bf16[2,128,256], index: 1, kind: input, shape index: {}]
  %s2 = inlined_call_operand.vmem [shape: bf16[2,4,128], index: 2, kind: input, shape index: {}]
  %s3 = inlined_call_operand.vmem [shape: f32[2,4,1], index: 3, kind: input, shape index: {}]
  %s4 = inlined_call_operand.vmem [shape: bf16[2,4,256], index: 4, kind: output, shape index: {}]
  %s5 = sld [smem:[#allocation0]]
  $region53: #{net_forward.19} parent=0
    _
  %s7 = ssub.s32 1, %s5
  %s8 = scalar_select 0, %s7, %s5
  $region1: #{net_forward.19} parent=0
    #allocation2 [shape = 'u8[512]{0}', space=smem, size = 0x200, scoped, tag = 'input window, operand 0, single buffered']
    #allocation3 [shape = 's32[2]{0}', space=sflag, size = 0x8, scoped, tag = 'scoped memory for net_forward.19']
    %9 = vsyncpa [#allocation3], 0
    loop: start=0, step=1, limit=4
    $region2: #{net_forward.19} parent=1 // loop_pre_header
      _
    $region3: #{net_forward.19} parent=1 // loop_header
      %s11 = sphi 0, %s15
      %p12 = scmp.ge.s32.totalorder %s11, 4
      %s19 = sphi 0, %s19
      %s21 = sphi 0, %s19
      %s22 = sphi 0, %s21
      %s36 = sphi 0, %s22
      %s42 = sphi 0, %s44
      %s45 = sphi 0, %s42
      %s46 = sphi 0, %s45
      %s62 = sphi 0, %s46
      %s68 = sphi 0, %s70
      %s71 = sphi 0, %s68
      %s72 = sphi 0, %s71
      %s88 = sphi 0, %s72
      %s94 = sphi 0, %s96
      %s97 = sphi 0, %s94
      %s98 = sphi 0, %s97
      %s114 = sphi 0, %s98
      %s120 = sphi 0, %s122
      %s123 = sphi 0, %s120
      %s124 = sphi 0, %s123
      %s140 = sphi 0, %s124
    $region4: #{net_forward.19} parent=1 // loop_header_branch
      %14 = sbr.rel (%p12) target = $region8
    $region5: #{net_forward.19} parent=1 // loop_body
      %s16 = ssub.s32 %s11, 1
      %s17 = ssub.s32 %s11, 2
      %s18 = sadd.s32 %s11, 1
      %s20 = sadd.s32 %s19, 1
      %p23 = scmp.eq.s32.totalorder %s11, 1
      %p24 = scmp.ne.s32.totalorder %s19, %s21
      %p25 = scmp.eq.s32.totalorder %s11, 0
      %p26 = por %p24, %p25
      %p27 = scmp.ne.s32.totalorder %s19, %s21
      %p28 = scmp.eq.s32.totalorder %s16, 1
      %p29 = por %p27, %p28
      %p30 = scmp.ne.s32.totalorder %s21, %s22
      %p31 = scmp.eq.s32.totalorder %s16, 0
      %p32 = por %p30, %p31
      %p33 = scmp.ne.s32.totalorder %s21, %s22
      %p34 = scmp.eq.s32.totalorder %s17, 1
      %p35 = por %p33, %p34
      %p37 = scmp.ne.s32.totalorder %s22, %s36
      %p38 = scmp.eq.s32.totalorder %s17, 0
      %p39 = por %p37, %p38
      %s40 = ssub.s32 %s11, %s18
      %p41 = scmp.eq.s32.totalorder %s40, 0
      %s43 = sadd.s32 %s42, 1
      %s44 = scalar_select %p41, %s42, %s43
      %p47 = pneg %p41
      %p48 = scmp.eq.s32.totalorder %s11, 1
      %p49 = por %p47, %p48
      %p50 = scmp.ne.s32.totalorder %s42, %s45
      %p51 = scmp.eq.s32.totalorder %s11, 0
      %p52 = por %p50, %p51
      %p53 = scmp.ne.s32.totalorder %s42, %s45
      %p54 = scmp.eq.s32.totalorder %s16, 1
      %p55 = por %p53, %p54
      %p56 = scmp.ne.s32.totalorder %s45, %s46
      %p57 = scmp.eq.s32.totalorder %s16, 0
      %p58 = por %p56, %p57
      %p59 = scmp.ne.s32.totalorder %s45, %s46
      %p60 = scmp.eq.s32.totalorder %s17, 1
      %p61 = por %p59, %p60
      %p63 = scmp.ne.s32.totalorder %s46, %s62
      %p64 = scmp.eq.s32.totalorder %s17, 0
      %p65 = por %p63, %p64
      %s66 = ssub.s32 %s11, %s18
      %p67 = scmp.eq.s32.totalorder %s66, 0
      %s69 = sadd.s32 %s68, 1
      %s70 = scalar_select %p67, %s68, %s69
      %p73 = pneg %p67
      %p74 = scmp.eq.s32.totalorder %s11, 1
      %p75 = por %p73, %p74
      %p76 = scmp.ne.s32.totalorder %s68, %s71
      %p77 = scmp.eq.s32.totalorder %s11, 0
      %p78 = por %p76, %p77
      %p79 = scmp.ne.s32.totalorder %s68, %s71
      %p80 = scmp.eq.s32.totalorder %s16, 1
      %p81 = por %p79, %p80
      %p82 = scmp.ne.s32.totalorder %s71, %s72
      %p83 = scmp.eq.s32.totalorder %s16, 0
      %p84 = por %p82, %p83
      %p85 = scmp.ne.s32.totalorder %s71, %s72
      %p86 = scmp.eq.s32.totalorder %s17, 1
      %p87 = por %p85, %p86
      %p89 = scmp.ne.s32.totalorder %s72, %s88
      %p90 = scmp.eq.s32.totalorder %s17, 0
      %p91 = por %p89, %p90
      %s92 = ssub.s32 %s11, %s18
      %p93 = scmp.eq.s32.totalorder %s92, 0
      %s95 = sadd.s32 %s94, 1
      %s96 = scalar_select %p93, %s94, %s95
      %p99 = pneg %p93
      %p100 = scmp.eq.s32.totalorder %s11, 1
      %p101 = por %p99, %p100
      %p102 = scmp.ne.s32.totalorder %s94, %s97
      %p103 = scmp.eq.s32.totalorder %s11, 0
      %p104 = por %p102, %p103
      %p105 = scmp.ne.s32.totalorder %s94, %s97
      %p106 = scmp.eq.s32.totalorder %s16, 1
      %p107 = por %p105, %p106
      %p108 = scmp.ne.s32.totalorder %s97, %s98
      %p109 = scmp.eq.s32.totalorder %s16, 0
      %p110 = por %p108, %p109
      %p111 = scmp.ne.s32.totalorder %s97, %s98
      %p112 = scmp.eq.s32.totalorder %s17, 1
      %p113 = por %p111, %p112
      %p115 = scmp.ne.s32.totalorder %s98, %s114
      %p116 = scmp.eq.s32.totalorder %s17, 0
      %p117 = por %p115, %p116
      %s118 = ssub.s32 %s11, %s18
      %p119 = scmp.eq.s32.totalorder %s118, 0
      %s121 = sadd.s32 %s120, 1
      %s122 = scalar_select %p119, %s120, %s121
      %p125 = pneg %p119
      %p126 = scmp.eq.s32.totalorder %s11, 1
      %p127 = por %p125, %p126
      %p128 = scmp.ne.s32.totalorder %s120, %s123
      %p129 = scmp.eq.s32.totalorder %s11, 0
      %p130 = por %p128, %p129
      %p131 = scmp.ne.s32.totalorder %s120, %s123
      %p132 = scmp.eq.s32.totalorder %s16, 1
      %p133 = por %p131, %p132
      %p134 = scmp.ne.s32.totalorder %s123, %s124
      %p135 = scmp.eq.s32.totalorder %s16, 0
      %p136 = por %p134, %p135
      %p137 = scmp.ne.s32.totalorder %s123, %s124
      %p138 = scmp.eq.s32.totalorder %s17, 1
      %p139 = por %p137, %p138
      %p141 = scmp.ne.s32.totalorder %s124, %s140
      %p142 = scmp.eq.s32.totalorder %s17, 0
      %p143 = por %p141, %p142
      %p144 = scmp.le.s32.totalorder 1, %s11
      %p145 = scmp.lt.s32.totalorder %s11, 3
      %p146 = pnand %p144, %p145
      %p147 = pneg %p146
      // Predicated region
      $region9: #{net_forward.19} parent=5 // pred_check
        _
      $region10: #{net_forward.19} parent=5 // pred_check_branch
        %149 = sbr.rel (%p146) target = $region12
      $region11: #{net_forward.19} parent=5 // pred_region
        %s150 = ssub.s32 %s11, 1
        // Predicated region
        $region13: #{net_forward.19} parent=11 // pred_check
          %p151 = pneg %p32
        $region14: #{net_forward.19} parent=11 // pred_check_branch
          %153 = sbr.rel (%p151) target = $region16
        $region15: #{net_forward.19} parent=11 // pred_region
          %s155 = ssub.s32 16, 16
          %156 = vsyncadd [#allocation3], %s155
          %s158 = sshll.u32 %s0, 4
          %s159 = int_to_ptr.vmem [resolvable:$true] %s158
          %161 = dma.vmem_to_smem %s159, 16, [#allocation2], [#allocation3]
        $region16: #{net_forward.19} parent=11 // pred_fallthru
          _
      $region12: #{net_forward.19} parent=5 // pred_fallthru
        _
      %p162 = scmp.lt.s32.totalorder %s11, 2
      // Predicated region
      $region17: #{net_forward.19} parent=5 // pred_check
        %p163 = pneg %p162
      $region18: #{net_forward.19} parent=5 // pred_check_branch
        %165 = sbr.rel (%p163) target = $region20
      $region19: #{net_forward.19} parent=5 // pred_region
        // Predicated region
        $region21: #{net_forward.19} parent=19 // pred_check
          %p166 = pneg %p52
        $region22: #{net_forward.19} parent=19 // pred_check_branch
          %168 = sbr.rel (%p166) target = $region24
        $region23: #{net_forward.19} parent=19 // pred_region
          %p169 = scmp.lt.s32.totalorder %s11, 1
          %s170 = scalar_select %p169, %s11, 1
          %s171 = smul.addr %s170, 32
          %s172 = smul.addr %s171, 4
          %s173 = scalar_lea.vmem %s1, %s172
        $region24: #{net_forward.19} parent=19 // pred_fallthru
          _
        // Predicated region
        $region25: #{net_forward.19} parent=19 // pred_check
          %p174 = pneg %p78
        $region26: #{net_forward.19} parent=19 // pred_check_branch
          %176 = sbr.rel (%p174) target = $region28
        $region27: #{net_forward.19} parent=19 // pred_region
          %p177 = scmp.lt.s32.totalorder %s11, 1
          %s178 = scalar_select %p177, %s11, 1
          %s179 = smul.addr %s178, 2
          %s180 = scalar_lea.vmem %s2, %s179
        $region28: #{net_forward.19} parent=19 // pred_fallthru
          _
        // Predicated region
        $region29: #{net_forward.19} parent=19 // pred_check
          %p181 = pneg %p104
        $region30: #{net_forward.19} parent=19 // pred_check_branch
          %183 = sbr.rel (%p181) target = $region32
        $region31: #{net_forward.19} parent=19 // pred_region
          %p184 = scmp.lt.s32.totalorder %s11, 1
          %s185 = scalar_select %p184, %s11, 1
          %s186 = smul.addr %s185, 4
          %s187 = scalar_lea.vmem %s3, %s186
        $region32: #{net_forward.19} parent=19 // pred_fallthru
          _
      $region20: #{net_forward.19} parent=5 // pred_fallthru
        _
      %p188 = scmp.le.s32.totalorder 1, %s11
      %p189 = scmp.lt.s32.totalorder %s11, 3
      %p190 = pnand %p188, %p189
      %p191 = pneg %p190
      // Predicated region
      $region33: #{net_forward.19} parent=5 // pred_check
        _
      $region34: #{net_forward.19} parent=5 // pred_check_branch
        %193 = sbr.rel (%p190) target = $region36
      $region35: #{net_forward.19} parent=5 // pred_region
        %s194 = ssub.s32 %s11, 1
        // Predicated region
        $region37: #{net_forward.19} parent=35 // pred_check
          %p195 = pneg %p32
        $region38: #{net_forward.19} parent=35 // pred_check_branch
          %197 = sbr.rel (%p195) target = $region40
        $region39: #{net_forward.19} parent=35 // pred_region
          %198 = dma.done [#allocation3], 16
        $region40: #{net_forward.19} parent=35 // pred_fallthru
          _
        %199 = sfence
        %p200 = pneg %p32
        %p201 = pneg %p29
        %p202 = scmp.lt.s32.totalorder %s16, 1
        %s203 = scalar_select %p202, %s16, 1
        %s204 = smul.addr %s203, 32
        %s205 = smul.addr %s204, 4
        %s206 = scalar_lea.vmem %s1, %s205
        %p207 = pneg %p58
        %p208 = pneg %p55
        %p209 = scmp.lt.s32.totalorder %s16, 1
        %s210 = scalar_select %p209, %s16, 1
        %s211 = smul.addr %s210, 2
        %s212 = scalar_lea.vmem %s2, %s211
        %p213 = pneg %p84
        %p214 = pneg %p81
        %p215 = scmp.lt.s32.totalorder %s16, 1
        %s216 = scalar_select %p215, %s16, 1
        %s217 = smul.addr %s216, 4
        %s218 = scalar_lea.vmem %s3, %s217
        %p219 = pneg %p110
        %p220 = pneg %p107
        %p221 = pneg %p136
        %p222 = pneg %p133
        %p223 = scmp.lt.s32.totalorder %s16, 1
        %s224 = scalar_select %p223, %s16, 1
        %s225 = smul.addr %s224, 2
        %s226 = smul.addr %s225, 2
        %s227 = scalar_lea.vmem %s4, %s226
        %p228 = scmp.lt.s32.totalorder %s16, 1
        %s229 = scalar_select %p228, %s16, 1
        %s230 = smul.addr %s229, 32
        %s231 = smul.addr %s230, 4
        %s232 = scalar_lea.vmem %s1, %s231
        %p233 = scmp.lt.s32.totalorder %s16, 1
        %s234 = scalar_select %p233, %s16, 1
        %s235 = smul.addr %s234, 2
        %s236 = scalar_lea.vmem %s2, %s235
        %p237 = scmp.lt.s32.totalorder %s16, 1
        %s238 = scalar_select %p237, %s16, 1
        %s239 = smul.addr %s238, 4
        %s240 = scalar_lea.vmem %s3, %s239
        %p241 = scmp.lt.s32.totalorder %s16, 1
        %s242 = scalar_select %p241, %s16, 1
        %s243 = smul.addr %s242, 2
        %s244 = smul.addr %s243, 2
        %s245 = scalar_lea.vmem %s4, %s244
        %v247 = vld [vmem:[%s236] sm:$0x3]
        %v248 = vld [vmem:[%s232] sm:$0xff]
        %v249 = vld [vmem:[%s232 + $0x8] sm:$0xff]
        %v250 = vld [vmem:[%s232 + $0x10] sm:$0xff]
        %v251 = vld [vmem:[%s232 + $0x18] sm:$0xff]
        %v252 = vld [vmem:[%s232 + $0x20] sm:$0xff]
        %v253 = vld [vmem:[%s232 + $0x28] sm:$0xff]
        %v254 = vld [vmem:[%s232 + $0x30] sm:$0xff]
        %v255 = vld [vmem:[%s232 + $0x38] sm:$0xff]
        %v256 = vld [vmem:[%s232 + $0x40] sm:$0xff]
        %v257 = vld [vmem:[%s232 + $0x48] sm:$0xff]
        %v258 = vld [vmem:[%s232 + $0x50] sm:$0xff]
        %v259 = vld [vmem:[%s232 + $0x58] sm:$0xff]
        %v260 = vld [vmem:[%s232 + $0x60] sm:$0xff]
        %v261 = vld [vmem:[%s232 + $0x68] sm:$0xff]
        %v262 = vld [vmem:[%s232 + $0x70] sm:$0xff]
        %v263 = vld [vmem:[%s232 + $0x78] sm:$0xff]
        %v264 = vld [vmem:[%s240] sm:$0xf]
        %266 = vset.pattern.permute.xlu0 0
        %267 = vperm.xlu0 %266, %v264
        %v268 = vpop.permute.xlu0 %267
        %v286 = vunpack.c.l.b16 %v248
        %v287 = vunpack.c.h.b16 %v248
        %v288 = vunpack.c.l.b16 %v249
        %v289 = vunpack.c.h.b16 %v249
        %v290 = vunpack.c.l.b16 %v250
        %v291 = vunpack.c.h.b16 %v250
        %v292 = vunpack.c.l.b16 %v251
        %v293 = vunpack.c.h.b16 %v251
        %v294 = vunpack.c.l.b16 %v252
        %v295 = vunpack.c.h.b16 %v252
        %v296 = vunpack.c.l.b16 %v253
        %v297 = vunpack.c.h.b16 %v253
        %v298 = vunpack.c.l.b16 %v254
        %v299 = vunpack.c.h.b16 %v254
        %v300 = vunpack.c.l.b16 %v255
        %v301 = vunpack.c.h.b16 %v255
        %v302 = vunpack.c.l.b16 %v256
        %v303 = vunpack.c.h.b16 %v256
        %v304 = vunpack.c.l.b16 %v257
        %v305 = vunpack.c.h.b16 %v257
        %v306 = vunpack.c.l.b16 %v258
        %v307 = vunpack.c.h.b16 %v258
        %v308 = vunpack.c.l.b16 %v259
        %v309 = vunpack.c.h.b16 %v259
        %v310 = vunpack.c.l.b16 %v260
        %v311 = vunpack.c.h.b16 %v260
        %v312 = vunpack.c.l.b16 %v261
        %v313 = vunpack.c.h.b16 %v261
        %v314 = vunpack.c.l.b16 %v262
        %v315 = vunpack.c.h.b16 %v262
        %v316 = vunpack.c.l.b16 %v263
        %v317 = vunpack.c.h.b16 %v263
        %v318 = vpack.c.b16 %v288, %v286
        %v319 = vpack.c.b16 %v289, %v287
        %v320 = vpack.c.b16 %v292, %v290
        %v321 = vpack.c.b16 %v293, %v291
        %v322 = vpack.c.b16 %v296, %v294
        %v323 = vpack.c.b16 %v297, %v295
        %v324 = vpack.c.b16 %v300, %v298
        %v325 = vpack.c.b16 %v301, %v299
        %v326 = vpack.c.b16 %v304, %v302
        %v327 = vpack.c.b16 %v305, %v303
        %v328 = vpack.c.b16 %v308, %v306
        %v329 = vpack.c.b16 %v309, %v307
        %v330 = vpack.c.b16 %v312, %v310
        %v331 = vpack.c.b16 %v313, %v311
        %v332 = vpack.c.b16 %v316, %v314
        %v333 = vpack.c.b16 %v317, %v315
        %350 = vmatprep.subr.bf16.mxu0 %v319
        %351 = vmatpush1.bf16.msra.mxu0 %v318
        %352 = vmatprep.subr.bf16.mxu0 %v321
        %353 = vmatpush1.bf16.msra.mxu0 %v320
        %354 = vmatprep.subr.bf16.mxu0 %v323
        %355 = vmatpush1.bf16.msra.mxu0 %v322
        %356 = vmatprep.subr.bf16.mxu0 %v325
        %357 = vmatpush1.bf16.msra.mxu0 %v324
        %358 = vmatprep.subr.bf16.mxu0 %v327
        %359 = vmatpush1.bf16.msra.mxu0 %v326
        %360 = vmatprep.subr.bf16.mxu0 %v329
        %361 = vmatpush1.bf16.msra.mxu0 %v328
        %362 = vmatprep.subr.bf16.mxu0 %v331
        %363 = vmatpush1.bf16.msra.mxu0 %v330
        %364 = vmatprep.subr.bf16.mxu0 %v333
        %365 = vmatpush1.bf16.msra.mxu0 %v332
        %366 = vmatprep.subr.bf16.mxu0 0
        %367 = vmatpush1.bf16.msra.mxu0 0
        %368 = vmatprep.subr.bf16.mxu0 0
        %369 = vmatpush1.bf16.msra.mxu0 0
        %370 = vmatprep.subr.bf16.mxu0 0
        %371 = vmatpush1.bf16.msra.mxu0 0
        %372 = vmatprep.subr.bf16.mxu0 0
        %373 = vmatpush1.bf16.msra.mxu0 0
        %374 = vmatprep.subr.bf16.mxu0 0
        %375 = vmatpush1.bf16.msra.mxu0 0
        %376 = vmatprep.subr.bf16.mxu0 0
        %377 = vmatpush1.bf16.msra.mxu0 0
        %378 = vmatprep.subr.bf16.mxu0 0
        %379 = vmatpush1.bf16.msra.mxu0 0
        %380 = vmatprep.subr.bf16.mxu0 0
        %381 = vmatpush1.bf16.msra.mxu0 0
        %382 = vmatprep.mubr.bf16.mxu0 0
        %383 = vmatmul.mubr.bf16.gmra.mrb[0].mxu0 %v247
        %v384 = vpop.f32.mrb[0].mxu0
        %v385 = vadd.f32 %v268, %v384
        %v386 = vpop.f32.mrb[0].mxu0
        %v387 = vadd.f32 %v268, %v386
        %v388 = vpop.f32.mrb[0].mxu0
        %v389 = vpop.f32.mrb[0].mxu0
        %390 = vdwg.mxu0
        %s391 = sld [smem:[#allocation2 + %s16]]
        %vm392 = vcmp.ge.f32.partialorder %v385, 0.0
        %vm393 = vcmp.ge.f32.partialorder %v387, 0.0
        %v394 = vstv %s391
        %v395 = vmul.f32 %v394, %v385
        %v396 = vmul.f32 %v394, %v387
        %v397 = vsel %vm392, %v385, %v395
        %v398 = vsel %vm393, %v387, %v396
        %v399 = vpack.c.bf16 %v397, %v397
        %v400 = vpack.c.bf16 %v398, %v398
        %v403 = vcombine.low %v399, %v400
        %v405 = vunpack.c.l.s4 1983009808
        %v406 = vunpack.c.0.s8 %v405
        %v407 = vlaneseq
        %v408 = vshrl.u32 %v407, 7
        %v409 = vsub.s32 %v406, %v408
        %v410 = vrot.slane %v403, %v409
        %412 = vst [vmem:[%s245] sm:$0xf] %v410
        %p413 = scmp.lt.s32.totalorder %s16, 1
        %s414 = scalar_select %p413, %s16, 1
        %s415 = smul.addr %s414, 2
        %s416 = smul.addr %s415, 2
        %s417 = scalar_lea.vmem %s4, %s416
        // Predicated region
        $region41: #{net_forward.19} parent=35 // pred_check
          %p418 = pneg %p133
        $region42: #{net_forward.19} parent=35 // pred_check_branch
          %420 = sbr.rel (%p418) target = $region44
        $region43: #{net_forward.19} parent=35 // pred_region
          _
        $region44: #{net_forward.19} parent=35 // pred_fallthru
          _
      $region36: #{net_forward.19} parent=5 // pred_fallthru
        _
      %p421 = scmp.le.s32.totalorder 2, %s11
      // Predicated region
      $region45: #{net_forward.19} parent=5 // pred_check
        %p422 = pneg %p421
      $region46: #{net_forward.19} parent=5 // pred_check_branch
        %424 = sbr.rel (%p422) target = $region48
      $region47: #{net_forward.19} parent=5 // pred_region
        %s425 = ssub.s32 %s11, 2
        // Predicated region
        $region49: #{net_forward.19} parent=47 // pred_check
          %p426 = pneg %p139
        $region50: #{net_forward.19} parent=47 // pred_check_branch
          %428 = sbr.rel (%p426) target = $region52
        $region51: #{net_forward.19} parent=47 // pred_region
          %p429 = scmp.lt.s32.totalorder %s17, 1
          %s430 = scalar_select %p429, %s17, 1
          %s431 = smul.addr %s430, 2
          %s432 = smul.addr %s431, 2
          %s433 = scalar_lea.vmem %s4, %s432
        $region52: #{net_forward.19} parent=47 // pred_fallthru
          _
      $region48: #{net_forward.19} parent=5 // pred_fallthru
        _
    $region6: #{net_forward.19} parent=1 // loop_footer
      %s15 = sadd.s32 1, %s11
    $region7: #{net_forward.19} parent=1 // loop_footer_branch
      %10 = sbr.rel target = $region3
    $region8: #{net_forward.19} parent=1 // loop_exit
      _
    %434 = vsyncpa [#allocation3], 1
    %s435 = scalar_lea.sflag [#allocation3], 1
    %436 = vsyncpa %s435, 1

// kernel: net_forward.20
$region0: #{net_forward.20}
  #allocation0 [shape = 'u32[]', space=smem, size = 0x4, offset = 0x4, fixed_abs, tag = 'smem constant byte address 0x4 - core index']
  #allocation1 [shape = 'u32[144,128]{1,0:T(1,128)}', space=vmem, size = 0x12000, scoped, tag = 'internal scratch']
  %s0 = inlined_call_operand.vmem [shape: f32[2], index: 0, kind: input, shape index: {}]
  %s1 = inlined_call_operand.vmem [shape: bf16[2,128,256], index: 1, kind: input, shape index: {}]
  %s2 = inlined_call_operand.vmem [shape: bf16[2,8,128], index: 2, kind: input, shape index: {}]
  %s3 = inlined_call_operand.vmem [shape: f32[2,8,1], index: 3, kind: input, shape index: {}]
  %s4 = inlined_call_operand.vmem [shape: bf16[2,8,256], index: 4, kind: output, shape index: {}]
  %s5 = sld [smem:[#allocation0]]
  $region53: #{net_forward.20} parent=0
    _
  %s7 = ssub.s32 1, %s5
  %s8 = scalar_select 0, %s7, %s5
  $region1: #{net_forward.20} parent=0
    #allocation2 [shape = 'u8[512]{0}', space=smem, size = 0x200, scoped, tag = 'input window, operand 0, single buffered']
    #allocation3 [shape = 's32[2]{0}', space=sflag, size = 0x8, scoped, tag = 'scoped memory for net_forward.20']
    %9 = vsyncpa [#allocation3], 0
    loop: start=0, step=1, limit=4
    $region2: #{net_forward.20} parent=1 // loop_pre_header
      _
    $region3: #{net_forward.20} parent=1 // loop_header
      %s11 = sphi 0, %s15
      %p12 = scmp.ge.s32.totalorder %s11, 4
      %s19 = sphi 0, %s19
      %s21 = sphi 0, %s19
      %s22 = sphi 0, %s21
      %s36 = sphi 0, %s22
      %s42 = sphi 0, %s44
      %s45 = sphi 0, %s42
      %s46 = sphi 0, %s45
      %s62 = sphi 0, %s46
      %s68 = sphi 0, %s70
      %s71 = sphi 0, %s68
      %s72 = sphi 0, %s71
      %s88 = sphi 0, %s72
      %s94 = sphi 0, %s96
      %s97 = sphi 0, %s94
      %s98 = sphi 0, %s97
      %s114 = sphi 0, %s98
      %s120 = sphi 0, %s122
      %s123 = sphi 0, %s120
      %s124 = sphi 0, %s123
      %s140 = sphi 0, %s124
    $region4: #{net_forward.20} parent=1 // loop_header_branch
      %14 = sbr.rel (%p12) target = $region8
    $region5: #{net_forward.20} parent=1 // loop_body
      %s16 = ssub.s32 %s11, 1
      %s17 = ssub.s32 %s11, 2
      %s18 = sadd.s32 %s11, 1
      %s20 = sadd.s32 %s19, 1
      %p23 = scmp.eq.s32.totalorder %s11, 1
      %p24 = scmp.ne.s32.totalorder %s19, %s21
      %p25 = scmp.eq.s32.totalorder %s11, 0
      %p26 = por %p24, %p25
      %p27 = scmp.ne.s32.totalorder %s19, %s21
      %p28 = scmp.eq.s32.totalorder %s16, 1
      %p29 = por %p27, %p28
      %p30 = scmp.ne.s32.totalorder %s21, %s22
      %p31 = scmp.eq.s32.totalorder %s16, 0
      %p32 = por %p30, %p31
      %p33 = scmp.ne.s32.totalorder %s21, %s22
      %p34 = scmp.eq.s32.totalorder %s17, 1
      %p35 = por %p33, %p34
      %p37 = scmp.ne.s32.totalorder %s22, %s36
      %p38 = scmp.eq.s32.totalorder %s17, 0
      %p39 = por %p37, %p38
      %s40 = ssub.s32 %s11, %s18
      %p41 = scmp.eq.s32.totalorder %s40, 0
      %s43 = sadd.s32 %s42, 1
      %s44 = scalar_select %p41, %s42, %s43
      %p47 = pneg %p41
      %p48 = scmp.eq.s32.totalorder %s11, 1
      %p49 = por %p47, %p48
      %p50 = scmp.ne.s32.totalorder %s42, %s45
      %p51 = scmp.eq.s32.totalorder %s11, 0
      %p52 = por %p50, %p51
      %p53 = scmp.ne.s32.totalorder %s42, %s45
      %p54 = scmp.eq.s32.totalorder %s16, 1
      %p55 = por %p53, %p54
      %p56 = scmp.ne.s32.totalorder %s45, %s46
      %p57 = scmp.eq.s32.totalorder %s16, 0
      %p58 = por %p56, %p57
      %p59 = scmp.ne.s32.totalorder %s45, %s46
      %p60 = scmp.eq.s32.totalorder %s17, 1
      %p61 = por %p59, %p60
      %p63 = scmp.ne.s32.totalorder %s46, %s62
      %p64 = scmp.eq.s32.totalorder %s17, 0
      %p65 = por %p63, %p64
      %s66 = ssub.s32 %s11, %s18
      %p67 = scmp.eq.s32.totalorder %s66, 0
      %s69 = sadd.s32 %s68, 1
      %s70 = scalar_select %p67, %s68, %s69
      %p73 = pneg %p67
      %p74 = scmp.eq.s32.totalorder %s11, 1
      %p75 = por %p73, %p74
      %p76 = scmp.ne.s32.totalorder %s68, %s71
      %p77 = scmp.eq.s32.totalorder %s11, 0
      %p78 = por %p76, %p77
      %p79 = scmp.ne.s32.totalorder %s68, %s71
      %p80 = scmp.eq.s32.totalorder %s16, 1
      %p81 = por %p79, %p80
      %p82 = scmp.ne.s32.totalorder %s71, %s72
      %p83 = scmp.eq.s32.totalorder %s16, 0
      %p84 = por %p82, %p83
      %p85 = scmp.ne.s32.totalorder %s71, %s72
      %p86 = scmp.eq.s32.totalorder %s17, 1
      %p87 = por %p85, %p86
      %p89 = scmp.ne.s32.totalorder %s72, %s88
      %p90 = scmp.eq.s32.totalorder %s17, 0
      %p91 = por %p89, %p90
      %s92 = ssub.s32 %s11, %s18
      %p93 = scmp.eq.s32.totalorder %s92, 0
      %s95 = sadd.s32 %s94, 1
      %s96 = scalar_select %p93, %s94, %s95
      %p99 = pneg %p93
      %p100 = scmp.eq.s32.totalorder %s11, 1
      %p101 = por %p99, %p100
      %p102 = scmp.ne.s32.totalorder %s94, %s97
      %p103 = scmp.eq.s32.totalorder %s11, 0
      %p104 = por %p102, %p103
      %p105 = scmp.ne.s32.totalorder %s94, %s97
      %p106 = scmp.eq.s32.totalorder %s16, 1
      %p107 = por %p105, %p106
      %p108 = scmp.ne.s32.totalorder %s97, %s98
      %p109 = scmp.eq.s32.totalorder %s16, 0
      %p110 = por %p108, %p109
      %p111 = scmp.ne.s32.totalorder %s97, %s98
      %p112 = scmp.eq.s32.totalorder %s17, 1
      %p113 = por %p111, %p112
      %p115 = scmp.ne.s32.totalorder %s98, %s114
      %p116 = scmp.eq.s32.totalorder %s17, 0
      %p117 = por %p115, %p116
      %s118 = ssub.s32 %s11, %s18
      %p119 = scmp.eq.s32.totalorder %s118, 0
      %s121 = sadd.s32 %s120, 1
      %s122 = scalar_select %p119, %s120, %s121
      %p125 = pneg %p119
      %p126 = scmp.eq.s32.totalorder %s11, 1
      %p127 = por %p125, %p126
      %p128 = scmp.ne.s32.totalorder %s120, %s123
      %p129 = scmp.eq.s32.totalorder %s11, 0
      %p130 = por %p128, %p129
      %p131 = scmp.ne.s32.totalorder %s120, %s123
      %p132 = scmp.eq.s32.totalorder %s16, 1
      %p133 = por %p131, %p132
      %p134 = scmp.ne.s32.totalorder %s123, %s124
      %p135 = scmp.eq.s32.totalorder %s16, 0
      %p136 = por %p134, %p135
      %p137 = scmp.ne.s32.totalorder %s123, %s124
      %p138 = scmp.eq.s32.totalorder %s17, 1
      %p139 = por %p137, %p138
      %p141 = scmp.ne.s32.totalorder %s124, %s140
      %p142 = scmp.eq.s32.totalorder %s17, 0
      %p143 = por %p141, %p142
      %p144 = scmp.le.s32.totalorder 1, %s11
      %p145 = scmp.lt.s32.totalorder %s11, 3
      %p146 = pnand %p144, %p145
      %p147 = pneg %p146
      // Predicated region
      $region9: #{net_forward.20} parent=5 // pred_check
        _
      $region10: #{net_forward.20} parent=5 // pred_check_branch
        %149 = sbr.rel (%p146) target = $region12
      $region11: #{net_forward.20} parent=5 // pred_region
        %s150 = ssub.s32 %s11, 1
        // Predicated region
        $region13: #{net_forward.20} parent=11 // pred_check
          %p151 = pneg %p32
        $region14: #{net_forward.20} parent=11 // pred_check_branch
          %153 = sbr.rel (%p151) target = $region16
        $region15: #{net_forward.20} parent=11 // pred_region
          %s155 = ssub.s32 16, 16
          %156 = vsyncadd [#allocation3], %s155
          %s158 = sshll.u32 %s0, 4
          %s159 = int_to_ptr.vmem [resolvable:$true] %s158
          %161 = dma.vmem_to_smem %s159, 16, [#allocation2], [#allocation3]
        $region16: #{net_forward.20} parent=11 // pred_fallthru
          _
      $region12: #{net_forward.20} parent=5 // pred_fallthru
        _
      %p162 = scmp.lt.s32.totalorder %s11, 2
      // Predicated region
      $region17: #{net_forward.20} parent=5 // pred_check
        %p163 = pneg %p162
      $region18: #{net_forward.20} parent=5 // pred_check_branch
        %165 = sbr.rel (%p163) target = $region20
      $region19: #{net_forward.20} parent=5 // pred_region
        // Predicated region
        $region21: #{net_forward.20} parent=19 // pred_check
          %p166 = pneg %p52
        $region22: #{net_forward.20} parent=19 // pred_check_branch
          %168 = sbr.rel (%p166) target = $region24
        $region23: #{net_forward.20} parent=19 // pred_region
          %p169 = scmp.lt.s32.totalorder %s11, 1
          %s170 = scalar_select %p169, %s11, 1
          %s171 = smul.addr %s170, 32
          %s172 = smul.addr %s171, 4
          %s173 = scalar_lea.vmem %s1, %s172
        $region24: #{net_forward.20} parent=19 // pred_fallthru
          _
        // Predicated region
        $region25: #{net_forward.20} parent=19 // pred_check
          %p174 = pneg %p78
        $region26: #{net_forward.20} parent=19 // pred_check_branch
          %176 = sbr.rel (%p174) target = $region28
        $region27: #{net_forward.20} parent=19 // pred_region
          %p177 = scmp.lt.s32.totalorder %s11, 1
          %s178 = scalar_select %p177, %s11, 1
          %s179 = smul.addr %s178, 4
          %s180 = scalar_lea.vmem %s2, %s179
        $region28: #{net_forward.20} parent=19 // pred_fallthru
          _
        // Predicated region
        $region29: #{net_forward.20} parent=19 // pred_check
          %p181 = pneg %p104
        $region30: #{net_forward.20} parent=19 // pred_check_branch
          %183 = sbr.rel (%p181) target = $region32
        $region31: #{net_forward.20} parent=19 // pred_region
          %p184 = scmp.lt.s32.totalorder %s11, 1
          %s185 = scalar_select %p184, %s11, 1
          %s186 = smul.addr %s185, 8
          %s187 = scalar_lea.vmem %s3, %s186
        $region32: #{net_forward.20} parent=19 // pred_fallthru
          _
      $region20: #{net_forward.20} parent=5 // pred_fallthru
        _
      %p188 = scmp.le.s32.totalorder 1, %s11
      %p189 = scmp.lt.s32.totalorder %s11, 3
      %p190 = pnand %p188, %p189
      %p191 = pneg %p190
      // Predicated region
      $region33: #{net_forward.20} parent=5 // pred_check
        _
      $region34: #{net_forward.20} parent=5 // pred_check_branch
        %193 = sbr.rel (%p190) target = $region36
      $region35: #{net_forward.20} parent=5 // pred_region
        %s194 = ssub.s32 %s11, 1
        // Predicated region
        $region37: #{net_forward.20} parent=35 // pred_check
          %p195 = pneg %p32
        $region38: #{net_forward.20} parent=35 // pred_check_branch
          %197 = sbr.rel (%p195) target = $region40
        $region39: #{net_forward.20} parent=35 // pred_region
          %198 = dma.done [#allocation3], 16
        $region40: #{net_forward.20} parent=35 // pred_fallthru
          _
        %199 = sfence
        %p200 = pneg %p32
        %p201 = pneg %p29
        %p202 = scmp.lt.s32.totalorder %s16, 1
        %s203 = scalar_select %p202, %s16, 1
        %s204 = smul.addr %s203, 32
        %s205 = smul.addr %s204, 4
        %s206 = scalar_lea.vmem %s1, %s205
        %p207 = pneg %p58
        %p208 = pneg %p55
        %p209 = scmp.lt.s32.totalorder %s16, 1
        %s210 = scalar_select %p209, %s16, 1
        %s211 = smul.addr %s210, 4
        %s212 = scalar_lea.vmem %s2, %s211
        %p213 = pneg %p84
        %p214 = pneg %p81
        %p215 = scmp.lt.s32.totalorder %s16, 1
        %s216 = scalar_select %p215, %s16, 1
        %s217 = smul.addr %s216, 8
        %s218 = scalar_lea.vmem %s3, %s217
        %p219 = pneg %p110
        %p220 = pneg %p107
        %p221 = pneg %p136
        %p222 = pneg %p133
        %p223 = scmp.lt.s32.totalorder %s16, 1
        %s224 = scalar_select %p223, %s16, 1
        %s225 = smul.addr %s224, 2
        %s226 = smul.addr %s225, 4
        %s227 = scalar_lea.vmem %s4, %s226
        %p228 = scmp.lt.s32.totalorder %s16, 1
        %s229 = scalar_select %p228, %s16, 1
        %s230 = smul.addr %s229, 32
        %s231 = smul.addr %s230, 4
        %s232 = scalar_lea.vmem %s1, %s231
        %p233 = scmp.lt.s32.totalorder %s16, 1
        %s234 = scalar_select %p233, %s16, 1
        %s235 = smul.addr %s234, 4
        %s236 = scalar_lea.vmem %s2, %s235
        %p237 = scmp.lt.s32.totalorder %s16, 1
        %s238 = scalar_select %p237, %s16, 1
        %s239 = smul.addr %s238, 8
        %s240 = scalar_lea.vmem %s3, %s239
        %p241 = scmp.lt.s32.totalorder %s16, 1
        %s242 = scalar_select %p241, %s16, 1
        %s243 = smul.addr %s242, 2
        %s244 = smul.addr %s243, 4
        %s245 = scalar_lea.vmem %s4, %s244
        %v247 = vld [vmem:[%s236] sm:$0xf]
        %v248 = vld [vmem:[%s232] sm:$0xff]
        %v249 = vld [vmem:[%s232 + $0x8] sm:$0xff]
        %v250 = vld [vmem:[%s232 + $0x10] sm:$0xff]
        %v251 = vld [vmem:[%s232 + $0x18] sm:$0xff]
        %v252 = vld [vmem:[%s232 + $0x20] sm:$0xff]
        %v253 = vld [vmem:[%s232 + $0x28] sm:$0xff]
        %v254 = vld [vmem:[%s232 + $0x30] sm:$0xff]
        %v255 = vld [vmem:[%s232 + $0x38] sm:$0xff]
        %v256 = vld [vmem:[%s232 + $0x40] sm:$0xff]
        %v257 = vld [vmem:[%s232 + $0x48] sm:$0xff]
        %v258 = vld [vmem:[%s232 + $0x50] sm:$0xff]
        %v259 = vld [vmem:[%s232 + $0x58] sm:$0xff]
        %v260 = vld [vmem:[%s232 + $0x60] sm:$0xff]
        %v261 = vld [vmem:[%s232 + $0x68] sm:$0xff]
        %v262 = vld [vmem:[%s232 + $0x70] sm:$0xff]
        %v263 = vld [vmem:[%s232 + $0x78] sm:$0xff]
        %v264 = vld [vmem:[%s240] sm:$0xff]
        %266 = vset.pattern.permute.xlu0 0
        %267 = vperm.xlu0 %266, %v264
        %v268 = vpop.permute.xlu0 %267
        %v286 = vunpack.c.l.b16 %v248
        %v287 = vunpack.c.h.b16 %v248
        %v288 = vunpack.c.l.b16 %v249
        %v289 = vunpack.c.h.b16 %v249
        %v290 = vunpack.c.l.b16 %v250
        %v291 = vunpack.c.h.b16 %v250
        %v292 = vunpack.c.l.b16 %v251
        %v293 = vunpack.c.h.b16 %v251
        %v294 = vunpack.c.l.b16 %v252
        %v295 = vunpack.c.h.b16 %v252
        %v296 = vunpack.c.l.b16 %v253
        %v297 = vunpack.c.h.b16 %v253
        %v298 = vunpack.c.l.b16 %v254
        %v299 = vunpack.c.h.b16 %v254
        %v300 = vunpack.c.l.b16 %v255
        %v301 = vunpack.c.h.b16 %v255
        %v302 = vunpack.c.l.b16 %v256
        %v303 = vunpack.c.h.b16 %v256
        %v304 = vunpack.c.l.b16 %v257
        %v305 = vunpack.c.h.b16 %v257
        %v306 = vunpack.c.l.b16 %v258
        %v307 = vunpack.c.h.b16 %v258
        %v308 = vunpack.c.l.b16 %v259
        %v309 = vunpack.c.h.b16 %v259
        %v310 = vunpack.c.l.b16 %v260
        %v311 = vunpack.c.h.b16 %v260
        %v312 = vunpack.c.l.b16 %v261
        %v313 = vunpack.c.h.b16 %v261
        %v314 = vunpack.c.l.b16 %v262
        %v315 = vunpack.c.h.b16 %v262
        %v316 = vunpack.c.l.b16 %v263
        %v317 = vunpack.c.h.b16 %v263
        %v318 = vpack.c.b16 %v288, %v286
        %v319 = vpack.c.b16 %v289, %v287
        %v320 = vpack.c.b16 %v292, %v290
        %v321 = vpack.c.b16 %v293, %v291
        %v322 = vpack.c.b16 %v296, %v294
        %v323 = vpack.c.b16 %v297, %v295
        %v324 = vpack.c.b16 %v300, %v298
        %v325 = vpack.c.b16 %v301, %v299
        %v326 = vpack.c.b16 %v304, %v302
        %v327 = vpack.c.b16 %v305, %v303
        %v328 = vpack.c.b16 %v308, %v306
        %v329 = vpack.c.b16 %v309, %v307
        %v330 = vpack.c.b16 %v312, %v310
        %v331 = vpack.c.b16 %v313, %v311
        %v332 = vpack.c.b16 %v316, %v314
        %v333 = vpack.c.b16 %v317, %v315
        %350 = vmatprep.subr.bf16.mxu0 %v319
        %351 = vmatpush1.bf16.msra.mxu0 %v318
        %352 = vmatprep.subr.bf16.mxu0 %v321
        %353 = vmatpush1.bf16.msra.mxu0 %v320
        %354 = vmatprep.subr.bf16.mxu0 %v323
        %355 = vmatpush1.bf16.msra.mxu0 %v322
        %356 = vmatprep.subr.bf16.mxu0 %v325
        %357 = vmatpush1.bf16.msra.mxu0 %v324
        %358 = vmatprep.subr.bf16.mxu0 %v327
        %359 = vmatpush1.bf16.msra.mxu0 %v326
        %360 = vmatprep.subr.bf16.mxu0 %v329
        %361 = vmatpush1.bf16.msra.mxu0 %v328
        %362 = vmatprep.subr.bf16.mxu0 %v331
        %363 = vmatpush1.bf16.msra.mxu0 %v330
        %364 = vmatprep.subr.bf16.mxu0 %v333
        %365 = vmatpush1.bf16.msra.mxu0 %v332
        %366 = vmatprep.subr.bf16.mxu0 0
        %367 = vmatpush1.bf16.msra.mxu0 0
        %368 = vmatprep.subr.bf16.mxu0 0
        %369 = vmatpush1.bf16.msra.mxu0 0
        %370 = vmatprep.subr.bf16.mxu0 0
        %371 = vmatpush1.bf16.msra.mxu0 0
        %372 = vmatprep.subr.bf16.mxu0 0
        %373 = vmatpush1.bf16.msra.mxu0 0
        %374 = vmatprep.subr.bf16.mxu0 0
        %375 = vmatpush1.bf16.msra.mxu0 0
        %376 = vmatprep.subr.bf16.mxu0 0
        %377 = vmatpush1.bf16.msra.mxu0 0
        %378 = vmatprep.subr.bf16.mxu0 0
        %379 = vmatpush1.bf16.msra.mxu0 0
        %380 = vmatprep.subr.bf16.mxu0 0
        %381 = vmatpush1.bf16.msra.mxu0 0
        %382 = vmatprep.mubr.bf16.mxu0 0
        %383 = vmatmul.mubr.bf16.gmra.mrb[0].mxu0 %v247
        %v384 = vpop.f32.mrb[0].mxu0
        %v385 = vadd.f32 %v268, %v384
        %v386 = vpop.f32.mrb[0].mxu0
        %v387 = vadd.f32 %v268, %v386
        %v388 = vpop.f32.mrb[0].mxu0
        %v389 = vpop.f32.mrb[0].mxu0
        %390 = vdwg.mxu0
        %s391 = sld [smem:[#allocation2 + %s16]]
        %vm392 = vcmp.ge.f32.partialorder %v385, 0.0
        %vm393 = vcmp.ge.f32.partialorder %v387, 0.0
        %v394 = vstv %s391
        %v395 = vmul.f32 %v394, %v385
        %v396 = vmul.f32 %v394, %v387
        %v397 = vsel %vm392, %v385, %v395
        %v398 = vsel %vm393, %v387, %v396
        %v399 = vpack.c.bf16 %v397, %v397
        %v400 = vpack.c.bf16 %v398, %v398
        %v403 = vunpack.c.l.b16 %v399
        %v404 = vunpack.c.l.b16 %v400
        %v405 = vpack.c.b16 %v404, %v403
        %407 = vst [vmem:[%s245] sm:$0xff] %v405
        %p408 = scmp.lt.s32.totalorder %s16, 1
        %s409 = scalar_select %p408, %s16, 1
        %s410 = smul.addr %s409, 2
        %s411 = smul.addr %s410, 4
        %s412 = scalar_lea.vmem %s4, %s411
        // Predicated region
        $region41: #{net_forward.20} parent=35 // pred_check
          %p413 = pneg %p133
        $region42: #{net_forward.20} parent=35 // pred_check_branch
          %415 = sbr.rel (%p413) target = $region44
        $region43: #{net_forward.20} parent=35 // pred_region
          _
        $region44: #{net_forward.20} parent=35 // pred_fallthru
          _
      $region36: #{net_forward.20} parent=5 // pred_fallthru
        _
      %p416 = scmp.le.s32.totalorder 2, %s11
      // Predicated region
      $region45: #{net_forward.20} parent=5 // pred_check
        %p417 = pneg %p416
      $region46: #{net_forward.20} parent=5 // pred_check_branch
        %419 = sbr.rel (%p417) target = $region48
      $region47: #{net_forward.20} parent=5 // pred_region
        %s420 = ssub.s32 %s11, 2
        // Predicated region
        $region49: #{net_forward.20} parent=47 // pred_check
          %p421 = pneg %p139
        $region50: #{net_forward.20} parent=47 // pred_check_branch
          %423 = sbr.rel (%p421) target = $region52
        $region51: #{net_forward.20} parent=47 // pred_region
          %p424 = scmp.lt.s32.totalorder %s17, 1
          %s425 = scalar_select %p424, %s17, 1
          %s426 = smul.addr %s425, 2
          %s427 = smul.addr %s426, 4
          %s428 = scalar_lea.vmem %s4, %s427
        $region52: #{net_forward.20} parent=47 // pred_fallthru
          _
      $region48: #{net_forward.20} parent=5 // pred_fallthru
        _
    $region6: #{net_forward.20} parent=1 // loop_footer
      %s15 = sadd.s32 1, %s11
    $region7: #{net_forward.20} parent=1 // loop_footer_branch
      %10 = sbr.rel target = $region3
    $region8: #{net_forward.20} parent=1 // loop_exit
      _
    %429 = vsyncpa [#allocation3], 1
    %s430 = scalar_lea.sflag [#allocation3], 1
    %431 = vsyncpa %s430, 1

// kernel: net_forward.21
$region0: #{net_forward.21}
  #allocation0 [shape = 'u32[]', space=smem, size = 0x4, offset = 0x4, fixed_abs, tag = 'smem constant byte address 0x4 - core index']
  #allocation1 [shape = 'u32[144,128]{1,0:T(1,128)}', space=vmem, size = 0x12000, scoped, tag = 'internal scratch']
  %s0 = inlined_call_operand.vmem [shape: f32[2], index: 0, kind: input, shape index: {}]
  %s1 = inlined_call_operand.vmem [shape: bf16[2,256,256], index: 1, kind: input, shape index: {}]
  %s2 = inlined_call_operand.vmem [shape: bf16[2,8,256], index: 2, kind: input, shape index: {}]
  %s3 = inlined_call_operand.vmem [shape: f32[2,8,1], index: 3, kind: input, shape index: {}]
  %s4 = inlined_call_operand.vmem [shape: bf16[2,8,256], index: 4, kind: output, shape index: {}]
  %s5 = sld [smem:[#allocation0]]
  $region53: #{net_forward.21} parent=0
    _
  %s7 = ssub.s32 1, %s5
  %s8 = scalar_select 0, %s7, %s5
  $region1: #{net_forward.21} parent=0
    #allocation2 [shape = 'u8[512]{0}', space=smem, size = 0x200, scoped, tag = 'input window, operand 0, single buffered']
    #allocation3 [shape = 's32[2]{0}', space=sflag, size = 0x8, scoped, tag = 'scoped memory for net_forward.21']
    %9 = vsyncpa [#allocation3], 0
    loop: start=0, step=1, limit=4
    $region2: #{net_forward.21} parent=1 // loop_pre_header
      _
    $region3: #{net_forward.21} parent=1 // loop_header
      %s11 = sphi 0, %s15
      %p12 = scmp.ge.s32.totalorder %s11, 4
      %s19 = sphi 0, %s19
      %s21 = sphi 0, %s19
      %s22 = sphi 0, %s21
      %s36 = sphi 0, %s22
      %s42 = sphi 0, %s44
      %s45 = sphi 0, %s42
      %s46 = sphi 0, %s45
      %s62 = sphi 0, %s46
      %s68 = sphi 0, %s70
      %s71 = sphi 0, %s68
      %s72 = sphi 0, %s71
      %s88 = sphi 0, %s72
      %s94 = sphi 0, %s96
      %s97 = sphi 0, %s94
      %s98 = sphi 0, %s97
      %s114 = sphi 0, %s98
      %s120 = sphi 0, %s122
      %s123 = sphi 0, %s120
      %s124 = sphi 0, %s123
      %s140 = sphi 0, %s124
    $region4: #{net_forward.21} parent=1 // loop_header_branch
      %14 = sbr.rel (%p12) target = $region8
    $region5: #{net_forward.21} parent=1 // loop_body
      %s16 = ssub.s32 %s11, 1
      %s17 = ssub.s32 %s11, 2
      %s18 = sadd.s32 %s11, 1
      %s20 = sadd.s32 %s19, 1
      %p23 = scmp.eq.s32.totalorder %s11, 1
      %p24 = scmp.ne.s32.totalorder %s19, %s21
      %p25 = scmp.eq.s32.totalorder %s11, 0
      %p26 = por %p24, %p25
      %p27 = scmp.ne.s32.totalorder %s19, %s21
      %p28 = scmp.eq.s32.totalorder %s16, 1
      %p29 = por %p27, %p28
      %p30 = scmp.ne.s32.totalorder %s21, %s22
      %p31 = scmp.eq.s32.totalorder %s16, 0
      %p32 = por %p30, %p31
      %p33 = scmp.ne.s32.totalorder %s21, %s22
      %p34 = scmp.eq.s32.totalorder %s17, 1
      %p35 = por %p33, %p34
      %p37 = scmp.ne.s32.totalorder %s22, %s36
      %p38 = scmp.eq.s32.totalorder %s17, 0
      %p39 = por %p37, %p38
      %s40 = ssub.s32 %s11, %s18
      %p41 = scmp.eq.s32.totalorder %s40, 0
      %s43 = sadd.s32 %s42, 1
      %s44 = scalar_select %p41, %s42, %s43
      %p47 = pneg %p41
      %p48 = scmp.eq.s32.totalorder %s11, 1
      %p49 = por %p47, %p48
      %p50 = scmp.ne.s32.totalorder %s42, %s45
      %p51 = scmp.eq.s32.totalorder %s11, 0
      %p52 = por %p50, %p51
      %p53 = scmp.ne.s32.totalorder %s42, %s45
      %p54 = scmp.eq.s32.totalorder %s16, 1
      %p55 = por %p53, %p54
      %p56 = scmp.ne.s32.totalorder %s45, %s46
      %p57 = scmp.eq.s32.totalorder %s16, 0
      %p58 = por %p56, %p57
      %p59 = scmp.ne.s32.totalorder %s45, %s46
      %p60 = scmp.eq.s32.totalorder %s17, 1
      %p61 = por %p59, %p60
      %p63 = scmp.ne.s32.totalorder %s46, %s62
      %p64 = scmp.eq.s32.totalorder %s17, 0
      %p65 = por %p63, %p64
      %s66 = ssub.s32 %s11, %s18
      %p67 = scmp.eq.s32.totalorder %s66, 0
      %s69 = sadd.s32 %s68, 1
      %s70 = scalar_select %p67, %s68, %s69
      %p73 = pneg %p67
      %p74 = scmp.eq.s32.totalorder %s11, 1
      %p75 = por %p73, %p74
      %p76 = scmp.ne.s32.totalorder %s68, %s71
      %p77 = scmp.eq.s32.totalorder %s11, 0
      %p78 = por %p76, %p77
      %p79 = scmp.ne.s32.totalorder %s68, %s71
      %p80 = scmp.eq.s32.totalorder %s16, 1
      %p81 = por %p79, %p80
      %p82 = scmp.ne.s32.totalorder %s71, %s72
      %p83 = scmp.eq.s32.totalorder %s16, 0
      %p84 = por %p82, %p83
      %p85 = scmp.ne.s32.totalorder %s71, %s72
      %p86 = scmp.eq.s32.totalorder %s17, 1
      %p87 = por %p85, %p86
      %p89 = scmp.ne.s32.totalorder %s72, %s88
      %p90 = scmp.eq.s32.totalorder %s17, 0
      %p91 = por %p89, %p90
      %s92 = ssub.s32 %s11, %s18
      %p93 = scmp.eq.s32.totalorder %s92, 0
      %s95 = sadd.s32 %s94, 1
      %s96 = scalar_select %p93, %s94, %s95
      %p99 = pneg %p93
      %p100 = scmp.eq.s32.totalorder %s11, 1
      %p101 = por %p99, %p100
      %p102 = scmp.ne.s32.totalorder %s94, %s97
      %p103 = scmp.eq.s32.totalorder %s11, 0
      %p104 = por %p102, %p103
      %p105 = scmp.ne.s32.totalorder %s94, %s97
      %p106 = scmp.eq.s32.totalorder %s16, 1
      %p107 = por %p105, %p106
      %p108 = scmp.ne.s32.totalorder %s97, %s98
      %p109 = scmp.eq.s32.totalorder %s16, 0
      %p110 = por %p108, %p109
      %p111 = scmp.ne.s32.totalorder %s97, %s98
      %p112 = scmp.eq.s32.totalorder %s17, 1
      %p113 = por %p111, %p112
      %p115 = scmp.ne.s32.totalorder %s98, %s114
      %p116 = scmp.eq.s32.totalorder %s17, 0
      %p117 = por %p115, %p116
      %s118 = ssub.s32 %s11, %s18
      %p119 = scmp.eq.s32.totalorder %s118, 0
      %s121 = sadd.s32 %s120, 1
      %s122 = scalar_select %p119, %s120, %s121
      %p125 = pneg %p119
      %p126 = scmp.eq.s32.totalorder %s11, 1
      %p127 = por %p125, %p126
      %p128 = scmp.ne.s32.totalorder %s120, %s123
      %p129 = scmp.eq.s32.totalorder %s11, 0
      %p130 = por %p128, %p129
      %p131 = scmp.ne.s32.totalorder %s120, %s123
      %p132 = scmp.eq.s32.totalorder %s16, 1
      %p133 = por %p131, %p132
      %p134 = scmp.ne.s32.totalorder %s123, %s124
      %p135 = scmp.eq.s32.totalorder %s16, 0
      %p136 = por %p134, %p135
      %p137 = scmp.ne.s32.totalorder %s123, %s124
      %p138 = scmp.eq.s32.totalorder %s17, 1
      %p139 = por %p137, %p138
      %p141 = scmp.ne.s32.totalorder %s124, %s140
      %p142 = scmp.eq.s32.totalorder %s17, 0
      %p143 = por %p141, %p142
      %p144 = scmp.le.s32.totalorder 1, %s11
      %p145 = scmp.lt.s32.totalorder %s11, 3
      %p146 = pnand %p144, %p145
      %p147 = pneg %p146
      // Predicated region
      $region9: #{net_forward.21} parent=5 // pred_check
        _
      $region10: #{net_forward.21} parent=5 // pred_check_branch
        %149 = sbr.rel (%p146) target = $region12
      $region11: #{net_forward.21} parent=5 // pred_region
        %s150 = ssub.s32 %s11, 1
        // Predicated region
        $region13: #{net_forward.21} parent=11 // pred_check
          %p151 = pneg %p32
        $region14: #{net_forward.21} parent=11 // pred_check_branch
          %153 = sbr.rel (%p151) target = $region16
        $region15: #{net_forward.21} parent=11 // pred_region
          %s155 = ssub.s32 16, 16
          %156 = vsyncadd [#allocation3], %s155
          %s158 = sshll.u32 %s0, 4
          %s159 = int_to_ptr.vmem [resolvable:$true] %s158
          %161 = dma.vmem_to_smem %s159, 16, [#allocation2], [#allocation3]
        $region16: #{net_forward.21} parent=11 // pred_fallthru
          _
      $region12: #{net_forward.21} parent=5 // pred_fallthru
        _
      %p162 = scmp.lt.s32.totalorder %s11, 2
      // Predicated region
      $region17: #{net_forward.21} parent=5 // pred_check
        %p163 = pneg %p162
      $region18: #{net_forward.21} parent=5 // pred_check_branch
        %165 = sbr.rel (%p163) target = $region20
      $region19: #{net_forward.21} parent=5 // pred_region
        // Predicated region
        $region21: #{net_forward.21} parent=19 // pred_check
          %p166 = pneg %p52
        $region22: #{net_forward.21} parent=19 // pred_check_branch
          %168 = sbr.rel (%p166) target = $region24
        $region23: #{net_forward.21} parent=19 // pred_region
          %p169 = scmp.lt.s32.totalorder %s11, 1
          %s170 = scalar_select %p169, %s11, 1
          %s171 = smul.addr %s170, 64
          %s172 = smul.addr %s171, 4
          %s173 = scalar_lea.vmem %s1, %s172
        $region24: #{net_forward.21} parent=19 // pred_fallthru
          _
        // Predicated region
        $region25: #{net_forward.21} parent=19 // pred_check
          %p174 = pneg %p78
        $region26: #{net_forward.21} parent=19 // pred_check_branch
          %176 = sbr.rel (%p174) target = $region28
        $region27: #{net_forward.21} parent=19 // pred_region
          %p177 = scmp.lt.s32.totalorder %s11, 1
          %s178 = scalar_select %p177, %s11, 1
          %s179 = smul.addr %s178, 2
          %s180 = smul.addr %s179, 4
          %s181 = scalar_lea.vmem %s2, %s180
        $region28: #{net_forward.21} parent=19 // pred_fallthru
          _
        // Predicated region
        $region29: #{net_forward.21} parent=19 // pred_check
          %p182 = pneg %p104
        $region30: #{net_forward.21} parent=19 // pred_check_branch
          %184 = sbr.rel (%p182) target = $region32
        $region31: #{net_forward.21} parent=19 // pred_region
          %p185 = scmp.lt.s32.totalorder %s11, 1
          %s186 = scalar_select %p185, %s11, 1
          %s187 = smul.addr %s186, 8
          %s188 = scalar_lea.vmem %s3, %s187
        $region32: #{net_forward.21} parent=19 // pred_fallthru
          _
      $region20: #{net_forward.21} parent=5 // pred_fallthru
        _
      %p189 = scmp.le.s32.totalorder 1, %s11
      %p190 = scmp.lt.s32.totalorder %s11, 3
      %p191 = pnand %p189, %p190
      %p192 = pneg %p191
      // Predicated region
      $region33: #{net_forward.21} parent=5 // pred_check
        _
      $region34: #{net_forward.21} parent=5 // pred_check_branch
        %194 = sbr.rel (%p191) target = $region36
      $region35: #{net_forward.21} parent=5 // pred_region
        %s195 = ssub.s32 %s11, 1
        // Predicated region
        $region37: #{net_forward.21} parent=35 // pred_check
          %p196 = pneg %p32
        $region38: #{net_forward.21} parent=35 // pred_check_branch
          %198 = sbr.rel (%p196) target = $region40
        $region39: #{net_forward.21} parent=35 // pred_region
          %199 = dma.done [#allocation3], 16
        $region40: #{net_forward.21} parent=35 // pred_fallthru
          _
        %200 = sfence
        %p201 = pneg %p32
        %p202 = pneg %p29
        %p203 = scmp.lt.s32.totalorder %s16, 1
        %s204 = scalar_select %p203, %s16, 1
        %s205 = smul.addr %s204, 64
        %s206 = smul.addr %s205, 4
        %s207 = scalar_lea.vmem %s1, %s206
        %p208 = pneg %p58
        %p209 = pneg %p55
        %p210 = scmp.lt.s32.totalorder %s16, 1
        %s211 = scalar_select %p210, %s16, 1
        %s212 = smul.addr %s211, 2
        %s213 = smul.addr %s212, 4
        %s214 = scalar_lea.vmem %s2, %s213
        %p215 = pneg %p84
        %p216 = pneg %p81
        %p217 = scmp.lt.s32.totalorder %s16, 1
        %s218 = scalar_select %p217, %s16, 1
        %s219 = smul.addr %s218, 8
        %s220 = scalar_lea.vmem %s3, %s219
        %p221 = pneg %p110
        %p222 = pneg %p107
        %p223 = pneg %p136
        %p224 = pneg %p133
        %p225 = scmp.lt.s32.totalorder %s16, 1
        %s226 = scalar_select %p225, %s16, 1
        %s227 = smul.addr %s226, 2
        %s228 = smul.addr %s227, 4
        %s229 = scalar_lea.vmem %s4, %s228
        %p230 = scmp.lt.s32.totalorder %s16, 1
        %s231 = scalar_select %p230, %s16, 1
        %s232 = smul.addr %s231, 64
        %s233 = smul.addr %s232, 4
        %s234 = scalar_lea.vmem %s1, %s233
        %p235 = scmp.lt.s32.totalorder %s16, 1
        %s236 = scalar_select %p235, %s16, 1
        %s237 = smul.addr %s236, 2
        %s238 = smul.addr %s237, 4
        %s239 = scalar_lea.vmem %s2, %s238
        %p240 = scmp.lt.s32.totalorder %s16, 1
        %s241 = scalar_select %p240, %s16, 1
        %s242 = smul.addr %s241, 8
        %s243 = scalar_lea.vmem %s3, %s242
        %p244 = scmp.lt.s32.totalorder %s16, 1
        %s245 = scalar_select %p244, %s16, 1
        %s246 = smul.addr %s245, 2
        %s247 = smul.addr %s246, 4
        %s248 = scalar_lea.vmem %s4, %s247
        %v249 = vld [vmem:[%s239] sm:$0xff]
        %v250 = vld [vmem:[%s234] sm:$0xff]
        %v251 = vld [vmem:[%s234 + $0x8] sm:$0xff]
        %v252 = vld [vmem:[%s234 + $0x10] sm:$0xff]
        %v253 = vld [vmem:[%s234 + $0x18] sm:$0xff]
        %v254 = vld [vmem:[%s234 + $0x20] sm:$0xff]
        %v255 = vld [vmem:[%s234 + $0x28] sm:$0xff]
        %v256 = vld [vmem:[%s234 + $0x30] sm:$0xff]
        %v257 = vld [vmem:[%s234 + $0x38] sm:$0xff]
        %v258 = vld [vmem:[%s234 + $0x40] sm:$0xff]
        %v259 = vld [vmem:[%s234 + $0x48] sm:$0xff]
        %v260 = vld [vmem:[%s234 + $0x50] sm:$0xff]
        %v261 = vld [vmem:[%s234 + $0x58] sm:$0xff]
        %v262 = vld [vmem:[%s234 + $0x60] sm:$0xff]
        %v263 = vld [vmem:[%s234 + $0x68] sm:$0xff]
        %v264 = vld [vmem:[%s234 + $0x70] sm:$0xff]
        %v265 = vld [vmem:[%s234 + $0x78] sm:$0xff]
        %v266 = vld [vmem:[%s234 + $0x80] sm:$0xff]
        %v267 = vld [vmem:[%s234 + $0x88] sm:$0xff]
        %v268 = vld [vmem:[%s234 + $0x90] sm:$0xff]
        %v269 = vld [vmem:[%s234 + $0x98] sm:$0xff]
        %v270 = vld [vmem:[%s234 + $0xa0] sm:$0xff]
        %v271 = vld [vmem:[%s234 + $0xa8] sm:$0xff]
        %v272 = vld [vmem:[%s234 + $0xb0] sm:$0xff]
        %v273 = vld [vmem:[%s234 + $0xb8] sm:$0xff]
        %v274 = vld [vmem:[%s234 + $0xc0] sm:$0xff]
        %v275 = vld [vmem:[%s234 + $0xc8] sm:$0xff]
        %v276 = vld [vmem:[%s234 + $0xd0] sm:$0xff]
        %v277 = vld [vmem:[%s234 + $0xd8] sm:$0xff]
        %v278 = vld [vmem:[%s234 + $0xe0] sm:$0xff]
        %v279 = vld [vmem:[%s234 + $0xe8] sm:$0xff]
        %v280 = vld [vmem:[%s234 + $0xf0] sm:$0xff]
        %v281 = vld [vmem:[%s234 + $0xf8] sm:$0xff]
        %v282 = vld [vmem:[%s243] sm:$0xff]
        %284 = vset.pattern.permute.xlu0 0
        %285 = vperm.xlu0 %284, %v282
        %v286 = vpop.permute.xlu0 %285
        %v289 = vunpack.c.l.b16 %v249
        %v290 = vunpack.c.h.b16 %v249
        %v291 = vpack.c.b16 %v289, %v289
        %v292 = vpack.c.b16 %v290, %v290
        %v327 = vunpack.c.l.b16 %v250
        %v328 = vunpack.c.h.b16 %v250
        %v329 = vunpack.c.l.b16 %v251
        %v330 = vunpack.c.h.b16 %v251
        %v331 = vunpack.c.l.b16 %v252
        %v332 = vunpack.c.h.b16 %v252
        %v333 = vunpack.c.l.b16 %v253
        %v334 = vunpack.c.h.b16 %v253
        %v335 = vunpack.c.l.b16 %v254
        %v336 = vunpack.c.h.b16 %v254
        %v337 = vunpack.c.l.b16 %v255
        %v338 = vunpack.c.h.b16 %v255
        %v339 = vunpack.c.l.b16 %v256
        %v340 = vunpack.c.h.b16 %v256
        %v341 = vunpack.c.l.b16 %v257
        %v342 = vunpack.c.h.b16 %v257
        %v343 = vunpack.c.l.b16 %v258
        %v344 = vunpack.c.h.b16 %v258
        %v345 = vunpack.c.l.b16 %v259
        %v346 = vunpack.c.h.b16 %v259
        %v347 = vunpack.c.l.b16 %v260
        %v348 = vunpack.c.h.b16 %v260
        %v349 = vunpack.c.l.b16 %v261
        %v350 = vunpack.c.h.b16 %v261
        %v351 = vunpack.c.l.b16 %v262
        %v352 = vunpack.c.h.b16 %v262
        %v353 = vunpack.c.l.b16 %v263
        %v354 = vunpack.c.h.b16 %v263
        %v355 = vunpack.c.l.b16 %v264
        %v356 = vunpack.c.h.b16 %v264
        %v357 = vunpack.c.l.b16 %v265
        %v358 = vunpack.c.h.b16 %v265
        %v359 = vunpack.c.l.b16 %v266
        %v360 = vunpack.c.h.b16 %v266
        %v361 = vunpack.c.l.b16 %v267
        %v362 = vunpack.c.h.b16 %v267
        %v363 = vunpack.c.l.b16 %v268
        %v364 = vunpack.c.h.b16 %v268
        %v365 = vunpack.c.l.b16 %v269
        %v366 = vunpack.c.h.b16 %v269
        %v367 = vunpack.c.l.b16 %v270
        %v368 = vunpack.c.h.b16 %v270
        %v369 = vunpack.c.l.b16 %v271
        %v370 = vunpack.c.h.b16 %v271
        %v371 = vunpack.c.l.b16 %v272
        %v372 = vunpack.c.h.b16 %v272
        %v373 = vunpack.c.l.b16 %v273
        %v374 = vunpack.c.h.b16 %v273
        %v375 = vunpack.c.l.b16 %v274
        %v376 = vunpack.c.h.b16 %v274
        %v377 = vunpack.c.l.b16 %v275
        %v378 = vunpack.c.h.b16 %v275
        %v379 = vunpack.c.l.b16 %v276
        %v380 = vunpack.c.h.b16 %v276
        %v381 = vunpack.c.l.b16 %v277
        %v382 = vunpack.c.h.b16 %v277
        %v383 = vunpack.c.l.b16 %v278
        %v384 = vunpack.c.h.b16 %v278
        %v385 = vunpack.c.l.b16 %v279
        %v386 = vunpack.c.h.b16 %v279
        %v387 = vunpack.c.l.b16 %v280
        %v388 = vunpack.c.h.b16 %v280
        %v389 = vunpack.c.l.b16 %v281
        %v390 = vunpack.c.h.b16 %v281
        %v391 = vpack.c.b16 %v329, %v327
        %v392 = vpack.c.b16 %v330, %v328
        %v393 = vpack.c.b16 %v333, %v331
        %v394 = vpack.c.b16 %v334, %v332
        %v395 = vpack.c.b16 %v337, %v335
        %v396 = vpack.c.b16 %v338, %v336
        %v397 = vpack.c.b16 %v341, %v339
        %v398 = vpack.c.b16 %v342, %v340
        %v399 = vpack.c.b16 %v345, %v343
        %v400 = vpack.c.b16 %v346, %v344
        %v401 = vpack.c.b16 %v349, %v347
        %v402 = vpack.c.b16 %v350, %v348
        %v403 = vpack.c.b16 %v353, %v351
        %v404 = vpack.c.b16 %v354, %v352
        %v405 = vpack.c.b16 %v357, %v355
        %v406 = vpack.c.b16 %v358, %v356
        %v407 = vpack.c.b16 %v361, %v359
        %v408 = vpack.c.b16 %v362, %v360
        %v409 = vpack.c.b16 %v365, %v363
        %v410 = vpack.c.b16 %v366, %v364
        %v411 = vpack.c.b16 %v369, %v367
        %v412 = vpack.c.b16 %v370, %v368
        %v413 = vpack.c.b16 %v373, %v371
        %v414 = vpack.c.b16 %v374, %v372
        %v415 = vpack.c.b16 %v377, %v375
        %v416 = vpack.c.b16 %v378, %v376
        %v417 = vpack.c.b16 %v381, %v379
        %v418 = vpack.c.b16 %v382, %v380
        %v419 = vpack.c.b16 %v385, %v383
        %v420 = vpack.c.b16 %v386, %v384
        %v421 = vpack.c.b16 %v389, %v387
        %v422 = vpack.c.b16 %v390, %v388
        %455 = vmatprep.subr.bf16.mxu0 %v392
        %456 = vmatpush1.bf16.msra.mxu0 %v391
        %457 = vmatprep.subr.bf16.mxu0 %v394
        %458 = vmatpush1.bf16.msra.mxu0 %v393
        %459 = vmatprep.subr.bf16.mxu0 %v396
        %460 = vmatpush1.bf16.msra.mxu0 %v395
        %461 = vmatprep.subr.bf16.mxu0 %v398
        %462 = vmatpush1.bf16.msra.mxu0 %v397
        %463 = vmatprep.subr.bf16.mxu0 %v400
        %464 = vmatpush1.bf16.msra.mxu0 %v399
        %465 = vmatprep.subr.bf16.mxu0 %v402
        %466 = vmatpush1.bf16.msra.mxu0 %v401
        %467 = vmatprep.subr.bf16.mxu0 %v404
        %468 = vmatpush1.bf16.msra.mxu0 %v403
        %469 = vmatprep.subr.bf16.mxu0 %v406
        %470 = vmatpush1.bf16.msra.mxu0 %v405
        %471 = vmatprep.subr.bf16.mxu0 %v408
        %472 = vmatpush1.bf16.msra.mxu0 %v407
        %473 = vmatprep.subr.bf16.mxu0 %v410
        %474 = vmatpush1.bf16.msra.mxu0 %v409
        %475 = vmatprep.subr.bf16.mxu0 %v412
        %476 = vmatpush1.bf16.msra.mxu0 %v411
        %477 = vmatprep.subr.bf16.mxu0 %v414
        %478 = vmatpush1.bf16.msra.mxu0 %v413
        %479 = vmatprep.subr.bf16.mxu0 %v416
        %480 = vmatpush1.bf16.msra.mxu0 %v415
        %481 = vmatprep.subr.bf16.mxu0 %v418
        %482 = vmatpush1.bf16.msra.mxu0 %v417
        %483 = vmatprep.subr.bf16.mxu0 %v420
        %484 = vmatpush1.bf16.msra.mxu0 %v419
        %485 = vmatprep.subr.bf16.mxu0 %v422
        %486 = vmatpush1.bf16.msra.mxu0 %v421
        %487 = vmatprep.mubr.bf16.mxu0 %v292
        %488 = vmatmul.mubr.bf16.gmra.mrb[0].mxu0 %v291
        %v489 = vpop.f32.mrb[0].mxu0
        %v490 = vadd.f32 %v286, %v489
        %v491 = vpop.f32.mrb[0].mxu0
        %v492 = vadd.f32 %v286, %v491
        %v493 = vpop.f32.mrb[0].mxu0
        %v494 = vpop.f32.mrb[0].mxu0
        %495 = vdwg.mxu0
        %s496 = sld [smem:[#allocation2 + %s16]]
        %vm497 = vcmp.ge.f32.partialorder %v490, 0.0
        %vm498 = vcmp.ge.f32.partialorder %v492, 0.0
        %v499 = vstv %s496
        %v500 = vmul.f32 %v499, %v490
        %v501 = vmul.f32 %v499, %v492
        %v502 = vsel %vm497, %v490, %v500
        %v503 = vsel %vm498, %v492, %v501
        %v504 = vpack.c.bf16 %v502, %v502
        %v505 = vpack.c.bf16 %v503, %v503
        %v508 = vunpack.c.l.b16 %v504
        %v509 = vunpack.c.l.b16 %v505
        %v510 = vpack.c.b16 %v509, %v508
        %512 = vst [vmem:[%s248] sm:$0xff] %v510
        %p513 = scmp.lt.s32.totalorder %s16, 1
        %s514 = scalar_select %p513, %s16, 1
        %s515 = smul.addr %s514, 2
        %s516 = smul.addr %s515, 4
        %s517 = scalar_lea.vmem %s4, %s516
        // Predicated region
        $region41: #{net_forward.21} parent=35 // pred_check
          %p518 = pneg %p133
        $region42: #{net_forward.21} parent=35 // pred_check_branch
          %520 = sbr.rel (%p518) target = $region44
        $region43: #{net_forward.21} parent=35 // pred_region
          _
        $region44: #{net_forward.21} parent=35 // pred_fallthru
          _
      $region36: #{net_forward.21} parent=5 // pred_fallthru
        _
      %p521 = scmp.le.s32.totalorder 2, %s11
      // Predicated region
      $region45: #{net_forward.21} parent=5 // pred_check
        %p522 = pneg %p521
      $region46: #{net_forward.21} parent=5 // pred_check_branch
        %524 = sbr.rel (%p522) target = $region48
      $region47: #{net_forward.21} parent=5 // pred_region
        %s525 = ssub.s32 %s11, 2
        // Predicated region
        $region49: #{net_forward.21} parent=47 // pred_check
          %p526 = pneg %p139
        $region50: #{net_forward.21} parent=47 // pred_check_branch
          %528 = sbr.rel (%p526) target = $region52
        $region51: #{net_forward.21} parent=47 // pred_region
          %p529 = scmp.lt.s32.totalorder %s17, 1
          %s530 = scalar_select %p529, %s17, 1
          %s531 = smul.addr %s530, 2
          %s532 = smul.addr %s531, 4
          %s533 = scalar_lea.vmem %s4, %s532
        $region52: #{net_forward.21} parent=47 // pred_fallthru
          _
      $region48: #{net_forward.21} parent=5 // pred_fallthru
        _
    $region6: #{net_forward.21} parent=1 // loop_footer
      %s15 = sadd.s32 1, %s11
    $region7: #{net_forward.21} parent=1 // loop_footer_branch
      %10 = sbr.rel target = $region3
    $region8: #{net_forward.21} parent=1 // loop_exit
      _
    %534 = vsyncpa [#allocation3], 1
    %s535 = scalar_lea.sflag [#allocation3], 1
    %536 = vsyncpa %s535, 1

// kernel: squeeze.2
$region0: #{squeeze.2}
  %s0 = inlined_call_operand.vmem [shape: bf16[1,8,54], index: 0, kind: input, shape index: {}]
  %s1 = inlined_call_operand.vmem [shape: bf16[8,2,3,3,3], index: 1, kind: output, shape index: {}]
  $region1: #{squeeze.2} parent=0
    #allocation0 [shape = 'u8[73728]{0}', space=vmem, size = 0x12000, scoped, tag = 'scoped mem for output reshape']
    #allocation1 [shape = 'u8[28672]{0}', space=vmem, size = 0x7000, scoped, tag = 'scoped mem for input reshape']
    %s3 = smul.u32 4, 2
    %s4 = sshllo.u32 0, %s3
    %s5 = smul.addr 4, 6
    %s6 = scalar_lea.vmem %s0, %s5
    %s7 = sshrl.u32 %s4, 1
    %s8 = sor.u32 %s4, %s7
    %s9 = sand.u32 %s8, 85
    %s10 = sshrl.u32 %s9, 1
    %s11 = sor.u32 %s9, %s10
    %s12 = sand.u32 51, %s11
    %s13 = sshrl.u32 %s12, 2
    %s14 = sor.u32 %s12, %s13
    %s15 = sand.u32 15, %s14
    %v16 = vld [vmem:[%s6] sm:%s15]
    %v17 = vunpack.c.l.bf16 %v16
    %v18 = vunpack.c.h.bf16 %v16
    %s19 = scalar_lea.vmem [#allocation1], 48
    %20 = vst [vmem:[%s19] sm:%s4] %v17
    %s21 = smul.addr 4, 5
    %s22 = scalar_lea.vmem %s0, %s21
    %s23 = sshrl.u32 %s4, 1
    %s24 = sor.u32 %s4, %s23
    %s25 = sand.u32 %s24, 85
    %s26 = sshrl.u32 %s25, 1
    %s27 = sor.u32 %s25, %s26
    %s28 = sand.u32 51, %s27
    %s29 = sshrl.u32 %s28, 2
    %s30 = sor.u32 %s28, %s29
    %s31 = sand.u32 15, %s30
    %v32 = vld [vmem:[%s22] sm:%s31]
    %v33 = vunpack.c.l.bf16 %v32
    %v34 = vunpack.c.h.bf16 %v32
    %s35 = scalar_lea.vmem [#allocation1], 40
    %36 = vst [vmem:[%s35] sm:%s4] %v33
    %s37 = smul.addr 4, 4
    %s38 = scalar_lea.vmem %s0, %s37
    %s39 = sshrl.u32 %s4, 1
    %s40 = sor.u32 %s4, %s39
    %s41 = sand.u32 %s40, 85
    %s42 = sshrl.u32 %s41, 1
    %s43 = sor.u32 %s41, %s42
    %s44 = sand.u32 51, %s43
    %s45 = sshrl.u32 %s44, 2
    %s46 = sor.u32 %s44, %s45
    %s47 = sand.u32 15, %s46
    %v48 = vld [vmem:[%s38] sm:%s47]
    %v49 = vunpack.c.l.bf16 %v48
    %v50 = vunpack.c.h.bf16 %v48
    %s51 = scalar_lea.vmem [#allocation1], 32
    %52 = vst [vmem:[%s51] sm:%s4] %v49
    %s53 = smul.addr 4, 3
    %s54 = scalar_lea.vmem %s0, %s53
    %s55 = sshrl.u32 %s4, 1
    %s56 = sor.u32 %s4, %s55
    %s57 = sand.u32 %s56, 85
    %s58 = sshrl.u32 %s57, 1
    %s59 = sor.u32 %s57, %s58
    %s60 = sand.u32 51, %s59
    %s61 = sshrl.u32 %s60, 2
    %s62 = sor.u32 %s60, %s61
    %s63 = sand.u32 15, %s62
    %v64 = vld [vmem:[%s54] sm:%s63]
    %v65 = vunpack.c.l.bf16 %v64
    %v66 = vunpack.c.h.bf16 %v64
    %s67 = scalar_lea.vmem [#allocation1], 24
    %68 = vst [vmem:[%s67] sm:%s4] %v65
    %s69 = smul.addr 4, 2
    %s70 = scalar_lea.vmem %s0, %s69
    %s71 = sshrl.u32 %s4, 1
    %s72 = sor.u32 %s4, %s71
    %s73 = sand.u32 %s72, 85
    %s74 = sshrl.u32 %s73, 1
    %s75 = sor.u32 %s73, %s74
    %s76 = sand.u32 51, %s75
    %s77 = sshrl.u32 %s76, 2
    %s78 = sor.u32 %s76, %s77
    %s79 = sand.u32 15, %s78
    %v80 = vld [vmem:[%s70] sm:%s79]
    %v81 = vunpack.c.l.bf16 %v80
    %v82 = vunpack.c.h.bf16 %v80
    %s83 = scalar_lea.vmem [#allocation1], 16
    %84 = vst [vmem:[%s83] sm:%s4] %v81
    %s85 = scalar_lea.vmem %s0, 4
    %s86 = sshrl.u32 %s4, 1
    %s87 = sor.u32 %s4, %s86
    %s88 = sand.u32 %s87, 85
    %s89 = sshrl.u32 %s88, 1
    %s90 = sor.u32 %s88, %s89
    %s91 = sand.u32 51, %s90
    %s92 = sshrl.u32 %s91, 2
    %s93 = sor.u32 %s91, %s92
    %s94 = sand.u32 15, %s93
    %v95 = vld [vmem:[%s85] sm:%s94]
    %v96 = vunpack.c.l.bf16 %v95
    %v97 = vunpack.c.h.bf16 %v95
    %s98 = scalar_lea.vmem [#allocation1], 8
    %99 = vst [vmem:[%s98] sm:%s4] %v96
    %s100 = sshrl.u32 %s4, 1
    %s101 = sor.u32 %s4, %s100
    %s102 = sand.u32 %s101, 85
    %s103 = sshrl.u32 %s102, 1
    %s104 = sor.u32 %s102, %s103
    %s105 = sand.u32 51, %s104
    %s106 = sshrl.u32 %s105, 2
    %s107 = sor.u32 %s105, %s106
    %s108 = sand.u32 15, %s107
    %v109 = vld [vmem:[%s0] sm:%s108]
    %v110 = vunpack.c.l.bf16 %v109
    %v111 = vunpack.c.h.bf16 %v109
    %112 = vst [vmem:[#allocation1] sm:%s4] %v110
    %v113 = vld [vmem:[#allocation1] sm:$0xff]
    %vm114 = vcmask 64512
    %115 = vst.msk [vmem:[#allocation0] sm:$0x7] %vm114, %v113
    %s116 = scalar_lea.vmem [#allocation0], 5
    %117 = vst.msk [vmem:[%s116] sm:$0x38] %vm114, %v113
    %s118 = scalar_lea.vmem [#allocation0], 10
    %119 = vst.msk [vmem:[%s118] sm:$0xc0] %vm114, %v113
    %s120 = scalar_lea.vmem [#allocation1], 8
    %v121 = vld [vmem:[%s120] sm:$0xff]
    %vm122 = vcmask 64512
    %s123 = scalar_lea.vmem [#allocation0], 18
    %124 = vst.msk [vmem:[%s123] ss:$6 sm:$0x3] %vm122, %v121
    %s125 = scalar_lea.vmem [#allocation0], 23
    %126 = vst.msk [vmem:[%s125] sm:$0xc] %vm122, %v121
    %s127 = scalar_lea.vmem [#allocation0], 28
    %128 = vst.msk [vmem:[%s127] sm:$0x70] %vm122, %v121
    %s129 = scalar_lea.vmem [#allocation0], 33
    %130 = vst.msk [vmem:[%s129] sm:$0x80] %vm122, %v121
    %s131 = scalar_lea.vmem [#allocation1], 16
    %v132 = vld [vmem:[%s131] sm:$0xff]
    %vm133 = vcmask 64512
    %s134 = scalar_lea.vmem [#allocation0], 41
    %135 = vst.msk [vmem:[%s134] sm:$0x3] %vm133, %v132
    %s136 = scalar_lea.vmem [#allocation0], 46
    %137 = vst.msk [vmem:[%s136] sm:$0x1c] %vm133, %v132
    %s138 = scalar_lea.vmem [#allocation0], 51
    %139 = vst.msk [vmem:[%s138] sm:$0xe0] %vm133, %v132
    %s140 = scalar_lea.vmem [#allocation1], 24
    %v141 = vld [vmem:[%s140] sm:$0xff]
    %vm142 = vcmask 64512
    %s143 = scalar_lea.vmem [#allocation0], 64
    %144 = vst.msk [vmem:[%s143] sm:$0x7] %vm142, %v141
    %s145 = scalar_lea.vmem [#allocation0], 69
    %146 = vst.msk [vmem:[%s145] sm:$0x38] %vm142, %v141
    %s147 = scalar_lea.vmem [#allocation0], 74
    %148 = vst.msk [vmem:[%s147] sm:$0xc0] %vm142, %v141
    %s149 = scalar_lea.vmem [#allocation1], 32
    %v150 = vld [vmem:[%s149] sm:$0xff]
    %vm151 = vcmask 64512
    %s152 = scalar_lea.vmem [#allocation0], 82
    %153 = vst.msk [vmem:[%s152] ss:$6 sm:$0x3] %vm151, %v150
    %s154 = scalar_lea.vmem [#allocation0], 87
    %155 = vst.msk [vmem:[%s154] sm:$0xc] %vm151, %v150
    %s156 = scalar_lea.vmem [#allocation0], 92
    %157 = vst.msk [vmem:[%s156] sm:$0x70] %vm151, %v150
    %s158 = scalar_lea.vmem [#allocation0], 97
    %159 = vst.msk [vmem:[%s158] sm:$0x80] %vm151, %v150
    %s160 = scalar_lea.vmem [#allocation1], 40
    %v161 = vld [vmem:[%s160] sm:$0xff]
    %vm162 = vcmask 64512
    %s163 = scalar_lea.vmem [#allocation0], 105
    %164 = vst.msk [vmem:[%s163] sm:$0x3] %vm162, %v161
    %s165 = scalar_lea.vmem [#allocation0], 110
    %166 = vst.msk [vmem:[%s165] sm:$0x1c] %vm162, %v161
    %s167 = scalar_lea.vmem [#allocation0], 115
    %168 = vst.msk [vmem:[%s167] sm:$0xe0] %vm162, %v161
    %s169 = scalar_lea.vmem [#allocation1], 48
    %v170 = vld [vmem:[%s169] sm:$0x3f]
    %vm171 = vcmask 64512
    %s172 = scalar_lea.vmem [#allocation0], 128
    %173 = vst.msk [vmem:[%s172] sm:$0x7] %vm171, %v170
    %s174 = scalar_lea.vmem [#allocation0], 133
    %175 = vst.msk [vmem:[%s174] sm:$0x38] %vm171, %v170
    %s177 = smul.u32 2, 2
    %s178 = sshllo.u32 0, %s177
    %s179 = sshrl.u32 %s177, 1
    %v180 = vld [vmem:[#allocation0] sm:%s178]
    %v181 = vpack.c.bf16 0.0, %v180
    %s182 = sshllo.u32 0, %s179
    %183 = vst [vmem:[%s1] sm:%s182] %v181
    %s184 = scalar_lea.vmem [#allocation0], 8
    %v185 = vld [vmem:[%s184] sm:%s178]
    %v186 = vpack.c.bf16 0.0, %v185
    %s187 = sshllo.u32 0, %s179
    %s188 = scalar_lea.vmem %s1, 2
    %189 = vst [vmem:[%s188] sm:%s187] %v186
    %s190 = scalar_lea.vmem [#allocation0], 16
    %v191 = vld [vmem:[%s190] sm:%s178]
    %v192 = vpack.c.bf16 0.0, %v191
    %s193 = sshllo.u32 0, %s179
    %s194 = smul.addr 2, 2
    %s195 = scalar_lea.vmem %s1, %s194
    %196 = vst [vmem:[%s195] sm:%s193] %v192
    %s197 = scalar_lea.vmem [#allocation0], 24
    %v198 = vld [vmem:[%s197] sm:%s178]
    %v199 = vpack.c.bf16 0.0, %v198
    %s200 = sshllo.u32 0, %s179
    %s201 = smul.addr 2, 3
    %s202 = scalar_lea.vmem %s1, %s201
    %203 = vst [vmem:[%s202] sm:%s200] %v199
    %s204 = scalar_lea.vmem [#allocation0], 32
    %v205 = vld [vmem:[%s204] sm:%s178]
    %v206 = vpack.c.bf16 0.0, %v205
    %s207 = sshllo.u32 0, %s179
    %s208 = smul.addr 2, 4
    %s209 = scalar_lea.vmem %s1, %s208
    %210 = vst [vmem:[%s209] sm:%s207] %v206
    %s211 = scalar_lea.vmem [#allocation0], 40
    %v212 = vld [vmem:[%s211] sm:%s178]
    %v213 = vpack.c.bf16 0.0, %v212
    %s214 = sshllo.u32 0, %s179
    %s215 = smul.addr 2, 5
    %s216 = scalar_lea.vmem %s1, %s215
    %217 = vst [vmem:[%s216] sm:%s214] %v213
    %s218 = scalar_lea.vmem [#allocation0], 48
    %v219 = vld [vmem:[%s218] sm:%s178]
    %v220 = vpack.c.bf16 0.0, %v219
    %s221 = sshllo.u32 0, %s179
    %s222 = smul.addr 2, 6
    %s223 = scalar_lea.vmem %s1, %s222
    %224 = vst [vmem:[%s223] sm:%s221] %v220
    %s225 = scalar_lea.vmem [#allocation0], 56
    %v226 = vld [vmem:[%s225] sm:%s178]
    %v227 = vpack.c.bf16 0.0, %v226
    %s228 = sshllo.u32 0, %s179
    %s229 = smul.addr 2, 7
    %s230 = scalar_lea.vmem %s1, %s229
    %231 = vst [vmem:[%s230] sm:%s228] %v227
    %s232 = scalar_lea.vmem [#allocation0], 64
    %v233 = vld [vmem:[%s232] sm:%s178]
    %v234 = vpack.c.bf16 0.0, %v233
    %s235 = sshllo.u32 0, %s179
    %s236 = smul.addr 2, 8
    %s237 = scalar_lea.vmem %s1, %s236
    %238 = vst [vmem:[%s237] sm:%s235] %v234
    %s239 = scalar_lea.vmem [#allocation0], 72
    %v240 = vld [vmem:[%s239] sm:%s178]
    %v241 = vpack.c.bf16 0.0, %v240
    %s242 = sshllo.u32 0, %s179
    %s243 = smul.addr 2, 9
    %s244 = scalar_lea.vmem %s1, %s243
    %245 = vst [vmem:[%s244] sm:%s242] %v241
    %s246 = scalar_lea.vmem [#allocation0], 80
    %v247 = vld [vmem:[%s246] sm:%s178]
    %v248 = vpack.c.bf16 0.0, %v247
    %s249 = sshllo.u32 0, %s179
    %s250 = smul.addr 2, 10
    %s251 = scalar_lea.vmem %s1, %s250
    %252 = vst [vmem:[%s251] sm:%s249] %v248
    %s253 = scalar_lea.vmem [#allocation0], 88
    %v254 = vld [vmem:[%s253] sm:%s178]
    %v255 = vpack.c.bf16 0.0, %v254
    %s256 = sshllo.u32 0, %s179
    %s257 = smul.addr 2, 11
    %s258 = scalar_lea.vmem %s1, %s257
    %259 = vst [vmem:[%s258] sm:%s256] %v255
    %s260 = scalar_lea.vmem [#allocation0], 96
    %v261 = vld [vmem:[%s260] sm:%s178]
    %v262 = vpack.c.bf16 0.0, %v261
    %s263 = sshllo.u32 0, %s179
    %s264 = smul.addr 2, 12
    %s265 = scalar_lea.vmem %s1, %s264
    %266 = vst [vmem:[%s265] sm:%s263] %v262
    %s267 = scalar_lea.vmem [#allocation0], 104
    %v268 = vld [vmem:[%s267] sm:%s178]
    %v269 = vpack.c.bf16 0.0, %v268
    %s270 = sshllo.u32 0, %s179
    %s271 = smul.addr 2, 13
    %s272 = scalar_lea.vmem %s1, %s271
    %273 = vst [vmem:[%s272] sm:%s270] %v269
    %s274 = scalar_lea.vmem [#allocation0], 112
    %v275 = vld [vmem:[%s274] sm:%s178]
    %v276 = vpack.c.bf16 0.0, %v275
    %s277 = sshllo.u32 0, %s179
    %s278 = smul.addr 2, 14
    %s279 = scalar_lea.vmem %s1, %s278
    %280 = vst [vmem:[%s279] sm:%s277] %v276
    %s281 = scalar_lea.vmem [#allocation0], 120
    %v282 = vld [vmem:[%s281] sm:%s178]
    %v283 = vpack.c.bf16 0.0, %v282
    %s284 = sshllo.u32 0, %s179
    %s285 = smul.addr 2, 15
    %s286 = scalar_lea.vmem %s1, %s285
    %287 = vst [vmem:[%s286] sm:%s284] %v283
    %s288 = scalar_lea.vmem [#allocation0], 128
    %v289 = vld [vmem:[%s288] sm:%s178]
    %v290 = vpack.c.bf16 0.0, %v289
    %s291 = sshllo.u32 0, %s179
    %s292 = smul.addr 2, 16
    %s293 = scalar_lea.vmem %s1, %s292
    %294 = vst [vmem:[%s293] sm:%s291] %v290
    %s295 = scalar_lea.vmem [#allocation0], 136
    %v296 = vld [vmem:[%s295] sm:%s178]
    %v297 = vpack.c.bf16 0.0, %v296
    %s298 = sshllo.u32 0, %s179
    %s299 = smul.addr 2, 17
    %s300 = scalar_lea.vmem %s1, %s299
    %301 = vst [vmem:[%s300] sm:%s298] %v297

// kernel: net_forward.23
$region0: #{net_forward.23}
  #allocation0 [shape = 'u32[]', space=smem, size = 0x4, offset = 0x4, fixed_abs, tag = 'smem constant byte address 0x4 - core index']
  #allocation1 [shape = 'u32[144,128]{1,0:T(1,128)}', space=vmem, size = 0x12000, scoped, tag = 'internal scratch']
  %s0 = inlined_call_operand.vmem [shape: f32[2], index: 0, kind: input, shape index: {}]
  %s1 = inlined_call_operand.vmem [shape: bf16[2,128,128], index: 1, kind: input, shape index: {}]
  %s2 = inlined_call_operand.vmem [shape: bf16[2,8,128], index: 2, kind: input, shape index: {}]
  %s3 = inlined_call_operand.vmem [shape: f32[2,8,1], index: 3, kind: input, shape index: {}]
  %s4 = inlined_call_operand.vmem [shape: bf16[2,8,128], index: 4, kind: output, shape index: {}]
  %s5 = sld [smem:[#allocation0]]
  $region53: #{net_forward.23} parent=0
    _
  %s7 = ssub.s32 1, %s5
  %s8 = scalar_select 0, %s7, %s5
  $region1: #{net_forward.23} parent=0
    #allocation2 [shape = 'u8[512]{0}', space=smem, size = 0x200, scoped, tag = 'input window, operand 0, single buffered']
    #allocation3 [shape = 's32[2]{0}', space=sflag, size = 0x8, scoped, tag = 'scoped memory for net_forward.23']
    %9 = vsyncpa [#allocation3], 0
    loop: start=0, step=1, limit=4
    $region2: #{net_forward.23} parent=1 // loop_pre_header
      _
    $region3: #{net_forward.23} parent=1 // loop_header
      %s11 = sphi 0, %s15
      %p12 = scmp.ge.s32.totalorder %s11, 4
      %s19 = sphi 0, %s19
      %s21 = sphi 0, %s19
      %s22 = sphi 0, %s21
      %s36 = sphi 0, %s22
      %s42 = sphi 0, %s44
      %s45 = sphi 0, %s42
      %s46 = sphi 0, %s45
      %s62 = sphi 0, %s46
      %s68 = sphi 0, %s70
      %s71 = sphi 0, %s68
      %s72 = sphi 0, %s71
      %s88 = sphi 0, %s72
      %s94 = sphi 0, %s96
      %s97 = sphi 0, %s94
      %s98 = sphi 0, %s97
      %s114 = sphi 0, %s98
      %s120 = sphi 0, %s122
      %s123 = sphi 0, %s120
      %s124 = sphi 0, %s123
      %s140 = sphi 0, %s124
    $region4: #{net_forward.23} parent=1 // loop_header_branch
      %14 = sbr.rel (%p12) target = $region8
    $region5: #{net_forward.23} parent=1 // loop_body
      %s16 = ssub.s32 %s11, 1
      %s17 = ssub.s32 %s11, 2
      %s18 = sadd.s32 %s11, 1
      %s20 = sadd.s32 %s19, 1
      %p23 = scmp.eq.s32.totalorder %s11, 1
      %p24 = scmp.ne.s32.totalorder %s19, %s21
      %p25 = scmp.eq.s32.totalorder %s11, 0
      %p26 = por %p24, %p25
      %p27 = scmp.ne.s32.totalorder %s19, %s21
      %p28 = scmp.eq.s32.totalorder %s16, 1
      %p29 = por %p27, %p28
      %p30 = scmp.ne.s32.totalorder %s21, %s22
      %p31 = scmp.eq.s32.totalorder %s16, 0
      %p32 = por %p30, %p31
      %p33 = scmp.ne.s32.totalorder %s21, %s22
      %p34 = scmp.eq.s32.totalorder %s17, 1
      %p35 = por %p33, %p34
      %p37 = scmp.ne.s32.totalorder %s22, %s36
      %p38 = scmp.eq.s32.totalorder %s17, 0
      %p39 = por %p37, %p38
      %s40 = ssub.s32 %s11, %s18
      %p41 = scmp.eq.s32.totalorder %s40, 0
      %s43 = sadd.s32 %s42, 1
      %s44 = scalar_select %p41, %s42, %s43
      %p47 = pneg %p41
      %p48 = scmp.eq.s32.totalorder %s11, 1
      %p49 = por %p47, %p48
      %p50 = scmp.ne.s32.totalorder %s42, %s45
      %p51 = scmp.eq.s32.totalorder %s11, 0
      %p52 = por %p50, %p51
      %p53 = scmp.ne.s32.totalorder %s42, %s45
      %p54 = scmp.eq.s32.totalorder %s16, 1
      %p55 = por %p53, %p54
      %p56 = scmp.ne.s32.totalorder %s45, %s46
      %p57 = scmp.eq.s32.totalorder %s16, 0
      %p58 = por %p56, %p57
      %p59 = scmp.ne.s32.totalorder %s45, %s46
      %p60 = scmp.eq.s32.totalorder %s17, 1
      %p61 = por %p59, %p60
      %p63 = scmp.ne.s32.totalorder %s46, %s62
      %p64 = scmp.eq.s32.totalorder %s17, 0
      %p65 = por %p63, %p64
      %s66 = ssub.s32 %s11, %s18
      %p67 = scmp.eq.s32.totalorder %s66, 0
      %s69 = sadd.s32 %s68, 1
      %s70 = scalar_select %p67, %s68, %s69
      %p73 = pneg %p67
      %p74 = scmp.eq.s32.totalorder %s11, 1
      %p75 = por %p73, %p74
      %p76 = scmp.ne.s32.totalorder %s68, %s71
      %p77 = scmp.eq.s32.totalorder %s11, 0
      %p78 = por %p76, %p77
      %p79 = scmp.ne.s32.totalorder %s68, %s71
      %p80 = scmp.eq.s32.totalorder %s16, 1
      %p81 = por %p79, %p80
      %p82 = scmp.ne.s32.totalorder %s71, %s72
      %p83 = scmp.eq.s32.totalorder %s16, 0
      %p84 = por %p82, %p83
      %p85 = scmp.ne.s32.totalorder %s71, %s72
      %p86 = scmp.eq.s32.totalorder %s17, 1
      %p87 = por %p85, %p86
      %p89 = scmp.ne.s32.totalorder %s72, %s88
      %p90 = scmp.eq.s32.totalorder %s17, 0
      %p91 = por %p89, %p90
      %s92 = ssub.s32 %s11, %s18
      %p93 = scmp.eq.s32.totalorder %s92, 0
      %s95 = sadd.s32 %s94, 1
      %s96 = scalar_select %p93, %s94, %s95
      %p99 = pneg %p93
      %p100 = scmp.eq.s32.totalorder %s11, 1
      %p101 = por %p99, %p100
      %p102 = scmp.ne.s32.totalorder %s94, %s97
      %p103 = scmp.eq.s32.totalorder %s11, 0
      %p104 = por %p102, %p103
      %p105 = scmp.ne.s32.totalorder %s94, %s97
      %p106 = scmp.eq.s32.totalorder %s16, 1
      %p107 = por %p105, %p106
      %p108 = scmp.ne.s32.totalorder %s97, %s98
      %p109 = scmp.eq.s32.totalorder %s16, 0
      %p110 = por %p108, %p109
      %p111 = scmp.ne.s32.totalorder %s97, %s98
      %p112 = scmp.eq.s32.totalorder %s17, 1
      %p113 = por %p111, %p112
      %p115 = scmp.ne.s32.totalorder %s98, %s114
      %p116 = scmp.eq.s32.totalorder %s17, 0
      %p117 = por %p115, %p116
      %s118 = ssub.s32 %s11, %s18
      %p119 = scmp.eq.s32.totalorder %s118, 0
      %s121 = sadd.s32 %s120, 1
      %s122 = scalar_select %p119, %s120, %s121
      %p125 = pneg %p119
      %p126 = scmp.eq.s32.totalorder %s11, 1
      %p127 = por %p125, %p126
      %p128 = scmp.ne.s32.totalorder %s120, %s123
      %p129 = scmp.eq.s32.totalorder %s11, 0
      %p130 = por %p128, %p129
      %p131 = scmp.ne.s32.totalorder %s120, %s123
      %p132 = scmp.eq.s32.totalorder %s16, 1
      %p133 = por %p131, %p132
      %p134 = scmp.ne.s32.totalorder %s123, %s124
      %p135 = scmp.eq.s32.totalorder %s16, 0
      %p136 = por %p134, %p135
      %p137 = scmp.ne.s32.totalorder %s123, %s124
      %p138 = scmp.eq.s32.totalorder %s17, 1
      %p139 = por %p137, %p138
      %p141 = scmp.ne.s32.totalorder %s124, %s140
      %p142 = scmp.eq.s32.totalorder %s17, 0
      %p143 = por %p141, %p142
      %p144 = scmp.le.s32.totalorder 1, %s11
      %p145 = scmp.lt.s32.totalorder %s11, 3
      %p146 = pnand %p144, %p145
      %p147 = pneg %p146
      // Predicated region
      $region9: #{net_forward.23} parent=5 // pred_check
        _
      $region10: #{net_forward.23} parent=5 // pred_check_branch
        %149 = sbr.rel (%p146) target = $region12
      $region11: #{net_forward.23} parent=5 // pred_region
        %s150 = ssub.s32 %s11, 1
        // Predicated region
        $region13: #{net_forward.23} parent=11 // pred_check
          %p151 = pneg %p32
        $region14: #{net_forward.23} parent=11 // pred_check_branch
          %153 = sbr.rel (%p151) target = $region16
        $region15: #{net_forward.23} parent=11 // pred_region
          %s155 = ssub.s32 16, 16
          %156 = vsyncadd [#allocation3], %s155
          %s158 = sshll.u32 %s0, 4
          %s159 = int_to_ptr.vmem [resolvable:$true] %s158
          %161 = dma.vmem_to_smem %s159, 16, [#allocation2], [#allocation3]
        $region16: #{net_forward.23} parent=11 // pred_fallthru
          _
      $region12: #{net_forward.23} parent=5 // pred_fallthru
        _
      %p162 = scmp.lt.s32.totalorder %s11, 2
      // Predicated region
      $region17: #{net_forward.23} parent=5 // pred_check
        %p163 = pneg %p162
      $region18: #{net_forward.23} parent=5 // pred_check_branch
        %165 = sbr.rel (%p163) target = $region20
      $region19: #{net_forward.23} parent=5 // pred_region
        // Predicated region
        $region21: #{net_forward.23} parent=19 // pred_check
          %p166 = pneg %p52
        $region22: #{net_forward.23} parent=19 // pred_check_branch
          %168 = sbr.rel (%p166) target = $region24
        $region23: #{net_forward.23} parent=19 // pred_region
          %p169 = scmp.lt.s32.totalorder %s11, 1
          %s170 = scalar_select %p169, %s11, 1
          %s171 = smul.addr %s170, 16
          %s172 = smul.addr %s171, 4
          %s173 = scalar_lea.vmem %s1, %s172
        $region24: #{net_forward.23} parent=19 // pred_fallthru
          _
        // Predicated region
        $region25: #{net_forward.23} parent=19 // pred_check
          %p174 = pneg %p78
        $region26: #{net_forward.23} parent=19 // pred_check_branch
          %176 = sbr.rel (%p174) target = $region28
        $region27: #{net_forward.23} parent=19 // pred_region
          %p177 = scmp.lt.s32.totalorder %s11, 1
          %s178 = scalar_select %p177, %s11, 1
          %s179 = smul.addr %s178, 4
          %s180 = scalar_lea.vmem %s2, %s179
        $region28: #{net_forward.23} parent=19 // pred_fallthru
          _
        // Predicated region
        $region29: #{net_forward.23} parent=19 // pred_check
          %p181 = pneg %p104
        $region30: #{net_forward.23} parent=19 // pred_check_branch
          %183 = sbr.rel (%p181) target = $region32
        $region31: #{net_forward.23} parent=19 // pred_region
          %p184 = scmp.lt.s32.totalorder %s11, 1
          %s185 = scalar_select %p184, %s11, 1
          %s186 = smul.addr %s185, 8
          %s187 = scalar_lea.vmem %s3, %s186
        $region32: #{net_forward.23} parent=19 // pred_fallthru
          _
      $region20: #{net_forward.23} parent=5 // pred_fallthru
        _
      %p188 = scmp.le.s32.totalorder 1, %s11
      %p189 = scmp.lt.s32.totalorder %s11, 3
      %p190 = pnand %p188, %p189
      %p191 = pneg %p190
      // Predicated region
      $region33: #{net_forward.23} parent=5 // pred_check
        _
      $region34: #{net_forward.23} parent=5 // pred_check_branch
        %193 = sbr.rel (%p190) target = $region36
      $region35: #{net_forward.23} parent=5 // pred_region
        %s194 = ssub.s32 %s11, 1
        // Predicated region
        $region37: #{net_forward.23} parent=35 // pred_check
          %p195 = pneg %p32
        $region38: #{net_forward.23} parent=35 // pred_check_branch
          %197 = sbr.rel (%p195) target = $region40
        $region39: #{net_forward.23} parent=35 // pred_region
          %198 = dma.done [#allocation3], 16
        $region40: #{net_forward.23} parent=35 // pred_fallthru
          _
        %199 = sfence
        %p200 = pneg %p32
        %p201 = pneg %p29
        %p202 = scmp.lt.s32.totalorder %s16, 1
        %s203 = scalar_select %p202, %s16, 1
        %s204 = smul.addr %s203, 16
        %s205 = smul.addr %s204, 4
        %s206 = scalar_lea.vmem %s1, %s205
        %p207 = pneg %p58
        %p208 = pneg %p55
        %p209 = scmp.lt.s32.totalorder %s16, 1
        %s210 = scalar_select %p209, %s16, 1
        %s211 = smul.addr %s210, 4
        %s212 = scalar_lea.vmem %s2, %s211
        %p213 = pneg %p84
        %p214 = pneg %p81
        %p215 = scmp.lt.s32.totalorder %s16, 1
        %s216 = scalar_select %p215, %s16, 1
        %s217 = smul.addr %s216, 8
        %s218 = scalar_lea.vmem %s3, %s217
        %p219 = pneg %p110
        %p220 = pneg %p107
        %p221 = pneg %p136
        %p222 = pneg %p133
        %p223 = scmp.lt.s32.totalorder %s16, 1
        %s224 = scalar_select %p223, %s16, 1
        %s225 = smul.addr %s224, 4
        %s226 = scalar_lea.vmem %s4, %s225
        %p227 = scmp.lt.s32.totalorder %s16, 1
        %s228 = scalar_select %p227, %s16, 1
        %s229 = smul.addr %s228, 16
        %s230 = smul.addr %s229, 4
        %s231 = scalar_lea.vmem %s1, %s230
        %p232 = scmp.lt.s32.totalorder %s16, 1
        %s233 = scalar_select %p232, %s16, 1
        %s234 = smul.addr %s233, 4
        %s235 = scalar_lea.vmem %s2, %s234
        %p236 = scmp.lt.s32.totalorder %s16, 1
        %s237 = scalar_select %p236, %s16, 1
        %s238 = smul.addr %s237, 8
        %s239 = scalar_lea.vmem %s3, %s238
        %p240 = scmp.lt.s32.totalorder %s16, 1
        %s241 = scalar_select %p240, %s16, 1
        %s242 = smul.addr %s241, 4
        %s243 = scalar_lea.vmem %s4, %s242
        %v245 = vld [vmem:[%s235] sm:$0xf]
        %v246 = vld [vmem:[%s231] sm:$0xf]
        %v247 = vld [vmem:[%s231 + $0x4] sm:$0xf]
        %v248 = vld [vmem:[%s231 + $0x8] sm:$0xf]
        %v249 = vld [vmem:[%s231 + $0xc] sm:$0xf]
        %v250 = vld [vmem:[%s231 + $0x10] sm:$0xf]
        %v251 = vld [vmem:[%s231 + $0x14] sm:$0xf]
        %v252 = vld [vmem:[%s231 + $0x18] sm:$0xf]
        %v253 = vld [vmem:[%s231 + $0x1c] sm:$0xf]
        %v254 = vld [vmem:[%s231 + $0x20] sm:$0xf]
        %v255 = vld [vmem:[%s231 + $0x24] sm:$0xf]
        %v256 = vld [vmem:[%s231 + $0x28] sm:$0xf]
        %v257 = vld [vmem:[%s231 + $0x2c] sm:$0xf]
        %v258 = vld [vmem:[%s231 + $0x30] sm:$0xf]
        %v259 = vld [vmem:[%s231 + $0x34] sm:$0xf]
        %v260 = vld [vmem:[%s231 + $0x38] sm:$0xf]
        %v261 = vld [vmem:[%s231 + $0x3c] sm:$0xf]
        %v262 = vld [vmem:[%s239] sm:$0xff]
        %264 = vset.pattern.permute.xlu0 0
        %265 = vperm.xlu0 %264, %v262
        %v266 = vpop.permute.xlu0 %265
        %v284 = vunpack.c.l.b16 %v246
        %v285 = vunpack.c.l.b16 %v247
        %v286 = vunpack.c.l.b16 %v248
        %v287 = vunpack.c.l.b16 %v249
        %v288 = vunpack.c.l.b16 %v250
        %v289 = vunpack.c.l.b16 %v251
        %v290 = vunpack.c.l.b16 %v252
        %v291 = vunpack.c.l.b16 %v253
        %v292 = vunpack.c.l.b16 %v254
        %v293 = vunpack.c.l.b16 %v255
        %v294 = vunpack.c.l.b16 %v256
        %v295 = vunpack.c.l.b16 %v257
        %v296 = vunpack.c.l.b16 %v258
        %v297 = vunpack.c.l.b16 %v259
        %v298 = vunpack.c.l.b16 %v260
        %v299 = vunpack.c.l.b16 %v261
        %v300 = vpack.c.b16 %v285, %v284
        %v301 = vpack.c.b16 %v287, %v286
        %v302 = vpack.c.b16 %v289, %v288
        %v303 = vpack.c.b16 %v291, %v290
        %v304 = vpack.c.b16 %v293, %v292
        %v305 = vpack.c.b16 %v295, %v294
        %v306 = vpack.c.b16 %v297, %v296
        %v307 = vpack.c.b16 %v299, %v298
        %316 = vmatprep.subr.bf16.mxu0 0
        %317 = vmatpush1.bf16.msra.mxu0 %v300
        %318 = vmatprep.subr.bf16.mxu0 0
        %319 = vmatpush1.bf16.msra.mxu0 %v301
        %320 = vmatprep.subr.bf16.mxu0 0
        %321 = vmatpush1.bf16.msra.mxu0 %v302
        %322 = vmatprep.subr.bf16.mxu0 0
        %323 = vmatpush1.bf16.msra.mxu0 %v303
        %324 = vmatprep.subr.bf16.mxu0 0
        %325 = vmatpush1.bf16.msra.mxu0 %v304
        %326 = vmatprep.subr.bf16.mxu0 0
        %327 = vmatpush1.bf16.msra.mxu0 %v305
        %328 = vmatprep.subr.bf16.mxu0 0
        %329 = vmatpush1.bf16.msra.mxu0 %v306
        %330 = vmatprep.subr.bf16.mxu0 0
        %331 = vmatpush1.bf16.msra.mxu0 %v307
        %332 = vmatprep.subr.bf16.mxu0 0
        %333 = vmatpush1.bf16.msra.mxu0 0
        %334 = vmatprep.subr.bf16.mxu0 0
        %335 = vmatpush1.bf16.msra.mxu0 0
        %336 = vmatprep.subr.bf16.mxu0 0
        %337 = vmatpush1.bf16.msra.mxu0 0
        %338 = vmatprep.subr.bf16.mxu0 0
        %339 = vmatpush1.bf16.msra.mxu0 0
        %340 = vmatprep.subr.bf16.mxu0 0
        %341 = vmatpush1.bf16.msra.mxu0 0
        %342 = vmatprep.subr.bf16.mxu0 0
        %343 = vmatpush1.bf16.msra.mxu0 0
        %344 = vmatprep.subr.bf16.mxu0 0
        %345 = vmatpush1.bf16.msra.mxu0 0
        %346 = vmatprep.subr.bf16.mxu0 0
        %347 = vmatpush1.bf16.msra.mxu0 0
        %348 = vmatprep.mubr.bf16.mxu0 0
        %349 = vmatmul.mubr.bf16.gmra.mrb[0].mxu0 %v245
        %v350 = vpop.f32.mrb[0].mxu0
        %v351 = vadd.f32 %v266, %v350
        %v352 = vpop.f32.mrb[0].mxu0
        %v353 = vpop.f32.mrb[0].mxu0
        %v354 = vpop.f32.mrb[0].mxu0
        %355 = vdwg.mxu0
        %s356 = sld [smem:[#allocation2 + %s16]]
        %vm357 = vcmp.ge.f32.partialorder %v351, 0.0
        %v358 = vstv %s356
        %v359 = vmul.f32 %v358, %v351
        %v360 = vsel %vm357, %v351, %v359
        %v361 = vpack.c.bf16 %v360, %v360
        %362 = vst [vmem:[%s243] sm:$0xf] %v361
        %p363 = scmp.lt.s32.totalorder %s16, 1
        %s364 = scalar_select %p363, %s16, 1
        %s365 = smul.addr %s364, 4
        %s366 = scalar_lea.vmem %s4, %s365
        // Predicated region
        $region41: #{net_forward.23} parent=35 // pred_check
          %p367 = pneg %p133
        $region42: #{net_forward.23} parent=35 // pred_check_branch
          %369 = sbr.rel (%p367) target = $region44
        $region43: #{net_forward.23} parent=35 // pred_region
          _
        $region44: #{net_forward.23} parent=35 // pred_fallthru
          _
      $region36: #{net_forward.23} parent=5 // pred_fallthru
        _
      %p370 = scmp.le.s32.totalorder 2, %s11
      // Predicated region
      $region45: #{net_forward.23} parent=5 // pred_check
        %p371 = pneg %p370
      $region46: #{net_forward.23} parent=5 // pred_check_branch
        %373 = sbr.rel (%p371) target = $region48
      $region47: #{net_forward.23} parent=5 // pred_region
        %s374 = ssub.s32 %s11, 2
        // Predicated region
        $region49: #{net_forward.23} parent=47 // pred_check
          %p375 = pneg %p139
        $region50: #{net_forward.23} parent=47 // pred_check_branch
          %377 = sbr.rel (%p375) target = $region52
        $region51: #{net_forward.23} parent=47 // pred_region
          %p378 = scmp.lt.s32.totalorder %s17, 1
          %s379 = scalar_select %p378, %s17, 1
          %s380 = smul.addr %s379, 4
          %s381 = scalar_lea.vmem %s4, %s380
        $region52: #{net_forward.23} parent=47 // pred_fallthru
          _
      $region48: #{net_forward.23} parent=5 // pred_fallthru
        _
    $region6: #{net_forward.23} parent=1 // loop_footer
      %s15 = sadd.s32 1, %s11
    $region7: #{net_forward.23} parent=1 // loop_footer_branch
      %10 = sbr.rel target = $region3
    $region8: #{net_forward.23} parent=1 // loop_exit
      _
    %382 = vsyncpa [#allocation3], 1
    %s383 = scalar_lea.sflag [#allocation3], 1
    %384 = vsyncpa %s383, 1

// kernel: net_forward.24
$region0: #{net_forward.24}
  #allocation0 [shape = 'u32[]', space=smem, size = 0x4, offset = 0x4, fixed_abs, tag = 'smem constant byte address 0x4 - core index']
  #allocation1 [shape = 'u32[144,128]{1,0:T(1,128)}', space=vmem, size = 0x12000, scoped, tag = 'internal scratch']
  %s0 = inlined_call_operand.vmem [shape: f32[3], index: 0, kind: input, shape index: {}]
  %s1 = inlined_call_operand.vmem [shape: bf16[1,128,128], index: 1, kind: input, shape index: {}]
  %s2 = inlined_call_operand.vmem [shape: bf16[3,16,128], index: 2, kind: input, shape index: {}]
  %s3 = inlined_call_operand.vmem [shape: f32[3,16,1], index: 3, kind: input, shape index: {}]
  %s4 = inlined_call_operand.vmem [shape: bf16[3,16,128], index: 4, kind: output, shape index: {}]
  %s5 = sld [smem:[#allocation0]]
  $region53: #{net_forward.24} parent=0
    _
  %s7 = ssub.s32 1, %s5
  %s8 = scalar_select 0, %s7, %s5
  $region1: #{net_forward.24} parent=0
    #allocation2 [shape = 'u8[512]{0}', space=smem, size = 0x200, scoped, tag = 'input window, operand 0, single buffered']
    #allocation3 [shape = 's32[2]{0}', space=sflag, size = 0x8, scoped, tag = 'scoped memory for net_forward.24']
    %9 = vsyncpa [#allocation3], 0
    loop: start=0, step=1, limit=5
    $region2: #{net_forward.24} parent=1 // loop_pre_header
      _
    $region3: #{net_forward.24} parent=1 // loop_header
      %s11 = sphi 0, %s15
      %p12 = scmp.ge.s32.totalorder %s11, 5
      %s19 = sphi 0, %s19
      %s21 = sphi 0, %s19
      %s22 = sphi 0, %s21
      %s36 = sphi 0, %s22
      %s40 = sphi 0, %s40
      %s42 = sphi 0, %s40
      %s43 = sphi 0, %s42
      %s57 = sphi 0, %s43
      %s63 = sphi 0, %s65
      %s66 = sphi 0, %s63
      %s67 = sphi 0, %s66
      %s83 = sphi 0, %s67
      %s89 = sphi 0, %s91
      %s92 = sphi 0, %s89
      %s93 = sphi 0, %s92
      %s109 = sphi 0, %s93
      %s115 = sphi 0, %s117
      %s118 = sphi 0, %s115
      %s119 = sphi 0, %s118
      %s135 = sphi 0, %s119
    $region4: #{net_forward.24} parent=1 // loop_header_branch
      %14 = sbr.rel (%p12) target = $region8
    $region5: #{net_forward.24} parent=1 // loop_body
      %s16 = ssub.s32 %s11, 1
      %s17 = ssub.s32 %s11, 2
      %s18 = sadd.s32 %s11, 1
      %s20 = sadd.s32 %s19, 1
      %p23 = scmp.eq.s32.totalorder %s11, 2
      %p24 = scmp.ne.s32.totalorder %s19, %s21
      %p25 = scmp.eq.s32.totalorder %s11, 0
      %p26 = por %p24, %p25
      %p27 = scmp.ne.s32.totalorder %s19, %s21
      %p28 = scmp.eq.s32.totalorder %s16, 2
      %p29 = por %p27, %p28
      %p30 = scmp.ne.s32.totalorder %s21, %s22
      %p31 = scmp.eq.s32.totalorder %s16, 0
      %p32 = por %p30, %p31
      %p33 = scmp.ne.s32.totalorder %s21, %s22
      %p34 = scmp.eq.s32.totalorder %s17, 2
      %p35 = por %p33, %p34
      %p37 = scmp.ne.s32.totalorder %s22, %s36
      %p38 = scmp.eq.s32.totalorder %s17, 0
      %p39 = por %p37, %p38
      %s41 = sadd.s32 %s40, 1
      %p44 = scmp.eq.s32.totalorder %s11, 2
      %p45 = scmp.ne.s32.totalorder %s40, %s42
      %p46 = scmp.eq.s32.totalorder %s11, 0
      %p47 = por %p45, %p46
      %p48 = scmp.ne.s32.totalorder %s40, %s42
      %p49 = scmp.eq.s32.totalorder %s16, 2
      %p50 = por %p48, %p49
      %p51 = scmp.ne.s32.totalorder %s42, %s43
      %p52 = scmp.eq.s32.totalorder %s16, 0
      %p53 = por %p51, %p52
      %p54 = scmp.ne.s32.totalorder %s42, %s43
      %p55 = scmp.eq.s32.totalorder %s17, 2
      %p56 = por %p54, %p55
      %p58 = scmp.ne.s32.totalorder %s43, %s57
      %p59 = scmp.eq.s32.totalorder %s17, 0
      %p60 = por %p58, %p59
      %s61 = ssub.s32 %s11, %s18
      %p62 = scmp.eq.s32.totalorder %s61, 0
      %s64 = sadd.s32 %s63, 1
      %s65 = scalar_select %p62, %s63, %s64
      %p68 = pneg %p62
      %p69 = scmp.eq.s32.totalorder %s11, 2
      %p70 = por %p68, %p69
      %p71 = scmp.ne.s32.totalorder %s63, %s66
      %p72 = scmp.eq.s32.totalorder %s11, 0
      %p73 = por %p71, %p72
      %p74 = scmp.ne.s32.totalorder %s63, %s66
      %p75 = scmp.eq.s32.totalorder %s16, 2
      %p76 = por %p74, %p75
      %p77 = scmp.ne.s32.totalorder %s66, %s67
      %p78 = scmp.eq.s32.totalorder %s16, 0
      %p79 = por %p77, %p78
      %p80 = scmp.ne.s32.totalorder %s66, %s67
      %p81 = scmp.eq.s32.totalorder %s17, 2
      %p82 = por %p80, %p81
      %p84 = scmp.ne.s32.totalorder %s67, %s83
      %p85 = scmp.eq.s32.totalorder %s17, 0
      %p86 = por %p84, %p85
      %s87 = ssub.s32 %s11, %s18
      %p88 = scmp.eq.s32.totalorder %s87, 0
      %s90 = sadd.s32 %s89, 1
      %s91 = scalar_select %p88, %s89, %s90
      %p94 = pneg %p88
      %p95 = scmp.eq.s32.totalorder %s11, 2
      %p96 = por %p94, %p95
      %p97 = scmp.ne.s32.totalorder %s89, %s92
      %p98 = scmp.eq.s32.totalorder %s11, 0
      %p99 = por %p97, %p98
      %p100 = scmp.ne.s32.totalorder %s89, %s92
      %p101 = scmp.eq.s32.totalorder %s16, 2
      %p102 = por %p100, %p101
      %p103 = scmp.ne.s32.totalorder %s92, %s93
      %p104 = scmp.eq.s32.totalorder %s16, 0
      %p105 = por %p103, %p104
      %p106 = scmp.ne.s32.totalorder %s92, %s93
      %p107 = scmp.eq.s32.totalorder %s17, 2
      %p108 = por %p106, %p107
      %p110 = scmp.ne.s32.totalorder %s93, %s109
      %p111 = scmp.eq.s32.totalorder %s17, 0
      %p112 = por %p110, %p111
      %s113 = ssub.s32 %s11, %s18
      %p114 = scmp.eq.s32.totalorder %s113, 0
      %s116 = sadd.s32 %s115, 1
      %s117 = scalar_select %p114, %s115, %s116
      %p120 = pneg %p114
      %p121 = scmp.eq.s32.totalorder %s11, 2
      %p122 = por %p120, %p121
      %p123 = scmp.ne.s32.totalorder %s115, %s118
      %p124 = scmp.eq.s32.totalorder %s11, 0
      %p125 = por %p123, %p124
      %p126 = scmp.ne.s32.totalorder %s115, %s118
      %p127 = scmp.eq.s32.totalorder %s16, 2
      %p128 = por %p126, %p127
      %p129 = scmp.ne.s32.totalorder %s118, %s119
      %p130 = scmp.eq.s32.totalorder %s16, 0
      %p131 = por %p129, %p130
      %p132 = scmp.ne.s32.totalorder %s118, %s119
      %p133 = scmp.eq.s32.totalorder %s17, 2
      %p134 = por %p132, %p133
      %p136 = scmp.ne.s32.totalorder %s119, %s135
      %p137 = scmp.eq.s32.totalorder %s17, 0
      %p138 = por %p136, %p137
      %p139 = scmp.le.s32.totalorder 1, %s11
      %p140 = scmp.lt.s32.totalorder %s11, 4
      %p141 = pnand %p139, %p140
      %p142 = pneg %p141
      // Predicated region
      $region9: #{net_forward.24} parent=5 // pred_check
        _
      $region10: #{net_forward.24} parent=5 // pred_check_branch
        %144 = sbr.rel (%p141) target = $region12
      $region11: #{net_forward.24} parent=5 // pred_region
        %s145 = ssub.s32 %s11, 1
        // Predicated region
        $region13: #{net_forward.24} parent=11 // pred_check
          %p146 = pneg %p32
        $region14: #{net_forward.24} parent=11 // pred_check_branch
          %148 = sbr.rel (%p146) target = $region16
        $region15: #{net_forward.24} parent=11 // pred_region
          %s150 = ssub.s32 16, 16
          %151 = vsyncadd [#allocation3], %s150
          %s153 = sshll.u32 %s0, 4
          %s154 = int_to_ptr.vmem [resolvable:$true] %s153
          %156 = dma.vmem_to_smem %s154, 16, [#allocation2], [#allocation3]
        $region16: #{net_forward.24} parent=11 // pred_fallthru
          _
        // Predicated region
        $region17: #{net_forward.24} parent=11 // pred_check
          %p157 = pneg %p53
        $region18: #{net_forward.24} parent=11 // pred_check_branch
          %159 = sbr.rel (%p157) target = $region20
        $region19: #{net_forward.24} parent=11 // pred_region
          _
        $region20: #{net_forward.24} parent=11 // pred_fallthru
          _
      $region12: #{net_forward.24} parent=5 // pred_fallthru
        _
      %p160 = scmp.lt.s32.totalorder %s11, 3
      // Predicated region
      $region21: #{net_forward.24} parent=5 // pred_check
        %p161 = pneg %p160
      $region22: #{net_forward.24} parent=5 // pred_check_branch
        %163 = sbr.rel (%p161) target = $region24
      $region23: #{net_forward.24} parent=5 // pred_region
        // Predicated region
        $region25: #{net_forward.24} parent=23 // pred_check
          %p164 = pneg %p73
        $region26: #{net_forward.24} parent=23 // pred_check_branch
          %166 = sbr.rel (%p164) target = $region28
        $region27: #{net_forward.24} parent=23 // pred_region
          %p167 = scmp.lt.s32.totalorder %s11, 2
          %s168 = scalar_select %p167, %s11, 2
          %s169 = smul.addr %s168, 2
          %s170 = smul.addr %s169, 4
          %s171 = scalar_lea.vmem %s2, %s170
        $region28: #{net_forward.24} parent=23 // pred_fallthru
          _
        // Predicated region
        $region29: #{net_forward.24} parent=23 // pred_check
          %p172 = pneg %p99
        $region30: #{net_forward.24} parent=23 // pred_check_branch
          %174 = sbr.rel (%p172) target = $region32
        $region31: #{net_forward.24} parent=23 // pred_region
          %p175 = scmp.lt.s32.totalorder %s11, 2
          %s176 = scalar_select %p175, %s11, 2
          %s177 = smul.addr %s176, 2
          %s178 = smul.addr %s177, 8
          %s179 = scalar_lea.vmem %s3, %s178
        $region32: #{net_forward.24} parent=23 // pred_fallthru
          _
      $region24: #{net_forward.24} parent=5 // pred_fallthru
        _
      %p180 = scmp.le.s32.totalorder 1, %s11
      %p181 = scmp.lt.s32.totalorder %s11, 4
      %p182 = pnand %p180, %p181
      %p183 = pneg %p182
      // Predicated region
      $region33: #{net_forward.24} parent=5 // pred_check
        _
      $region34: #{net_forward.24} parent=5 // pred_check_branch
        %185 = sbr.rel (%p182) target = $region36
      $region35: #{net_forward.24} parent=5 // pred_region
        %s186 = ssub.s32 %s11, 1
        // Predicated region
        $region37: #{net_forward.24} parent=35 // pred_check
          %p187 = pneg %p32
        $region38: #{net_forward.24} parent=35 // pred_check_branch
          %189 = sbr.rel (%p187) target = $region40
        $region39: #{net_forward.24} parent=35 // pred_region
          %190 = dma.done [#allocation3], 16
        $region40: #{net_forward.24} parent=35 // pred_fallthru
          _
        %191 = sfence
        %p192 = pneg %p32
        %p193 = pneg %p29
        %p194 = pneg %p53
        %p195 = pneg %p50
        %p196 = scmp.lt.s32.totalorder %s16, 2
        %s197 = scalar_select %p196, %s16, 2
        %s198 = smul.addr %s197, 2
        %s199 = smul.addr %s198, 4
        %s200 = scalar_lea.vmem %s2, %s199
        %p201 = pneg %p79
        %p202 = pneg %p76
        %p203 = scmp.lt.s32.totalorder %s16, 2
        %s204 = scalar_select %p203, %s16, 2
        %s205 = smul.addr %s204, 2
        %s206 = smul.addr %s205, 8
        %s207 = scalar_lea.vmem %s3, %s206
        %p208 = pneg %p105
        %p209 = pneg %p102
        %p210 = pneg %p131
        %p211 = pneg %p128
        %p212 = scmp.lt.s32.totalorder %s16, 2
        %s213 = scalar_select %p212, %s16, 2
        %s214 = smul.addr %s213, 2
        %s215 = smul.addr %s214, 4
        %s216 = scalar_lea.vmem %s4, %s215
        %p217 = scmp.lt.s32.totalorder %s16, 2
        %s218 = scalar_select %p217, %s16, 2
        %s219 = smul.addr %s218, 2
        %s220 = smul.addr %s219, 4
        %s221 = scalar_lea.vmem %s2, %s220
        %p222 = scmp.lt.s32.totalorder %s16, 2
        %s223 = scalar_select %p222, %s16, 2
        %s224 = smul.addr %s223, 2
        %s225 = smul.addr %s224, 8
        %s226 = scalar_lea.vmem %s3, %s225
        %p227 = scmp.lt.s32.totalorder %s16, 2
        %s228 = scalar_select %p227, %s16, 2
        %s229 = smul.addr %s228, 2
        %s230 = smul.addr %s229, 4
        %s231 = scalar_lea.vmem %s4, %s230
        %v233 = vld [vmem:[%s221] sm:$0xf]
        %v234 = vld [vmem:[%s221 + $0x4] sm:$0xf]
        %v235 = vld [vmem:[%s1] sm:$0xf]
        %v236 = vld [vmem:[%s1 + $0x4] sm:$0xf]
        %v237 = vld [vmem:[%s1 + $0x8] sm:$0xf]
        %v238 = vld [vmem:[%s1 + $0xc] sm:$0xf]
        %v239 = vld [vmem:[%s1 + $0x10] sm:$0xf]
        %v240 = vld [vmem:[%s1 + $0x14] sm:$0xf]
        %v241 = vld [vmem:[%s1 + $0x18] sm:$0xf]
        %v242 = vld [vmem:[%s1 + $0x1c] sm:$0xf]
        %v243 = vld [vmem:[%s1 + $0x20] sm:$0xf]
        %v244 = vld [vmem:[%s1 + $0x24] sm:$0xf]
        %v245 = vld [vmem:[%s1 + $0x28] sm:$0xf]
        %v246 = vld [vmem:[%s1 + $0x2c] sm:$0xf]
        %v247 = vld [vmem:[%s1 + $0x30] sm:$0xf]
        %v248 = vld [vmem:[%s1 + $0x34] sm:$0xf]
        %v249 = vld [vmem:[%s1 + $0x38] sm:$0xf]
        %v250 = vld [vmem:[%s1 + $0x3c] sm:$0xf]
        %v251 = vld [vmem:[%s226] sm:$0xff]
        %v252 = vld [vmem:[%s226 + $0x8] sm:$0xff]
        %254 = vset.pattern.permute.xlu0 0
        %255 = vperm.xlu0 %254, %v251
        %v256 = vpop.permute.xlu0 %255
        %259 = vset.pattern.permute.xlu0 0
        %260 = vperm.xlu0 %259, %v252
        %v261 = vpop.permute.xlu0 %260
        %v265 = vunpack.c.l.b16 %v233
        %v266 = vunpack.c.l.b16 %v234
        %v267 = vpack.c.b16 %v266, %v265
        %v285 = vunpack.c.l.b16 %v235
        %v286 = vunpack.c.l.b16 %v236
        %v287 = vunpack.c.l.b16 %v237
        %v288 = vunpack.c.l.b16 %v238
        %v289 = vunpack.c.l.b16 %v239
        %v290 = vunpack.c.l.b16 %v240
        %v291 = vunpack.c.l.b16 %v241
        %v292 = vunpack.c.l.b16 %v242
        %v293 = vunpack.c.l.b16 %v243
        %v294 = vunpack.c.l.b16 %v244
        %v295 = vunpack.c.l.b16 %v245
        %v296 = vunpack.c.l.b16 %v246
        %v297 = vunpack.c.l.b16 %v247
        %v298 = vunpack.c.l.b16 %v248
        %v299 = vunpack.c.l.b16 %v249
        %v300 = vunpack.c.l.b16 %v250
        %v301 = vpack.c.b16 %v286, %v285
        %v302 = vpack.c.b16 %v288, %v287
        %v303 = vpack.c.b16 %v290, %v289
        %v304 = vpack.c.b16 %v292, %v291
        %v305 = vpack.c.b16 %v294, %v293
        %v306 = vpack.c.b16 %v296, %v295
        %v307 = vpack.c.b16 %v298, %v297
        %v308 = vpack.c.b16 %v300, %v299
        %317 = vmatprep.subr.bf16.mxu0 0
        %318 = vmatpush1.bf16.msra.mxu0 %v301
        %319 = vmatprep.subr.bf16.mxu0 0
        %320 = vmatpush1.bf16.msra.mxu0 %v302
        %321 = vmatprep.subr.bf16.mxu0 0
        %322 = vmatpush1.bf16.msra.mxu0 %v303
        %323 = vmatprep.subr.bf16.mxu0 0
        %324 = vmatpush1.bf16.msra.mxu0 %v304
        %325 = vmatprep.subr.bf16.mxu0 0
        %326 = vmatpush1.bf16.msra.mxu0 %v305
        %327 = vmatprep.subr.bf16.mxu0 0
        %328 = vmatpush1.bf16.msra.mxu0 %v306
        %329 = vmatprep.subr.bf16.mxu0 0
        %330 = vmatpush1.bf16.msra.mxu0 %v307
        %331 = vmatprep.subr.bf16.mxu0 0
        %332 = vmatpush1.bf16.msra.mxu0 %v308
        %333 = vmatprep.subr.bf16.mxu0 0
        %334 = vmatpush1.bf16.msra.mxu0 0
        %335 = vmatprep.subr.bf16.mxu0 0
        %336 = vmatpush1.bf16.msra.mxu0 0
        %337 = vmatprep.subr.bf16.mxu0 0
        %338 = vmatpush1.bf16.msra.mxu0 0
        %339 = vmatprep.subr.bf16.mxu0 0
        %340 = vmatpush1.bf16.msra.mxu0 0
        %341 = vmatprep.subr.bf16.mxu0 0
        %342 = vmatpush1.bf16.msra.mxu0 0
        %343 = vmatprep.subr.bf16.mxu0 0
        %344 = vmatpush1.bf16.msra.mxu0 0
        %345 = vmatprep.subr.bf16.mxu0 0
        %346 = vmatpush1.bf16.msra.mxu0 0
        %347 = vmatprep.subr.bf16.mxu0 0
        %348 = vmatpush1.bf16.msra.mxu0 0
        %349 = vmatprep.mubr.bf16.mxu0 0
        %350 = vmatmul.mubr.bf16.gmra.mrb[0].mxu0 %v267
        %v351 = vpop.f32.mrb[0].mxu0
        %v352 = vadd.f32 %v256, %v351
        %v353 = vpop.f32.mrb[0].mxu0
        %v354 = vpop.f32.mrb[0].mxu0
        %v355 = vadd.f32 %v261, %v354
        %v356 = vpop.f32.mrb[0].mxu0
        %357 = vdwg.mxu0
        %s358 = sld [smem:[#allocation2 + %s16]]
        %vm359 = vcmp.ge.f32.partialorder %v352, 0.0
        %vm360 = vcmp.ge.f32.partialorder %v355, 0.0
        %v361 = vstv %s358
        %v362 = vmul.f32 %v361, %v352
        %v363 = vmul.f32 %v361, %v355
        %v364 = vsel %vm359, %v352, %v362
        %v365 = vsel %vm360, %v355, %v363
        %v366 = vpack.c.bf16 %v365, %v364
        %v368 = vunpack.c.l.b16 %v366
        %v369 = vunpack.c.h.b16 %v366
        %v370 = vpack.c.b16 %v368, %v368
        %v371 = vpack.c.b16 %v369, %v369
        %374 = vst [vmem:[%s231] sm:$0xf] %v370
        %375 = vst [vmem:[%s231 + $0x4] sm:$0xf] %v371
        %p376 = scmp.lt.s32.totalorder %s16, 2
        %s377 = scalar_select %p376, %s16, 2
        %s378 = smul.addr %s377, 2
        %s379 = smul.addr %s378, 4
        %s380 = scalar_lea.vmem %s4, %s379
        // Predicated region
        $region41: #{net_forward.24} parent=35 // pred_check
          %p381 = pneg %p128
        $region42: #{net_forward.24} parent=35 // pred_check_branch
          %383 = sbr.rel (%p381) target = $region44
        $region43: #{net_forward.24} parent=35 // pred_region
          _
        $region44: #{net_forward.24} parent=35 // pred_fallthru
          _
      $region36: #{net_forward.24} parent=5 // pred_fallthru
        _
      %p384 = scmp.le.s32.totalorder 2, %s11
      // Predicated region
      $region45: #{net_forward.24} parent=5 // pred_check
        %p385 = pneg %p384
      $region46: #{net_forward.24} parent=5 // pred_check_branch
        %387 = sbr.rel (%p385) target = $region48
      $region47: #{net_forward.24} parent=5 // pred_region
        %s388 = ssub.s32 %s11, 2
        // Predicated region
        $region49: #{net_forward.24} parent=47 // pred_check
          %p389 = pneg %p134
        $region50: #{net_forward.24} parent=47 // pred_check_branch
          %391 = sbr.rel (%p389) target = $region52
        $region51: #{net_forward.24} parent=47 // pred_region
          %p392 = scmp.lt.s32.totalorder %s17, 2
          %s393 = scalar_select %p392, %s17, 2
          %s394 = smul.addr %s393, 2
          %s395 = smul.addr %s394, 4
          %s396 = scalar_lea.vmem %s4, %s395
        $region52: #{net_forward.24} parent=47 // pred_fallthru
          _
      $region48: #{net_forward.24} parent=5 // pred_fallthru
        _
    $region6: #{net_forward.24} parent=1 // loop_footer
      %s15 = sadd.s32 1, %s11
    $region7: #{net_forward.24} parent=1 // loop_footer_branch
      %10 = sbr.rel target = $region3
    $region8: #{net_forward.24} parent=1 // loop_exit
      _
    %397 = vsyncpa [#allocation3], 1
    %s398 = scalar_lea.sflag [#allocation3], 1
    %399 = vsyncpa %s398, 1

// kernel: net_forward.25
$region0: #{net_forward.25}
  #allocation0 [shape = 'u32[]', space=smem, size = 0x4, offset = 0x4, fixed_abs, tag = 'smem constant byte address 0x4 - core index']
  #allocation1 [shape = 'u32[144,128]{1,0:T(1,128)}', space=vmem, size = 0x12000, scoped, tag = 'internal scratch']
  %s0 = inlined_call_operand.vmem [shape: f32[3], index: 0, kind: input, shape index: {}]
  %s1 = inlined_call_operand.vmem [shape: bf16[3,512,128], index: 1, kind: input, shape index: {}]
  %s2 = inlined_call_operand.vmem [shape: bf16[3,16,512], index: 2, kind: input, shape index: {}]
  %s3 = inlined_call_operand.vmem [shape: f32[3,16,1], index: 3, kind: input, shape index: {}]
  %s4 = inlined_call_operand.vmem [shape: bf16[3,16,128], index: 4, kind: output, shape index: {}]
  %s5 = sld [smem:[#allocation0]]
  $region53: #{net_forward.25} parent=0
    _
  %s7 = ssub.s32 1, %s5
  %s8 = scalar_select 0, %s7, %s5
  $region1: #{net_forward.25} parent=0
    #allocation2 [shape = 'u8[512]{0}', space=smem, size = 0x200, scoped, tag = 'input window, operand 0, single buffered']
    #allocation3 [shape = 's32[2]{0}', space=sflag, size = 0x8, scoped, tag = 'scoped memory for net_forward.25']
    %9 = vsyncpa [#allocation3], 0
    loop: start=0, step=1, limit=5
    $region2: #{net_forward.25} parent=1 // loop_pre_header
      _
    $region3: #{net_forward.25} parent=1 // loop_header
      %s11 = sphi 0, %s15
      %p12 = scmp.ge.s32.totalorder %s11, 5
      %s19 = sphi 0, %s19
      %s21 = sphi 0, %s19
      %s22 = sphi 0, %s21
      %s36 = sphi 0, %s22
      %s42 = sphi 0, %s44
      %s45 = sphi 0, %s42
      %s46 = sphi 0, %s45
      %s62 = sphi 0, %s46
      %s68 = sphi 0, %s70
      %s71 = sphi 0, %s68
      %s72 = sphi 0, %s71
      %s88 = sphi 0, %s72
      %s94 = sphi 0, %s96
      %s97 = sphi 0, %s94
      %s98 = sphi 0, %s97
      %s114 = sphi 0, %s98
      %s120 = sphi 0, %s122
      %s123 = sphi 0, %s120
      %s124 = sphi 0, %s123
      %s140 = sphi 0, %s124
    $region4: #{net_forward.25} parent=1 // loop_header_branch
      %14 = sbr.rel (%p12) target = $region8
    $region5: #{net_forward.25} parent=1 // loop_body
      %s16 = ssub.s32 %s11, 1
      %s17 = ssub.s32 %s11, 2
      %s18 = sadd.s32 %s11, 1
      %s20 = sadd.s32 %s19, 1
      %p23 = scmp.eq.s32.totalorder %s11, 2
      %p24 = scmp.ne.s32.totalorder %s19, %s21
      %p25 = scmp.eq.s32.totalorder %s11, 0
      %p26 = por %p24, %p25
      %p27 = scmp.ne.s32.totalorder %s19, %s21
      %p28 = scmp.eq.s32.totalorder %s16, 2
      %p29 = por %p27, %p28
      %p30 = scmp.ne.s32.totalorder %s21, %s22
      %p31 = scmp.eq.s32.totalorder %s16, 0
      %p32 = por %p30, %p31
      %p33 = scmp.ne.s32.totalorder %s21, %s22
      %p34 = scmp.eq.s32.totalorder %s17, 2
      %p35 = por %p33, %p34
      %p37 = scmp.ne.s32.totalorder %s22, %s36
      %p38 = scmp.eq.s32.totalorder %s17, 0
      %p39 = por %p37, %p38
      %s40 = ssub.s32 %s11, %s18
      %p41 = scmp.eq.s32.totalorder %s40, 0
      %s43 = sadd.s32 %s42, 1
      %s44 = scalar_select %p41, %s42, %s43
      %p47 = pneg %p41
      %p48 = scmp.eq.s32.totalorder %s11, 2
      %p49 = por %p47, %p48
      %p50 = scmp.ne.s32.totalorder %s42, %s45
      %p51 = scmp.eq.s32.totalorder %s11, 0
      %p52 = por %p50, %p51
      %p53 = scmp.ne.s32.totalorder %s42, %s45
      %p54 = scmp.eq.s32.totalorder %s16, 2
      %p55 = por %p53, %p54
      %p56 = scmp.ne.s32.totalorder %s45, %s46
      %p57 = scmp.eq.s32.totalorder %s16, 0
      %p58 = por %p56, %p57
      %p59 = scmp.ne.s32.totalorder %s45, %s46
      %p60 = scmp.eq.s32.totalorder %s17, 2
      %p61 = por %p59, %p60
      %p63 = scmp.ne.s32.totalorder %s46, %s62
      %p64 = scmp.eq.s32.totalorder %s17, 0
      %p65 = por %p63, %p64
      %s66 = ssub.s32 %s11, %s18
      %p67 = scmp.eq.s32.totalorder %s66, 0
      %s69 = sadd.s32 %s68, 1
      %s70 = scalar_select %p67, %s68, %s69
      %p73 = pneg %p67
      %p74 = scmp.eq.s32.totalorder %s11, 2
      %p75 = por %p73, %p74
      %p76 = scmp.ne.s32.totalorder %s68, %s71
      %p77 = scmp.eq.s32.totalorder %s11, 0
      %p78 = por %p76, %p77
      %p79 = scmp.ne.s32.totalorder %s68, %s71
      %p80 = scmp.eq.s32.totalorder %s16, 2
      %p81 = por %p79, %p80
      %p82 = scmp.ne.s32.totalorder %s71, %s72
      %p83 = scmp.eq.s32.totalorder %s16, 0
      %p84 = por %p82, %p83
      %p85 = scmp.ne.s32.totalorder %s71, %s72
      %p86 = scmp.eq.s32.totalorder %s17, 2
      %p87 = por %p85, %p86
      %p89 = scmp.ne.s32.totalorder %s72, %s88
      %p90 = scmp.eq.s32.totalorder %s17, 0
      %p91 = por %p89, %p90
      %s92 = ssub.s32 %s11, %s18
      %p93 = scmp.eq.s32.totalorder %s92, 0
      %s95 = sadd.s32 %s94, 1
      %s96 = scalar_select %p93, %s94, %s95
      %p99 = pneg %p93
      %p100 = scmp.eq.s32.totalorder %s11, 2
      %p101 = por %p99, %p100
      %p102 = scmp.ne.s32.totalorder %s94, %s97
      %p103 = scmp.eq.s32.totalorder %s11, 0
      %p104 = por %p102, %p103
      %p105 = scmp.ne.s32.totalorder %s94, %s97
      %p106 = scmp.eq.s32.totalorder %s16, 2
      %p107 = por %p105, %p106
      %p108 = scmp.ne.s32.totalorder %s97, %s98
      %p109 = scmp.eq.s32.totalorder %s16, 0
      %p110 = por %p108, %p109
      %p111 = scmp.ne.s32.totalorder %s97, %s98
      %p112 = scmp.eq.s32.totalorder %s17, 2
      %p113 = por %p111, %p112
      %p115 = scmp.ne.s32.totalorder %s98, %s114
      %p116 = scmp.eq.s32.totalorder %s17, 0
      %p117 = por %p115, %p116
      %s118 = ssub.s32 %s11, %s18
      %p119 = scmp.eq.s32.totalorder %s118, 0
      %s121 = sadd.s32 %s120, 1
      %s122 = scalar_select %p119, %s120, %s121
      %p125 = pneg %p119
      %p126 = scmp.eq.s32.totalorder %s11, 2
      %p127 = por %p125, %p126
      %p128 = scmp.ne.s32.totalorder %s120, %s123
      %p129 = scmp.eq.s32.totalorder %s11, 0
      %p130 = por %p128, %p129
      %p131 = scmp.ne.s32.totalorder %s120, %s123
      %p132 = scmp.eq.s32.totalorder %s16, 2
      %p133 = por %p131, %p132
      %p134 = scmp.ne.s32.totalorder %s123, %s124
      %p135 = scmp.eq.s32.totalorder %s16, 0
      %p136 = por %p134, %p135
      %p137 = scmp.ne.s32.totalorder %s123, %s124
      %p138 = scmp.eq.s32.totalorder %s17, 2
      %p139 = por %p137, %p138
      %p141 = scmp.ne.s32.totalorder %s124, %s140
      %p142 = scmp.eq.s32.totalorder %s17, 0
      %p143 = por %p141, %p142
      %p144 = scmp.le.s32.totalorder 1, %s11
      %p145 = scmp.lt.s32.totalorder %s11, 4
      %p146 = pnand %p144, %p145
      %p147 = pneg %p146
      // Predicated region
      $region9: #{net_forward.25} parent=5 // pred_check
        _
      $region10: #{net_forward.25} parent=5 // pred_check_branch
        %149 = sbr.rel (%p146) target = $region12
      $region11: #{net_forward.25} parent=5 // pred_region
        %s150 = ssub.s32 %s11, 1
        // Predicated region
        $region13: #{net_forward.25} parent=11 // pred_check
          %p151 = pneg %p32
        $region14: #{net_forward.25} parent=11 // pred_check_branch
          %153 = sbr.rel (%p151) target = $region16
        $region15: #{net_forward.25} parent=11 // pred_region
          %s155 = ssub.s32 16, 16
          %156 = vsyncadd [#allocation3], %s155
          %s158 = sshll.u32 %s0, 4
          %s159 = int_to_ptr.vmem [resolvable:$true] %s158
          %161 = dma.vmem_to_smem %s159, 16, [#allocation2], [#allocation3]
        $region16: #{net_forward.25} parent=11 // pred_fallthru
          _
      $region12: #{net_forward.25} parent=5 // pred_fallthru
        _
      %p162 = scmp.lt.s32.totalorder %s11, 3
      // Predicated region
      $region17: #{net_forward.25} parent=5 // pred_check
        %p163 = pneg %p162
      $region18: #{net_forward.25} parent=5 // pred_check_branch
        %165 = sbr.rel (%p163) target = $region20
      $region19: #{net_forward.25} parent=5 // pred_region
        // Predicated region
        $region21: #{net_forward.25} parent=19 // pred_check
          %p166 = pneg %p52
        $region22: #{net_forward.25} parent=19 // pred_check_branch
          %168 = sbr.rel (%p166) target = $region24
        $region23: #{net_forward.25} parent=19 // pred_region
          %p169 = scmp.lt.s32.totalorder %s11, 2
          %s170 = scalar_select %p169, %s11, 2
          %s171 = smul.addr %s170, 64
          %s172 = smul.addr %s171, 4
          %s173 = scalar_lea.vmem %s1, %s172
        $region24: #{net_forward.25} parent=19 // pred_fallthru
          _
        // Predicated region
        $region25: #{net_forward.25} parent=19 // pred_check
          %p174 = pneg %p78
        $region26: #{net_forward.25} parent=19 // pred_check_branch
          %176 = sbr.rel (%p174) target = $region28
        $region27: #{net_forward.25} parent=19 // pred_region
          %p177 = scmp.lt.s32.totalorder %s11, 2
          %s178 = scalar_select %p177, %s11, 2
          %s179 = smul.addr %s178, 8
          %s180 = smul.addr %s179, 4
          %s181 = scalar_lea.vmem %s2, %s180
        $region28: #{net_forward.25} parent=19 // pred_fallthru
          _
        // Predicated region
        $region29: #{net_forward.25} parent=19 // pred_check
          %p182 = pneg %p104
        $region30: #{net_forward.25} parent=19 // pred_check_branch
          %184 = sbr.rel (%p182) target = $region32
        $region31: #{net_forward.25} parent=19 // pred_region
          %p185 = scmp.lt.s32.totalorder %s11, 2
          %s186 = scalar_select %p185, %s11, 2
          %s187 = smul.addr %s186, 2
          %s188 = smul.addr %s187, 8
          %s189 = scalar_lea.vmem %s3, %s188
        $region32: #{net_forward.25} parent=19 // pred_fallthru
          _
      $region20: #{net_forward.25} parent=5 // pred_fallthru
        _
      %p190 = scmp.le.s32.totalorder 1, %s11
      %p191 = scmp.lt.s32.totalorder %s11, 4
      %p192 = pnand %p190, %p191
      %p193 = pneg %p192
      // Predicated region
      $region33: #{net_forward.25} parent=5 // pred_check
        _
      $region34: #{net_forward.25} parent=5 // pred_check_branch
        %195 = sbr.rel (%p192) target = $region36
      $region35: #{net_forward.25} parent=5 // pred_region
        %s196 = ssub.s32 %s11, 1
        // Predicated region
        $region37: #{net_forward.25} parent=35 // pred_check
          %p197 = pneg %p32
        $region38: #{net_forward.25} parent=35 // pred_check_branch
          %199 = sbr.rel (%p197) target = $region40
        $region39: #{net_forward.25} parent=35 // pred_region
          %200 = dma.done [#allocation3], 16
        $region40: #{net_forward.25} parent=35 // pred_fallthru
          _
        %201 = sfence
        %p202 = pneg %p32
        %p203 = pneg %p29
        %p204 = scmp.lt.s32.totalorder %s16, 2
        %s205 = scalar_select %p204, %s16, 2
        %s206 = smul.addr %s205, 64
        %s207 = smul.addr %s206, 4
        %s208 = scalar_lea.vmem %s1, %s207
        %p209 = pneg %p58
        %p210 = pneg %p55
        %p211 = scmp.lt.s32.totalorder %s16, 2
        %s212 = scalar_select %p211, %s16, 2
        %s213 = smul.addr %s212, 8
        %s214 = smul.addr %s213, 4
        %s215 = scalar_lea.vmem %s2, %s214
        %p216 = pneg %p84
        %p217 = pneg %p81
        %p218 = scmp.lt.s32.totalorder %s16, 2
        %s219 = scalar_select %p218, %s16, 2
        %s220 = smul.addr %s219, 2
        %s221 = smul.addr %s220, 8
        %s222 = scalar_lea.vmem %s3, %s221
        %p223 = pneg %p110
        %p224 = pneg %p107
        %p225 = pneg %p136
        %p226 = pneg %p133
        %p227 = scmp.lt.s32.totalorder %s16, 2
        %s228 = scalar_select %p227, %s16, 2
        %s229 = smul.addr %s228, 2
        %s230 = smul.addr %s229, 4
        %s231 = scalar_lea.vmem %s4, %s230
        %p232 = scmp.lt.s32.totalorder %s16, 2
        %s233 = scalar_select %p232, %s16, 2
        %s234 = smul.addr %s233, 64
        %s235 = smul.addr %s234, 4
        %s236 = scalar_lea.vmem %s1, %s235
        %p237 = scmp.lt.s32.totalorder %s16, 2
        %s238 = scalar_select %p237, %s16, 2
        %s239 = smul.addr %s238, 8
        %s240 = smul.addr %s239, 4
        %s241 = scalar_lea.vmem %s2, %s240
        %p242 = scmp.lt.s32.totalorder %s16, 2
        %s243 = scalar_select %p242, %s16, 2
        %s244 = smul.addr %s243, 2
        %s245 = smul.addr %s244, 8
        %s246 = scalar_lea.vmem %s3, %s245
        %p247 = scmp.lt.s32.totalorder %s16, 2
        %s248 = scalar_select %p247, %s16, 2
        %s249 = smul.addr %s248, 2
        %s250 = smul.addr %s249, 4
        %s251 = scalar_lea.vmem %s4, %s250
        %v253 = vld [vmem:[%s241] sm:$0xff]
        %v254 = vld [vmem:[%s241 + $0x8] sm:$0xff]
        %v255 = vld [vmem:[%s241 + $0x10] sm:$0xff]
        %v256 = vld [vmem:[%s241 + $0x18] sm:$0xff]
        %v257 = vld [vmem:[%s236] sm:$0xf]
        %v258 = vld [vmem:[%s236 + $0x4] sm:$0xf]
        %v259 = vld [vmem:[%s236 + $0x8] sm:$0xf]
        %v260 = vld [vmem:[%s236 + $0xc] sm:$0xf]
        %v261 = vld [vmem:[%s236 + $0x10] sm:$0xf]
        %v262 = vld [vmem:[%s236 + $0x14] sm:$0xf]
        %v263 = vld [vmem:[%s236 + $0x18] sm:$0xf]
        %v264 = vld [vmem:[%s236 + $0x1c] sm:$0xf]
        %v265 = vld [vmem:[%s236 + $0x20] sm:$0xf]
        %v266 = vld [vmem:[%s236 + $0x24] sm:$0xf]
        %v267 = vld [vmem:[%s236 + $0x28] sm:$0xf]
        %v268 = vld [vmem:[%s236 + $0x2c] sm:$0xf]
        %v269 = vld [vmem:[%s236 + $0x30] sm:$0xf]
        %v270 = vld [vmem:[%s236 + $0x34] sm:$0xf]
        %v271 = vld [vmem:[%s236 + $0x38] sm:$0xf]
        %v272 = vld [vmem:[%s236 + $0x3c] sm:$0xf]
        %v273 = vld [vmem:[%s236 + $0x40] sm:$0xf]
        %v274 = vld [vmem:[%s236 + $0x44] sm:$0xf]
        %v275 = vld [vmem:[%s236 + $0x48] sm:$0xf]
        %v276 = vld [vmem:[%s236 + $0x4c] sm:$0xf]
        %v277 = vld [vmem:[%s236 + $0x50] sm:$0xf]
        %v278 = vld [vmem:[%s236 + $0x54] sm:$0xf]
        %v279 = vld [vmem:[%s236 + $0x58] sm:$0xf]
        %v280 = vld [vmem:[%s236 + $0x5c] sm:$0xf]
        %v281 = vld [vmem:[%s236 + $0x60] sm:$0xf]
        %v282 = vld [vmem:[%s236 + $0x64] sm:$0xf]
        %v283 = vld [vmem:[%s236 + $0x68] sm:$0xf]
        %v284 = vld [vmem:[%s236 + $0x6c] sm:$0xf]
        %v285 = vld [vmem:[%s236 + $0x70] sm:$0xf]
        %v286 = vld [vmem:[%s236 + $0x74] sm:$0xf]
        %v287 = vld [vmem:[%s236 + $0x78] sm:$0xf]
        %v288 = vld [vmem:[%s236 + $0x7c] sm:$0xf]
        %v289 = vld [vmem:[%s236 + $0x80] sm:$0xf]
        %v290 = vld [vmem:[%s236 + $0x84] sm:$0xf]
        %v291 = vld [vmem:[%s236 + $0x88] sm:$0xf]
        %v292 = vld [vmem:[%s236 + $0x8c] sm:$0xf]
        %v293 = vld [vmem:[%s236 + $0x90] sm:$0xf]
        %v294 = vld [vmem:[%s236 + $0x94] sm:$0xf]
        %v295 = vld [vmem:[%s236 + $0x98] sm:$0xf]
        %v296 = vld [vmem:[%s236 + $0x9c] sm:$0xf]
        %v297 = vld [vmem:[%s236 + $0xa0] sm:$0xf]
        %v298 = vld [vmem:[%s236 + $0xa4] sm:$0xf]
        %v299 = vld [vmem:[%s236 + $0xa8] sm:$0xf]
        %v300 = vld [vmem:[%s236 + $0xac] sm:$0xf]
        %v301 = vld [vmem:[%s236 + $0xb0] sm:$0xf]
        %v302 = vld [vmem:[%s236 + $0xb4] sm:$0xf]
        %v303 = vld [vmem:[%s236 + $0xb8] sm:$0xf]
        %v304 = vld [vmem:[%s236 + $0xbc] sm:$0xf]
        %v305 = vld [vmem:[%s236 + $0xc0] sm:$0xf]
        %v306 = vld [vmem:[%s236 + $0xc4] sm:$0xf]
        %v307 = vld [vmem:[%s236 + $0xc8] sm:$0xf]
        %v308 = vld [vmem:[%s236 + $0xcc] sm:$0xf]
        %v309 = vld [vmem:[%s236 + $0xd0] sm:$0xf]
        %v310 = vld [vmem:[%s236 + $0xd4] sm:$0xf]
        %v311 = vld [vmem:[%s236 + $0xd8] sm:$0xf]
        %v312 = vld [vmem:[%s236 + $0xdc] sm:$0xf]
        %v313 = vld [vmem:[%s236 + $0xe0] sm:$0xf]
        %v314 = vld [vmem:[%s236 + $0xe4] sm:$0xf]
        %v315 = vld [vmem:[%s236 + $0xe8] sm:$0xf]
        %v316 = vld [vmem:[%s236 + $0xec] sm:$0xf]
        %v317 = vld [vmem:[%s236 + $0xf0] sm:$0xf]
        %v318 = vld [vmem:[%s236 + $0xf4] sm:$0xf]
        %v319 = vld [vmem:[%s236 + $0xf8] sm:$0xf]
        %v320 = vld [vmem:[%s236 + $0xfc] sm:$0xf]
        %v321 = vld [vmem:[%s246] sm:$0xff]
        %v322 = vld [vmem:[%s246 + $0x8] sm:$0xff]
        %324 = vset.pattern.permute.xlu0 0
        %325 = vperm.xlu0 %324, %v321
        %v326 = vpop.permute.xlu0 %325
        %329 = vset.pattern.permute.xlu0 0
        %330 = vperm.xlu0 %329, %v322
        %v331 = vpop.permute.xlu0 %330
        %v337 = vunpack.c.l.b16 %v253
        %v338 = vunpack.c.h.b16 %v253
        %v339 = vunpack.c.l.b16 %v254
        %v340 = vunpack.c.h.b16 %v254
        %v341 = vunpack.c.l.b16 %v255
        %v342 = vunpack.c.h.b16 %v255
        %v343 = vunpack.c.l.b16 %v256
        %v344 = vunpack.c.h.b16 %v256
        %v345 = vpack.c.b16 %v341, %v337
        %v346 = vpack.c.b16 %v342, %v338
        %v347 = vpack.c.b16 %v343, %v339
        %v348 = vpack.c.b16 %v344, %v340
        %v417 = vunpack.c.l.b16 %v257
        %v418 = vunpack.c.l.b16 %v258
        %v419 = vunpack.c.l.b16 %v259
        %v420 = vunpack.c.l.b16 %v260
        %v421 = vunpack.c.l.b16 %v261
        %v422 = vunpack.c.l.b16 %v262
        %v423 = vunpack.c.l.b16 %v263
        %v424 = vunpack.c.l.b16 %v264
        %v425 = vunpack.c.l.b16 %v265
        %v426 = vunpack.c.l.b16 %v266
        %v427 = vunpack.c.l.b16 %v267
        %v428 = vunpack.c.l.b16 %v268
        %v429 = vunpack.c.l.b16 %v269
        %v430 = vunpack.c.l.b16 %v270
        %v431 = vunpack.c.l.b16 %v271
        %v432 = vunpack.c.l.b16 %v272
        %v433 = vunpack.c.l.b16 %v273
        %v434 = vunpack.c.l.b16 %v274
        %v435 = vunpack.c.l.b16 %v275
        %v436 = vunpack.c.l.b16 %v276
        %v437 = vunpack.c.l.b16 %v277
        %v438 = vunpack.c.l.b16 %v278
        %v439 = vunpack.c.l.b16 %v279
        %v440 = vunpack.c.l.b16 %v280
        %v441 = vunpack.c.l.b16 %v281
        %v442 = vunpack.c.l.b16 %v282
        %v443 = vunpack.c.l.b16 %v283
        %v444 = vunpack.c.l.b16 %v284
        %v445 = vunpack.c.l.b16 %v285
        %v446 = vunpack.c.l.b16 %v286
        %v447 = vunpack.c.l.b16 %v287
        %v448 = vunpack.c.l.b16 %v288
        %v449 = vunpack.c.l.b16 %v289
        %v450 = vunpack.c.l.b16 %v290
        %v451 = vunpack.c.l.b16 %v291
        %v452 = vunpack.c.l.b16 %v292
        %v453 = vunpack.c.l.b16 %v293
        %v454 = vunpack.c.l.b16 %v294
        %v455 = vunpack.c.l.b16 %v295
        %v456 = vunpack.c.l.b16 %v296
        %v457 = vunpack.c.l.b16 %v297
        %v458 = vunpack.c.l.b16 %v298
        %v459 = vunpack.c.l.b16 %v299
        %v460 = vunpack.c.l.b16 %v300
        %v461 = vunpack.c.l.b16 %v301
        %v462 = vunpack.c.l.b16 %v302
        %v463 = vunpack.c.l.b16 %v303
        %v464 = vunpack.c.l.b16 %v304
        %v465 = vunpack.c.l.b16 %v305
        %v466 = vunpack.c.l.b16 %v306
        %v467 = vunpack.c.l.b16 %v307
        %v468 = vunpack.c.l.b16 %v308
        %v469 = vunpack.c.l.b16 %v309
        %v470 = vunpack.c.l.b16 %v310
        %v471 = vunpack.c.l.b16 %v311
        %v472 = vunpack.c.l.b16 %v312
        %v473 = vunpack.c.l.b16 %v313
        %v474 = vunpack.c.l.b16 %v314
        %v475 = vunpack.c.l.b16 %v315
        %v476 = vunpack.c.l.b16 %v316
        %v477 = vunpack.c.l.b16 %v317
        %v478 = vunpack.c.l.b16 %v318
        %v479 = vunpack.c.l.b16 %v319
        %v480 = vunpack.c.l.b16 %v320
        %v481 = vpack.c.b16 %v418, %v417
        %v482 = vpack.c.b16 %v420, %v419
        %v483 = vpack.c.b16 %v422, %v421
        %v484 = vpack.c.b16 %v424, %v423
        %v485 = vpack.c.b16 %v426, %v425
        %v486 = vpack.c.b16 %v428, %v427
        %v487 = vpack.c.b16 %v430, %v429
        %v488 = vpack.c.b16 %v432, %v431
        %v489 = vpack.c.b16 %v434, %v433
        %v490 = vpack.c.b16 %v436, %v435
        %v491 = vpack.c.b16 %v438, %v437
        %v492 = vpack.c.b16 %v440, %v439
        %v493 = vpack.c.b16 %v442, %v441
        %v494 = vpack.c.b16 %v444, %v443
        %v495 = vpack.c.b16 %v446, %v445
        %v496 = vpack.c.b16 %v448, %v447
        %v497 = vpack.c.b16 %v450, %v449
        %v498 = vpack.c.b16 %v452, %v451
        %v499 = vpack.c.b16 %v454, %v453
        %v500 = vpack.c.b16 %v456, %v455
        %v501 = vpack.c.b16 %v458, %v457
        %v502 = vpack.c.b16 %v460, %v459
        %v503 = vpack.c.b16 %v462, %v461
        %v504 = vpack.c.b16 %v464, %v463
        %v505 = vpack.c.b16 %v466, %v465
        %v506 = vpack.c.b16 %v468, %v467
        %v507 = vpack.c.b16 %v470, %v469
        %v508 = vpack.c.b16 %v472, %v471
        %v509 = vpack.c.b16 %v474, %v473
        %v510 = vpack.c.b16 %v476, %v475
        %v511 = vpack.c.b16 %v478, %v477
        %v512 = vpack.c.b16 %v480, %v479
        %545 = vmatprep.subr.bf16.mxu0 0
        %546 = vmatpush1.bf16.msra.mxu0 %v481
        %547 = vmatprep.subr.bf16.mxu0 0
        %548 = vmatpush1.bf16.msra.mxu0 %v482
        %549 = vmatprep.subr.bf16.mxu0 0
        %550 = vmatpush1.bf16.msra.mxu0 %v483
        %551 = vmatprep.subr.bf16.mxu0 0
        %552 = vmatpush1.bf16.msra.mxu0 %v484
        %553 = vmatprep.subr.bf16.mxu0 0
        %554 = vmatpush1.bf16.msra.mxu0 %v485
        %555 = vmatprep.subr.bf16.mxu0 0
        %556 = vmatpush1.bf16.msra.mxu0 %v486
        %557 = vmatprep.subr.bf16.mxu0 0
        %558 = vmatpush1.bf16.msra.mxu0 %v487
        %559 = vmatprep.subr.bf16.mxu0 0
        %560 = vmatpush1.bf16.msra.mxu0 %v488
        %561 = vmatprep.subr.bf16.mxu0 0
        %562 = vmatpush1.bf16.msra.mxu0 %v489
        %563 = vmatprep.subr.bf16.mxu0 0
        %564 = vmatpush1.bf16.msra.mxu0 %v490
        %565 = vmatprep.subr.bf16.mxu0 0
        %566 = vmatpush1.bf16.msra.mxu0 %v491
        %567 = vmatprep.subr.bf16.mxu0 0
        %568 = vmatpush1.bf16.msra.mxu0 %v492
        %569 = vmatprep.subr.bf16.mxu0 0
        %570 = vmatpush1.bf16.msra.mxu0 %v493
        %571 = vmatprep.subr.bf16.mxu0 0
        %572 = vmatpush1.bf16.msra.mxu0 %v494
        %573 = vmatprep.subr.bf16.mxu0 0
        %574 = vmatpush1.bf16.msra.mxu0 %v495
        %575 = vmatprep.subr.bf16.mxu0 0
        %576 = vmatpush1.bf16.msra.mxu0 %v496
        %577 = vmatprep.mubr.bf16.mxu0 %v346
        %578 = vmatmul.mubr.bf16.gmra.mrb[0].mxu0 %v345
        %v579 = vpop.f32.mrb[0].mxu0
        %v580 = vadd.f32 %v326, %v579
        %v581 = vpop.f32.mrb[0].mxu0
        %v582 = vpop.f32.mrb[0].mxu0
        %v583 = vadd.f32 %v331, %v582
        %v584 = vpop.f32.mrb[0].mxu0
        %585 = vdwg.mxu0
        %586 = vmatprep.subr.bf16.mxu0 0
        %587 = vmatpush1.bf16.msra.mxu0 %v497
        %588 = vmatprep.subr.bf16.mxu0 0
        %589 = vmatpush1.bf16.msra.mxu0 %v498
        %590 = vmatprep.subr.bf16.mxu0 0
        %591 = vmatpush1.bf16.msra.mxu0 %v499
        %592 = vmatprep.subr.bf16.mxu0 0
        %593 = vmatpush1.bf16.msra.mxu0 %v500
        %594 = vmatprep.subr.bf16.mxu0 0
        %595 = vmatpush1.bf16.msra.mxu0 %v501
        %596 = vmatprep.subr.bf16.mxu0 0
        %597 = vmatpush1.bf16.msra.mxu0 %v502
        %598 = vmatprep.subr.bf16.mxu0 0
        %599 = vmatpush1.bf16.msra.mxu0 %v503
        %600 = vmatprep.subr.bf16.mxu0 0
        %601 = vmatpush1.bf16.msra.mxu0 %v504
        %602 = vmatprep.subr.bf16.mxu0 0
        %603 = vmatpush1.bf16.msra.mxu0 %v505
        %604 = vmatprep.subr.bf16.mxu0 0
        %605 = vmatpush1.bf16.msra.mxu0 %v506
        %606 = vmatprep.subr.bf16.mxu0 0
        %607 = vmatpush1.bf16.msra.mxu0 %v507
        %608 = vmatprep.subr.bf16.mxu0 0
        %609 = vmatpush1.bf16.msra.mxu0 %v508
        %610 = vmatprep.subr.bf16.mxu0 0
        %611 = vmatpush1.bf16.msra.mxu0 %v509
        %612 = vmatprep.subr.bf16.mxu0 0
        %613 = vmatpush1.bf16.msra.mxu0 %v510
        %614 = vmatprep.subr.bf16.mxu0 0
        %615 = vmatpush1.bf16.msra.mxu0 %v511
        %616 = vmatprep.subr.bf16.mxu0 0
        %617 = vmatpush1.bf16.msra.mxu0 %v512
        %618 = vmatprep.mubr.bf16.mxu0 %v348
        %619 = vmatmul.mubr.bf16.gmra.mrb[0].mxu0 %v347
        %v620 = vpop.f32.mrb[0].mxu0
        %v621 = vadd.f32 %v580, %v620
        %v622 = vpop.f32.mrb[0].mxu0
        %v623 = vpop.f32.mrb[0].mxu0
        %v624 = vadd.f32 %v583, %v623
        %v625 = vpop.f32.mrb[0].mxu0
        %626 = vdwg.mxu0
        %s627 = sld [smem:[#allocation2 + %s16]]
        %vm628 = vcmp.ge.f32.partialorder %v621, 0.0
        %vm629 = vcmp.ge.f32.partialorder %v624, 0.0
        %v630 = vstv %s627
        %v631 = vmul.f32 %v630, %v621
        %v632 = vmul.f32 %v630, %v624
        %v633 = vsel %vm628, %v621, %v631
        %v634 = vsel %vm629, %v624, %v632
        %v635 = vpack.c.bf16 %v634, %v633
        %v637 = vunpack.c.l.b16 %v635
        %v638 = vunpack.c.h.b16 %v635
        %v639 = vpack.c.b16 %v637, %v637
        %v640 = vpack.c.b16 %v638, %v638
        %643 = vst [vmem:[%s251] sm:$0xf] %v639
        %644 = vst [vmem:[%s251 + $0x4] sm:$0xf] %v640
        %p645 = scmp.lt.s32.totalorder %s16, 2
        %s646 = scalar_select %p645, %s16, 2
        %s647 = smul.addr %s646, 2
        %s648 = smul.addr %s647, 4
        %s649 = scalar_lea.vmem %s4, %s648
        // Predicated region
        $region41: #{net_forward.25} parent=35 // pred_check
          %p650 = pneg %p133
        $region42: #{net_forward.25} parent=35 // pred_check_branch
          %652 = sbr.rel (%p650) target = $region44
        $region43: #{net_forward.25} parent=35 // pred_region
          _
        $region44: #{net_forward.25} parent=35 // pred_fallthru
          _
      $region36: #{net_forward.25} parent=5 // pred_fallthru
        _
      %p653 = scmp.le.s32.totalorder 2, %s11
      // Predicated region
      $region45: #{net_forward.25} parent=5 // pred_check
        %p654 = pneg %p653
      $region46: #{net_forward.25} parent=5 // pred_check_branch
        %656 = sbr.rel (%p654) target = $region48
      $region47: #{net_forward.25} parent=5 // pred_region
        %s657 = ssub.s32 %s11, 2
        // Predicated region
        $region49: #{net_forward.25} parent=47 // pred_check
          %p658 = pneg %p139
        $region50: #{net_forward.25} parent=47 // pred_check_branch
          %660 = sbr.rel (%p658) target = $region52
        $region51: #{net_forward.25} parent=47 // pred_region
          %p661 = scmp.lt.s32.totalorder %s17, 2
          %s662 = scalar_select %p661, %s17, 2
          %s663 = smul.addr %s662, 2
          %s664 = smul.addr %s663, 4
          %s665 = scalar_lea.vmem %s4, %s664
        $region52: #{net_forward.25} parent=47 // pred_fallthru
          _
      $region48: #{net_forward.25} parent=5 // pred_fallthru
        _
    $region6: #{net_forward.25} parent=1 // loop_footer
      %s15 = sadd.s32 1, %s11
    $region7: #{net_forward.25} parent=1 // loop_footer_branch
      %10 = sbr.rel target = $region3
    $region8: #{net_forward.25} parent=1 // loop_exit
      _
    %666 = vsyncpa [#allocation3], 1
    %s667 = scalar_lea.sflag [#allocation3], 1
    %668 = vsyncpa %s667, 1

// kernel: net_forward.27
$region0: #{net_forward.27}
  #allocation0 [shape = 'u32[]', space=smem, size = 0x4, offset = 0x4, fixed_abs, tag = 'smem constant byte address 0x4 - core index']
  #allocation1 [shape = 'u32[144,128]{1,0:T(1,128)}', space=vmem, size = 0x12000, scoped, tag = 'internal scratch']
  %s0 = inlined_call_operand.vmem [shape: f32[3], index: 0, kind: input, shape index: {}]
  %s1 = inlined_call_operand.vmem [shape: bf16[3,512,128], index: 1, kind: input, shape index: {}]
  %s2 = inlined_call_operand.vmem [shape: bf16[3,8,512], index: 2, kind: input, shape index: {}]
  %s3 = inlined_call_operand.vmem [shape: f32[3,8,1], index: 3, kind: input, shape index: {}]
  %s4 = inlined_call_operand.vmem [shape: bf16[3,8,128], index: 4, kind: output, shape index: {}]
  %s5 = sld [smem:[#allocation0]]
  $region53: #{net_forward.27} parent=0
    _
  %s7 = ssub.s32 1, %s5
  %s8 = scalar_select 0, %s7, %s5
  $region1: #{net_forward.27} parent=0
    #allocation2 [shape = 'u8[512]{0}', space=smem, size = 0x200, scoped, tag = 'input window, operand 0, single buffered']
    #allocation3 [shape = 's32[2]{0}', space=sflag, size = 0x8, scoped, tag = 'scoped memory for net_forward.27']
    %9 = vsyncpa [#allocation3], 0
    loop: start=0, step=1, limit=5
    $region2: #{net_forward.27} parent=1 // loop_pre_header
      _
    $region3: #{net_forward.27} parent=1 // loop_header
      %s11 = sphi 0, %s15
      %p12 = scmp.ge.s32.totalorder %s11, 5
      %s19 = sphi 0, %s19
      %s21 = sphi 0, %s19
      %s22 = sphi 0, %s21
      %s36 = sphi 0, %s22
      %s42 = sphi 0, %s44
      %s45 = sphi 0, %s42
      %s46 = sphi 0, %s45
      %s62 = sphi 0, %s46
      %s68 = sphi 0, %s70
      %s71 = sphi 0, %s68
      %s72 = sphi 0, %s71
      %s88 = sphi 0, %s72
      %s94 = sphi 0, %s96
      %s97 = sphi 0, %s94
      %s98 = sphi 0, %s97
      %s114 = sphi 0, %s98
      %s120 = sphi 0, %s122
      %s123 = sphi 0, %s120
      %s124 = sphi 0, %s123
      %s140 = sphi 0, %s124
    $region4: #{net_forward.27} parent=1 // loop_header_branch
      %14 = sbr.rel (%p12) target = $region8
    $region5: #{net_forward.27} parent=1 // loop_body
      %s16 = ssub.s32 %s11, 1
      %s17 = ssub.s32 %s11, 2
      %s18 = sadd.s32 %s11, 1
      %s20 = sadd.s32 %s19, 1
      %p23 = scmp.eq.s32.totalorder %s11, 2
      %p24 = scmp.ne.s32.totalorder %s19, %s21
      %p25 = scmp.eq.s32.totalorder %s11, 0
      %p26 = por %p24, %p25
      %p27 = scmp.ne.s32.totalorder %s19, %s21
      %p28 = scmp.eq.s32.totalorder %s16, 2
      %p29 = por %p27, %p28
      %p30 = scmp.ne.s32.totalorder %s21, %s22
      %p31 = scmp.eq.s32.totalorder %s16, 0
      %p32 = por %p30, %p31
      %p33 = scmp.ne.s32.totalorder %s21, %s22
      %p34 = scmp.eq.s32.totalorder %s17, 2
      %p35 = por %p33, %p34
      %p37 = scmp.ne.s32.totalorder %s22, %s36
      %p38 = scmp.eq.s32.totalorder %s17, 0
      %p39 = por %p37, %p38
      %s40 = ssub.s32 %s11, %s18
      %p41 = scmp.eq.s32.totalorder %s40, 0
      %s43 = sadd.s32 %s42, 1
      %s44 = scalar_select %p41, %s42, %s43
      %p47 = pneg %p41
      %p48 = scmp.eq.s32.totalorder %s11, 2
      %p49 = por %p47, %p48
      %p50 = scmp.ne.s32.totalorder %s42, %s45
      %p51 = scmp.eq.s32.totalorder %s11, 0
      %p52 = por %p50, %p51
      %p53 = scmp.ne.s32.totalorder %s42, %s45
      %p54 = scmp.eq.s32.totalorder %s16, 2
      %p55 = por %p53, %p54
      %p56 = scmp.ne.s32.totalorder %s45, %s46
      %p57 = scmp.eq.s32.totalorder %s16, 0
      %p58 = por %p56, %p57
      %p59 = scmp.ne.s32.totalorder %s45, %s46
      %p60 = scmp.eq.s32.totalorder %s17, 2
      %p61 = por %p59, %p60
      %p63 = scmp.ne.s32.totalorder %s46, %s62
      %p64 = scmp.eq.s32.totalorder %s17, 0
      %p65 = por %p63, %p64
      %s66 = ssub.s32 %s11, %s18
      %p67 = scmp.eq.s32.totalorder %s66, 0
      %s69 = sadd.s32 %s68, 1
      %s70 = scalar_select %p67, %s68, %s69
      %p73 = pneg %p67
      %p74 = scmp.eq.s32.totalorder %s11, 2
      %p75 = por %p73, %p74
      %p76 = scmp.ne.s32.totalorder %s68, %s71
      %p77 = scmp.eq.s32.totalorder %s11, 0
      %p78 = por %p76, %p77
      %p79 = scmp.ne.s32.totalorder %s68, %s71
      %p80 = scmp.eq.s32.totalorder %s16, 2
      %p81 = por %p79, %p80
      %p82 = scmp.ne.s32.totalorder %s71, %s72
      %p83 = scmp.eq.s32.totalorder %s16, 0
      %p84 = por %p82, %p83
      %p85 = scmp.ne.s32.totalorder %s71, %s72
      %p86 = scmp.eq.s32.totalorder %s17, 2
      %p87 = por %p85, %p86
      %p89 = scmp.ne.s32.totalorder %s72, %s88
      %p90 = scmp.eq.s32.totalorder %s17, 0
      %p91 = por %p89, %p90
      %s92 = ssub.s32 %s11, %s18
      %p93 = scmp.eq.s32.totalorder %s92, 0
      %s95 = sadd.s32 %s94, 1
      %s96 = scalar_select %p93, %s94, %s95
      %p99 = pneg %p93
      %p100 = scmp.eq.s32.totalorder %s11, 2
      %p101 = por %p99, %p100
      %p102 = scmp.ne.s32.totalorder %s94, %s97
      %p103 = scmp.eq.s32.totalorder %s11, 0
      %p104 = por %p102, %p103
      %p105 = scmp.ne.s32.totalorder %s94, %s97
      %p106 = scmp.eq.s32.totalorder %s16, 2
      %p107 = por %p105, %p106
      %p108 = scmp.ne.s32.totalorder %s97, %s98
      %p109 = scmp.eq.s32.totalorder %s16, 0
      %p110 = por %p108, %p109
      %p111 = scmp.ne.s32.totalorder %s97, %s98
      %p112 = scmp.eq.s32.totalorder %s17, 2
      %p113 = por %p111, %p112
      %p115 = scmp.ne.s32.totalorder %s98, %s114
      %p116 = scmp.eq.s32.totalorder %s17, 0
      %p117 = por %p115, %p116
      %s118 = ssub.s32 %s11, %s18
      %p119 = scmp.eq.s32.totalorder %s118, 0
      %s121 = sadd.s32 %s120, 1
      %s122 = scalar_select %p119, %s120, %s121
      %p125 = pneg %p119
      %p126 = scmp.eq.s32.totalorder %s11, 2
      %p127 = por %p125, %p126
      %p128 = scmp.ne.s32.totalorder %s120, %s123
      %p129 = scmp.eq.s32.totalorder %s11, 0
      %p130 = por %p128, %p129
      %p131 = scmp.ne.s32.totalorder %s120, %s123
      %p132 = scmp.eq.s32.totalorder %s16, 2
      %p133 = por %p131, %p132
      %p134 = scmp.ne.s32.totalorder %s123, %s124
      %p135 = scmp.eq.s32.totalorder %s16, 0
      %p136 = por %p134, %p135
      %p137 = scmp.ne.s32.totalorder %s123, %s124
      %p138 = scmp.eq.s32.totalorder %s17, 2
      %p139 = por %p137, %p138
      %p141 = scmp.ne.s32.totalorder %s124, %s140
      %p142 = scmp.eq.s32.totalorder %s17, 0
      %p143 = por %p141, %p142
      %p144 = scmp.le.s32.totalorder 1, %s11
      %p145 = scmp.lt.s32.totalorder %s11, 4
      %p146 = pnand %p144, %p145
      %p147 = pneg %p146
      // Predicated region
      $region9: #{net_forward.27} parent=5 // pred_check
        _
      $region10: #{net_forward.27} parent=5 // pred_check_branch
        %149 = sbr.rel (%p146) target = $region12
      $region11: #{net_forward.27} parent=5 // pred_region
        %s150 = ssub.s32 %s11, 1
        // Predicated region
        $region13: #{net_forward.27} parent=11 // pred_check
          %p151 = pneg %p32
        $region14: #{net_forward.27} parent=11 // pred_check_branch
          %153 = sbr.rel (%p151) target = $region16
        $region15: #{net_forward.27} parent=11 // pred_region
          %s155 = ssub.s32 16, 16
          %156 = vsyncadd [#allocation3], %s155
          %s158 = sshll.u32 %s0, 4
          %s159 = int_to_ptr.vmem [resolvable:$true] %s158
          %161 = dma.vmem_to_smem %s159, 16, [#allocation2], [#allocation3]
        $region16: #{net_forward.27} parent=11 // pred_fallthru
          _
      $region12: #{net_forward.27} parent=5 // pred_fallthru
        _
      %p162 = scmp.lt.s32.totalorder %s11, 3
      // Predicated region
      $region17: #{net_forward.27} parent=5 // pred_check
        %p163 = pneg %p162
      $region18: #{net_forward.27} parent=5 // pred_check_branch
        %165 = sbr.rel (%p163) target = $region20
      $region19: #{net_forward.27} parent=5 // pred_region
        // Predicated region
        $region21: #{net_forward.27} parent=19 // pred_check
          %p166 = pneg %p52
        $region22: #{net_forward.27} parent=19 // pred_check_branch
          %168 = sbr.rel (%p166) target = $region24
        $region23: #{net_forward.27} parent=19 // pred_region
          %p169 = scmp.lt.s32.totalorder %s11, 2
          %s170 = scalar_select %p169, %s11, 2
          %s171 = smul.addr %s170, 64
          %s172 = smul.addr %s171, 4
          %s173 = scalar_lea.vmem %s1, %s172
        $region24: #{net_forward.27} parent=19 // pred_fallthru
          _
        // Predicated region
        $region25: #{net_forward.27} parent=19 // pred_check
          %p174 = pneg %p78
        $region26: #{net_forward.27} parent=19 // pred_check_branch
          %176 = sbr.rel (%p174) target = $region28
        $region27: #{net_forward.27} parent=19 // pred_region
          %p177 = scmp.lt.s32.totalorder %s11, 2
          %s178 = scalar_select %p177, %s11, 2
          %s179 = smul.addr %s178, 4
          %s180 = smul.addr %s179, 4
          %s181 = scalar_lea.vmem %s2, %s180
        $region28: #{net_forward.27} parent=19 // pred_fallthru
          _
        // Predicated region
        $region29: #{net_forward.27} parent=19 // pred_check
          %p182 = pneg %p104
        $region30: #{net_forward.27} parent=19 // pred_check_branch
          %184 = sbr.rel (%p182) target = $region32
        $region31: #{net_forward.27} parent=19 // pred_region
          %p185 = scmp.lt.s32.totalorder %s11, 2
          %s186 = scalar_select %p185, %s11, 2
          %s187 = smul.addr %s186, 8
          %s188 = scalar_lea.vmem %s3, %s187
        $region32: #{net_forward.27} parent=19 // pred_fallthru
          _
      $region20: #{net_forward.27} parent=5 // pred_fallthru
        _
      %p189 = scmp.le.s32.totalorder 1, %s11
      %p190 = scmp.lt.s32.totalorder %s11, 4
      %p191 = pnand %p189, %p190
      %p192 = pneg %p191
      // Predicated region
      $region33: #{net_forward.27} parent=5 // pred_check
        _
      $region34: #{net_forward.27} parent=5 // pred_check_branch
        %194 = sbr.rel (%p191) target = $region36
      $region35: #{net_forward.27} parent=5 // pred_region
        %s195 = ssub.s32 %s11, 1
        // Predicated region
        $region37: #{net_forward.27} parent=35 // pred_check
          %p196 = pneg %p32
        $region38: #{net_forward.27} parent=35 // pred_check_branch
          %198 = sbr.rel (%p196) target = $region40
        $region39: #{net_forward.27} parent=35 // pred_region
          %199 = dma.done [#allocation3], 16
        $region40: #{net_forward.27} parent=35 // pred_fallthru
          _
        %200 = sfence
        %p201 = pneg %p32
        %p202 = pneg %p29
        %p203 = scmp.lt.s32.totalorder %s16, 2
        %s204 = scalar_select %p203, %s16, 2
        %s205 = smul.addr %s204, 64
        %s206 = smul.addr %s205, 4
        %s207 = scalar_lea.vmem %s1, %s206
        %p208 = pneg %p58
        %p209 = pneg %p55
        %p210 = scmp.lt.s32.totalorder %s16, 2
        %s211 = scalar_select %p210, %s16, 2
        %s212 = smul.addr %s211, 4
        %s213 = smul.addr %s212, 4
        %s214 = scalar_lea.vmem %s2, %s213
        %p215 = pneg %p84
        %p216 = pneg %p81
        %p217 = scmp.lt.s32.totalorder %s16, 2
        %s218 = scalar_select %p217, %s16, 2
        %s219 = smul.addr %s218, 8
        %s220 = scalar_lea.vmem %s3, %s219
        %p221 = pneg %p110
        %p222 = pneg %p107
        %p223 = pneg %p136
        %p224 = pneg %p133
        %p225 = scmp.lt.s32.totalorder %s16, 2
        %s226 = scalar_select %p225, %s16, 2
        %s227 = smul.addr %s226, 4
        %s228 = scalar_lea.vmem %s4, %s227
        %p229 = scmp.lt.s32.totalorder %s16, 2
        %s230 = scalar_select %p229, %s16, 2
        %s231 = smul.addr %s230, 64
        %s232 = smul.addr %s231, 4
        %s233 = scalar_lea.vmem %s1, %s232
        %p234 = scmp.lt.s32.totalorder %s16, 2
        %s235 = scalar_select %p234, %s16, 2
        %s236 = smul.addr %s235, 4
        %s237 = smul.addr %s236, 4
        %s238 = scalar_lea.vmem %s2, %s237
        %p239 = scmp.lt.s32.totalorder %s16, 2
        %s240 = scalar_select %p239, %s16, 2
        %s241 = smul.addr %s240, 8
        %s242 = scalar_lea.vmem %s3, %s241
        %p243 = scmp.lt.s32.totalorder %s16, 2
        %s244 = scalar_select %p243, %s16, 2
        %s245 = smul.addr %s244, 4
        %s246 = scalar_lea.vmem %s4, %s245
        %v248 = vld [vmem:[%s238] sm:$0xff]
        %v249 = vld [vmem:[%s238 + $0x8] sm:$0xff]
        %v250 = vld [vmem:[%s233] sm:$0xf]
        %v251 = vld [vmem:[%s233 + $0x4] sm:$0xf]
        %v252 = vld [vmem:[%s233 + $0x8] sm:$0xf]
        %v253 = vld [vmem:[%s233 + $0xc] sm:$0xf]
        %v254 = vld [vmem:[%s233 + $0x10] sm:$0xf]
        %v255 = vld [vmem:[%s233 + $0x14] sm:$0xf]
        %v256 = vld [vmem:[%s233 + $0x18] sm:$0xf]
        %v257 = vld [vmem:[%s233 + $0x1c] sm:$0xf]
        %v258 = vld [vmem:[%s233 + $0x20] sm:$0xf]
        %v259 = vld [vmem:[%s233 + $0x24] sm:$0xf]
        %v260 = vld [vmem:[%s233 + $0x28] sm:$0xf]
        %v261 = vld [vmem:[%s233 + $0x2c] sm:$0xf]
        %v262 = vld [vmem:[%s233 + $0x30] sm:$0xf]
        %v263 = vld [vmem:[%s233 + $0x34] sm:$0xf]
        %v264 = vld [vmem:[%s233 + $0x38] sm:$0xf]
        %v265 = vld [vmem:[%s233 + $0x3c] sm:$0xf]
        %v266 = vld [vmem:[%s233 + $0x40] sm:$0xf]
        %v267 = vld [vmem:[%s233 + $0x44] sm:$0xf]
        %v268 = vld [vmem:[%s233 + $0x48] sm:$0xf]
        %v269 = vld [vmem:[%s233 + $0x4c] sm:$0xf]
        %v270 = vld [vmem:[%s233 + $0x50] sm:$0xf]
        %v271 = vld [vmem:[%s233 + $0x54] sm:$0xf]
        %v272 = vld [vmem:[%s233 + $0x58] sm:$0xf]
        %v273 = vld [vmem:[%s233 + $0x5c] sm:$0xf]
        %v274 = vld [vmem:[%s233 + $0x60] sm:$0xf]
        %v275 = vld [vmem:[%s233 + $0x64] sm:$0xf]
        %v276 = vld [vmem:[%s233 + $0x68] sm:$0xf]
        %v277 = vld [vmem:[%s233 + $0x6c] sm:$0xf]
        %v278 = vld [vmem:[%s233 + $0x70] sm:$0xf]
        %v279 = vld [vmem:[%s233 + $0x74] sm:$0xf]
        %v280 = vld [vmem:[%s233 + $0x78] sm:$0xf]
        %v281 = vld [vmem:[%s233 + $0x7c] sm:$0xf]
        %v282 = vld [vmem:[%s233 + $0x80] sm:$0xf]
        %v283 = vld [vmem:[%s233 + $0x84] sm:$0xf]
        %v284 = vld [vmem:[%s233 + $0x88] sm:$0xf]
        %v285 = vld [vmem:[%s233 + $0x8c] sm:$0xf]
        %v286 = vld [vmem:[%s233 + $0x90] sm:$0xf]
        %v287 = vld [vmem:[%s233 + $0x94] sm:$0xf]
        %v288 = vld [vmem:[%s233 + $0x98] sm:$0xf]
        %v289 = vld [vmem:[%s233 + $0x9c] sm:$0xf]
        %v290 = vld [vmem:[%s233 + $0xa0] sm:$0xf]
        %v291 = vld [vmem:[%s233 + $0xa4] sm:$0xf]
        %v292 = vld [vmem:[%s233 + $0xa8] sm:$0xf]
        %v293 = vld [vmem:[%s233 + $0xac] sm:$0xf]
        %v294 = vld [vmem:[%s233 + $0xb0] sm:$0xf]
        %v295 = vld [vmem:[%s233 + $0xb4] sm:$0xf]
        %v296 = vld [vmem:[%s233 + $0xb8] sm:$0xf]
        %v297 = vld [vmem:[%s233 + $0xbc] sm:$0xf]
        %v298 = vld [vmem:[%s233 + $0xc0] sm:$0xf]
        %v299 = vld [vmem:[%s233 + $0xc4] sm:$0xf]
        %v300 = vld [vmem:[%s233 + $0xc8] sm:$0xf]
        %v301 = vld [vmem:[%s233 + $0xcc] sm:$0xf]
        %v302 = vld [vmem:[%s233 + $0xd0] sm:$0xf]
        %v303 = vld [vmem:[%s233 + $0xd4] sm:$0xf]
        %v304 = vld [vmem:[%s233 + $0xd8] sm:$0xf]
        %v305 = vld [vmem:[%s233 + $0xdc] sm:$0xf]
        %v306 = vld [vmem:[%s233 + $0xe0] sm:$0xf]
        %v307 = vld [vmem:[%s233 + $0xe4] sm:$0xf]
        %v308 = vld [vmem:[%s233 + $0xe8] sm:$0xf]
        %v309 = vld [vmem:[%s233 + $0xec] sm:$0xf]
        %v310 = vld [vmem:[%s233 + $0xf0] sm:$0xf]
        %v311 = vld [vmem:[%s233 + $0xf4] sm:$0xf]
        %v312 = vld [vmem:[%s233 + $0xf8] sm:$0xf]
        %v313 = vld [vmem:[%s233 + $0xfc] sm:$0xf]
        %v314 = vld [vmem:[%s242] sm:$0xff]
        %316 = vset.pattern.permute.xlu0 0
        %317 = vperm.xlu0 %316, %v314
        %v318 = vpop.permute.xlu0 %317
        %v322 = vunpack.c.l.b16 %v248
        %v323 = vunpack.c.h.b16 %v248
        %v324 = vunpack.c.l.b16 %v249
        %v325 = vunpack.c.h.b16 %v249
        %v326 = vpack.c.b16 %v322, %v322
        %v327 = vpack.c.b16 %v323, %v323
        %v328 = vpack.c.b16 %v324, %v324
        %v329 = vpack.c.b16 %v325, %v325
        %v398 = vunpack.c.l.b16 %v250
        %v399 = vunpack.c.l.b16 %v251
        %v400 = vunpack.c.l.b16 %v252
        %v401 = vunpack.c.l.b16 %v253
        %v402 = vunpack.c.l.b16 %v254
        %v403 = vunpack.c.l.b16 %v255
        %v404 = vunpack.c.l.b16 %v256
        %v405 = vunpack.c.l.b16 %v257
        %v406 = vunpack.c.l.b16 %v258
        %v407 = vunpack.c.l.b16 %v259
        %v408 = vunpack.c.l.b16 %v260
        %v409 = vunpack.c.l.b16 %v261
        %v410 = vunpack.c.l.b16 %v262
        %v411 = vunpack.c.l.b16 %v263
        %v412 = vunpack.c.l.b16 %v264
        %v413 = vunpack.c.l.b16 %v265
        %v414 = vunpack.c.l.b16 %v266
        %v415 = vunpack.c.l.b16 %v267
        %v416 = vunpack.c.l.b16 %v268
        %v417 = vunpack.c.l.b16 %v269
        %v418 = vunpack.c.l.b16 %v270
        %v419 = vunpack.c.l.b16 %v271
        %v420 = vunpack.c.l.b16 %v272
        %v421 = vunpack.c.l.b16 %v273
        %v422 = vunpack.c.l.b16 %v274
        %v423 = vunpack.c.l.b16 %v275
        %v424 = vunpack.c.l.b16 %v276
        %v425 = vunpack.c.l.b16 %v277
        %v426 = vunpack.c.l.b16 %v278
        %v427 = vunpack.c.l.b16 %v279
        %v428 = vunpack.c.l.b16 %v280
        %v429 = vunpack.c.l.b16 %v281
        %v430 = vunpack.c.l.b16 %v282
        %v431 = vunpack.c.l.b16 %v283
        %v432 = vunpack.c.l.b16 %v284
        %v433 = vunpack.c.l.b16 %v285
        %v434 = vunpack.c.l.b16 %v286
        %v435 = vunpack.c.l.b16 %v287
        %v436 = vunpack.c.l.b16 %v288
        %v437 = vunpack.c.l.b16 %v289
        %v438 = vunpack.c.l.b16 %v290
        %v439 = vunpack.c.l.b16 %v291
        %v440 = vunpack.c.l.b16 %v292
        %v441 = vunpack.c.l.b16 %v293
        %v442 = vunpack.c.l.b16 %v294
        %v443 = vunpack.c.l.b16 %v295
        %v444 = vunpack.c.l.b16 %v296
        %v445 = vunpack.c.l.b16 %v297
        %v446 = vunpack.c.l.b16 %v298
        %v447 = vunpack.c.l.b16 %v299
        %v448 = vunpack.c.l.b16 %v300
        %v449 = vunpack.c.l.b16 %v301
        %v450 = vunpack.c.l.b16 %v302
        %v451 = vunpack.c.l.b16 %v303
        %v452 = vunpack.c.l.b16 %v304
        %v453 = vunpack.c.l.b16 %v305
        %v454 = vunpack.c.l.b16 %v306
        %v455 = vunpack.c.l.b16 %v307
        %v456 = vunpack.c.l.b16 %v308
        %v457 = vunpack.c.l.b16 %v309
        %v458 = vunpack.c.l.b16 %v310
        %v459 = vunpack.c.l.b16 %v311
        %v460 = vunpack.c.l.b16 %v312
        %v461 = vunpack.c.l.b16 %v313
        %v462 = vpack.c.b16 %v399, %v398
        %v463 = vpack.c.b16 %v401, %v400
        %v464 = vpack.c.b16 %v403, %v402
        %v465 = vpack.c.b16 %v405, %v404
        %v466 = vpack.c.b16 %v407, %v406
        %v467 = vpack.c.b16 %v409, %v408
        %v468 = vpack.c.b16 %v411, %v410
        %v469 = vpack.c.b16 %v413, %v412
        %v470 = vpack.c.b16 %v415, %v414
        %v471 = vpack.c.b16 %v417, %v416
        %v472 = vpack.c.b16 %v419, %v418
        %v473 = vpack.c.b16 %v421, %v420
        %v474 = vpack.c.b16 %v423, %v422
        %v475 = vpack.c.b16 %v425, %v424
        %v476 = vpack.c.b16 %v427, %v426
        %v477 = vpack.c.b16 %v429, %v428
        %v478 = vpack.c.b16 %v431, %v430
        %v479 = vpack.c.b16 %v433, %v432
        %v480 = vpack.c.b16 %v435, %v434
        %v481 = vpack.c.b16 %v437, %v436
        %v482 = vpack.c.b16 %v439, %v438
        %v483 = vpack.c.b16 %v441, %v440
        %v484 = vpack.c.b16 %v443, %v442
        %v485 = vpack.c.b16 %v445, %v444
        %v486 = vpack.c.b16 %v447, %v446
        %v487 = vpack.c.b16 %v449, %v448
        %v488 = vpack.c.b16 %v451, %v450
        %v489 = vpack.c.b16 %v453, %v452
        %v490 = vpack.c.b16 %v455, %v454
        %v491 = vpack.c.b16 %v457, %v456
        %v492 = vpack.c.b16 %v459, %v458
        %v493 = vpack.c.b16 %v461, %v460
        %526 = vmatprep.subr.bf16.mxu0 0
        %527 = vmatpush1.bf16.msra.mxu0 %v462
        %528 = vmatprep.subr.bf16.mxu0 0
        %529 = vmatpush1.bf16.msra.mxu0 %v463
        %530 = vmatprep.subr.bf16.mxu0 0
        %531 = vmatpush1.bf16.msra.mxu0 %v464
        %532 = vmatprep.subr.bf16.mxu0 0
        %533 = vmatpush1.bf16.msra.mxu0 %v465
        %534 = vmatprep.subr.bf16.mxu0 0
        %535 = vmatpush1.bf16.msra.mxu0 %v466
        %536 = vmatprep.subr.bf16.mxu0 0
        %537 = vmatpush1.bf16.msra.mxu0 %v467
        %538 = vmatprep.subr.bf16.mxu0 0
        %539 = vmatpush1.bf16.msra.mxu0 %v468
        %540 = vmatprep.subr.bf16.mxu0 0
        %541 = vmatpush1.bf16.msra.mxu0 %v469
        %542 = vmatprep.subr.bf16.mxu0 0
        %543 = vmatpush1.bf16.msra.mxu0 %v470
        %544 = vmatprep.subr.bf16.mxu0 0
        %545 = vmatpush1.bf16.msra.mxu0 %v471
        %546 = vmatprep.subr.bf16.mxu0 0
        %547 = vmatpush1.bf16.msra.mxu0 %v472
        %548 = vmatprep.subr.bf16.mxu0 0
        %549 = vmatpush1.bf16.msra.mxu0 %v473
        %550 = vmatprep.subr.bf16.mxu0 0
        %551 = vmatpush1.bf16.msra.mxu0 %v474
        %552 = vmatprep.subr.bf16.mxu0 0
        %553 = vmatpush1.bf16.msra.mxu0 %v475
        %554 = vmatprep.subr.bf16.mxu0 0
        %555 = vmatpush1.bf16.msra.mxu0 %v476
        %556 = vmatprep.subr.bf16.mxu0 0
        %557 = vmatpush1.bf16.msra.mxu0 %v477
        %558 = vmatprep.mubr.bf16.mxu0 %v327
        %559 = vmatmul.mubr.bf16.gmra.mrb[0].mxu0 %v326
        %v560 = vpop.f32.mrb[0].mxu0
        %v561 = vadd.f32 %v318, %v560
        %v562 = vpop.f32.mrb[0].mxu0
        %v563 = vpop.f32.mrb[0].mxu0
        %v564 = vpop.f32.mrb[0].mxu0
        %565 = vdwg.mxu0
        %566 = vmatprep.subr.bf16.mxu0 0
        %567 = vmatpush1.bf16.msra.mxu0 %v478
        %568 = vmatprep.subr.bf16.mxu0 0
        %569 = vmatpush1.bf16.msra.mxu0 %v479
        %570 = vmatprep.subr.bf16.mxu0 0
        %571 = vmatpush1.bf16.msra.mxu0 %v480
        %572 = vmatprep.subr.bf16.mxu0 0
        %573 = vmatpush1.bf16.msra.mxu0 %v481
        %574 = vmatprep.subr.bf16.mxu0 0
        %575 = vmatpush1.bf16.msra.mxu0 %v482
        %576 = vmatprep.subr.bf16.mxu0 0
        %577 = vmatpush1.bf16.msra.mxu0 %v483
        %578 = vmatprep.subr.bf16.mxu0 0
        %579 = vmatpush1.bf16.msra.mxu0 %v484
        %580 = vmatprep.subr.bf16.mxu0 0
        %581 = vmatpush1.bf16.msra.mxu0 %v485
        %582 = vmatprep.subr.bf16.mxu0 0
        %583 = vmatpush1.bf16.msra.mxu0 %v486
        %584 = vmatprep.subr.bf16.mxu0 0
        %585 = vmatpush1.bf16.msra.mxu0 %v487
        %586 = vmatprep.subr.bf16.mxu0 0
        %587 = vmatpush1.bf16.msra.mxu0 %v488
        %588 = vmatprep.subr.bf16.mxu0 0
        %589 = vmatpush1.bf16.msra.mxu0 %v489
        %590 = vmatprep.subr.bf16.mxu0 0
        %591 = vmatpush1.bf16.msra.mxu0 %v490
        %592 = vmatprep.subr.bf16.mxu0 0
        %593 = vmatpush1.bf16.msra.mxu0 %v491
        %594 = vmatprep.subr.bf16.mxu0 0
        %595 = vmatpush1.bf16.msra.mxu0 %v492
        %596 = vmatprep.subr.bf16.mxu0 0
        %597 = vmatpush1.bf16.msra.mxu0 %v493
        %598 = vmatprep.mubr.bf16.mxu0 %v329
        %599 = vmatmul.mubr.bf16.gmra.mrb[0].mxu0 %v328
        %v600 = vpop.f32.mrb[0].mxu0
        %v601 = vadd.f32 %v561, %v600
        %v602 = vpop.f32.mrb[0].mxu0
        %v603 = vpop.f32.mrb[0].mxu0
        %v604 = vpop.f32.mrb[0].mxu0
        %605 = vdwg.mxu0
        %s606 = sld [smem:[#allocation2 + %s16]]
        %vm607 = vcmp.ge.f32.partialorder %v601, 0.0
        %v608 = vstv %s606
        %v609 = vmul.f32 %v608, %v601
        %v610 = vsel %vm607, %v601, %v609
        %v611 = vpack.c.bf16 %v610, %v610
        %612 = vst [vmem:[%s246] sm:$0xf] %v611
        %p613 = scmp.lt.s32.totalorder %s16, 2
        %s614 = scalar_select %p613, %s16, 2
        %s615 = smul.addr %s614, 4
        %s616 = scalar_lea.vmem %s4, %s615
        // Predicated region
        $region41: #{net_forward.27} parent=35 // pred_check
          %p617 = pneg %p133
        $region42: #{net_forward.27} parent=35 // pred_check_branch
          %619 = sbr.rel (%p617) target = $region44
        $region43: #{net_forward.27} parent=35 // pred_region
          _
        $region44: #{net_forward.27} parent=35 // pred_fallthru
          _
      $region36: #{net_forward.27} parent=5 // pred_fallthru
        _
      %p620 = scmp.le.s32.totalorder 2, %s11
      // Predicated region
      $region45: #{net_forward.27} parent=5 // pred_check
        %p621 = pneg %p620
      $region46: #{net_forward.27} parent=5 // pred_check_branch
        %623 = sbr.rel (%p621) target = $region48
      $region47: #{net_forward.27} parent=5 // pred_region
        %s624 = ssub.s32 %s11, 2
        // Predicated region
        $region49: #{net_forward.27} parent=47 // pred_check
          %p625 = pneg %p139
        $region50: #{net_forward.27} parent=47 // pred_check_branch
          %627 = sbr.rel (%p625) target = $region52
        $region51: #{net_forward.27} parent=47 // pred_region
          %p628 = scmp.lt.s32.totalorder %s17, 2
          %s629 = scalar_select %p628, %s17, 2
          %s630 = smul.addr %s629, 4
          %s631 = scalar_lea.vmem %s4, %s630
        $region52: #{net_forward.27} parent=47 // pred_fallthru
          _
      $region48: #{net_forward.27} parent=5 // pred_fallthru
        _
    $region6: #{net_forward.27} parent=1 // loop_footer
      %s15 = sadd.s32 1, %s11
    $region7: #{net_forward.27} parent=1 // loop_footer_branch
      %10 = sbr.rel target = $region3
    $region8: #{net_forward.27} parent=1 // loop_exit
      _
    %632 = vsyncpa [#allocation3], 1
    %s633 = scalar_lea.sflag [#allocation3], 1
    %634 = vsyncpa %s633, 1

// kernel: net_forward.28
$region0: #{net_forward.28}
  #allocation0 [shape = 'u32[]', space=smem, size = 0x4, offset = 0x4, fixed_abs, tag = 'smem constant byte address 0x4 - core index']
  #allocation1 [shape = 'u32[144,128]{1,0:T(1,128)}', space=vmem, size = 0x12000, scoped, tag = 'internal scratch']
  %s0 = inlined_call_operand.vmem [shape: f32[3], index: 0, kind: input, shape index: {}]
  %s1 = inlined_call_operand.vmem [shape: bf16[3,256,768], index: 1, kind: input, shape index: {}]
  %s2 = inlined_call_operand.vmem [shape: bf16[3,8,256], index: 2, kind: input, shape index: {}]
  %s3 = inlined_call_operand.vmem [shape: f32[3,8,1], index: 3, kind: input, shape index: {}]
  %s4 = inlined_call_operand.vmem [shape: bf16[3,8,768], index: 4, kind: output, shape index: {}]
  %s5 = sld [smem:[#allocation0]]
  $region53: #{net_forward.28} parent=0
    _
  %s7 = ssub.s32 1, %s5
  %s8 = scalar_select 0, %s7, %s5
  $region1: #{net_forward.28} parent=0
    #allocation2 [shape = 'u8[512]{0}', space=smem, size = 0x200, scoped, tag = 'input window, operand 0, single buffered']
    #allocation3 [shape = 's32[2]{0}', space=sflag, size = 0x8, scoped, tag = 'scoped memory for net_forward.28']
    %9 = vsyncpa [#allocation3], 0
    loop: start=0, step=1, limit=5
    $region2: #{net_forward.28} parent=1 // loop_pre_header
      _
    $region3: #{net_forward.28} parent=1 // loop_header
      %s11 = sphi 0, %s15
      %p12 = scmp.ge.s32.totalorder %s11, 5
      %s19 = sphi 0, %s19
      %s21 = sphi 0, %s19
      %s22 = sphi 0, %s21
      %s36 = sphi 0, %s22
      %s42 = sphi 0, %s44
      %s45 = sphi 0, %s42
      %s46 = sphi 0, %s45
      %s62 = sphi 0, %s46
      %s68 = sphi 0, %s70
      %s71 = sphi 0, %s68
      %s72 = sphi 0, %s71
      %s88 = sphi 0, %s72
      %s94 = sphi 0, %s96
      %s97 = sphi 0, %s94
      %s98 = sphi 0, %s97
      %s114 = sphi 0, %s98
      %s120 = sphi 0, %s122
      %s123 = sphi 0, %s120
      %s124 = sphi 0, %s123
      %s140 = sphi 0, %s124
    $region4: #{net_forward.28} parent=1 // loop_header_branch
      %14 = sbr.rel (%p12) target = $region8
    $region5: #{net_forward.28} parent=1 // loop_body
      %s16 = ssub.s32 %s11, 1
      %s17 = ssub.s32 %s11, 2
      %s18 = sadd.s32 %s11, 1
      %s20 = sadd.s32 %s19, 1
      %p23 = scmp.eq.s32.totalorder %s11, 2
      %p24 = scmp.ne.s32.totalorder %s19, %s21
      %p25 = scmp.eq.s32.totalorder %s11, 0
      %p26 = por %p24, %p25
      %p27 = scmp.ne.s32.totalorder %s19, %s21
      %p28 = scmp.eq.s32.totalorder %s16, 2
      %p29 = por %p27, %p28
      %p30 = scmp.ne.s32.totalorder %s21, %s22
      %p31 = scmp.eq.s32.totalorder %s16, 0
      %p32 = por %p30, %p31
      %p33 = scmp.ne.s32.totalorder %s21, %s22
      %p34 = scmp.eq.s32.totalorder %s17, 2
      %p35 = por %p33, %p34
      %p37 = scmp.ne.s32.totalorder %s22, %s36
      %p38 = scmp.eq.s32.totalorder %s17, 0
      %p39 = por %p37, %p38
      %s40 = ssub.s32 %s11, %s18
      %p41 = scmp.eq.s32.totalorder %s40, 0
      %s43 = sadd.s32 %s42, 1
      %s44 = scalar_select %p41, %s42, %s43
      %p47 = pneg %p41
      %p48 = scmp.eq.s32.totalorder %s11, 2
      %p49 = por %p47, %p48
      %p50 = scmp.ne.s32.totalorder %s42, %s45
      %p51 = scmp.eq.s32.totalorder %s11, 0
      %p52 = por %p50, %p51
      %p53 = scmp.ne.s32.totalorder %s42, %s45
      %p54 = scmp.eq.s32.totalorder %s16, 2
      %p55 = por %p53, %p54
      %p56 = scmp.ne.s32.totalorder %s45, %s46
      %p57 = scmp.eq.s32.totalorder %s16, 0
      %p58 = por %p56, %p57
      %p59 = scmp.ne.s32.totalorder %s45, %s46
      %p60 = scmp.eq.s32.totalorder %s17, 2
      %p61 = por %p59, %p60
      %p63 = scmp.ne.s32.totalorder %s46, %s62
      %p64 = scmp.eq.s32.totalorder %s17, 0
      %p65 = por %p63, %p64
      %s66 = ssub.s32 %s11, %s18
      %p67 = scmp.eq.s32.totalorder %s66, 0
      %s69 = sadd.s32 %s68, 1
      %s70 = scalar_select %p67, %s68, %s69
      %p73 = pneg %p67
      %p74 = scmp.eq.s32.totalorder %s11, 2
      %p75 = por %p73, %p74
      %p76 = scmp.ne.s32.totalorder %s68, %s71
      %p77 = scmp.eq.s32.totalorder %s11, 0
      %p78 = por %p76, %p77
      %p79 = scmp.ne.s32.totalorder %s68, %s71
      %p80 = scmp.eq.s32.totalorder %s16, 2
      %p81 = por %p79, %p80
      %p82 = scmp.ne.s32.totalorder %s71, %s72
      %p83 = scmp.eq.s32.totalorder %s16, 0
      %p84 = por %p82, %p83
      %p85 = scmp.ne.s32.totalorder %s71, %s72
      %p86 = scmp.eq.s32.totalorder %s17, 2
      %p87 = por %p85, %p86
      %p89 = scmp.ne.s32.totalorder %s72, %s88
      %p90 = scmp.eq.s32.totalorder %s17, 0
      %p91 = por %p89, %p90
      %s92 = ssub.s32 %s11, %s18
      %p93 = scmp.eq.s32.totalorder %s92, 0
      %s95 = sadd.s32 %s94, 1
      %s96 = scalar_select %p93, %s94, %s95
      %p99 = pneg %p93
      %p100 = scmp.eq.s32.totalorder %s11, 2
      %p101 = por %p99, %p100
      %p102 = scmp.ne.s32.totalorder %s94, %s97
      %p103 = scmp.eq.s32.totalorder %s11, 0
      %p104 = por %p102, %p103
      %p105 = scmp.ne.s32.totalorder %s94, %s97
      %p106 = scmp.eq.s32.totalorder %s16, 2
      %p107 = por %p105, %p106
      %p108 = scmp.ne.s32.totalorder %s97, %s98
      %p109 = scmp.eq.s32.totalorder %s16, 0
      %p110 = por %p108, %p109
      %p111 = scmp.ne.s32.totalorder %s97, %s98
      %p112 = scmp.eq.s32.totalorder %s17, 2
      %p113 = por %p111, %p112
      %p115 = scmp.ne.s32.totalorder %s98, %s114
      %p116 = scmp.eq.s32.totalorder %s17, 0
      %p117 = por %p115, %p116
      %s118 = ssub.s32 %s11, %s18
      %p119 = scmp.eq.s32.totalorder %s118, 0
      %s121 = sadd.s32 %s120, 1
      %s122 = scalar_select %p119, %s120, %s121
      %p125 = pneg %p119
      %p126 = scmp.eq.s32.totalorder %s11, 2
      %p127 = por %p125, %p126
      %p128 = scmp.ne.s32.totalorder %s120, %s123
      %p129 = scmp.eq.s32.totalorder %s11, 0
      %p130 = por %p128, %p129
      %p131 = scmp.ne.s32.totalorder %s120, %s123
      %p132 = scmp.eq.s32.totalorder %s16, 2
      %p133 = por %p131, %p132
      %p134 = scmp.ne.s32.totalorder %s123, %s124
      %p135 = scmp.eq.s32.totalorder %s16, 0
      %p136 = por %p134, %p135
      %p137 = scmp.ne.s32.totalorder %s123, %s124
      %p138 = scmp.eq.s32.totalorder %s17, 2
      %p139 = por %p137, %p138
      %p141 = scmp.ne.s32.totalorder %s124, %s140
      %p142 = scmp.eq.s32.totalorder %s17, 0
      %p143 = por %p141, %p142
      %p144 = scmp.le.s32.totalorder 1, %s11
      %p145 = scmp.lt.s32.totalorder %s11, 4
      %p146 = pnand %p144, %p145
      %p147 = pneg %p146
      // Predicated region
      $region9: #{net_forward.28} parent=5 // pred_check
        _
      $region10: #{net_forward.28} parent=5 // pred_check_branch
        %149 = sbr.rel (%p146) target = $region12
      $region11: #{net_forward.28} parent=5 // pred_region
        %s150 = ssub.s32 %s11, 1
        // Predicated region
        $region13: #{net_forward.28} parent=11 // pred_check
          %p151 = pneg %p32
        $region14: #{net_forward.28} parent=11 // pred_check_branch
          %153 = sbr.rel (%p151) target = $region16
        $region15: #{net_forward.28} parent=11 // pred_region
          %s155 = ssub.s32 16, 16
          %156 = vsyncadd [#allocation3], %s155
          %s158 = sshll.u32 %s0, 4
          %s159 = int_to_ptr.vmem [resolvable:$true] %s158
          %161 = dma.vmem_to_smem %s159, 16, [#allocation2], [#allocation3]
        $region16: #{net_forward.28} parent=11 // pred_fallthru
          _
      $region12: #{net_forward.28} parent=5 // pred_fallthru
        _
      %p162 = scmp.lt.s32.totalorder %s11, 3
      // Predicated region
      $region17: #{net_forward.28} parent=5 // pred_check
        %p163 = pneg %p162
      $region18: #{net_forward.28} parent=5 // pred_check_branch
        %165 = sbr.rel (%p163) target = $region20
      $region19: #{net_forward.28} parent=5 // pred_region
        // Predicated region
        $region21: #{net_forward.28} parent=19 // pred_check
          %p166 = pneg %p52
        $region22: #{net_forward.28} parent=19 // pred_check_branch
          %168 = sbr.rel (%p166) target = $region24
        $region23: #{net_forward.28} parent=19 // pred_region
          %p169 = scmp.lt.s32.totalorder %s11, 2
          %s170 = scalar_select %p169, %s11, 2
          %s171 = smul.addr %s170, 192
          %s172 = smul.addr %s171, 4
          %s173 = scalar_lea.vmem %s1, %s172
        $region24: #{net_forward.28} parent=19 // pred_fallthru
          _
        // Predicated region
        $region25: #{net_forward.28} parent=19 // pred_check
          %p174 = pneg %p78
        $region26: #{net_forward.28} parent=19 // pred_check_branch
          %176 = sbr.rel (%p174) target = $region28
        $region27: #{net_forward.28} parent=19 // pred_region
          %p177 = scmp.lt.s32.totalorder %s11, 2
          %s178 = scalar_select %p177, %s11, 2
          %s179 = smul.addr %s178, 2
          %s180 = smul.addr %s179, 4
          %s181 = scalar_lea.vmem %s2, %s180
        $region28: #{net_forward.28} parent=19 // pred_fallthru
          _
        // Predicated region
        $region29: #{net_forward.28} parent=19 // pred_check
          %p182 = pneg %p104
        $region30: #{net_forward.28} parent=19 // pred_check_branch
          %184 = sbr.rel (%p182) target = $region32
        $region31: #{net_forward.28} parent=19 // pred_region
          %p185 = scmp.lt.s32.totalorder %s11, 2
          %s186 = scalar_select %p185, %s11, 2
          %s187 = smul.addr %s186, 8
          %s188 = scalar_lea.vmem %s3, %s187
        $region32: #{net_forward.28} parent=19 // pred_fallthru
          _
      $region20: #{net_forward.28} parent=5 // pred_fallthru
        _
      %p189 = scmp.le.s32.totalorder 1, %s11
      %p190 = scmp.lt.s32.totalorder %s11, 4
      %p191 = pnand %p189, %p190
      %p192 = pneg %p191
      // Predicated region
      $region33: #{net_forward.28} parent=5 // pred_check
        _
      $region34: #{net_forward.28} parent=5 // pred_check_branch
        %194 = sbr.rel (%p191) target = $region36
      $region35: #{net_forward.28} parent=5 // pred_region
        %s195 = ssub.s32 %s11, 1
        // Predicated region
        $region37: #{net_forward.28} parent=35 // pred_check
          %p196 = pneg %p32
        $region38: #{net_forward.28} parent=35 // pred_check_branch
          %198 = sbr.rel (%p196) target = $region40
        $region39: #{net_forward.28} parent=35 // pred_region
          %199 = dma.done [#allocation3], 16
        $region40: #{net_forward.28} parent=35 // pred_fallthru
          _
        %200 = sfence
        %p201 = pneg %p32
        %p202 = pneg %p29
        %p203 = scmp.lt.s32.totalorder %s16, 2
        %s204 = scalar_select %p203, %s16, 2
        %s205 = smul.addr %s204, 192
        %s206 = smul.addr %s205, 4
        %s207 = scalar_lea.vmem %s1, %s206
        %p208 = pneg %p58
        %p209 = pneg %p55
        %p210 = scmp.lt.s32.totalorder %s16, 2
        %s211 = scalar_select %p210, %s16, 2
        %s212 = smul.addr %s211, 2
        %s213 = smul.addr %s212, 4
        %s214 = scalar_lea.vmem %s2, %s213
        %p215 = pneg %p84
        %p216 = pneg %p81
        %p217 = scmp.lt.s32.totalorder %s16, 2
        %s218 = scalar_select %p217, %s16, 2
        %s219 = smul.addr %s218, 8
        %s220 = scalar_lea.vmem %s3, %s219
        %p221 = pneg %p110
        %p222 = pneg %p107
        %p223 = pneg %p136
        %p224 = pneg %p133
        %p225 = scmp.lt.s32.totalorder %s16, 2
        %s226 = scalar_select %p225, %s16, 2
        %s227 = smul.addr %s226, 6
        %s228 = smul.addr %s227, 4
        %s229 = scalar_lea.vmem %s4, %s228
        %p230 = scmp.lt.s32.totalorder %s16, 2
        %s231 = scalar_select %p230, %s16, 2
        %s232 = smul.addr %s231, 192
        %s233 = smul.addr %s232, 4
        %s234 = scalar_lea.vmem %s1, %s233
        %p235 = scmp.lt.s32.totalorder %s16, 2
        %s236 = scalar_select %p235, %s16, 2
        %s237 = smul.addr %s236, 2
        %s238 = smul.addr %s237, 4
        %s239 = scalar_lea.vmem %s2, %s238
        %p240 = scmp.lt.s32.totalorder %s16, 2
        %s241 = scalar_select %p240, %s16, 2
        %s242 = smul.addr %s241, 8
        %s243 = scalar_lea.vmem %s3, %s242
        %p244 = scmp.lt.s32.totalorder %s16, 2
        %s245 = scalar_select %p244, %s16, 2
        %s246 = smul.addr %s245, 6
        %s247 = smul.addr %s246, 4
        %s248 = scalar_lea.vmem %s4, %s247
        %v249 = vld [vmem:[%s239] sm:$0xff]
        %v250 = vld [vmem:[%s234] sm:$0xff]
        %v251 = vld [vmem:[%s234 + $0x8] sm:$0xff]
        %v252 = vld [vmem:[%s234 + $0x10] sm:$0xff]
        %v253 = vld [vmem:[%s234 + $0x18] sm:$0xff]
        %v254 = vld [vmem:[%s234 + $0x20] sm:$0xff]
        %v255 = vld [vmem:[%s234 + $0x28] sm:$0xff]
        %v256 = vld [vmem:[%s234 + $0x30] sm:$0xff]
        %v257 = vld [vmem:[%s234 + $0x38] sm:$0xff]
        %v258 = vld [vmem:[%s234 + $0x40] sm:$0xff]
        %v259 = vld [vmem:[%s234 + $0x48] sm:$0xff]
        %v260 = vld [vmem:[%s234 + $0x50] sm:$0xff]
        %v261 = vld [vmem:[%s234 + $0x58] sm:$0xff]
        %v262 = vld [vmem:[%s234 + $0x60] sm:$0xff]
        %v263 = vld [vmem:[%s234 + $0x68] sm:$0xff]
        %v264 = vld [vmem:[%s234 + $0x70] sm:$0xff]
        %v265 = vld [vmem:[%s234 + $0x78] sm:$0xff]
        %v266 = vld [vmem:[%s234 + $0x80] sm:$0xff]
        %v267 = vld [vmem:[%s234 + $0x88] sm:$0xff]
        %v268 = vld [vmem:[%s234 + $0x90] sm:$0xff]
        %v269 = vld [vmem:[%s234 + $0x98] sm:$0xff]
        %v270 = vld [vmem:[%s234 + $0xa0] sm:$0xff]
        %v271 = vld [vmem:[%s234 + $0xa8] sm:$0xff]
        %v272 = vld [vmem:[%s234 + $0xb0] sm:$0xff]
        %v273 = vld [vmem:[%s234 + $0xb8] sm:$0xff]
        %v274 = vld [vmem:[%s234 + $0xc0] sm:$0xff]
        %v275 = vld [vmem:[%s234 + $0xc8] sm:$0xff]
        %v276 = vld [vmem:[%s234 + $0xd0] sm:$0xff]
        %v277 = vld [vmem:[%s234 + $0xd8] sm:$0xff]
        %v278 = vld [vmem:[%s234 + $0xe0] sm:$0xff]
        %v279 = vld [vmem:[%s234 + $0xe8] sm:$0xff]
        %v280 = vld [vmem:[%s234 + $0xf0] sm:$0xff]
        %v281 = vld [vmem:[%s234 + $0xf8] sm:$0xff]
        %v282 = vld [vmem:[%s234 + $0x100] sm:$0xff]
        %v283 = vld [vmem:[%s234 + $0x108] sm:$0xff]
        %v284 = vld [vmem:[%s234 + $0x110] sm:$0xff]
        %v285 = vld [vmem:[%s234 + $0x118] sm:$0xff]
        %v286 = vld [vmem:[%s234 + $0x120] sm:$0xff]
        %v287 = vld [vmem:[%s234 + $0x128] sm:$0xff]
        %v288 = vld [vmem:[%s234 + $0x130] sm:$0xff]
        %v289 = vld [vmem:[%s234 + $0x138] sm:$0xff]
        %v290 = vld [vmem:[%s234 + $0x140] sm:$0xff]
        %v291 = vld [vmem:[%s234 + $0x148] sm:$0xff]
        %v292 = vld [vmem:[%s234 + $0x150] sm:$0xff]
        %v293 = vld [vmem:[%s234 + $0x158] sm:$0xff]
        %v294 = vld [vmem:[%s234 + $0x160] sm:$0xff]
        %v295 = vld [vmem:[%s234 + $0x168] sm:$0xff]
        %v296 = vld [vmem:[%s234 + $0x170] sm:$0xff]
        %v297 = vld [vmem:[%s234 + $0x178] sm:$0xff]
        %v298 = vld [vmem:[%s234 + $0x180] sm:$0xff]
        %v299 = vld [vmem:[%s234 + $0x188] sm:$0xff]
        %v300 = vld [vmem:[%s234 + $0x190] sm:$0xff]
        %v301 = vld [vmem:[%s234 + $0x198] sm:$0xff]
        %v302 = vld [vmem:[%s234 + $0x1a0] sm:$0xff]
        %v303 = vld [vmem:[%s234 + $0x1a8] sm:$0xff]
        %v304 = vld [vmem:[%s234 + $0x1b0] sm:$0xff]
        %v305 = vld [vmem:[%s234 + $0x1b8] sm:$0xff]
        %v306 = vld [vmem:[%s234 + $0x1c0] sm:$0xff]
        %v307 = vld [vmem:[%s234 + $0x1c8] sm:$0xff]
        %v308 = vld [vmem:[%s234 + $0x1d0] sm:$0xff]
        %v309 = vld [vmem:[%s234 + $0x1d8] sm:$0xff]
        %v310 = vld [vmem:[%s234 + $0x1e0] sm:$0xff]
        %v311 = vld [vmem:[%s234 + $0x1e8] sm:$0xff]
        %v312 = vld [vmem:[%s234 + $0x1f0] sm:$0xff]
        %v313 = vld [vmem:[%s234 + $0x1f8] sm:$0xff]
        %v314 = vld [vmem:[%s234 + $0x200] sm:$0xff]
        %v315 = vld [vmem:[%s234 + $0x208] sm:$0xff]
        %v316 = vld [vmem:[%s234 + $0x210] sm:$0xff]
        %v317 = vld [vmem:[%s234 + $0x218] sm:$0xff]
        %v318 = vld [vmem:[%s234 + $0x220] sm:$0xff]
        %v319 = vld [vmem:[%s234 + $0x228] sm:$0xff]
        %v320 = vld [vmem:[%s234 + $0x230] sm:$0xff]
        %v321 = vld [vmem:[%s234 + $0x238] sm:$0xff]
        %v322 = vld [vmem:[%s234 + $0x240] sm:$0xff]
        %v323 = vld [vmem:[%s234 + $0x248] sm:$0xff]
        %v324 = vld [vmem:[%s234 + $0x250] sm:$0xff]
        %v325 = vld [vmem:[%s234 + $0x258] sm:$0xff]
        %v326 = vld [vmem:[%s234 + $0x260] sm:$0xff]
        %v327 = vld [vmem:[%s234 + $0x268] sm:$0xff]
        %v328 = vld [vmem:[%s234 + $0x270] sm:$0xff]
        %v329 = vld [vmem:[%s234 + $0x278] sm:$0xff]
        %v330 = vld [vmem:[%s234 + $0x280] sm:$0xff]
        %v331 = vld [vmem:[%s234 + $0x288] sm:$0xff]
        %v332 = vld [vmem:[%s234 + $0x290] sm:$0xff]
        %v333 = vld [vmem:[%s234 + $0x298] sm:$0xff]
        %v334 = vld [vmem:[%s234 + $0x2a0] sm:$0xff]
        %v335 = vld [vmem:[%s234 + $0x2a8] sm:$0xff]
        %v336 = vld [vmem:[%s234 + $0x2b0] sm:$0xff]
        %v337 = vld [vmem:[%s234 + $0x2b8] sm:$0xff]
        %v338 = vld [vmem:[%s234 + $0x2c0] sm:$0xff]
        %v339 = vld [vmem:[%s234 + $0x2c8] sm:$0xff]
        %v340 = vld [vmem:[%s234 + $0x2d0] sm:$0xff]
        %v341 = vld [vmem:[%s234 + $0x2d8] sm:$0xff]
        %v342 = vld [vmem:[%s234 + $0x2e0] sm:$0xff]
        %v343 = vld [vmem:[%s234 + $0x2e8] sm:$0xff]
        %v344 = vld [vmem:[%s234 + $0x2f0] sm:$0xff]
        %v345 = vld [vmem:[%s234 + $0x2f8] sm:$0xff]
        %v346 = vld [vmem:[%s243] sm:$0xff]
        %348 = vset.pattern.permute.xlu0 0
        %349 = vperm.xlu0 %348, %v346
        %v350 = vpop.permute.xlu0 %349
        %v353 = vunpack.c.l.b16 %v249
        %v354 = vunpack.c.h.b16 %v249
        %v355 = vpack.c.b16 %v353, %v353
        %v356 = vpack.c.b16 %v354, %v354
        %v455 = vunpack.c.l.b16 %v250
        %v456 = vunpack.c.h.b16 %v250
        %v457 = vunpack.c.l.b16 %v251
        %v458 = vunpack.c.h.b16 %v251
        %v459 = vunpack.c.l.b16 %v252
        %v460 = vunpack.c.h.b16 %v252
        %v461 = vunpack.c.l.b16 %v253
        %v462 = vunpack.c.h.b16 %v253
        %v463 = vunpack.c.l.b16 %v254
        %v464 = vunpack.c.h.b16 %v254
        %v465 = vunpack.c.l.b16 %v255
        %v466 = vunpack.c.h.b16 %v255
        %v467 = vunpack.c.l.b16 %v256
        %v468 = vunpack.c.h.b16 %v256
        %v469 = vunpack.c.l.b16 %v257
        %v470 = vunpack.c.h.b16 %v257
        %v471 = vunpack.c.l.b16 %v258
        %v472 = vunpack.c.h.b16 %v258
        %v473 = vunpack.c.l.b16 %v259
        %v474 = vunpack.c.h.b16 %v259
        %v475 = vunpack.c.l.b16 %v260
        %v476 = vunpack.c.h.b16 %v260
        %v477 = vunpack.c.l.b16 %v261
        %v478 = vunpack.c.h.b16 %v261
        %v479 = vunpack.c.l.b16 %v262
        %v480 = vunpack.c.h.b16 %v262
        %v481 = vunpack.c.l.b16 %v263
        %v482 = vunpack.c.h.b16 %v263
        %v483 = vunpack.c.l.b16 %v264
        %v484 = vunpack.c.h.b16 %v264
        %v485 = vunpack.c.l.b16 %v265
        %v486 = vunpack.c.h.b16 %v265
        %v487 = vunpack.c.l.b16 %v266
        %v488 = vunpack.c.h.b16 %v266
        %v489 = vunpack.c.l.b16 %v267
        %v490 = vunpack.c.h.b16 %v267
        %v491 = vunpack.c.l.b16 %v268
        %v492 = vunpack.c.h.b16 %v268
        %v493 = vunpack.c.l.b16 %v269
        %v494 = vunpack.c.h.b16 %v269
        %v495 = vunpack.c.l.b16 %v270
        %v496 = vunpack.c.h.b16 %v270
        %v497 = vunpack.c.l.b16 %v271
        %v498 = vunpack.c.h.b16 %v271
        %v499 = vunpack.c.l.b16 %v272
        %v500 = vunpack.c.h.b16 %v272
        %v501 = vunpack.c.l.b16 %v273
        %v502 = vunpack.c.h.b16 %v273
        %v503 = vunpack.c.l.b16 %v274
        %v504 = vunpack.c.h.b16 %v274
        %v505 = vunpack.c.l.b16 %v275
        %v506 = vunpack.c.h.b16 %v275
        %v507 = vunpack.c.l.b16 %v276
        %v508 = vunpack.c.h.b16 %v276
        %v509 = vunpack.c.l.b16 %v277
        %v510 = vunpack.c.h.b16 %v277
        %v511 = vunpack.c.l.b16 %v278
        %v512 = vunpack.c.h.b16 %v278
        %v513 = vunpack.c.l.b16 %v279
        %v514 = vunpack.c.h.b16 %v279
        %v515 = vunpack.c.l.b16 %v280
        %v516 = vunpack.c.h.b16 %v280
        %v517 = vunpack.c.l.b16 %v281
        %v518 = vunpack.c.h.b16 %v281
        %v519 = vunpack.c.l.b16 %v282
        %v520 = vunpack.c.h.b16 %v282
        %v521 = vunpack.c.l.b16 %v283
        %v522 = vunpack.c.h.b16 %v283
        %v523 = vunpack.c.l.b16 %v284
        %v524 = vunpack.c.h.b16 %v284
        %v525 = vunpack.c.l.b16 %v285
        %v526 = vunpack.c.h.b16 %v285
        %v527 = vunpack.c.l.b16 %v286
        %v528 = vunpack.c.h.b16 %v286
        %v529 = vunpack.c.l.b16 %v287
        %v530 = vunpack.c.h.b16 %v287
        %v531 = vunpack.c.l.b16 %v288
        %v532 = vunpack.c.h.b16 %v288
        %v533 = vunpack.c.l.b16 %v289
        %v534 = vunpack.c.h.b16 %v289
        %v535 = vunpack.c.l.b16 %v290
        %v536 = vunpack.c.h.b16 %v290
        %v537 = vunpack.c.l.b16 %v291
        %v538 = vunpack.c.h.b16 %v291
        %v539 = vunpack.c.l.b16 %v292
        %v540 = vunpack.c.h.b16 %v292
        %v541 = vunpack.c.l.b16 %v293
        %v542 = vunpack.c.h.b16 %v293
        %v543 = vunpack.c.l.b16 %v294
        %v544 = vunpack.c.h.b16 %v294
        %v545 = vunpack.c.l.b16 %v295
        %v546 = vunpack.c.h.b16 %v295
        %v547 = vunpack.c.l.b16 %v296
        %v548 = vunpack.c.h.b16 %v296
        %v549 = vunpack.c.l.b16 %v297
        %v550 = vunpack.c.h.b16 %v297
        %v551 = vunpack.c.l.b16 %v298
        %v552 = vunpack.c.h.b16 %v298
        %v553 = vunpack.c.l.b16 %v299
        %v554 = vunpack.c.h.b16 %v299
        %v555 = vunpack.c.l.b16 %v300
        %v556 = vunpack.c.h.b16 %v300
        %v557 = vunpack.c.l.b16 %v301
        %v558 = vunpack.c.h.b16 %v301
        %v559 = vunpack.c.l.b16 %v302
        %v560 = vunpack.c.h.b16 %v302
        %v561 = vunpack.c.l.b16 %v303
        %v562 = vunpack.c.h.b16 %v303
        %v563 = vunpack.c.l.b16 %v304
        %v564 = vunpack.c.h.b16 %v304
        %v565 = vunpack.c.l.b16 %v305
        %v566 = vunpack.c.h.b16 %v305
        %v567 = vunpack.c.l.b16 %v306
        %v568 = vunpack.c.h.b16 %v306
        %v569 = vunpack.c.l.b16 %v307
        %v570 = vunpack.c.h.b16 %v307
        %v571 = vunpack.c.l.b16 %v308
        %v572 = vunpack.c.h.b16 %v308
        %v573 = vunpack.c.l.b16 %v309
        %v574 = vunpack.c.h.b16 %v309
        %v575 = vunpack.c.l.b16 %v310
        %v576 = vunpack.c.h.b16 %v310
        %v577 = vunpack.c.l.b16 %v311
        %v578 = vunpack.c.h.b16 %v311
        %v579 = vunpack.c.l.b16 %v312
        %v580 = vunpack.c.h.b16 %v312
        %v581 = vunpack.c.l.b16 %v313
        %v582 = vunpack.c.h.b16 %v313
        %v583 = vunpack.c.l.b16 %v314
        %v584 = vunpack.c.h.b16 %v314
        %v585 = vunpack.c.l.b16 %v315
        %v586 = vunpack.c.h.b16 %v315
        %v587 = vunpack.c.l.b16 %v316
        %v588 = vunpack.c.h.b16 %v316
        %v589 = vunpack.c.l.b16 %v317
        %v590 = vunpack.c.h.b16 %v317
        %v591 = vunpack.c.l.b16 %v318
        %v592 = vunpack.c.h.b16 %v318
        %v593 = vunpack.c.l.b16 %v319
        %v594 = vunpack.c.h.b16 %v319
        %v595 = vunpack.c.l.b16 %v320
        %v596 = vunpack.c.h.b16 %v320
        %v597 = vunpack.c.l.b16 %v321
        %v598 = vunpack.c.h.b16 %v321
        %v599 = vunpack.c.l.b16 %v322
        %v600 = vunpack.c.h.b16 %v322
        %v601 = vunpack.c.l.b16 %v323
        %v602 = vunpack.c.h.b16 %v323
        %v603 = vunpack.c.l.b16 %v324
        %v604 = vunpack.c.h.b16 %v324
        %v605 = vunpack.c.l.b16 %v325
        %v606 = vunpack.c.h.b16 %v325
        %v607 = vunpack.c.l.b16 %v326
        %v608 = vunpack.c.h.b16 %v326
        %v609 = vunpack.c.l.b16 %v327
        %v610 = vunpack.c.h.b16 %v327
        %v611 = vunpack.c.l.b16 %v328
        %v612 = vunpack.c.h.b16 %v328
        %v613 = vunpack.c.l.b16 %v329
        %v614 = vunpack.c.h.b16 %v329
        %v615 = vunpack.c.l.b16 %v330
        %v616 = vunpack.c.h.b16 %v330
        %v617 = vunpack.c.l.b16 %v331
        %v618 = vunpack.c.h.b16 %v331
        %v619 = vunpack.c.l.b16 %v332
        %v620 = vunpack.c.h.b16 %v332
        %v621 = vunpack.c.l.b16 %v333
        %v622 = vunpack.c.h.b16 %v333
        %v623 = vunpack.c.l.b16 %v334
        %v624 = vunpack.c.h.b16 %v334
        %v625 = vunpack.c.l.b16 %v335
        %v626 = vunpack.c.h.b16 %v335
        %v627 = vunpack.c.l.b16 %v336
        %v628 = vunpack.c.h.b16 %v336
        %v629 = vunpack.c.l.b16 %v337
        %v630 = vunpack.c.h.b16 %v337
        %v631 = vunpack.c.l.b16 %v338
        %v632 = vunpack.c.h.b16 %v338
        %v633 = vunpack.c.l.b16 %v339
        %v634 = vunpack.c.h.b16 %v339
        %v635 = vunpack.c.l.b16 %v340
        %v636 = vunpack.c.h.b16 %v340
        %v637 = vunpack.c.l.b16 %v341
        %v638 = vunpack.c.h.b16 %v341
        %v639 = vunpack.c.l.b16 %v342
        %v640 = vunpack.c.h.b16 %v342
        %v641 = vunpack.c.l.b16 %v343
        %v642 = vunpack.c.h.b16 %v343
        %v643 = vunpack.c.l.b16 %v344
        %v644 = vunpack.c.h.b16 %v344
        %v645 = vunpack.c.l.b16 %v345
        %v646 = vunpack.c.h.b16 %v345
        %v647 = vpack.c.b16 %v461, %v455
        %v648 = vpack.c.b16 %v462, %v456
        %v649 = vpack.c.b16 %v463, %v457
        %v650 = vpack.c.b16 %v464, %v458
        %v651 = vpack.c.b16 %v465, %v459
        %v652 = vpack.c.b16 %v466, %v460
        %v653 = vpack.c.b16 %v473, %v467
        %v654 = vpack.c.b16 %v474, %v468
        %v655 = vpack.c.b16 %v475, %v469
        %v656 = vpack.c.b16 %v476, %v470
        %v657 = vpack.c.b16 %v477, %v471
        %v658 = vpack.c.b16 %v478, %v472
        %v659 = vpack.c.b16 %v485, %v479
        %v660 = vpack.c.b16 %v486, %v480
        %v661 = vpack.c.b16 %v487, %v481
        %v662 = vpack.c.b16 %v488, %v482
        %v663 = vpack.c.b16 %v489, %v483
        %v664 = vpack.c.b16 %v490, %v484
        %v665 = vpack.c.b16 %v497, %v491
        %v666 = vpack.c.b16 %v498, %v492
        %v667 = vpack.c.b16 %v499, %v493
        %v668 = vpack.c.b16 %v500, %v494
        %v669 = vpack.c.b16 %v501, %v495
        %v670 = vpack.c.b16 %v502, %v496
        %v671 = vpack.c.b16 %v509, %v503
        %v672 = vpack.c.b16 %v510, %v504
        %v673 = vpack.c.b16 %v511, %v505
        %v674 = vpack.c.b16 %v512, %v506
        %v675 = vpack.c.b16 %v513, %v507
        %v676 = vpack.c.b16 %v514, %v508
        %v677 = vpack.c.b16 %v521, %v515
        %v678 = vpack.c.b16 %v522, %v516
        %v679 = vpack.c.b16 %v523, %v517
        %v680 = vpack.c.b16 %v524, %v518
        %v681 = vpack.c.b16 %v525, %v519
        %v682 = vpack.c.b16 %v526, %v520
        %v683 = vpack.c.b16 %v533, %v527
        %v684 = vpack.c.b16 %v534, %v528
        %v685 = vpack.c.b16 %v535, %v529
        %v686 = vpack.c.b16 %v536, %v530
        %v687 = vpack.c.b16 %v537, %v531
        %v688 = vpack.c.b16 %v538, %v532
        %v689 = vpack.c.b16 %v545, %v539
        %v690 = vpack.c.b16 %v546, %v540
        %v691 = vpack.c.b16 %v547, %v541
        %v692 = vpack.c.b16 %v548, %v542
        %v693 = vpack.c.b16 %v549, %v543
        %v694 = vpack.c.b16 %v550, %v544
        %v695 = vpack.c.b16 %v557, %v551
        %v696 = vpack.c.b16 %v558, %v552
        %v697 = vpack.c.b16 %v559, %v553
        %v698 = vpack.c.b16 %v560, %v554
        %v699 = vpack.c.b16 %v561, %v555
        %v700 = vpack.c.b16 %v562, %v556
        %v701 = vpack.c.b16 %v569, %v563
        %v702 = vpack.c.b16 %v570, %v564
        %v703 = vpack.c.b16 %v571, %v565
        %v704 = vpack.c.b16 %v572, %v566
        %v705 = vpack.c.b16 %v573, %v567
        %v706 = vpack.c.b16 %v574, %v568
        %v707 = vpack.c.b16 %v581, %v575
        %v708 = vpack.c.b16 %v582, %v576
        %v709 = vpack.c.b16 %v583, %v577
        %v710 = vpack.c.b16 %v584, %v578
        %v711 = vpack.c.b16 %v585, %v579
        %v712 = vpack.c.b16 %v586, %v580
        %v713 = vpack.c.b16 %v593, %v587
        %v714 = vpack.c.b16 %v594, %v588
        %v715 = vpack.c.b16 %v595, %v589
        %v716 = vpack.c.b16 %v596, %v590
        %v717 = vpack.c.b16 %v597, %v591
        %v718 = vpack.c.b16 %v598, %v592
        %v719 = vpack.c.b16 %v605, %v599
        %v720 = vpack.c.b16 %v606, %v600
        %v721 = vpack.c.b16 %v607, %v601
        %v722 = vpack.c.b16 %v608, %v602
        %v723 = vpack.c.b16 %v609, %v603
        %v724 = vpack.c.b16 %v610, %v604
        %v725 = vpack.c.b16 %v617, %v611
        %v726 = vpack.c.b16 %v618, %v612
        %v727 = vpack.c.b16 %v619, %v613
        %v728 = vpack.c.b16 %v620, %v614
        %v729 = vpack.c.b16 %v621, %v615
        %v730 = vpack.c.b16 %v622, %v616
        %v731 = vpack.c.b16 %v629, %v623
        %v732 = vpack.c.b16 %v630, %v624
        %v733 = vpack.c.b16 %v631, %v625
        %v734 = vpack.c.b16 %v632, %v626
        %v735 = vpack.c.b16 %v633, %v627
        %v736 = vpack.c.b16 %v634, %v628
        %v737 = vpack.c.b16 %v641, %v635
        %v738 = vpack.c.b16 %v642, %v636
        %v739 = vpack.c.b16 %v643, %v637
        %v740 = vpack.c.b16 %v644, %v638
        %v741 = vpack.c.b16 %v645, %v639
        %v742 = vpack.c.b16 %v646, %v640
        %839 = vmatprep.subr.bf16.mxu0 %v648
        %840 = vmatpush1.bf16.msra.mxu0 %v647
        %841 = vmatprep.subr.bf16.mxu0 %v654
        %842 = vmatpush1.bf16.msra.mxu0 %v653
        %843 = vmatprep.subr.bf16.mxu0 %v660
        %844 = vmatpush1.bf16.msra.mxu0 %v659
        %845 = vmatprep.subr.bf16.mxu0 %v666
        %846 = vmatpush1.bf16.msra.mxu0 %v665
        %847 = vmatprep.subr.bf16.mxu0 %v672
        %848 = vmatpush1.bf16.msra.mxu0 %v671
        %849 = vmatprep.subr.bf16.mxu0 %v678
        %850 = vmatpush1.bf16.msra.mxu0 %v677
        %851 = vmatprep.subr.bf16.mxu0 %v684
        %852 = vmatpush1.bf16.msra.mxu0 %v683
        %853 = vmatprep.subr.bf16.mxu0 %v690
        %854 = vmatpush1.bf16.msra.mxu0 %v689
        %855 = vmatprep.subr.bf16.mxu0 %v696
        %856 = vmatpush1.bf16.msra.mxu0 %v695
        %857 = vmatprep.subr.bf16.mxu0 %v702
        %858 = vmatpush1.bf16.msra.mxu0 %v701
        %859 = vmatprep.subr.bf16.mxu0 %v708
        %860 = vmatpush1.bf16.msra.mxu0 %v707
        %861 = vmatprep.subr.bf16.mxu0 %v714
        %862 = vmatpush1.bf16.msra.mxu0 %v713
        %863 = vmatprep.subr.bf16.mxu0 %v720
        %864 = vmatpush1.bf16.msra.mxu0 %v719
        %865 = vmatprep.subr.bf16.mxu0 %v726
        %866 = vmatpush1.bf16.msra.mxu0 %v725
        %867 = vmatprep.subr.bf16.mxu0 %v732
        %868 = vmatpush1.bf16.msra.mxu0 %v731
        %869 = vmatprep.subr.bf16.mxu0 %v738
        %870 = vmatpush1.bf16.msra.mxu0 %v737
        %871 = vmatprep.mubr.bf16.mxu0 %v356
        %872 = vmatmul.mubr.bf16.gmra.mrb[0].mxu0 %v355
        %v873 = vpop.f32.mrb[0].mxu0
        %v874 = vadd.f32 %v350, %v873
        %v875 = vpop.f32.mrb[0].mxu0
        %v876 = vadd.f32 %v350, %v875
        %v877 = vpop.f32.mrb[0].mxu0
        %v878 = vpop.f32.mrb[0].mxu0
        %879 = vdwg.mxu0
        %880 = vmatprep.subr.bf16.mxu0 %v650
        %881 = vmatpush1.bf16.msra.mxu0 %v649
        %882 = vmatprep.subr.bf16.mxu0 %v656
        %883 = vmatpush1.bf16.msra.mxu0 %v655
        %884 = vmatprep.subr.bf16.mxu0 %v662
        %885 = vmatpush1.bf16.msra.mxu0 %v661
        %886 = vmatprep.subr.bf16.mxu0 %v668
        %887 = vmatpush1.bf16.msra.mxu0 %v667
        %888 = vmatprep.subr.bf16.mxu0 %v674
        %889 = vmatpush1.bf16.msra.mxu0 %v673
        %890 = vmatprep.subr.bf16.mxu0 %v680
        %891 = vmatpush1.bf16.msra.mxu0 %v679
        %892 = vmatprep.subr.bf16.mxu0 %v686
        %893 = vmatpush1.bf16.msra.mxu0 %v685
        %894 = vmatprep.subr.bf16.mxu0 %v692
        %895 = vmatpush1.bf16.msra.mxu0 %v691
        %896 = vmatprep.subr.bf16.mxu0 %v698
        %897 = vmatpush1.bf16.msra.mxu0 %v697
        %898 = vmatprep.subr.bf16.mxu0 %v704
        %899 = vmatpush1.bf16.msra.mxu0 %v703
        %900 = vmatprep.subr.bf16.mxu0 %v710
        %901 = vmatpush1.bf16.msra.mxu0 %v709
        %902 = vmatprep.subr.bf16.mxu0 %v716
        %903 = vmatpush1.bf16.msra.mxu0 %v715
        %904 = vmatprep.subr.bf16.mxu0 %v722
        %905 = vmatpush1.bf16.msra.mxu0 %v721
        %906 = vmatprep.subr.bf16.mxu0 %v728
        %907 = vmatpush1.bf16.msra.mxu0 %v727
        %908 = vmatprep.subr.bf16.mxu0 %v734
        %909 = vmatpush1.bf16.msra.mxu0 %v733
        %910 = vmatprep.subr.bf16.mxu0 %v740
        %911 = vmatpush1.bf16.msra.mxu0 %v739
        %912 = vmatprep.mubr.bf16.mxu0 %v356
        %913 = vmatmul.mubr.bf16.gmra.mrb[0].mxu0 %v355
        %v914 = vpop.f32.mrb[0].mxu0
        %v915 = vadd.f32 %v350, %v914
        %v916 = vpop.f32.mrb[0].mxu0
        %v917 = vadd.f32 %v350, %v916
        %v918 = vpop.f32.mrb[0].mxu0
        %v919 = vpop.f32.mrb[0].mxu0
        %920 = vdwg.mxu0
        %921 = vmatprep.subr.bf16.mxu0 %v652
        %922 = vmatpush1.bf16.msra.mxu0 %v651
        %923 = vmatprep.subr.bf16.mxu0 %v658
        %924 = vmatpush1.bf16.msra.mxu0 %v657
        %925 = vmatprep.subr.bf16.mxu0 %v664
        %926 = vmatpush1.bf16.msra.mxu0 %v663
        %927 = vmatprep.subr.bf16.mxu0 %v670
        %928 = vmatpush1.bf16.msra.mxu0 %v669
        %929 = vmatprep.subr.bf16.mxu0 %v676
        %930 = vmatpush1.bf16.msra.mxu0 %v675
        %931 = vmatprep.subr.bf16.mxu0 %v682
        %932 = vmatpush1.bf16.msra.mxu0 %v681
        %933 = vmatprep.subr.bf16.mxu0 %v688
        %934 = vmatpush1.bf16.msra.mxu0 %v687
        %935 = vmatprep.subr.bf16.mxu0 %v694
        %936 = vmatpush1.bf16.msra.mxu0 %v693
        %937 = vmatprep.subr.bf16.mxu0 %v700
        %938 = vmatpush1.bf16.msra.mxu0 %v699
        %939 = vmatprep.subr.bf16.mxu0 %v706
        %940 = vmatpush1.bf16.msra.mxu0 %v705
        %941 = vmatprep.subr.bf16.mxu0 %v712
        %942 = vmatpush1.bf16.msra.mxu0 %v711
        %943 = vmatprep.subr.bf16.mxu0 %v718
        %944 = vmatpush1.bf16.msra.mxu0 %v717
        %945 = vmatprep.subr.bf16.mxu0 %v724
        %946 = vmatpush1.bf16.msra.mxu0 %v723
        %947 = vmatprep.subr.bf16.mxu0 %v730
        %948 = vmatpush1.bf16.msra.mxu0 %v729
        %949 = vmatprep.subr.bf16.mxu0 %v736
        %950 = vmatpush1.bf16.msra.mxu0 %v735
        %951 = vmatprep.subr.bf16.mxu0 %v742
        %952 = vmatpush1.bf16.msra.mxu0 %v741
        %953 = vmatprep.mubr.bf16.mxu0 %v356
        %954 = vmatmul.mubr.bf16.gmra.mrb[0].mxu0 %v355
        %v955 = vpop.f32.mrb[0].mxu0
        %v956 = vadd.f32 %v350, %v955
        %v957 = vpop.f32.mrb[0].mxu0
        %v958 = vadd.f32 %v350, %v957
        %v959 = vpop.f32.mrb[0].mxu0
        %v960 = vpop.f32.mrb[0].mxu0
        %961 = vdwg.mxu0
        %s962 = sld [smem:[#allocation2 + %s16]]
        %vm963 = vcmp.ge.f32.partialorder %v874, 0.0
        %vm964 = vcmp.ge.f32.partialorder %v876, 0.0
        %vm965 = vcmp.ge.f32.partialorder %v915, 0.0
        %vm966 = vcmp.ge.f32.partialorder %v917, 0.0
        %vm967 = vcmp.ge.f32.partialorder %v956, 0.0
        %vm968 = vcmp.ge.f32.partialorder %v958, 0.0
        %v969 = vstv %s962
        %v970 = vmul.f32 %v969, %v874
        %v971 = vmul.f32 %v969, %v876
        %v972 = vmul.f32 %v969, %v915
        %v973 = vmul.f32 %v969, %v917
        %v974 = vmul.f32 %v969, %v956
        %v975 = vmul.f32 %v969, %v958
        %v976 = vsel %vm963, %v874, %v970
        %v977 = vsel %vm964, %v876, %v971
        %v978 = vsel %vm965, %v915, %v972
        %v979 = vsel %vm966, %v917, %v973
        %v980 = vsel %vm967, %v956, %v974
        %v981 = vsel %vm968, %v958, %v975
        %v982 = vpack.c.bf16 %v976, %v976
        %v983 = vpack.c.bf16 %v977, %v977
        %v984 = vpack.c.bf16 %v978, %v978
        %v985 = vpack.c.bf16 %v979, %v979
        %v986 = vpack.c.bf16 %v980, %v980
        %v987 = vpack.c.bf16 %v981, %v981
        %v994 = vunpack.c.l.b16 %v982
        %v995 = vunpack.c.l.b16 %v983
        %v996 = vunpack.c.l.b16 %v984
        %v997 = vunpack.c.l.b16 %v985
        %v998 = vunpack.c.l.b16 %v986
        %v999 = vunpack.c.l.b16 %v987
        %v1000 = vpack.c.b16 %v995, %v994
        %v1001 = vpack.c.b16 %v997, %v996
        %v1002 = vpack.c.b16 %v999, %v998
        %1006 = vst [vmem:[%s248] sm:$0xff] %v1000
        %1007 = vst [vmem:[%s248 + $0x8] sm:$0xff] %v1001
        %1008 = vst [vmem:[%s248 + $0x10] sm:$0xff] %v1002
        %p1009 = scmp.lt.s32.totalorder %s16, 2
        %s1010 = scalar_select %p1009, %s16, 2
        %s1011 = smul.addr %s1010, 6
        %s1012 = smul.addr %s1011, 4
        %s1013 = scalar_lea.vmem %s4, %s1012
        // Predicated region
        $region41: #{net_forward.28} parent=35 // pred_check
          %p1014 = pneg %p133
        $region42: #{net_forward.28} parent=35 // pred_check_branch
          %1016 = sbr.rel (%p1014) target = $region44
        $region43: #{net_forward.28} parent=35 // pred_region
          _
        $region44: #{net_forward.28} parent=35 // pred_fallthru
          _
      $region36: #{net_forward.28} parent=5 // pred_fallthru
        _
      %p1017 = scmp.le.s32.totalorder 2, %s11
      // Predicated region
      $region45: #{net_forward.28} parent=5 // pred_check
        %p1018 = pneg %p1017
      $region46: #{net_forward.28} parent=5 // pred_check_branch
        %1020 = sbr.rel (%p1018) target = $region48
      $region47: #{net_forward.28} parent=5 // pred_region
        %s1021 = ssub.s32 %s11, 2
        // Predicated region
        $region49: #{net_forward.28} parent=47 // pred_check
          %p1022 = pneg %p139
        $region50: #{net_forward.28} parent=47 // pred_check_branch
          %1024 = sbr.rel (%p1022) target = $region52
        $region51: #{net_forward.28} parent=47 // pred_region
          %p1025 = scmp.lt.s32.totalorder %s17, 2
          %s1026 = scalar_select %p1025, %s17, 2
          %s1027 = smul.addr %s1026, 6
          %s1028 = smul.addr %s1027, 4
          %s1029 = scalar_lea.vmem %s4, %s1028
        $region52: #{net_forward.28} parent=47 // pred_fallthru
          _
      $region48: #{net_forward.28} parent=5 // pred_fallthru
        _
    $region6: #{net_forward.28} parent=1 // loop_footer
      %s15 = sadd.s32 1, %s11
    $region7: #{net_forward.28} parent=1 // loop_footer_branch
      %10 = sbr.rel target = $region3
    $region8: #{net_forward.28} parent=1 // loop_exit
      _
    %1030 = vsyncpa [#allocation3], 1
    %s1031 = scalar_lea.sflag [#allocation3], 1
    %1032 = vsyncpa %s1031, 1

// kernel: net_forward.31
$region0: #{net_forward.31}
  #allocation0 [shape = 'u32[]', space=smem, size = 0x4, offset = 0x4, fixed_abs, tag = 'smem constant byte address 0x4 - core index']
  #allocation1 [shape = 'u32[144,128]{1,0:T(1,128)}', space=vmem, size = 0x12000, scoped, tag = 'internal scratch']
  %s0 = inlined_call_operand.vmem [shape: f32[3], index: 0, kind: input, shape index: {}]
  %s1 = inlined_call_operand.vmem [shape: bf16[3,256,768], index: 1, kind: input, shape index: {}]
  %s2 = inlined_call_operand.vmem [shape: bf16[3,1,256], index: 2, kind: input, shape index: {}]
  %s3 = inlined_call_operand.vmem [shape: f32[3,1,1], index: 3, kind: input, shape index: {}]
  %s4 = inlined_call_operand.vmem [shape: f32[3,1,768], index: 4, kind: output, shape index: {}]
  %s5 = sld [smem:[#allocation0]]
  $region53: #{net_forward.31} parent=0
    _
  %s7 = ssub.s32 1, %s5
  %s8 = scalar_select 0, %s7, %s5
  $region1: #{net_forward.31} parent=0
    #allocation2 [shape = 'u8[512]{0}', space=smem, size = 0x200, scoped, tag = 'input window, operand 0, single buffered']
    #allocation3 [shape = 's32[2]{0}', space=sflag, size = 0x8, scoped, tag = 'scoped memory for net_forward.31']
    %9 = vsyncpa [#allocation3], 0
    loop: start=0, step=1, limit=5
    $region2: #{net_forward.31} parent=1 // loop_pre_header
      _
    $region3: #{net_forward.31} parent=1 // loop_header
      %s11 = sphi 0, %s15
      %p12 = scmp.ge.s32.totalorder %s11, 5
      %s19 = sphi 0, %s19
      %s21 = sphi 0, %s19
      %s22 = sphi 0, %s21
      %s36 = sphi 0, %s22
      %s42 = sphi 0, %s44
      %s45 = sphi 0, %s42
      %s46 = sphi 0, %s45
      %s62 = sphi 0, %s46
      %s68 = sphi 0, %s70
      %s71 = sphi 0, %s68
      %s72 = sphi 0, %s71
      %s88 = sphi 0, %s72
      %s94 = sphi 0, %s96
      %s97 = sphi 0, %s94
      %s98 = sphi 0, %s97
      %s114 = sphi 0, %s98
      %s120 = sphi 0, %s122
      %s123 = sphi 0, %s120
      %s124 = sphi 0, %s123
      %s140 = sphi 0, %s124
    $region4: #{net_forward.31} parent=1 // loop_header_branch
      %14 = sbr.rel (%p12) target = $region8
    $region5: #{net_forward.31} parent=1 // loop_body
      %s16 = ssub.s32 %s11, 1
      %s17 = ssub.s32 %s11, 2
      %s18 = sadd.s32 %s11, 1
      %s20 = sadd.s32 %s19, 1
      %p23 = scmp.eq.s32.totalorder %s11, 2
      %p24 = scmp.ne.s32.totalorder %s19, %s21
      %p25 = scmp.eq.s32.totalorder %s11, 0
      %p26 = por %p24, %p25
      %p27 = scmp.ne.s32.totalorder %s19, %s21
      %p28 = scmp.eq.s32.totalorder %s16, 2
      %p29 = por %p27, %p28
      %p30 = scmp.ne.s32.totalorder %s21, %s22
      %p31 = scmp.eq.s32.totalorder %s16, 0
      %p32 = por %p30, %p31
      %p33 = scmp.ne.s32.totalorder %s21, %s22
      %p34 = scmp.eq.s32.totalorder %s17, 2
      %p35 = por %p33, %p34
      %p37 = scmp.ne.s32.totalorder %s22, %s36
      %p38 = scmp.eq.s32.totalorder %s17, 0
      %p39 = por %p37, %p38
      %s40 = ssub.s32 %s11, %s18
      %p41 = scmp.eq.s32.totalorder %s40, 0
      %s43 = sadd.s32 %s42, 1
      %s44 = scalar_select %p41, %s42, %s43
      %p47 = pneg %p41
      %p48 = scmp.eq.s32.totalorder %s11, 2
      %p49 = por %p47, %p48
      %p50 = scmp.ne.s32.totalorder %s42, %s45
      %p51 = scmp.eq.s32.totalorder %s11, 0
      %p52 = por %p50, %p51
      %p53 = scmp.ne.s32.totalorder %s42, %s45
      %p54 = scmp.eq.s32.totalorder %s16, 2
      %p55 = por %p53, %p54
      %p56 = scmp.ne.s32.totalorder %s45, %s46
      %p57 = scmp.eq.s32.totalorder %s16, 0
      %p58 = por %p56, %p57
      %p59 = scmp.ne.s32.totalorder %s45, %s46
      %p60 = scmp.eq.s32.totalorder %s17, 2
      %p61 = por %p59, %p60
      %p63 = scmp.ne.s32.totalorder %s46, %s62
      %p64 = scmp.eq.s32.totalorder %s17, 0
      %p65 = por %p63, %p64
      %s66 = ssub.s32 %s11, %s18
      %p67 = scmp.eq.s32.totalorder %s66, 0
      %s69 = sadd.s32 %s68, 1
      %s70 = scalar_select %p67, %s68, %s69
      %p73 = pneg %p67
      %p74 = scmp.eq.s32.totalorder %s11, 2
      %p75 = por %p73, %p74
      %p76 = scmp.ne.s32.totalorder %s68, %s71
      %p77 = scmp.eq.s32.totalorder %s11, 0
      %p78 = por %p76, %p77
      %p79 = scmp.ne.s32.totalorder %s68, %s71
      %p80 = scmp.eq.s32.totalorder %s16, 2
      %p81 = por %p79, %p80
      %p82 = scmp.ne.s32.totalorder %s71, %s72
      %p83 = scmp.eq.s32.totalorder %s16, 0
      %p84 = por %p82, %p83
      %p85 = scmp.ne.s32.totalorder %s71, %s72
      %p86 = scmp.eq.s32.totalorder %s17, 2
      %p87 = por %p85, %p86
      %p89 = scmp.ne.s32.totalorder %s72, %s88
      %p90 = scmp.eq.s32.totalorder %s17, 0
      %p91 = por %p89, %p90
      %s92 = ssub.s32 %s11, %s18
      %p93 = scmp.eq.s32.totalorder %s92, 0
      %s95 = sadd.s32 %s94, 1
      %s96 = scalar_select %p93, %s94, %s95
      %p99 = pneg %p93
      %p100 = scmp.eq.s32.totalorder %s11, 2
      %p101 = por %p99, %p100
      %p102 = scmp.ne.s32.totalorder %s94, %s97
      %p103 = scmp.eq.s32.totalorder %s11, 0
      %p104 = por %p102, %p103
      %p105 = scmp.ne.s32.totalorder %s94, %s97
      %p106 = scmp.eq.s32.totalorder %s16, 2
      %p107 = por %p105, %p106
      %p108 = scmp.ne.s32.totalorder %s97, %s98
      %p109 = scmp.eq.s32.totalorder %s16, 0
      %p110 = por %p108, %p109
      %p111 = scmp.ne.s32.totalorder %s97, %s98
      %p112 = scmp.eq.s32.totalorder %s17, 2
      %p113 = por %p111, %p112
      %p115 = scmp.ne.s32.totalorder %s98, %s114
      %p116 = scmp.eq.s32.totalorder %s17, 0
      %p117 = por %p115, %p116
      %s118 = ssub.s32 %s11, %s18
      %p119 = scmp.eq.s32.totalorder %s118, 0
      %s121 = sadd.s32 %s120, 1
      %s122 = scalar_select %p119, %s120, %s121
      %p125 = pneg %p119
      %p126 = scmp.eq.s32.totalorder %s11, 2
      %p127 = por %p125, %p126
      %p128 = scmp.ne.s32.totalorder %s120, %s123
      %p129 = scmp.eq.s32.totalorder %s11, 0
      %p130 = por %p128, %p129
      %p131 = scmp.ne.s32.totalorder %s120, %s123
      %p132 = scmp.eq.s32.totalorder %s16, 2
      %p133 = por %p131, %p132
      %p134 = scmp.ne.s32.totalorder %s123, %s124
      %p135 = scmp.eq.s32.totalorder %s16, 0
      %p136 = por %p134, %p135
      %p137 = scmp.ne.s32.totalorder %s123, %s124
      %p138 = scmp.eq.s32.totalorder %s17, 2
      %p139 = por %p137, %p138
      %p141 = scmp.ne.s32.totalorder %s124, %s140
      %p142 = scmp.eq.s32.totalorder %s17, 0
      %p143 = por %p141, %p142
      %p144 = scmp.le.s32.totalorder 1, %s11
      %p145 = scmp.lt.s32.totalorder %s11, 4
      %p146 = pnand %p144, %p145
      %p147 = pneg %p146
      // Predicated region
      $region9: #{net_forward.31} parent=5 // pred_check
        _
      $region10: #{net_forward.31} parent=5 // pred_check_branch
        %149 = sbr.rel (%p146) target = $region12
      $region11: #{net_forward.31} parent=5 // pred_region
        %s150 = ssub.s32 %s11, 1
        // Predicated region
        $region13: #{net_forward.31} parent=11 // pred_check
          %p151 = pneg %p32
        $region14: #{net_forward.31} parent=11 // pred_check_branch
          %153 = sbr.rel (%p151) target = $region16
        $region15: #{net_forward.31} parent=11 // pred_region
          %s155 = ssub.s32 16, 16
          %156 = vsyncadd [#allocation3], %s155
          %s158 = sshll.u32 %s0, 4
          %s159 = int_to_ptr.vmem [resolvable:$true] %s158
          %161 = dma.vmem_to_smem %s159, 16, [#allocation2], [#allocation3]
        $region16: #{net_forward.31} parent=11 // pred_fallthru
          _
      $region12: #{net_forward.31} parent=5 // pred_fallthru
        _
      %p162 = scmp.lt.s32.totalorder %s11, 3
      // Predicated region
      $region17: #{net_forward.31} parent=5 // pred_check
        %p163 = pneg %p162
      $region18: #{net_forward.31} parent=5 // pred_check_branch
        %165 = sbr.rel (%p163) target = $region20
      $region19: #{net_forward.31} parent=5 // pred_region
        // Predicated region
        $region21: #{net_forward.31} parent=19 // pred_check
          %p166 = pneg %p52
        $region22: #{net_forward.31} parent=19 // pred_check_branch
          %168 = sbr.rel (%p166) target = $region24
        $region23: #{net_forward.31} parent=19 // pred_region
          %p169 = scmp.lt.s32.totalorder %s11, 2
          %s170 = scalar_select %p169, %s11, 2
          %s171 = smul.addr %s170, 192
          %s172 = smul.addr %s171, 4
          %s173 = scalar_lea.vmem %s1, %s172
        $region24: #{net_forward.31} parent=19 // pred_fallthru
          _
        // Predicated region
        $region25: #{net_forward.31} parent=19 // pred_check
          %p174 = pneg %p78
        $region26: #{net_forward.31} parent=19 // pred_check_branch
          %176 = sbr.rel (%p174) target = $region28
        $region27: #{net_forward.31} parent=19 // pred_region
          %p177 = scmp.lt.s32.totalorder %s11, 2
          %s178 = scalar_select %p177, %s11, 2
          %s179 = smul.addr %s178, 2
          %s180 = scalar_lea.vmem %s2, %s179
        $region28: #{net_forward.31} parent=19 // pred_fallthru
          _
        // Predicated region
        $region29: #{net_forward.31} parent=19 // pred_check
          %p181 = pneg %p104
        $region30: #{net_forward.31} parent=19 // pred_check_branch
          %183 = sbr.rel (%p181) target = $region32
        $region31: #{net_forward.31} parent=19 // pred_region
          %p184 = scmp.lt.s32.totalorder %s11, 2
          %s185 = scalar_select %p184, %s11, 2
          %s186 = scalar_lea.vmem %s3, %s185
        $region32: #{net_forward.31} parent=19 // pred_fallthru
          _
      $region20: #{net_forward.31} parent=5 // pred_fallthru
        _
      %p187 = scmp.le.s32.totalorder 1, %s11
      %p188 = scmp.lt.s32.totalorder %s11, 4
      %p189 = pnand %p187, %p188
      %p190 = pneg %p189
      // Predicated region
      $region33: #{net_forward.31} parent=5 // pred_check
        _
      $region34: #{net_forward.31} parent=5 // pred_check_branch
        %192 = sbr.rel (%p189) target = $region36
      $region35: #{net_forward.31} parent=5 // pred_region
        %s193 = ssub.s32 %s11, 1
        // Predicated region
        $region37: #{net_forward.31} parent=35 // pred_check
          %p194 = pneg %p32
        $region38: #{net_forward.31} parent=35 // pred_check_branch
          %196 = sbr.rel (%p194) target = $region40
        $region39: #{net_forward.31} parent=35 // pred_region
          %197 = dma.done [#allocation3], 16
        $region40: #{net_forward.31} parent=35 // pred_fallthru
          _
        %198 = sfence
        %p199 = pneg %p32
        %p200 = pneg %p29
        %p201 = scmp.lt.s32.totalorder %s16, 2
        %s202 = scalar_select %p201, %s16, 2
        %s203 = smul.addr %s202, 192
        %s204 = smul.addr %s203, 4
        %s205 = scalar_lea.vmem %s1, %s204
        %p206 = pneg %p58
        %p207 = pneg %p55
        %p208 = scmp.lt.s32.totalorder %s16, 2
        %s209 = scalar_select %p208, %s16, 2
        %s210 = smul.addr %s209, 2
        %s211 = scalar_lea.vmem %s2, %s210
        %p212 = pneg %p84
        %p213 = pneg %p81
        %p214 = scmp.lt.s32.totalorder %s16, 2
        %s215 = scalar_select %p214, %s16, 2
        %s216 = scalar_lea.vmem %s3, %s215
        %p217 = pneg %p110
        %p218 = pneg %p107
        %p219 = pneg %p136
        %p220 = pneg %p133
        %p221 = scmp.lt.s32.totalorder %s16, 2
        %s222 = scalar_select %p221, %s16, 2
        %s223 = smul.addr %s222, 6
        %s224 = scalar_lea.vmem %s4, %s223
        %p225 = scmp.lt.s32.totalorder %s16, 2
        %s226 = scalar_select %p225, %s16, 2
        %s227 = smul.addr %s226, 192
        %s228 = smul.addr %s227, 4
        %s229 = scalar_lea.vmem %s1, %s228
        %p230 = scmp.lt.s32.totalorder %s16, 2
        %s231 = scalar_select %p230, %s16, 2
        %s232 = smul.addr %s231, 2
        %s233 = scalar_lea.vmem %s2, %s232
        %p234 = scmp.lt.s32.totalorder %s16, 2
        %s235 = scalar_select %p234, %s16, 2
        %s236 = scalar_lea.vmem %s3, %s235
        %p237 = scmp.lt.s32.totalorder %s16, 2
        %s238 = scalar_select %p237, %s16, 2
        %s239 = smul.addr %s238, 6
        %s240 = scalar_lea.vmem %s4, %s239
        %v241 = vld [vmem:[%s233] sm:$0x3]
        %v242 = vld [vmem:[%s229] sm:$0xff]
        %v243 = vld [vmem:[%s229 + $0x8] sm:$0xff]
        %v244 = vld [vmem:[%s229 + $0x10] sm:$0xff]
        %v245 = vld [vmem:[%s229 + $0x18] sm:$0xff]
        %v246 = vld [vmem:[%s229 + $0x20] sm:$0xff]
        %v247 = vld [vmem:[%s229 + $0x28] sm:$0xff]
        %v248 = vld [vmem:[%s229 + $0x30] sm:$0xff]
        %v249 = vld [vmem:[%s229 + $0x38] sm:$0xff]
        %v250 = vld [vmem:[%s229 + $0x40] sm:$0xff]
        %v251 = vld [vmem:[%s229 + $0x48] sm:$0xff]
        %v252 = vld [vmem:[%s229 + $0x50] sm:$0xff]
        %v253 = vld [vmem:[%s229 + $0x58] sm:$0xff]
        %v254 = vld [vmem:[%s229 + $0x60] sm:$0xff]
        %v255 = vld [vmem:[%s229 + $0x68] sm:$0xff]
        %v256 = vld [vmem:[%s229 + $0x70] sm:$0xff]
        %v257 = vld [vmem:[%s229 + $0x78] sm:$0xff]
        %v258 = vld [vmem:[%s229 + $0x80] sm:$0xff]
        %v259 = vld [vmem:[%s229 + $0x88] sm:$0xff]
        %v260 = vld [vmem:[%s229 + $0x90] sm:$0xff]
        %v261 = vld [vmem:[%s229 + $0x98] sm:$0xff]
        %v262 = vld [vmem:[%s229 + $0xa0] sm:$0xff]
        %v263 = vld [vmem:[%s229 + $0xa8] sm:$0xff]
        %v264 = vld [vmem:[%s229 + $0xb0] sm:$0xff]
        %v265 = vld [vmem:[%s229 + $0xb8] sm:$0xff]
        %v266 = vld [vmem:[%s229 + $0xc0] sm:$0xff]
        %v267 = vld [vmem:[%s229 + $0xc8] sm:$0xff]
        %v268 = vld [vmem:[%s229 + $0xd0] sm:$0xff]
        %v269 = vld [vmem:[%s229 + $0xd8] sm:$0xff]
        %v270 = vld [vmem:[%s229 + $0xe0] sm:$0xff]
        %v271 = vld [vmem:[%s229 + $0xe8] sm:$0xff]
        %v272 = vld [vmem:[%s229 + $0xf0] sm:$0xff]
        %v273 = vld [vmem:[%s229 + $0xf8] sm:$0xff]
        %v274 = vld [vmem:[%s229 + $0x100] sm:$0xff]
        %v275 = vld [vmem:[%s229 + $0x108] sm:$0xff]
        %v276 = vld [vmem:[%s229 + $0x110] sm:$0xff]
        %v277 = vld [vmem:[%s229 + $0x118] sm:$0xff]
        %v278 = vld [vmem:[%s229 + $0x120] sm:$0xff]
        %v279 = vld [vmem:[%s229 + $0x128] sm:$0xff]
        %v280 = vld [vmem:[%s229 + $0x130] sm:$0xff]
        %v281 = vld [vmem:[%s229 + $0x138] sm:$0xff]
        %v282 = vld [vmem:[%s229 + $0x140] sm:$0xff]
        %v283 = vld [vmem:[%s229 + $0x148] sm:$0xff]
        %v284 = vld [vmem:[%s229 + $0x150] sm:$0xff]
        %v285 = vld [vmem:[%s229 + $0x158] sm:$0xff]
        %v286 = vld [vmem:[%s229 + $0x160] sm:$0xff]
        %v287 = vld [vmem:[%s229 + $0x168] sm:$0xff]
        %v288 = vld [vmem:[%s229 + $0x170] sm:$0xff]
        %v289 = vld [vmem:[%s229 + $0x178] sm:$0xff]
        %v290 = vld [vmem:[%s229 + $0x180] sm:$0xff]
        %v291 = vld [vmem:[%s229 + $0x188] sm:$0xff]
        %v292 = vld [vmem:[%s229 + $0x190] sm:$0xff]
        %v293 = vld [vmem:[%s229 + $0x198] sm:$0xff]
        %v294 = vld [vmem:[%s229 + $0x1a0] sm:$0xff]
        %v295 = vld [vmem:[%s229 + $0x1a8] sm:$0xff]
        %v296 = vld [vmem:[%s229 + $0x1b0] sm:$0xff]
        %v297 = vld [vmem:[%s229 + $0x1b8] sm:$0xff]
        %v298 = vld [vmem:[%s229 + $0x1c0] sm:$0xff]
        %v299 = vld [vmem:[%s229 + $0x1c8] sm:$0xff]
        %v300 = vld [vmem:[%s229 + $0x1d0] sm:$0xff]
        %v301 = vld [vmem:[%s229 + $0x1d8] sm:$0xff]
        %v302 = vld [vmem:[%s229 + $0x1e0] sm:$0xff]
        %v303 = vld [vmem:[%s229 + $0x1e8] sm:$0xff]
        %v304 = vld [vmem:[%s229 + $0x1f0] sm:$0xff]
        %v305 = vld [vmem:[%s229 + $0x1f8] sm:$0xff]
        %v306 = vld [vmem:[%s229 + $0x200] sm:$0xff]
        %v307 = vld [vmem:[%s229 + $0x208] sm:$0xff]
        %v308 = vld [vmem:[%s229 + $0x210] sm:$0xff]
        %v309 = vld [vmem:[%s229 + $0x218] sm:$0xff]
        %v310 = vld [vmem:[%s229 + $0x220] sm:$0xff]
        %v311 = vld [vmem:[%s229 + $0x228] sm:$0xff]
        %v312 = vld [vmem:[%s229 + $0x230] sm:$0xff]
        %v313 = vld [vmem:[%s229 + $0x238] sm:$0xff]
        %v314 = vld [vmem:[%s229 + $0x240] sm:$0xff]
        %v315 = vld [vmem:[%s229 + $0x248] sm:$0xff]
        %v316 = vld [vmem:[%s229 + $0x250] sm:$0xff]
        %v317 = vld [vmem:[%s229 + $0x258] sm:$0xff]
        %v318 = vld [vmem:[%s229 + $0x260] sm:$0xff]
        %v319 = vld [vmem:[%s229 + $0x268] sm:$0xff]
        %v320 = vld [vmem:[%s229 + $0x270] sm:$0xff]
        %v321 = vld [vmem:[%s229 + $0x278] sm:$0xff]
        %v322 = vld [vmem:[%s229 + $0x280] sm:$0xff]
        %v323 = vld [vmem:[%s229 + $0x288] sm:$0xff]
        %v324 = vld [vmem:[%s229 + $0x290] sm:$0xff]
        %v325 = vld [vmem:[%s229 + $0x298] sm:$0xff]
        %v326 = vld [vmem:[%s229 + $0x2a0] sm:$0xff]
        %v327 = vld [vmem:[%s229 + $0x2a8] sm:$0xff]
        %v328 = vld [vmem:[%s229 + $0x2b0] sm:$0xff]
        %v329 = vld [vmem:[%s229 + $0x2b8] sm:$0xff]
        %v330 = vld [vmem:[%s229 + $0x2c0] sm:$0xff]
        %v331 = vld [vmem:[%s229 + $0x2c8] sm:$0xff]
        %v332 = vld [vmem:[%s229 + $0x2d0] sm:$0xff]
        %v333 = vld [vmem:[%s229 + $0x2d8] sm:$0xff]
        %v334 = vld [vmem:[%s229 + $0x2e0] sm:$0xff]
        %v335 = vld [vmem:[%s229 + $0x2e8] sm:$0xff]
        %v336 = vld [vmem:[%s229 + $0x2f0] sm:$0xff]
        %v337 = vld [vmem:[%s229 + $0x2f8] sm:$0xff]
        %v338 = vld [vmem:[%s236] sm:$0x1]
        %340 = vset.pattern.permute.xlu0 0
        %341 = vperm.xlu0 %340, %v338
        %v342 = vpop.permute.xlu0 %341
        %v344 = vlaneseq
        %v345 = vshrl.u32 %v344, 7
        %v346 = vsub.s32 0, %v345
        %v347 = vrot.slane %v342, %v346
        %v350 = vunpack.c.l.s4 1966171168
        %v351 = vunpack.c.0.s8 %v350
        %v352 = vlaneseq
        %v353 = vshrl.u32 %v352, 7
        %v354 = vsub.s32 %v351, %v353
        %v355 = vrot.slane %v241, %v354
        %v356 = vcombine.high %v355, %v355
        %v358 = vunpack.c.l.s4 1966171168
        %v359 = vunpack.c.0.s8 %v358
        %v360 = vlaneseq
        %v361 = vshrl.u32 %v360, 7
        %v362 = vsub.s32 %v359, %v361
        %v363 = vrot.slane %v355, %v362
        %v365 = vunpack.c.l.s4 1966171168
        %v366 = vunpack.c.0.s8 %v365
        %v367 = vlaneseq
        %v368 = vshrl.u32 %v367, 7
        %v369 = vsub.s32 %v366, %v368
        %v370 = vrot.slane %v356, %v369
        %v469 = vunpack.c.l.b16 %v242
        %v470 = vunpack.c.h.b16 %v242
        %v471 = vunpack.c.l.b16 %v243
        %v472 = vunpack.c.h.b16 %v243
        %v473 = vunpack.c.l.b16 %v244
        %v474 = vunpack.c.h.b16 %v244
        %v475 = vunpack.c.l.b16 %v245
        %v476 = vunpack.c.h.b16 %v245
        %v477 = vunpack.c.l.b16 %v246
        %v478 = vunpack.c.h.b16 %v246
        %v479 = vunpack.c.l.b16 %v247
        %v480 = vunpack.c.h.b16 %v247
        %v481 = vunpack.c.l.b16 %v248
        %v482 = vunpack.c.h.b16 %v248
        %v483 = vunpack.c.l.b16 %v249
        %v484 = vunpack.c.h.b16 %v249
        %v485 = vunpack.c.l.b16 %v250
        %v486 = vunpack.c.h.b16 %v250
        %v487 = vunpack.c.l.b16 %v251
        %v488 = vunpack.c.h.b16 %v251
        %v489 = vunpack.c.l.b16 %v252
        %v490 = vunpack.c.h.b16 %v252
        %v491 = vunpack.c.l.b16 %v253
        %v492 = vunpack.c.h.b16 %v253
        %v493 = vunpack.c.l.b16 %v254
        %v494 = vunpack.c.h.b16 %v254
        %v495 = vunpack.c.l.b16 %v255
        %v496 = vunpack.c.h.b16 %v255
        %v497 = vunpack.c.l.b16 %v256
        %v498 = vunpack.c.h.b16 %v256
        %v499 = vunpack.c.l.b16 %v257
        %v500 = vunpack.c.h.b16 %v257
        %v501 = vunpack.c.l.b16 %v258
        %v502 = vunpack.c.h.b16 %v258
        %v503 = vunpack.c.l.b16 %v259
        %v504 = vunpack.c.h.b16 %v259
        %v505 = vunpack.c.l.b16 %v260
        %v506 = vunpack.c.h.b16 %v260
        %v507 = vunpack.c.l.b16 %v261
        %v508 = vunpack.c.h.b16 %v261
        %v509 = vunpack.c.l.b16 %v262
        %v510 = vunpack.c.h.b16 %v262
        %v511 = vunpack.c.l.b16 %v263
        %v512 = vunpack.c.h.b16 %v263
        %v513 = vunpack.c.l.b16 %v264
        %v514 = vunpack.c.h.b16 %v264
        %v515 = vunpack.c.l.b16 %v265
        %v516 = vunpack.c.h.b16 %v265
        %v517 = vunpack.c.l.b16 %v266
        %v518 = vunpack.c.h.b16 %v266
        %v519 = vunpack.c.l.b16 %v267
        %v520 = vunpack.c.h.b16 %v267
        %v521 = vunpack.c.l.b16 %v268
        %v522 = vunpack.c.h.b16 %v268
        %v523 = vunpack.c.l.b16 %v269
        %v524 = vunpack.c.h.b16 %v269
        %v525 = vunpack.c.l.b16 %v270
        %v526 = vunpack.c.h.b16 %v270
        %v527 = vunpack.c.l.b16 %v271
        %v528 = vunpack.c.h.b16 %v271
        %v529 = vunpack.c.l.b16 %v272
        %v530 = vunpack.c.h.b16 %v272
        %v531 = vunpack.c.l.b16 %v273
        %v532 = vunpack.c.h.b16 %v273
        %v533 = vunpack.c.l.b16 %v274
        %v534 = vunpack.c.h.b16 %v274
        %v535 = vunpack.c.l.b16 %v275
        %v536 = vunpack.c.h.b16 %v275
        %v537 = vunpack.c.l.b16 %v276
        %v538 = vunpack.c.h.b16 %v276
        %v539 = vunpack.c.l.b16 %v277
        %v540 = vunpack.c.h.b16 %v277
        %v541 = vunpack.c.l.b16 %v278
        %v542 = vunpack.c.h.b16 %v278
        %v543 = vunpack.c.l.b16 %v279
        %v544 = vunpack.c.h.b16 %v279
        %v545 = vunpack.c.l.b16 %v280
        %v546 = vunpack.c.h.b16 %v280
        %v547 = vunpack.c.l.b16 %v281
        %v548 = vunpack.c.h.b16 %v281
        %v549 = vunpack.c.l.b16 %v282
        %v550 = vunpack.c.h.b16 %v282
        %v551 = vunpack.c.l.b16 %v283
        %v552 = vunpack.c.h.b16 %v283
        %v553 = vunpack.c.l.b16 %v284
        %v554 = vunpack.c.h.b16 %v284
        %v555 = vunpack.c.l.b16 %v285
        %v556 = vunpack.c.h.b16 %v285
        %v557 = vunpack.c.l.b16 %v286
        %v558 = vunpack.c.h.b16 %v286
        %v559 = vunpack.c.l.b16 %v287
        %v560 = vunpack.c.h.b16 %v287
        %v561 = vunpack.c.l.b16 %v288
        %v562 = vunpack.c.h.b16 %v288
        %v563 = vunpack.c.l.b16 %v289
        %v564 = vunpack.c.h.b16 %v289
        %v565 = vunpack.c.l.b16 %v290
        %v566 = vunpack.c.h.b16 %v290
        %v567 = vunpack.c.l.b16 %v291
        %v568 = vunpack.c.h.b16 %v291
        %v569 = vunpack.c.l.b16 %v292
        %v570 = vunpack.c.h.b16 %v292
        %v571 = vunpack.c.l.b16 %v293
        %v572 = vunpack.c.h.b16 %v293
        %v573 = vunpack.c.l.b16 %v294
        %v574 = vunpack.c.h.b16 %v294
        %v575 = vunpack.c.l.b16 %v295
        %v576 = vunpack.c.h.b16 %v295
        %v577 = vunpack.c.l.b16 %v296
        %v578 = vunpack.c.h.b16 %v296
        %v579 = vunpack.c.l.b16 %v297
        %v580 = vunpack.c.h.b16 %v297
        %v581 = vunpack.c.l.b16 %v298
        %v582 = vunpack.c.h.b16 %v298
        %v583 = vunpack.c.l.b16 %v299
        %v584 = vunpack.c.h.b16 %v299
        %v585 = vunpack.c.l.b16 %v300
        %v586 = vunpack.c.h.b16 %v300
        %v587 = vunpack.c.l.b16 %v301
        %v588 = vunpack.c.h.b16 %v301
        %v589 = vunpack.c.l.b16 %v302
        %v590 = vunpack.c.h.b16 %v302
        %v591 = vunpack.c.l.b16 %v303
        %v592 = vunpack.c.h.b16 %v303
        %v593 = vunpack.c.l.b16 %v304
        %v594 = vunpack.c.h.b16 %v304
        %v595 = vunpack.c.l.b16 %v305
        %v596 = vunpack.c.h.b16 %v305
        %v597 = vunpack.c.l.b16 %v306
        %v598 = vunpack.c.h.b16 %v306
        %v599 = vunpack.c.l.b16 %v307
        %v600 = vunpack.c.h.b16 %v307
        %v601 = vunpack.c.l.b16 %v308
        %v602 = vunpack.c.h.b16 %v308
        %v603 = vunpack.c.l.b16 %v309
        %v604 = vunpack.c.h.b16 %v309
        %v605 = vunpack.c.l.b16 %v310
        %v606 = vunpack.c.h.b16 %v310
        %v607 = vunpack.c.l.b16 %v311
        %v608 = vunpack.c.h.b16 %v311
        %v609 = vunpack.c.l.b16 %v312
        %v610 = vunpack.c.h.b16 %v312
        %v611 = vunpack.c.l.b16 %v313
        %v612 = vunpack.c.h.b16 %v313
        %v613 = vunpack.c.l.b16 %v314
        %v614 = vunpack.c.h.b16 %v314
        %v615 = vunpack.c.l.b16 %v315
        %v616 = vunpack.c.h.b16 %v315
        %v617 = vunpack.c.l.b16 %v316
        %v618 = vunpack.c.h.b16 %v316
        %v619 = vunpack.c.l.b16 %v317
        %v620 = vunpack.c.h.b16 %v317
        %v621 = vunpack.c.l.b16 %v318
        %v622 = vunpack.c.h.b16 %v318
        %v623 = vunpack.c.l.b16 %v319
        %v624 = vunpack.c.h.b16 %v319
        %v625 = vunpack.c.l.b16 %v320
        %v626 = vunpack.c.h.b16 %v320
        %v627 = vunpack.c.l.b16 %v321
        %v628 = vunpack.c.h.b16 %v321
        %v629 = vunpack.c.l.b16 %v322
        %v630 = vunpack.c.h.b16 %v322
        %v631 = vunpack.c.l.b16 %v323
        %v632 = vunpack.c.h.b16 %v323
        %v633 = vunpack.c.l.b16 %v324
        %v634 = vunpack.c.h.b16 %v324
        %v635 = vunpack.c.l.b16 %v325
        %v636 = vunpack.c.h.b16 %v325
        %v637 = vunpack.c.l.b16 %v326
        %v638 = vunpack.c.h.b16 %v326
        %v639 = vunpack.c.l.b16 %v327
        %v640 = vunpack.c.h.b16 %v327
        %v641 = vunpack.c.l.b16 %v328
        %v642 = vunpack.c.h.b16 %v328
        %v643 = vunpack.c.l.b16 %v329
        %v644 = vunpack.c.h.b16 %v329
        %v645 = vunpack.c.l.b16 %v330
        %v646 = vunpack.c.h.b16 %v330
        %v647 = vunpack.c.l.b16 %v331
        %v648 = vunpack.c.h.b16 %v331
        %v649 = vunpack.c.l.b16 %v332
        %v650 = vunpack.c.h.b16 %v332
        %v651 = vunpack.c.l.b16 %v333
        %v652 = vunpack.c.h.b16 %v333
        %v653 = vunpack.c.l.b16 %v334
        %v654 = vunpack.c.h.b16 %v334
        %v655 = vunpack.c.l.b16 %v335
        %v656 = vunpack.c.h.b16 %v335
        %v657 = vunpack.c.l.b16 %v336
        %v658 = vunpack.c.h.b16 %v336
        %v659 = vunpack.c.l.b16 %v337
        %v660 = vunpack.c.h.b16 %v337
        %v661 = vpack.c.b16 %v475, %v469
        %v662 = vpack.c.b16 %v476, %v470
        %v663 = vpack.c.b16 %v477, %v471
        %v664 = vpack.c.b16 %v478, %v472
        %v665 = vpack.c.b16 %v479, %v473
        %v666 = vpack.c.b16 %v480, %v474
        %v667 = vpack.c.b16 %v487, %v481
        %v668 = vpack.c.b16 %v488, %v482
        %v669 = vpack.c.b16 %v489, %v483
        %v670 = vpack.c.b16 %v490, %v484
        %v671 = vpack.c.b16 %v491, %v485
        %v672 = vpack.c.b16 %v492, %v486
        %v673 = vpack.c.b16 %v499, %v493
        %v674 = vpack.c.b16 %v500, %v494
        %v675 = vpack.c.b16 %v501, %v495
        %v676 = vpack.c.b16 %v502, %v496
        %v677 = vpack.c.b16 %v503, %v497
        %v678 = vpack.c.b16 %v504, %v498
        %v679 = vpack.c.b16 %v511, %v505
        %v680 = vpack.c.b16 %v512, %v506
        %v681 = vpack.c.b16 %v513, %v507
        %v682 = vpack.c.b16 %v514, %v508
        %v683 = vpack.c.b16 %v515, %v509
        %v684 = vpack.c.b16 %v516, %v510
        %v685 = vpack.c.b16 %v523, %v517
        %v686 = vpack.c.b16 %v524, %v518
        %v687 = vpack.c.b16 %v525, %v519
        %v688 = vpack.c.b16 %v526, %v520
        %v689 = vpack.c.b16 %v527, %v521
        %v690 = vpack.c.b16 %v528, %v522
        %v691 = vpack.c.b16 %v535, %v529
        %v692 = vpack.c.b16 %v536, %v530
        %v693 = vpack.c.b16 %v537, %v531
        %v694 = vpack.c.b16 %v538, %v532
        %v695 = vpack.c.b16 %v539, %v533
        %v696 = vpack.c.b16 %v540, %v534
        %v697 = vpack.c.b16 %v547, %v541
        %v698 = vpack.c.b16 %v548, %v542
        %v699 = vpack.c.b16 %v549, %v543
        %v700 = vpack.c.b16 %v550, %v544
        %v701 = vpack.c.b16 %v551, %v545
        %v702 = vpack.c.b16 %v552, %v546
        %v703 = vpack.c.b16 %v559, %v553
        %v704 = vpack.c.b16 %v560, %v554
        %v705 = vpack.c.b16 %v561, %v555
        %v706 = vpack.c.b16 %v562, %v556
        %v707 = vpack.c.b16 %v563, %v557
        %v708 = vpack.c.b16 %v564, %v558
        %v709 = vpack.c.b16 %v571, %v565
        %v710 = vpack.c.b16 %v572, %v566
        %v711 = vpack.c.b16 %v573, %v567
        %v712 = vpack.c.b16 %v574, %v568
        %v713 = vpack.c.b16 %v575, %v569
        %v714 = vpack.c.b16 %v576, %v570
        %v715 = vpack.c.b16 %v583, %v577
        %v716 = vpack.c.b16 %v584, %v578
        %v717 = vpack.c.b16 %v585, %v579
        %v718 = vpack.c.b16 %v586, %v580
        %v719 = vpack.c.b16 %v587, %v581
        %v720 = vpack.c.b16 %v588, %v582
        %v721 = vpack.c.b16 %v595, %v589
        %v722 = vpack.c.b16 %v596, %v590
        %v723 = vpack.c.b16 %v597, %v591
        %v724 = vpack.c.b16 %v598, %v592
        %v725 = vpack.c.b16 %v599, %v593
        %v726 = vpack.c.b16 %v600, %v594
        %v727 = vpack.c.b16 %v607, %v601
        %v728 = vpack.c.b16 %v608, %v602
        %v729 = vpack.c.b16 %v609, %v603
        %v730 = vpack.c.b16 %v610, %v604
        %v731 = vpack.c.b16 %v611, %v605
        %v732 = vpack.c.b16 %v612, %v606
        %v733 = vpack.c.b16 %v619, %v613
        %v734 = vpack.c.b16 %v620, %v614
        %v735 = vpack.c.b16 %v621, %v615
        %v736 = vpack.c.b16 %v622, %v616
        %v737 = vpack.c.b16 %v623, %v617
        %v738 = vpack.c.b16 %v624, %v618
        %v739 = vpack.c.b16 %v631, %v625
        %v740 = vpack.c.b16 %v632, %v626
        %v741 = vpack.c.b16 %v633, %v627
        %v742 = vpack.c.b16 %v634, %v628
        %v743 = vpack.c.b16 %v635, %v629
        %v744 = vpack.c.b16 %v636, %v630
        %v745 = vpack.c.b16 %v643, %v637
        %v746 = vpack.c.b16 %v644, %v638
        %v747 = vpack.c.b16 %v645, %v639
        %v748 = vpack.c.b16 %v646, %v640
        %v749 = vpack.c.b16 %v647, %v641
        %v750 = vpack.c.b16 %v648, %v642
        %v751 = vpack.c.b16 %v655, %v649
        %v752 = vpack.c.b16 %v656, %v650
        %v753 = vpack.c.b16 %v657, %v651
        %v754 = vpack.c.b16 %v658, %v652
        %v755 = vpack.c.b16 %v659, %v653
        %v756 = vpack.c.b16 %v660, %v654
        %853 = vmatprep.subr.bf16.mxu0 %v662
        %854 = vmatpush1.bf16.msra.mxu0 %v661
        %855 = vmatprep.subr.bf16.mxu0 %v668
        %856 = vmatpush1.bf16.msra.mxu0 %v667
        %857 = vmatprep.subr.bf16.mxu0 %v674
        %858 = vmatpush1.bf16.msra.mxu0 %v673
        %859 = vmatprep.subr.bf16.mxu0 %v680
        %860 = vmatpush1.bf16.msra.mxu0 %v679
        %861 = vmatprep.subr.bf16.mxu0 %v686
        %862 = vmatpush1.bf16.msra.mxu0 %v685
        %863 = vmatprep.subr.bf16.mxu0 %v692
        %864 = vmatpush1.bf16.msra.mxu0 %v691
        %865 = vmatprep.subr.bf16.mxu0 %v698
        %866 = vmatpush1.bf16.msra.mxu0 %v697
        %867 = vmatprep.subr.bf16.mxu0 %v704
        %868 = vmatpush1.bf16.msra.mxu0 %v703
        %869 = vmatprep.subr.bf16.mxu0 %v710
        %870 = vmatpush1.bf16.msra.mxu0 %v709
        %871 = vmatprep.subr.bf16.mxu0 %v716
        %872 = vmatpush1.bf16.msra.mxu0 %v715
        %873 = vmatprep.subr.bf16.mxu0 %v722
        %874 = vmatpush1.bf16.msra.mxu0 %v721
        %875 = vmatprep.subr.bf16.mxu0 %v728
        %876 = vmatpush1.bf16.msra.mxu0 %v727
        %877 = vmatprep.subr.bf16.mxu0 %v734
        %878 = vmatpush1.bf16.msra.mxu0 %v733
        %879 = vmatprep.subr.bf16.mxu0 %v740
        %880 = vmatpush1.bf16.msra.mxu0 %v739
        %881 = vmatprep.subr.bf16.mxu0 %v746
        %882 = vmatpush1.bf16.msra.mxu0 %v745
        %883 = vmatprep.subr.bf16.mxu0 %v752
        %884 = vmatpush1.bf16.msra.mxu0 %v751
        %885 = vmatprep.mubr.bf16.mxu0 %v370
        %886 = vmatmul.mubr.bf16.gmra.mrb[0].mxu0 %v363
        %v887 = vpop.f32.mrb[0].mxu0
        %v888 = vadd.f32 %v347, %v887
        %v889 = vpop.f32.mrb[0].mxu0
        %v890 = vadd.f32 %v347, %v889
        %v891 = vpop.f32.mrb[0].mxu0
        %v892 = vpop.f32.mrb[0].mxu0
        %893 = vdwg.mxu0
        %894 = vmatprep.subr.bf16.mxu0 %v664
        %895 = vmatpush1.bf16.msra.mxu0 %v663
        %896 = vmatprep.subr.bf16.mxu0 %v670
        %897 = vmatpush1.bf16.msra.mxu0 %v669
        %898 = vmatprep.subr.bf16.mxu0 %v676
        %899 = vmatpush1.bf16.msra.mxu0 %v675
        %900 = vmatprep.subr.bf16.mxu0 %v682
        %901 = vmatpush1.bf16.msra.mxu0 %v681
        %902 = vmatprep.subr.bf16.mxu0 %v688
        %903 = vmatpush1.bf16.msra.mxu0 %v687
        %904 = vmatprep.subr.bf16.mxu0 %v694
        %905 = vmatpush1.bf16.msra.mxu0 %v693
        %906 = vmatprep.subr.bf16.mxu0 %v700
        %907 = vmatpush1.bf16.msra.mxu0 %v699
        %908 = vmatprep.subr.bf16.mxu0 %v706
        %909 = vmatpush1.bf16.msra.mxu0 %v705
        %910 = vmatprep.subr.bf16.mxu0 %v712
        %911 = vmatpush1.bf16.msra.mxu0 %v711
        %912 = vmatprep.subr.bf16.mxu0 %v718
        %913 = vmatpush1.bf16.msra.mxu0 %v717
        %914 = vmatprep.subr.bf16.mxu0 %v724
        %915 = vmatpush1.bf16.msra.mxu0 %v723
        %916 = vmatprep.subr.bf16.mxu0 %v730
        %917 = vmatpush1.bf16.msra.mxu0 %v729
        %918 = vmatprep.subr.bf16.mxu0 %v736
        %919 = vmatpush1.bf16.msra.mxu0 %v735
        %920 = vmatprep.subr.bf16.mxu0 %v742
        %921 = vmatpush1.bf16.msra.mxu0 %v741
        %922 = vmatprep.subr.bf16.mxu0 %v748
        %923 = vmatpush1.bf16.msra.mxu0 %v747
        %924 = vmatprep.subr.bf16.mxu0 %v754
        %925 = vmatpush1.bf16.msra.mxu0 %v753
        %926 = vmatprep.mubr.bf16.mxu0 %v370
        %927 = vmatmul.mubr.bf16.gmra.mrb[0].mxu0 %v363
        %v928 = vpop.f32.mrb[0].mxu0
        %v929 = vadd.f32 %v347, %v928
        %v930 = vpop.f32.mrb[0].mxu0
        %v931 = vadd.f32 %v347, %v930
        %v932 = vpop.f32.mrb[0].mxu0
        %v933 = vpop.f32.mrb[0].mxu0
        %934 = vdwg.mxu0
        %935 = vmatprep.subr.bf16.mxu0 %v666
        %936 = vmatpush1.bf16.msra.mxu0 %v665
        %937 = vmatprep.subr.bf16.mxu0 %v672
        %938 = vmatpush1.bf16.msra.mxu0 %v671
        %939 = vmatprep.subr.bf16.mxu0 %v678
        %940 = vmatpush1.bf16.msra.mxu0 %v677
        %941 = vmatprep.subr.bf16.mxu0 %v684
        %942 = vmatpush1.bf16.msra.mxu0 %v683
        %943 = vmatprep.subr.bf16.mxu0 %v690
        %944 = vmatpush1.bf16.msra.mxu0 %v689
        %945 = vmatprep.subr.bf16.mxu0 %v696
        %946 = vmatpush1.bf16.msra.mxu0 %v695
        %947 = vmatprep.subr.bf16.mxu0 %v702
        %948 = vmatpush1.bf16.msra.mxu0 %v701
        %949 = vmatprep.subr.bf16.mxu0 %v708
        %950 = vmatpush1.bf16.msra.mxu0 %v707
        %951 = vmatprep.subr.bf16.mxu0 %v714
        %952 = vmatpush1.bf16.msra.mxu0 %v713
        %953 = vmatprep.subr.bf16.mxu0 %v720
        %954 = vmatpush1.bf16.msra.mxu0 %v719
        %955 = vmatprep.subr.bf16.mxu0 %v726
        %956 = vmatpush1.bf16.msra.mxu0 %v725
        %957 = vmatprep.subr.bf16.mxu0 %v732
        %958 = vmatpush1.bf16.msra.mxu0 %v731
        %959 = vmatprep.subr.bf16.mxu0 %v738
        %960 = vmatpush1.bf16.msra.mxu0 %v737
        %961 = vmatprep.subr.bf16.mxu0 %v744
        %962 = vmatpush1.bf16.msra.mxu0 %v743
        %963 = vmatprep.subr.bf16.mxu0 %v750
        %964 = vmatpush1.bf16.msra.mxu0 %v749
        %965 = vmatprep.subr.bf16.mxu0 %v756
        %966 = vmatpush1.bf16.msra.mxu0 %v755
        %967 = vmatprep.mubr.bf16.mxu0 %v370
        %968 = vmatmul.mubr.bf16.gmra.mrb[0].mxu0 %v363
        %v969 = vpop.f32.mrb[0].mxu0
        %v970 = vadd.f32 %v347, %v969
        %v971 = vpop.f32.mrb[0].mxu0
        %v972 = vadd.f32 %v347, %v971
        %v973 = vpop.f32.mrb[0].mxu0
        %v974 = vpop.f32.mrb[0].mxu0
        %975 = vdwg.mxu0
        %v982 = vcombine.low %v888, %v890
        %v983 = vcombine.low %v929, %v931
        %v984 = vcombine.low %v970, %v972
        %v986 = vunpack.c.l.s4 1966171168
        %v987 = vunpack.c.0.s8 %v986
        %v988 = vlaneseq
        %v989 = vshrl.u32 %v988, 7
        %v990 = vsub.s32 %v987, %v989
        %v991 = vrot.slane %v982, %v990
        %v993 = vunpack.c.l.s4 1966171168
        %v994 = vunpack.c.0.s8 %v993
        %v995 = vlaneseq
        %v996 = vshrl.u32 %v995, 7
        %v997 = vsub.s32 %v994, %v996
        %v998 = vrot.slane %v983, %v997
        %v1000 = vunpack.c.l.s4 1966171168
        %v1001 = vunpack.c.0.s8 %v1000
        %v1002 = vlaneseq
        %v1003 = vshrl.u32 %v1002, 7
        %v1004 = vsub.s32 %v1001, %v1003
        %v1005 = vrot.slane %v984, %v1004
        %v1006 = vcombine.low %v991, %v998
        %v1008 = vunpack.c.l.s4 1966171168
        %v1009 = vunpack.c.0.s8 %v1008
        %v1010 = vlaneseq
        %v1011 = vshrl.u32 %v1010, 7
        %v1012 = vsub.s32 %v1009, %v1011
        %v1013 = vrot.slane %v1006, %v1012
        %v1015 = vunpack.c.l.s4 1966171168
        %v1016 = vunpack.c.0.s8 %v1015
        %v1017 = vlaneseq
        %v1018 = vshrl.u32 %v1017, 7
        %v1019 = vsub.s32 %v1016, %v1018
        %v1020 = vrot.slane %v1005, %v1019
        %v1021 = vcombine.low %v1013, %v1020
        %v1023 = vlaneseq
        %vm1024 = vcmp.ge.s32.totalorder %v1023, 0
        %vm1025 = vcmp.lt.s32.totalorder %v1023, 768
        %vm1026 = vmand %vm1024, %vm1025
        %1027 = vst.msk [vmem:[%s240] sm:$0x3f] %vm1026, %v1021
        %p1028 = scmp.lt.s32.totalorder %s16, 2
        %s1029 = scalar_select %p1028, %s16, 2
        %s1030 = smul.addr %s1029, 6
        %s1031 = scalar_lea.vmem %s4, %s1030
        // Predicated region
        $region41: #{net_forward.31} parent=35 // pred_check
          %p1032 = pneg %p133
        $region42: #{net_forward.31} parent=35 // pred_check_branch
          %1034 = sbr.rel (%p1032) target = $region44
        $region43: #{net_forward.31} parent=35 // pred_region
          _
        $region44: #{net_forward.31} parent=35 // pred_fallthru
          _
      $region36: #{net_forward.31} parent=5 // pred_fallthru
        _
      %p1035 = scmp.le.s32.totalorder 2, %s11
      // Predicated region
      $region45: #{net_forward.31} parent=5 // pred_check
        %p1036 = pneg %p1035
      $region46: #{net_forward.31} parent=5 // pred_check_branch
        %1038 = sbr.rel (%p1036) target = $region48
      $region47: #{net_forward.31} parent=5 // pred_region
        %s1039 = ssub.s32 %s11, 2
        // Predicated region
        $region49: #{net_forward.31} parent=47 // pred_check
          %p1040 = pneg %p139
        $region50: #{net_forward.31} parent=47 // pred_check_branch
          %1042 = sbr.rel (%p1040) target = $region52
        $region51: #{net_forward.31} parent=47 // pred_region
          %p1043 = scmp.lt.s32.totalorder %s17, 2
          %s1044 = scalar_select %p1043, %s17, 2
          %s1045 = smul.addr %s1044, 6
          %s1046 = scalar_lea.vmem %s4, %s1045
        $region52: #{net_forward.31} parent=47 // pred_fallthru
          _
      $region48: #{net_forward.31} parent=5 // pred_fallthru
        _
    $region6: #{net_forward.31} parent=1 // loop_footer
      %s15 = sadd.s32 1, %s11
    $region7: #{net_forward.31} parent=1 // loop_footer_branch
      %10 = sbr.rel target = $region3
    $region8: #{net_forward.31} parent=1 // loop_exit
      _
    %1047 = vsyncpa [#allocation3], 1
    %s1048 = scalar_lea.sflag [#allocation3], 1
    %1049 = vsyncpa %s1048, 1

</llo_original>
